<compile_context>
chip_gen: v7x
topology: tpu7x:2x2x1
jax: 0.10.0
libtpu: 0.0.40
codegen_flags: <defaults>
</compile_context>

<pallas_src>
import functools
import math

import jax
import jax.numpy as jnp
from jax import lax
from jax.experimental import pallas as pl
from jax.experimental.pallas import tpu as pltpu


# ----------------------------------------------------------------------------
# Fused SRCNN kernel (one grid step == one image, full network)
# ----------------------------------------------------------------------------
def _srcnn_kernel(col1_ref, mask_ref, w1_ref, b1_ref, w2_ref, b2_ref,
                  w3_ref, b3_ref, w4_ref, b4_ref, o_ref, act_ref, col_ref,
                  *, wp):
    # col1_ref: (1, ROWS, 25)  bf16  prebuilt im2col of the 1-channel input
    # mask_ref: (ROWS, 1)      f32   1 on interior canvas rows, 0 on halo/pad
    # wK_ref  : (kh*kw*Cin, Cout) bf16, bK_ref: (1, Cout) f32
    # o_ref   : (1, r*r, ROWS) f32   transposed, lane-dense conv4 output
    # act_ref : (2*SLACK+ROWS, 64) f32  zero-haloed flattened activation canvas
    # col_ref : (ROWS, 576) bf16        shared im2col scratch for the 3x3 convs
    f32 = jnp.float32
    rows = col_ref.shape[0]
    slack = (act_ref.shape[0] - rows) // 2
    cols = act_ref.shape[1]

    mask = mask_ref[...]                                        # (rows, 1)

    # Zero the halo slack rows of the activation canvas (aligned stores).
    act_ref[pl.ds(0, slack), :] = jnp.zeros((slack, cols), f32)
    act_ref[pl.ds(slack + rows, slack), :] = jnp.zeros((slack, cols), f32)

    # ---- conv1: 5x5, Cin=1 -> one (ROWS,25)x(25,64) MXU matmul -------------
    a = jnp.dot(col1_ref[0], w1_ref[...], preferred_element_type=f32)
    a = jnp.maximum(a + b1_ref[...], 0.0) * mask                # (rows, 64)

    taps = tuple((dy, dx) for dy in range(3) for dx in range(3))

    def conv3x3(a_prev, w_ref, b_ref, relu):
        cin = a_prev.shape[1]
        # Stage the activation into the zero-haloed canvas, then gather the
        # nine shifted taps into the im2col scratch (bf16 for the MXU).
        act_ref[pl.ds(slack, rows), :cin] = a_prev
        for t, (dy, dx) in enumerate(taps):
            off = (dy - 1) * wp + (dx - 1)
            patch = act_ref[pl.ds(slack + off, rows), :cin]
            col_ref[:, t * cin:(t + 1) * cin] = patch.astype(jnp.bfloat16)
        acc = jnp.dot(col_ref[:, :9 * cin], w_ref[...],
                      preferred_element_type=f32)
        acc = acc + b_ref[...]
        if relu:
            acc = jnp.maximum(acc, 0.0) * mask
        return acc

    a = conv3x3(a, w2_ref, b2_ref, relu=True)                   # (rows, 64)
    a = conv3x3(a, w3_ref, b3_ref, relu=True)                   # (rows, 32)
    y = conv3x3(a, w4_ref, b4_ref, relu=False)                  # (rows, 128)

    # Lane-dense store: (rows,128) -> (128,rows), keep the r*r real channels.
    y_t = jnp.transpose(y)
    o_ref[0] = y_t[:o_ref.shape[1], :]


# ----------------------------------------------------------------------------
# Wrapper
# ----------------------------------------------------------------------------
def _round_up(v, m):
    return -(-v // m) * m


def srcnn_forward(params, x_nchw, upscale_factor):
    N, C, H, W = x_nchw.shape
    assert C == 1, "SRCNN takes single-channel input"
    r = upscale_factor
    r2 = r * r
    assert r2 <= 128
    HP, WP = H + 2, W + 2                  # +1 halo ring for the 3x3 convs
    ROWS = _round_up(HP * WP, 128)         # canvas rows (aligned transpose)
    SLACK = _round_up(WP + 1, 8)           # zero rows above/below the canvas
    C_ACT = 64                             # widest intermediate channel count

    # TODO(synk): for large images (canvas im2col beyond a few MiB) switch to
    # a halo'd row-band grid axis instead of one whole image per grid step.
    vmem_est = (ROWS * 9 * C_ACT * 2 + (2 * SLACK + ROWS) * C_ACT * 4
                + 2 * ROWS * 25 * 2 + 2 * r2 * ROWS * 4)
    assert vmem_est < 8 * 1024 * 1024, "image too large for the fused kernel"

    # ---- conv1 im2col in canvas layout (pure layout glue on the input) -----
    x = x_nchw[:, 0].astype(jnp.float32)                        # (N, H, W)
    xp = jnp.pad(x, ((0, 0), (2, 2), (2, 2)))                   # 5x5 'same'
    pats = jnp.stack([xp[:, dy:dy + H, dx:dx + W]
                      for dy in range(5) for dx in range(5)], axis=-1)
    canvas = jnp.zeros((N, HP, WP, 25), jnp.float32)
    canvas = canvas.at[:, 1:H + 1, 1:W + 1, :].set(pats)
    col1 = jnp.pad(canvas.reshape(N, HP * WP, 25),
                   ((0, 0), (0, ROWS - HP * WP), (0, 0))).astype(jnp.bfloat16)

    # Interior-row mask (zeros halo ring + alignment pad rows after ReLU).
    idx = jnp.arange(ROWS)
    hh, ww = idx // WP, idx % WP
    interior = (idx < HP * WP) & (hh >= 1) & (hh <= H) & (ww >= 1) & (ww <= W)
    mask = interior.astype(jnp.float32).reshape(ROWS, 1)

    # ---- weights in MXU-friendly (kh*kw*Cin, Cout) bf16 layout -------------
    def flat_w(w):
        kk, cin, cout = w.shape
        return w.reshape(kk * cin, cout).astype(jnp.bfloat16)

    w1, b1 = params["conv1"]
    w2, b2 = params["conv2"]
    w3, b3 = params["conv3"]
    w4, b4 = params["conv4"]
    w1f, w2f, w3f = flat_w(w1), flat_w(w2), flat_w(w3)
    w4f = jnp.pad(flat_w(w4), ((0, 0), (0, 128 - r2)))          # Cout -> 128
    b4p = jnp.pad(b4.astype(jnp.float32), ((0, 0), (0, 128 - r2)))
    b1f, b2f, b3f = (b1.astype(jnp.float32), b2.astype(jnp.float32),
                     b3.astype(jnp.float32))

    out = pl.pallas_call(
        functools.partial(_srcnn_kernel, wp=WP),
        out_shape=jax.ShapeDtypeStruct((N, r2, ROWS), jnp.float32),
        grid=(N,),
        in_specs=[
            pl.BlockSpec((1, ROWS, 25), lambda n: (n, 0, 0)),
            pl.BlockSpec(mask.shape, lambda n: (0, 0)),
            pl.BlockSpec(w1f.shape, lambda n: (0, 0)),
            pl.BlockSpec(b1f.shape, lambda n: (0, 0)),
            pl.BlockSpec(w2f.shape, lambda n: (0, 0)),
            pl.BlockSpec(b2f.shape, lambda n: (0, 0)),
            pl.BlockSpec(w3f.shape, lambda n: (0, 0)),
            pl.BlockSpec(b3f.shape, lambda n: (0, 0)),
            pl.BlockSpec(w4f.shape, lambda n: (0, 0)),
            pl.BlockSpec(b4p.shape, lambda n: (0, 0)),
        ],
        out_specs=pl.BlockSpec((1, r2, ROWS), lambda n: (n, 0, 0)),
        scratch_shapes=[
            pltpu.VMEM((2 * SLACK + ROWS, C_ACT), jnp.float32),  # act canvas
            pltpu.VMEM((ROWS, 9 * C_ACT), jnp.bfloat16),         # im2col
        ],
        compiler_params=pltpu.CompilerParams(
            dimension_semantics=("parallel",)),
    )(col1, mask, w1f, b1f, w2f, b2f, w3f, b3f, w4f, b4p)

    # Drop canvas halo/pad, then PixelShuffle (pure layout glue).
    y = out[:, :, :HP * WP].reshape(N, r2, HP, WP)[:, :, 1:H + 1, 1:W + 1]
    y = y.reshape(N, r, r, H, W).transpose(0, 3, 1, 4, 2)       # (N,H,r,W,r)
    return y.reshape(N, 1, H * r, W * r)


def pixel_shuffle_nhwc(x, r):
    # nn.PixelShuffle(r) in NHWC: (N,H,W,c*r*r) -> (N,H*r,W*r,c).
    N, H, W, Cf = x.shape
    c = Cf // (r * r)
    x = x.reshape(N, H, W, c, r, r)
    x = jnp.transpose(x, (0, 1, 4, 2, 5, 3))
    return x.reshape(N, H * r, W * r, c)


# ----------------------------------------------------------------------------
# Parameters (orthogonal weight init like the PyTorch module; default bias)
# ----------------------------------------------------------------------------
def _orthogonal_conv_init(key, cin, cout, ksize, gain):
    wkey, bkey = jax.random.split(key)
    rows, cols = cout, cin * ksize * ksize
    n, m = max(rows, cols), min(rows, cols)
    a = jax.random.normal(wkey, (n, m), jnp.float32)
    q, rmat = jnp.linalg.qr(a)
    q = q * jnp.sign(jnp.diagonal(rmat))
    if rows < cols:
        q = q.T
    w = (gain * q).reshape(cout, cin, ksize, ksize)
    w = jnp.transpose(w, (2, 3, 1, 0)).reshape(ksize * ksize, cin, cout)
    bound = 1.0 / math.sqrt(cin * ksize * ksize)
    bias = jax.random.uniform(bkey, (1, cout), jnp.float32, -bound, bound)
    return w.astype(jnp.float32), bias


def init_params(key, upscale_factor):
    k1, k2, k3, k4 = jax.random.split(key, 4)
    gain = math.sqrt(2.0)  # init.calculate_gain('relu')
    return {
        "conv1": _orthogonal_conv_init(k1, 1, 64, 5, gain),
        "conv2": _orthogonal_conv_init(k2, 64, 64, 3, gain),
        "conv3": _orthogonal_conv_init(k3, 64, 32, 3, gain),
        "conv4": _orthogonal_conv_init(k4, 32, upscale_factor ** 2, 3, 1.0),
    }


# ----------------------------------------------------------------------------
# Pure-JAX reference (same bf16 rounding points) for a correctness check.
# ----------------------------------------------------------------------------
def srcnn_reference(params, x_nchw, upscale_factor):
    def conv_ref(x, w, b, ksize, relu, out_dtype):
        p = (ksize - 1) // 2
        xb = x.astype(jnp.bfloat16).astype(jnp.float32)
        wb = w.astype(jnp.bfloat16).astype(jnp.float32)
        w4 = wb.reshape(ksize, ksize, w.shape[1], w.shape[2])
        y = lax.conv_general_dilated(
            xb, w4, window_strides=(1, 1), padding=[(p, p), (p, p)],
            dimension_numbers=("NHWC", "HWIO", "NHWC"),
            precision=lax.Precision.HIGHEST)
        y = y + b[0]
        if relu:
            y = jnp.maximum(y, 0.0)
        return y.astype(out_dtype)

    x = jnp.transpose(x_nchw, (0, 2, 3, 1)).astype(jnp.float32)
    x = conv_ref(x, *params["conv1"], 5, True, jnp.bfloat16)
    x = conv_ref(x, *params["conv2"], 3, True, jnp.bfloat16)
    x = conv_ref(x, *params["conv3"], 3, True, jnp.bfloat16)
    x = conv_ref(x, *params["conv4"], 3, False, jnp.float32)
    x = pixel_shuffle_nhwc(x, upscale_factor)
    return jnp.transpose(x, (0, 3, 1, 2))


if __name__ == "__main__":
    key = jax.random.PRNGKey(0)
    pkey, xkey = jax.random.split(key)

    upscale = 2
    N, C, H, W = 2, 1, 16, 16            # SRCNN input: single-channel images

    params = init_params(pkey, upscale)
    img = jax.random.uniform(xkey, (N, C, H, W), jnp.float32)

    fwd = jax.jit(functools.partial(srcnn_forward, upscale_factor=upscale))
    out = jax.block_until_ready(fwd(params, img))

    assert out.shape == (N, 1, H * upscale, W * upscale), out.shape
    assert bool(jnp.all(jnp.isfinite(out)))

    ref = srcnn_reference(params, img, upscale)
    assert bool(jnp.allclose(out, ref, rtol=2e-2, atol=2e-2)), \
        float(jnp.max(jnp.abs(out - ref)))

    print("KERNEL_OK")
</pallas_src>

<mosaic_0001>
module attributes {stable_mosaic.version = 11 : i64} {
  func.func @_srcnn_kernel(%arg0: i32, %arg1: memref<1x384x25xbf16, #tpu.memory_space<vmem>>, %arg2: memref<384x1xf32, #tpu.memory_space<vmem>>, %arg3: memref<25x64xbf16, #tpu.memory_space<vmem>>, %arg4: memref<1x64xf32, #tpu.memory_space<vmem>>, %arg5: memref<576x64xbf16, #tpu.memory_space<vmem>>, %arg6: memref<1x64xf32, #tpu.memory_space<vmem>>, %arg7: memref<576x32xbf16, #tpu.memory_space<vmem>>, %arg8: memref<1x32xf32, #tpu.memory_space<vmem>>, %arg9: memref<288x128xbf16, #tpu.memory_space<vmem>>, %arg10: memref<1x128xf32, #tpu.memory_space<vmem>>, %arg11: memref<1x4x384xf32, #tpu.memory_space<vmem>>, %arg12: memref<432x64xf32, #tpu.memory_space<vmem>>, %arg13: memref<384x576xbf16, #tpu.memory_space<vmem>>) attributes {dimension_semantics = [#tpu.dimension_semantics<parallel>], iteration_bounds = array<i64: 2>, scalar_prefetch = 0 : i64, scratch_operands = 2 : i64, tpu.core_type = #tpu.core_type<tc>, window_params = [{transform_indices = @transform_0, window_bounds = array<i64: 1, 384, 25>}, {pipeline_mode = #tpu.pipeline_mode<synchronous>, transform_indices = @transform_1, window_bounds = array<i64: 384, 1>}, {pipeline_mode = #tpu.pipeline_mode<synchronous>, transform_indices = @transform_2, window_bounds = array<i64: 25, 64>}, {pipeline_mode = #tpu.pipeline_mode<synchronous>, transform_indices = @transform_3, window_bounds = array<i64: 1, 64>}, {pipeline_mode = #tpu.pipeline_mode<synchronous>, transform_indices = @transform_4, window_bounds = array<i64: 576, 64>}, {pipeline_mode = #tpu.pipeline_mode<synchronous>, transform_indices = @transform_5, window_bounds = array<i64: 1, 64>}, {pipeline_mode = #tpu.pipeline_mode<synchronous>, transform_indices = @transform_6, window_bounds = array<i64: 576, 32>}, {pipeline_mode = #tpu.pipeline_mode<synchronous>, transform_indices = @transform_7, window_bounds = array<i64: 1, 32>}, {pipeline_mode = #tpu.pipeline_mode<synchronous>, transform_indices = @transform_8, window_bounds = array<i64: 288, 128>}, {pipeline_mode = #tpu.pipeline_mode<synchronous>, transform_indices = @transform_9, window_bounds = array<i64: 1, 128>}, {transform_indices = @transform_10, window_bounds = array<i64: 1, 4, 384>}]} {
    %c0 = arith.constant 0 : index
    %c0_0 = arith.constant 0 : index
    %0 = vector.load %arg2[%c0, %c0_0] : memref<384x1xf32, #tpu.memory_space<vmem>>, vector<384x1xf32>
    %cst = arith.constant 0.000000e+00 : f32
    %1 = vector.broadcast %cst : f32 to vector<24x64xf32>
    %c0_1 = arith.constant 0 : index
    %c0_2 = arith.constant 0 : index
    %2 = vector.load %arg12[%c0_1, %c0_2] : memref<432x64xf32, #tpu.memory_space<vmem>>, vector<24x64xf32>
    tpu.vector_store %arg12[%c0_1, %c0_2], %1 {strides = array<i32>} : memref<432x64xf32, #tpu.memory_space<vmem>>, vector<24x64xf32>,
    %cst_3 = arith.constant 0.000000e+00 : f32
    %3 = vector.broadcast %cst_3 : f32 to vector<24x64xf32>
    %c408 = arith.constant 408 : index
    %c0_4 = arith.constant 0 : index
    %4 = vector.load %arg12[%c408, %c0_4] : memref<432x64xf32, #tpu.memory_space<vmem>>, vector<24x64xf32>
    tpu.vector_store %arg12[%c408, %c0_4], %3 {strides = array<i32>} : memref<432x64xf32, #tpu.memory_space<vmem>>, vector<24x64xf32>,
    %c0_5 = arith.constant 0 : index
    %c0_6 = arith.constant 0 : index
    %c0_7 = arith.constant 0 : index
    %5 = vector.load %arg1[%c0_5, %c0_6, %c0_7] : memref<1x384x25xbf16, #tpu.memory_space<vmem>>, vector<1x384x25xbf16>
    %6 = vector.shape_cast %5 : vector<1x384x25xbf16> to vector<384x25xbf16>
    %c0_8 = arith.constant 0 : index
    %c0_9 = arith.constant 0 : index
    %7 = vector.load %arg3[%c0_8, %c0_9] : memref<25x64xbf16, #tpu.memory_space<vmem>>, vector<25x64xbf16>
    %cst_10 = arith.constant dense<0.000000e+00> : vector<384x64xf32>
    %8 = tpu.matmul %6, %7, %cst_10 {dimension_numbers = #tpu.dot_dimension_numbers<[1], [0], [0], [1], [0, 0, 1, 1], [], []>} : vector<384x25xbf16>, vector<25x64xbf16>, vector<384x64xf32> -> vector<384x64xf32>
    %c0_11 = arith.constant 0 : index
    %c0_12 = arith.constant 0 : index
    %9 = vector.load %arg4[%c0_11, %c0_12] : memref<1x64xf32, #tpu.memory_space<vmem>>, vector<1x64xf32>
    %10 = vector.broadcast %9 : vector<1x64xf32> to vector<384x64xf32>
    %11 = arith.addf %8, %10 : vector<384x64xf32>
    %cst_13 = arith.constant 0.000000e+00 : f32
    %12 = vector.broadcast %cst_13 : f32 to vector<384x64xf32>
    %13 = arith.maximumf %11, %12 : vector<384x64xf32>
    %14 = vector.broadcast %0 : vector<384x1xf32> to vector<384x64xf32>
    %15 = arith.mulf %13, %14 : vector<384x64xf32>
    %c24 = arith.constant 24 : index
    %c0_14 = arith.constant 0 : index
    %16 = vector.load %arg12[%c24, %c0_14] : memref<432x64xf32, #tpu.memory_space<vmem>>, vector<384x64xf32>
    tpu.vector_store %arg12[%c24, %c0_14], %15 {strides = array<i32>} : memref<432x64xf32, #tpu.memory_space<vmem>>, vector<384x64xf32>,
    %c5 = arith.constant 5 : index
    %c0_15 = arith.constant 0 : index
    %17 = vector.load %arg12[%c5, %c0_15] : memref<432x64xf32, #tpu.memory_space<vmem>>, vector<384x64xf32>
    %18 = arith.truncf %17 : vector<384x64xf32> to vector<384x64xbf16>
    %c0_16 = arith.constant 0 : index
    %c0_17 = arith.constant 0 : index
    %19 = vector.load %arg13[%c0_16, %c0_17] : memref<384x576xbf16, #tpu.memory_space<vmem>>, vector<384x64xbf16>
    tpu.vector_store %arg13[%c0_16, %c0_17], %18 {strides = array<i32>} : memref<384x576xbf16, #tpu.memory_space<vmem>>, vector<384x64xbf16>,
    %c6 = arith.constant 6 : index
    %c0_18 = arith.constant 0 : index
    %20 = vector.load %arg12[%c6, %c0_18] : memref<432x64xf32, #tpu.memory_space<vmem>>, vector<384x64xf32>
    %21 = arith.truncf %20 : vector<384x64xf32> to vector<384x64xbf16>
    %c0_19 = arith.constant 0 : index
    %c64 = arith.constant 64 : index
    %22 = vector.load %arg13[%c0_19, %c64] : memref<384x576xbf16, #tpu.memory_space<vmem>>, vector<384x64xbf16>
    tpu.vector_store %arg13[%c0_19, %c64], %21 {strides = array<i32>} : memref<384x576xbf16, #tpu.memory_space<vmem>>, vector<384x64xbf16>,
    %c7 = arith.constant 7 : index
    %c0_20 = arith.constant 0 : index
    %23 = vector.load %arg12[%c7, %c0_20] : memref<432x64xf32, #tpu.memory_space<vmem>>, vector<384x64xf32>
    %24 = arith.truncf %23 : vector<384x64xf32> to vector<384x64xbf16>
    %c0_21 = arith.constant 0 : index
    %c128 = arith.constant 128 : index
    %25 = vector.load %arg13[%c0_21, %c128] : memref<384x576xbf16, #tpu.memory_space<vmem>>, vector<384x64xbf16>
    tpu.vector_store %arg13[%c0_21, %c128], %24 {strides = array<i32>} : memref<384x576xbf16, #tpu.memory_space<vmem>>, vector<384x64xbf16>,
    %c23 = arith.constant 23 : index
    %c0_22 = arith.constant 0 : index
    %26 = vector.load %arg12[%c23, %c0_22] : memref<432x64xf32, #tpu.memory_space<vmem>>, vector<384x64xf32>
    %27 = arith.truncf %26 : vector<384x64xf32> to vector<384x64xbf16>
    %c0_23 = arith.constant 0 : index
    %c192 = arith.constant 192 : index
    %28 = vector.load %arg13[%c0_23, %c192] : memref<384x576xbf16, #tpu.memory_space<vmem>>, vector<384x64xbf16>
    tpu.vector_store %arg13[%c0_23, %c192], %27 {strides = array<i32>} : memref<384x576xbf16, #tpu.memory_space<vmem>>, vector<384x64xbf16>,
    %c24_24 = arith.constant 24 : index
    %c0_25 = arith.constant 0 : index
    %29 = vector.load %arg12[%c24_24, %c0_25] : memref<432x64xf32, #tpu.memory_space<vmem>>, vector<384x64xf32>
    %30 = arith.truncf %29 : vector<384x64xf32> to vector<384x64xbf16>
    %c0_26 = arith.constant 0 : index
    %c256 = arith.constant 256 : index
    %31 = vector.load %arg13[%c0_26, %c256] : memref<384x576xbf16, #tpu.memory_space<vmem>>, vector<384x64xbf16>
    tpu.vector_store %arg13[%c0_26, %c256], %30 {strides = array<i32>} : memref<384x576xbf16, #tpu.memory_space<vmem>>, vector<384x64xbf16>,
    %c25 = arith.constant 25 : index
    %c0_27 = arith.constant 0 : index
    %32 = vector.load %arg12[%c25, %c0_27] : memref<432x64xf32, #tpu.memory_space<vmem>>, vector<384x64xf32>
    %33 = arith.truncf %32 : vector<384x64xf32> to vector<384x64xbf16>
    %c0_28 = arith.constant 0 : index
    %c320 = arith.constant 320 : index
    %34 = vector.load %arg13[%c0_28, %c320] : memref<384x576xbf16, #tpu.memory_space<vmem>>, vector<384x64xbf16>
    tpu.vector_store %arg13[%c0_28, %c320], %33 {strides = array<i32>} : memref<384x576xbf16, #tpu.memory_space<vmem>>, vector<384x64xbf16>,
    %c41 = arith.constant 41 : index
    %c0_29 = arith.constant 0 : index
    %35 = vector.load %arg12[%c41, %c0_29] : memref<432x64xf32, #tpu.memory_space<vmem>>, vector<384x64xf32>
    %36 = arith.truncf %35 : vector<384x64xf32> to vector<384x64xbf16>
    %c0_30 = arith.constant 0 : index
    %c384 = arith.constant 384 : index
    %37 = vector.load %arg13[%c0_30, %c384] : memref<384x576xbf16, #tpu.memory_space<vmem>>, vector<384x64xbf16>
    tpu.vector_store %arg13[%c0_30, %c384], %36 {strides = array<i32>} : memref<384x576xbf16, #tpu.memory_space<vmem>>, vector<384x64xbf16>,
    %c42 = arith.constant 42 : index
    %c0_31 = arith.constant 0 : index
    %38 = vector.load %arg12[%c42, %c0_31] : memref<432x64xf32, #tpu.memory_space<vmem>>, vector<384x64xf32>
    %39 = arith.truncf %38 : vector<384x64xf32> to vector<384x64xbf16>
    %c0_32 = arith.constant 0 : index
    %c448 = arith.constant 448 : index
    %40 = vector.load %arg13[%c0_32, %c448] : memref<384x576xbf16, #tpu.memory_space<vmem>>, vector<384x64xbf16>
    tpu.vector_store %arg13[%c0_32, %c448], %39 {strides = array<i32>} : memref<384x576xbf16, #tpu.memory_space<vmem>>, vector<384x64xbf16>,
    %c43 = arith.constant 43 : index
    %c0_33 = arith.constant 0 : index
    %41 = vector.load %arg12[%c43, %c0_33] : memref<432x64xf32, #tpu.memory_space<vmem>>, vector<384x64xf32>
    %42 = arith.truncf %41 : vector<384x64xf32> to vector<384x64xbf16>
    %c0_34 = arith.constant 0 : index
    %c512 = arith.constant 512 : index
    %43 = vector.load %arg13[%c0_34, %c512] : memref<384x576xbf16, #tpu.memory_space<vmem>>, vector<384x64xbf16>
    tpu.vector_store %arg13[%c0_34, %c512], %42 {strides = array<i32>} : memref<384x576xbf16, #tpu.memory_space<vmem>>, vector<384x64xbf16>,
    %c0_35 = arith.constant 0 : index
    %c0_36 = arith.constant 0 : index
    %44 = vector.load %arg13[%c0_35, %c0_36] : memref<384x576xbf16, #tpu.memory_space<vmem>>, vector<384x576xbf16>
    %c0_37 = arith.constant 0 : index
    %c0_38 = arith.constant 0 : index
    %45 = vector.load %arg5[%c0_37, %c0_38] : memref<576x64xbf16, #tpu.memory_space<vmem>>, vector<576x64xbf16>
    %cst_39 = arith.constant dense<0.000000e+00> : vector<384x64xf32>
    %46 = tpu.matmul %44, %45, %cst_39 {dimension_numbers = #tpu.dot_dimension_numbers<[1], [0], [0], [1], [0, 0, 1, 1], [], []>} : vector<384x576xbf16>, vector<576x64xbf16>, vector<384x64xf32> -> vector<384x64xf32>
    %c0_40 = arith.constant 0 : index
    %c0_41 = arith.constant 0 : index
    %47 = vector.load %arg6[%c0_40, %c0_41] : memref<1x64xf32, #tpu.memory_space<vmem>>, vector<1x64xf32>
    %48 = vector.broadcast %47 : vector<1x64xf32> to vector<384x64xf32>
    %49 = arith.addf %46, %48 : vector<384x64xf32>
    %cst_42 = arith.constant 0.000000e+00 : f32
    %50 = vector.broadcast %cst_42 : f32 to vector<384x64xf32>
    %51 = arith.maximumf %49, %50 : vector<384x64xf32>
    %52 = vector.broadcast %0 : vector<384x1xf32> to vector<384x64xf32>
    %53 = arith.mulf %51, %52 : vector<384x64xf32>
    %c24_43 = arith.constant 24 : index
    %c0_44 = arith.constant 0 : index
    %54 = vector.load %arg12[%c24_43, %c0_44] : memref<432x64xf32, #tpu.memory_space<vmem>>, vector<384x64xf32>
    tpu.vector_store %arg12[%c24_43, %c0_44], %53 {strides = array<i32>} : memref<432x64xf32, #tpu.memory_space<vmem>>, vector<384x64xf32>,
    %c5_45 = arith.constant 5 : index
    %c0_46 = arith.constant 0 : index
    %55 = vector.load %arg12[%c5_45, %c0_46] : memref<432x64xf32, #tpu.memory_space<vmem>>, vector<384x64xf32>
    %56 = arith.truncf %55 : vector<384x64xf32> to vector<384x64xbf16>
    %c0_47 = arith.constant 0 : index
    %c0_48 = arith.constant 0 : index
    %57 = vector.load %arg13[%c0_47, %c0_48] : memref<384x576xbf16, #tpu.memory_space<vmem>>, vector<384x64xbf16>
    tpu.vector_store %arg13[%c0_47, %c0_48], %56 {strides = array<i32>} : memref<384x576xbf16, #tpu.memory_space<vmem>>, vector<384x64xbf16>,
    %c6_49 = arith.constant 6 : index
    %c0_50 = arith.constant 0 : index
    %58 = vector.load %arg12[%c6_49, %c0_50] : memref<432x64xf32, #tpu.memory_space<vmem>>, vector<384x64xf32>
    %59 = arith.truncf %58 : vector<384x64xf32> to vector<384x64xbf16>
    %c0_51 = arith.constant 0 : index
    %c64_52 = arith.constant 64 : index
    %60 = vector.load %arg13[%c0_51, %c64_52] : memref<384x576xbf16, #tpu.memory_space<vmem>>, vector<384x64xbf16>
    tpu.vector_store %arg13[%c0_51, %c64_52], %59 {strides = array<i32>} : memref<384x576xbf16, #tpu.memory_space<vmem>>, vector<384x64xbf16>,
    %c7_53 = arith.constant 7 : index
    %c0_54 = arith.constant 0 : index
    %61 = vector.load %arg12[%c7_53, %c0_54] : memref<432x64xf32, #tpu.memory_space<vmem>>, vector<384x64xf32>
    %62 = arith.truncf %61 : vector<384x64xf32> to vector<384x64xbf16>
    %c0_55 = arith.constant 0 : index
    %c128_56 = arith.constant 128 : index
    %63 = vector.load %arg13[%c0_55, %c128_56] : memref<384x576xbf16, #tpu.memory_space<vmem>>, vector<384x64xbf16>
    tpu.vector_store %arg13[%c0_55, %c128_56], %62 {strides = array<i32>} : memref<384x576xbf16, #tpu.memory_space<vmem>>, vector<384x64xbf16>,
    %c23_57 = arith.constant 23 : index
    %c0_58 = arith.constant 0 : index
    %64 = vector.load %arg12[%c23_57, %c0_58] : memref<432x64xf32, #tpu.memory_space<vmem>>, vector<384x64xf32>
    %65 = arith.truncf %64 : vector<384x64xf32> to vector<384x64xbf16>
    %c0_59 = arith.constant 0 : index
    %c192_60 = arith.constant 192 : index
    %66 = vector.load %arg13[%c0_59, %c192_60] : memref<384x576xbf16, #tpu.memory_space<vmem>>, vector<384x64xbf16>
    tpu.vector_store %arg13[%c0_59, %c192_60], %65 {strides = array<i32>} : memref<384x576xbf16, #tpu.memory_space<vmem>>, vector<384x64xbf16>,
    %c24_61 = arith.constant 24 : index
    %c0_62 = arith.constant 0 : index
    %67 = vector.load %arg12[%c24_61, %c0_62] : memref<432x64xf32, #tpu.memory_space<vmem>>, vector<384x64xf32>
    %68 = arith.truncf %67 : vector<384x64xf32> to vector<384x64xbf16>
    %c0_63 = arith.constant 0 : index
    %c256_64 = arith.constant 256 : index
    %69 = vector.load %arg13[%c0_63, %c256_64] : memref<384x576xbf16, #tpu.memory_space<vmem>>, vector<384x64xbf16>
    tpu.vector_store %arg13[%c0_63, %c256_64], %68 {strides = array<i32>} : memref<384x576xbf16, #tpu.memory_space<vmem>>, vector<384x64xbf16>,
    %c25_65 = arith.constant 25 : index
    %c0_66 = arith.constant 0 : index
    %70 = vector.load %arg12[%c25_65, %c0_66] : memref<432x64xf32, #tpu.memory_space<vmem>>, vector<384x64xf32>
    %71 = arith.truncf %70 : vector<384x64xf32> to vector<384x64xbf16>
    %c0_67 = arith.constant 0 : index
    %c320_68 = arith.constant 320 : index
    %72 = vector.load %arg13[%c0_67, %c320_68] : memref<384x576xbf16, #tpu.memory_space<vmem>>, vector<384x64xbf16>
    tpu.vector_store %arg13[%c0_67, %c320_68], %71 {strides = array<i32>} : memref<384x576xbf16, #tpu.memory_space<vmem>>, vector<384x64xbf16>,
    %c41_69 = arith.constant 41 : index
    %c0_70 = arith.constant 0 : index
    %73 = vector.load %arg12[%c41_69, %c0_70] : memref<432x64xf32, #tpu.memory_space<vmem>>, vector<384x64xf32>
    %74 = arith.truncf %73 : vector<384x64xf32> to vector<384x64xbf16>
    %c0_71 = arith.constant 0 : index
    %c384_72 = arith.constant 384 : index
    %75 = vector.load %arg13[%c0_71, %c384_72] : memref<384x576xbf16, #tpu.memory_space<vmem>>, vector<384x64xbf16>
    tpu.vector_store %arg13[%c0_71, %c384_72], %74 {strides = array<i32>} : memref<384x576xbf16, #tpu.memory_space<vmem>>, vector<384x64xbf16>,
    %c42_73 = arith.constant 42 : index
    %c0_74 = arith.constant 0 : index
    %76 = vector.load %arg12[%c42_73, %c0_74] : memref<432x64xf32, #tpu.memory_space<vmem>>, vector<384x64xf32>
    %77 = arith.truncf %76 : vector<384x64xf32> to vector<384x64xbf16>
    %c0_75 = arith.constant 0 : index
    %c448_76 = arith.constant 448 : index
    %78 = vector.load %arg13[%c0_75, %c448_76] : memref<384x576xbf16, #tpu.memory_space<vmem>>, vector<384x64xbf16>
    tpu.vector_store %arg13[%c0_75, %c448_76], %77 {strides = array<i32>} : memref<384x576xbf16, #tpu.memory_space<vmem>>, vector<384x64xbf16>,
    %c43_77 = arith.constant 43 : index
    %c0_78 = arith.constant 0 : index
    %79 = vector.load %arg12[%c43_77, %c0_78] : memref<432x64xf32, #tpu.memory_space<vmem>>, vector<384x64xf32>
    %80 = arith.truncf %79 : vector<384x64xf32> to vector<384x64xbf16>
    %c0_79 = arith.constant 0 : index
    %c512_80 = arith.constant 512 : index
    %81 = vector.load %arg13[%c0_79, %c512_80] : memref<384x576xbf16, #tpu.memory_space<vmem>>, vector<384x64xbf16>
    tpu.vector_store %arg13[%c0_79, %c512_80], %80 {strides = array<i32>} : memref<384x576xbf16, #tpu.memory_space<vmem>>, vector<384x64xbf16>,
    %c0_81 = arith.constant 0 : index
    %c0_82 = arith.constant 0 : index
    %82 = vector.load %arg13[%c0_81, %c0_82] : memref<384x576xbf16, #tpu.memory_space<vmem>>, vector<384x576xbf16>
    %c0_83 = arith.constant 0 : index
    %c0_84 = arith.constant 0 : index
    %83 = vector.load %arg7[%c0_83, %c0_84] : memref<576x32xbf16, #tpu.memory_space<vmem>>, vector<576x32xbf16>
    %cst_85 = arith.constant dense<0.000000e+00> : vector<384x32xf32>
    %84 = tpu.matmul %82, %83, %cst_85 {dimension_numbers = #tpu.dot_dimension_numbers<[1], [0], [0], [1], [0, 0, 1, 1], [], []>} : vector<384x576xbf16>, vector<576x32xbf16>, vector<384x32xf32> -> vector<384x32xf32>
    %c0_86 = arith.constant 0 : index
    %c0_87 = arith.constant 0 : index
    %85 = vector.load %arg8[%c0_86, %c0_87] : memref<1x32xf32, #tpu.memory_space<vmem>>, vector<1x32xf32>
    %86 = vector.broadcast %85 : vector<1x32xf32> to vector<384x32xf32>
    %87 = arith.addf %84, %86 : vector<384x32xf32>
    %cst_88 = arith.constant 0.000000e+00 : f32
    %88 = vector.broadcast %cst_88 : f32 to vector<384x32xf32>
    %89 = arith.maximumf %87, %88 : vector<384x32xf32>
    %90 = vector.broadcast %0 : vector<384x1xf32> to vector<384x32xf32>
    %91 = arith.mulf %89, %90 : vector<384x32xf32>
    %c24_89 = arith.constant 24 : index
    %c0_90 = arith.constant 0 : index
    %92 = vector.load %arg12[%c24_89, %c0_90] : memref<432x64xf32, #tpu.memory_space<vmem>>, vector<384x32xf32>
    tpu.vector_store %arg12[%c24_89, %c0_90], %91 {strides = array<i32>} : memref<432x64xf32, #tpu.memory_space<vmem>>, vector<384x32xf32>,
    %c5_91 = arith.constant 5 : index
    %c0_92 = arith.constant 0 : index
    %93 = vector.load %arg12[%c5_91, %c0_92] : memref<432x64xf32, #tpu.memory_space<vmem>>, vector<384x32xf32>
    %94 = arith.truncf %93 : vector<384x32xf32> to vector<384x32xbf16>
    %c0_93 = arith.constant 0 : index
    %c0_94 = arith.constant 0 : index
    %95 = vector.load %arg13[%c0_93, %c0_94] : memref<384x576xbf16, #tpu.memory_space<vmem>>, vector<384x32xbf16>
    tpu.vector_store %arg13[%c0_93, %c0_94], %94 {strides = array<i32>} : memref<384x576xbf16, #tpu.memory_space<vmem>>, vector<384x32xbf16>,
    %c6_95 = arith.constant 6 : index
    %c0_96 = arith.constant 0 : index
    %96 = vector.load %arg12[%c6_95, %c0_96] : memref<432x64xf32, #tpu.memory_space<vmem>>, vector<384x32xf32>
    %97 = arith.truncf %96 : vector<384x32xf32> to vector<384x32xbf16>
    %c0_97 = arith.constant 0 : index
    %c32 = arith.constant 32 : index
    %98 = vector.load %arg13[%c0_97, %c32] : memref<384x576xbf16, #tpu.memory_space<vmem>>, vector<384x32xbf16>
    tpu.vector_store %arg13[%c0_97, %c32], %97 {strides = array<i32>} : memref<384x576xbf16, #tpu.memory_space<vmem>>, vector<384x32xbf16>,
    %c7_98 = arith.constant 7 : index
    %c0_99 = arith.constant 0 : index
    %99 = vector.load %arg12[%c7_98, %c0_99] : memref<432x64xf32, #tpu.memory_space<vmem>>, vector<384x32xf32>
    %100 = arith.truncf %99 : vector<384x32xf32> to vector<384x32xbf16>
    %c0_100 = arith.constant 0 : index
    %c64_101 = arith.constant 64 : index
    %101 = vector.load %arg13[%c0_100, %c64_101] : memref<384x576xbf16, #tpu.memory_space<vmem>>, vector<384x32xbf16>
    tpu.vector_store %arg13[%c0_100, %c64_101], %100 {strides = array<i32>} : memref<384x576xbf16, #tpu.memory_space<vmem>>, vector<384x32xbf16>,
    %c23_102 = arith.constant 23 : index
    %c0_103 = arith.constant 0 : index
    %102 = vector.load %arg12[%c23_102, %c0_103] : memref<432x64xf32, #tpu.memory_space<vmem>>, vector<384x32xf32>
    %103 = arith.truncf %102 : vector<384x32xf32> to vector<384x32xbf16>
    %c0_104 = arith.constant 0 : index
    %c96 = arith.constant 96 : index
    %104 = vector.load %arg13[%c0_104, %c96] : memref<384x576xbf16, #tpu.memory_space<vmem>>, vector<384x32xbf16>
    tpu.vector_store %arg13[%c0_104, %c96], %103 {strides = array<i32>} : memref<384x576xbf16, #tpu.memory_space<vmem>>, vector<384x32xbf16>,
    %c24_105 = arith.constant 24 : index
    %c0_106 = arith.constant 0 : index
    %105 = vector.load %arg12[%c24_105, %c0_106] : memref<432x64xf32, #tpu.memory_space<vmem>>, vector<384x32xf32>
    %106 = arith.truncf %105 : vector<384x32xf32> to vector<384x32xbf16>
    %c0_107 = arith.constant 0 : index
    %c128_108 = arith.constant 128 : index
    %107 = vector.load %arg13[%c0_107, %c128_108] : memref<384x576xbf16, #tpu.memory_space<vmem>>, vector<384x32xbf16>
    tpu.vector_store %arg13[%c0_107, %c128_108], %106 {strides = array<i32>} : memref<384x576xbf16, #tpu.memory_space<vmem>>, vector<384x32xbf16>,
    %c25_109 = arith.constant 25 : index
    %c0_110 = arith.constant 0 : index
    %108 = vector.load %arg12[%c25_109, %c0_110] : memref<432x64xf32, #tpu.memory_space<vmem>>, vector<384x32xf32>
    %109 = arith.truncf %108 : vector<384x32xf32> to vector<384x32xbf16>
    %c0_111 = arith.constant 0 : index
    %c160 = arith.constant 160 : index
    %110 = vector.load %arg13[%c0_111, %c160] : memref<384x576xbf16, #tpu.memory_space<vmem>>, vector<384x32xbf16>
    tpu.vector_store %arg13[%c0_111, %c160], %109 {strides = array<i32>} : memref<384x576xbf16, #tpu.memory_space<vmem>>, vector<384x32xbf16>,
    %c41_112 = arith.constant 41 : index
    %c0_113 = arith.constant 0 : index
    %111 = vector.load %arg12[%c41_112, %c0_113] : memref<432x64xf32, #tpu.memory_space<vmem>>, vector<384x32xf32>
    %112 = arith.truncf %111 : vector<384x32xf32> to vector<384x32xbf16>
    %c0_114 = arith.constant 0 : index
    %c192_115 = arith.constant 192 : index
    %113 = vector.load %arg13[%c0_114, %c192_115] : memref<384x576xbf16, #tpu.memory_space<vmem>>, vector<384x32xbf16>
    tpu.vector_store %arg13[%c0_114, %c192_115], %112 {strides = array<i32>} : memref<384x576xbf16, #tpu.memory_space<vmem>>, vector<384x32xbf16>,
    %c42_116 = arith.constant 42 : index
    %c0_117 = arith.constant 0 : index
    %114 = vector.load %arg12[%c42_116, %c0_117] : memref<432x64xf32, #tpu.memory_space<vmem>>, vector<384x32xf32>
    %115 = arith.truncf %114 : vector<384x32xf32> to vector<384x32xbf16>
    %c0_118 = arith.constant 0 : index
    %c224 = arith.constant 224 : index
    %116 = vector.load %arg13[%c0_118, %c224] : memref<384x576xbf16, #tpu.memory_space<vmem>>, vector<384x32xbf16>
    tpu.vector_store %arg13[%c0_118, %c224], %115 {strides = array<i32>} : memref<384x576xbf16, #tpu.memory_space<vmem>>, vector<384x32xbf16>,
    %c43_119 = arith.constant 43 : index
    %c0_120 = arith.constant 0 : index
    %117 = vector.load %arg12[%c43_119, %c0_120] : memref<432x64xf32, #tpu.memory_space<vmem>>, vector<384x32xf32>
    %118 = arith.truncf %117 : vector<384x32xf32> to vector<384x32xbf16>
    %c0_121 = arith.constant 0 : index
    %c256_122 = arith.constant 256 : index
    %119 = vector.load %arg13[%c0_121, %c256_122] : memref<384x576xbf16, #tpu.memory_space<vmem>>, vector<384x32xbf16>
    tpu.vector_store %arg13[%c0_121, %c256_122], %118 {strides = array<i32>} : memref<384x576xbf16, #tpu.memory_space<vmem>>, vector<384x32xbf16>,
    %c0_123 = arith.constant 0 : index
    %c0_124 = arith.constant 0 : index
    %120 = vector.load %arg13[%c0_123, %c0_124] : memref<384x576xbf16, #tpu.memory_space<vmem>>, vector<384x288xbf16>
    %c0_125 = arith.constant 0 : index
    %c0_126 = arith.constant 0 : index
    %121 = vector.load %arg9[%c0_125, %c0_126] : memref<288x128xbf16, #tpu.memory_space<vmem>>, vector<288x128xbf16>
    %cst_127 = arith.constant dense<0.000000e+00> : vector<384x128xf32>
    %122 = tpu.matmul %120, %121, %cst_127 {dimension_numbers = #tpu.dot_dimension_numbers<[1], [0], [0], [1], [0, 0, 1, 1], [], []>} : vector<384x288xbf16>, vector<288x128xbf16>, vector<384x128xf32> -> vector<384x128xf32>
    %c0_128 = arith.constant 0 : index
    %c0_129 = arith.constant 0 : index
    %123 = vector.load %arg10[%c0_128, %c0_129] : memref<1x128xf32, #tpu.memory_space<vmem>>, vector<1x128xf32>
    %124 = vector.broadcast %123 : vector<1x128xf32> to vector<384x128xf32>
    %125 = arith.addf %122, %124 : vector<384x128xf32>
    %126 = tpu.transpose %125, [1, 0] : vector<384x128xf32> -> vector<128x384xf32>
    %127 = vector.extract_strided_slice %126 {offsets = [0, 0], sizes = [4, 384], strides = [1, 1]} : vector<128x384xf32> to vector<4x384xf32>
    %c0_130 = arith.constant 0 : index
    %c0_131 = arith.constant 0 : index
    %c0_132 = arith.constant 0 : index
    %128 = vector.load %arg11[%c0_130, %c0_131, %c0_132] : memref<1x4x384xf32, #tpu.memory_space<vmem>>, vector<1x4x384xf32>
    %129 = vector.shape_cast %128 : vector<1x4x384xf32> to vector<4x384xf32>
    %130 = vector.shape_cast %127 : vector<4x384xf32> to vector<1x4x384xf32>
    tpu.vector_store %arg11[%c0_130, %c0_131, %c0_132], %130 {strides = array<i32>} : memref<1x4x384xf32, #tpu.memory_space<vmem>>, vector<1x4x384xf32>,
    return
  }
  func.func @transform_0(%arg0: i32) -> (i32, i32, i32) {
    %c0_i32 = arith.constant 0 : i32
    %c0_i32_0 = arith.constant 0 : i32
    %c0_i32_1 = arith.constant 0 : i32
    return %arg0, %c0_i32, %c0_i32_0 : i32, i32, i32
  }
  func.func @transform_1(%arg0: i32) -> (i32, i32) {
    %c0_i32 = arith.constant 0 : i32
    %c0_i32_0 = arith.constant 0 : i32
    %c0_i32_1 = arith.constant 0 : i32
    return %c0_i32, %c0_i32_0 : i32, i32
  }
  func.func @transform_2(%arg0: i32) -> (i32, i32) {
    %c0_i32 = arith.constant 0 : i32
    %c0_i32_0 = arith.constant 0 : i32
    %c0_i32_1 = arith.constant 0 : i32
    return %c0_i32, %c0_i32_0 : i32, i32
  }
  func.func @transform_3(%arg0: i32) -> (i32, i32) {
    %c0_i32 = arith.constant 0 : i32
    %c0_i32_0 = arith.constant 0 : i32
    %c0_i32_1 = arith.constant 0 : i32
    return %c0_i32, %c0_i32_0 : i32, i32
  }
  func.func @transform_4(%arg0: i32) -> (i32, i32) {
    %c0_i32 = arith.constant 0 : i32
    %c0_i32_0 = arith.constant 0 : i32
    %c0_i32_1 = arith.constant 0 : i32
    return %c0_i32, %c0_i32_0 : i32, i32
  }
  func.func @transform_5(%arg0: i32) -> (i32, i32) {
    %c0_i32 = arith.constant 0 : i32
    %c0_i32_0 = arith.constant 0 : i32
    %c0_i32_1 = arith.constant 0 : i32
    return %c0_i32, %c0_i32_0 : i32, i32
  }
  func.func @transform_6(%arg0: i32) -> (i32, i32) {
    %c0_i32 = arith.constant 0 : i32
    %c0_i32_0 = arith.constant 0 : i32
    %c0_i32_1 = arith.constant 0 : i32
    return %c0_i32, %c0_i32_0 : i32, i32
  }
  func.func @transform_7(%arg0: i32) -> (i32, i32) {
    %c0_i32 = arith.constant 0 : i32
    %c0_i32_0 = arith.constant 0 : i32
    %c0_i32_1 = arith.constant 0 : i32
    return %c0_i32, %c0_i32_0 : i32, i32
  }
  func.func @transform_8(%arg0: i32) -> (i32, i32) {
    %c0_i32 = arith.constant 0 : i32
    %c0_i32_0 = arith.constant 0 : i32
    %c0_i32_1 = arith.constant 0 : i32
    return %c0_i32, %c0_i32_0 : i32, i32
  }
  func.func @transform_9(%arg0: i32) -> (i32, i32) {
    %c0_i32 = arith.constant 0 : i32
    %c0_i32_0 = arith.constant 0 : i32
    %c0_i32_1 = arith.constant 0 : i32
    return %c0_i32, %c0_i32_0 : i32, i32
  }
  func.func @transform_10(%arg0: i32) -> (i32, i32, i32) {
    %c0_i32 = arith.constant 0 : i32
    %c0_i32_0 = arith.constant 0 : i32
    %c0_i32_1 = arith.constant 0 : i32
    return %arg0, %c0_i32, %c0_i32_0 : i32, i32, i32
  }
}

</mosaic_0001>

<llo_original>
// kernel: srcnn_forward.1
$region0: #{srcnn_forward.1}
  #allocation0 [shape = 'u32[]', space=smem, size = 0x4, offset = 0x4, fixed_abs, tag = 'smem constant byte address 0x4 - core index']
  #allocation1 [shape = 'u32[144,128]{1,0:T(1,128)}', space=vmem, size = 0x12000, scoped, tag = 'internal scratch']
  #allocation2 [shape = 'f32[432,64]{1,0:T(8,128)}', space=vmem, size = 0x36000, scoped, tag = 'scratch operand']
  #allocation3 [shape = 'bf16[384,576]{1,0:T(16,128)(2,1)}', space=vmem, size = 0x78000, scoped, tag = 'scratch operand']
  %s0 = inlined_call_operand.vmem [shape: bf16[2,384,25], index: 0, kind: input, shape index: {}]
  %s1 = inlined_call_operand.vmem [shape: f32[384,1], index: 1, kind: input, shape index: {}]
  %s2 = inlined_call_operand.vmem [shape: bf16[25,64], index: 2, kind: input, shape index: {}]
  %s3 = inlined_call_operand.vmem [shape: f32[1,64], index: 3, kind: input, shape index: {}]
  %s4 = inlined_call_operand.vmem [shape: bf16[576,64], index: 4, kind: input, shape index: {}]
  %s5 = inlined_call_operand.vmem [shape: f32[1,64], index: 5, kind: input, shape index: {}]
  %s6 = inlined_call_operand.vmem [shape: bf16[576,32], index: 6, kind: input, shape index: {}]
  %s7 = inlined_call_operand.vmem [shape: f32[1,32], index: 7, kind: input, shape index: {}]
  %s8 = inlined_call_operand.vmem [shape: bf16[288,128], index: 8, kind: input, shape index: {}]
  %s9 = inlined_call_operand.vmem [shape: f32[1,128], index: 9, kind: input, shape index: {}]
  %s10 = inlined_call_operand.vmem [shape: f32[2,4,384], index: 10, kind: output, shape index: {}]
  %s11 = sld [smem:[#allocation0]]
  $region73: #{srcnn_forward.1} parent=0
    _
  %s13 = ssub.s32 1, %s11
  %s14 = scalar_select 0, %s13, %s11
  loop: start=0, step=1, limit=4
  $region2: #{srcnn_forward.1} parent=0 // loop_pre_header
    _
  $region3: #{srcnn_forward.1} parent=0 // loop_header
    %s16 = sphi 0, %s20
    %p17 = scmp.ge.s32.totalorder %s16, 4
    %s26 = sphi 0, %s28
    %s29 = sphi 0, %s26
    %s30 = sphi 0, %s29
    %s46 = sphi 0, %s30
    %s50 = sphi 0, %s50
    %s52 = sphi 0, %s50
    %s53 = sphi 0, %s52
    %s67 = sphi 0, %s53
    %s71 = sphi 0, %s71
    %s73 = sphi 0, %s71
    %s74 = sphi 0, %s73
    %s88 = sphi 0, %s74
    %s92 = sphi 0, %s92
    %s94 = sphi 0, %s92
    %s95 = sphi 0, %s94
    %s109 = sphi 0, %s95
    %s113 = sphi 0, %s113
    %s115 = sphi 0, %s113
    %s116 = sphi 0, %s115
    %s130 = sphi 0, %s116
    %s134 = sphi 0, %s134
    %s136 = sphi 0, %s134
    %s137 = sphi 0, %s136
    %s151 = sphi 0, %s137
    %s155 = sphi 0, %s155
    %s157 = sphi 0, %s155
    %s158 = sphi 0, %s157
    %s172 = sphi 0, %s158
    %s176 = sphi 0, %s176
    %s178 = sphi 0, %s176
    %s179 = sphi 0, %s178
    %s193 = sphi 0, %s179
    %s197 = sphi 0, %s197
    %s199 = sphi 0, %s197
    %s200 = sphi 0, %s199
    %s214 = sphi 0, %s200
    %s218 = sphi 0, %s218
    %s220 = sphi 0, %s218
    %s221 = sphi 0, %s220
    %s235 = sphi 0, %s221
    %s241 = sphi 0, %s243
    %s244 = sphi 0, %s241
    %s245 = sphi 0, %s244
    %s261 = sphi 0, %s245
  $region4: #{srcnn_forward.1} parent=0 // loop_header_branch
    %19 = sbr.rel (%p17) target = $region8
  $region5: #{srcnn_forward.1} parent=0 // loop_body
    %s21 = ssub.s32 %s16, 1
    %s22 = ssub.s32 %s16, 2
    %s23 = sadd.s32 %s16, 1
    %s24 = ssub.s32 %s16, %s23
    %p25 = scmp.eq.s32.totalorder %s24, 0
    %s27 = sadd.s32 %s26, 1
    %s28 = scalar_select %p25, %s26, %s27
    %p31 = pneg %p25
    %p32 = scmp.eq.s32.totalorder %s16, 1
    %p33 = por %p31, %p32
    %p34 = scmp.ne.s32.totalorder %s26, %s29
    %p35 = scmp.eq.s32.totalorder %s16, 0
    %p36 = por %p34, %p35
    %p37 = scmp.ne.s32.totalorder %s26, %s29
    %p38 = scmp.eq.s32.totalorder %s21, 1
    %p39 = por %p37, %p38
    %p40 = scmp.ne.s32.totalorder %s29, %s30
    %p41 = scmp.eq.s32.totalorder %s21, 0
    %p42 = por %p40, %p41
    %p43 = scmp.ne.s32.totalorder %s29, %s30
    %p44 = scmp.eq.s32.totalorder %s22, 1
    %p45 = por %p43, %p44
    %p47 = scmp.ne.s32.totalorder %s30, %s46
    %p48 = scmp.eq.s32.totalorder %s22, 0
    %p49 = por %p47, %p48
    %s51 = sadd.s32 %s50, 1
    %p54 = scmp.eq.s32.totalorder %s16, 1
    %p55 = scmp.ne.s32.totalorder %s50, %s52
    %p56 = scmp.eq.s32.totalorder %s16, 0
    %p57 = por %p55, %p56
    %p58 = scmp.ne.s32.totalorder %s50, %s52
    %p59 = scmp.eq.s32.totalorder %s21, 1
    %p60 = por %p58, %p59
    %p61 = scmp.ne.s32.totalorder %s52, %s53
    %p62 = scmp.eq.s32.totalorder %s21, 0
    %p63 = por %p61, %p62
    %p64 = scmp.ne.s32.totalorder %s52, %s53
    %p65 = scmp.eq.s32.totalorder %s22, 1
    %p66 = por %p64, %p65
    %p68 = scmp.ne.s32.totalorder %s53, %s67
    %p69 = scmp.eq.s32.totalorder %s22, 0
    %p70 = por %p68, %p69
    %s72 = sadd.s32 %s71, 1
    %p75 = scmp.eq.s32.totalorder %s16, 1
    %p76 = scmp.ne.s32.totalorder %s71, %s73
    %p77 = scmp.eq.s32.totalorder %s16, 0
    %p78 = por %p76, %p77
    %p79 = scmp.ne.s32.totalorder %s71, %s73
    %p80 = scmp.eq.s32.totalorder %s21, 1
    %p81 = por %p79, %p80
    %p82 = scmp.ne.s32.totalorder %s73, %s74
    %p83 = scmp.eq.s32.totalorder %s21, 0
    %p84 = por %p82, %p83
    %p85 = scmp.ne.s32.totalorder %s73, %s74
    %p86 = scmp.eq.s32.totalorder %s22, 1
    %p87 = por %p85, %p86
    %p89 = scmp.ne.s32.totalorder %s74, %s88
    %p90 = scmp.eq.s32.totalorder %s22, 0
    %p91 = por %p89, %p90
    %s93 = sadd.s32 %s92, 1
    %p96 = scmp.eq.s32.totalorder %s16, 1
    %p97 = scmp.ne.s32.totalorder %s92, %s94
    %p98 = scmp.eq.s32.totalorder %s16, 0
    %p99 = por %p97, %p98
    %p100 = scmp.ne.s32.totalorder %s92, %s94
    %p101 = scmp.eq.s32.totalorder %s21, 1
    %p102 = por %p100, %p101
    %p103 = scmp.ne.s32.totalorder %s94, %s95
    %p104 = scmp.eq.s32.totalorder %s21, 0
    %p105 = por %p103, %p104
    %p106 = scmp.ne.s32.totalorder %s94, %s95
    %p107 = scmp.eq.s32.totalorder %s22, 1
    %p108 = por %p106, %p107
    %p110 = scmp.ne.s32.totalorder %s95, %s109
    %p111 = scmp.eq.s32.totalorder %s22, 0
    %p112 = por %p110, %p111
    %s114 = sadd.s32 %s113, 1
    %p117 = scmp.eq.s32.totalorder %s16, 1
    %p118 = scmp.ne.s32.totalorder %s113, %s115
    %p119 = scmp.eq.s32.totalorder %s16, 0
    %p120 = por %p118, %p119
    %p121 = scmp.ne.s32.totalorder %s113, %s115
    %p122 = scmp.eq.s32.totalorder %s21, 1
    %p123 = por %p121, %p122
    %p124 = scmp.ne.s32.totalorder %s115, %s116
    %p125 = scmp.eq.s32.totalorder %s21, 0
    %p126 = por %p124, %p125
    %p127 = scmp.ne.s32.totalorder %s115, %s116
    %p128 = scmp.eq.s32.totalorder %s22, 1
    %p129 = por %p127, %p128
    %p131 = scmp.ne.s32.totalorder %s116, %s130
    %p132 = scmp.eq.s32.totalorder %s22, 0
    %p133 = por %p131, %p132
    %s135 = sadd.s32 %s134, 1
    %p138 = scmp.eq.s32.totalorder %s16, 1
    %p139 = scmp.ne.s32.totalorder %s134, %s136
    %p140 = scmp.eq.s32.totalorder %s16, 0
    %p141 = por %p139, %p140
    %p142 = scmp.ne.s32.totalorder %s134, %s136
    %p143 = scmp.eq.s32.totalorder %s21, 1
    %p144 = por %p142, %p143
    %p145 = scmp.ne.s32.totalorder %s136, %s137
    %p146 = scmp.eq.s32.totalorder %s21, 0
    %p147 = por %p145, %p146
    %p148 = scmp.ne.s32.totalorder %s136, %s137
    %p149 = scmp.eq.s32.totalorder %s22, 1
    %p150 = por %p148, %p149
    %p152 = scmp.ne.s32.totalorder %s137, %s151
    %p153 = scmp.eq.s32.totalorder %s22, 0
    %p154 = por %p152, %p153
    %s156 = sadd.s32 %s155, 1
    %p159 = scmp.eq.s32.totalorder %s16, 1
    %p160 = scmp.ne.s32.totalorder %s155, %s157
    %p161 = scmp.eq.s32.totalorder %s16, 0
    %p162 = por %p160, %p161
    %p163 = scmp.ne.s32.totalorder %s155, %s157
    %p164 = scmp.eq.s32.totalorder %s21, 1
    %p165 = por %p163, %p164
    %p166 = scmp.ne.s32.totalorder %s157, %s158
    %p167 = scmp.eq.s32.totalorder %s21, 0
    %p168 = por %p166, %p167
    %p169 = scmp.ne.s32.totalorder %s157, %s158
    %p170 = scmp.eq.s32.totalorder %s22, 1
    %p171 = por %p169, %p170
    %p173 = scmp.ne.s32.totalorder %s158, %s172
    %p174 = scmp.eq.s32.totalorder %s22, 0
    %p175 = por %p173, %p174
    %s177 = sadd.s32 %s176, 1
    %p180 = scmp.eq.s32.totalorder %s16, 1
    %p181 = scmp.ne.s32.totalorder %s176, %s178
    %p182 = scmp.eq.s32.totalorder %s16, 0
    %p183 = por %p181, %p182
    %p184 = scmp.ne.s32.totalorder %s176, %s178
    %p185 = scmp.eq.s32.totalorder %s21, 1
    %p186 = por %p184, %p185
    %p187 = scmp.ne.s32.totalorder %s178, %s179
    %p188 = scmp.eq.s32.totalorder %s21, 0
    %p189 = por %p187, %p188
    %p190 = scmp.ne.s32.totalorder %s178, %s179
    %p191 = scmp.eq.s32.totalorder %s22, 1
    %p192 = por %p190, %p191
    %p194 = scmp.ne.s32.totalorder %s179, %s193
    %p195 = scmp.eq.s32.totalorder %s22, 0
    %p196 = por %p194, %p195
    %s198 = sadd.s32 %s197, 1
    %p201 = scmp.eq.s32.totalorder %s16, 1
    %p202 = scmp.ne.s32.totalorder %s197, %s199
    %p203 = scmp.eq.s32.totalorder %s16, 0
    %p204 = por %p202, %p203
    %p205 = scmp.ne.s32.totalorder %s197, %s199
    %p206 = scmp.eq.s32.totalorder %s21, 1
    %p207 = por %p205, %p206
    %p208 = scmp.ne.s32.totalorder %s199, %s200
    %p209 = scmp.eq.s32.totalorder %s21, 0
    %p210 = por %p208, %p209
    %p211 = scmp.ne.s32.totalorder %s199, %s200
    %p212 = scmp.eq.s32.totalorder %s22, 1
    %p213 = por %p211, %p212
    %p215 = scmp.ne.s32.totalorder %s200, %s214
    %p216 = scmp.eq.s32.totalorder %s22, 0
    %p217 = por %p215, %p216
    %s219 = sadd.s32 %s218, 1
    %p222 = scmp.eq.s32.totalorder %s16, 1
    %p223 = scmp.ne.s32.totalorder %s218, %s220
    %p224 = scmp.eq.s32.totalorder %s16, 0
    %p225 = por %p223, %p224
    %p226 = scmp.ne.s32.totalorder %s218, %s220
    %p227 = scmp.eq.s32.totalorder %s21, 1
    %p228 = por %p226, %p227
    %p229 = scmp.ne.s32.totalorder %s220, %s221
    %p230 = scmp.eq.s32.totalorder %s21, 0
    %p231 = por %p229, %p230
    %p232 = scmp.ne.s32.totalorder %s220, %s221
    %p233 = scmp.eq.s32.totalorder %s22, 1
    %p234 = por %p232, %p233
    %p236 = scmp.ne.s32.totalorder %s221, %s235
    %p237 = scmp.eq.s32.totalorder %s22, 0
    %p238 = por %p236, %p237
    %s239 = ssub.s32 %s16, %s23
    %p240 = scmp.eq.s32.totalorder %s239, 0
    %s242 = sadd.s32 %s241, 1
    %s243 = scalar_select %p240, %s241, %s242
    %p246 = pneg %p240
    %p247 = scmp.eq.s32.totalorder %s16, 1
    %p248 = por %p246, %p247
    %p249 = scmp.ne.s32.totalorder %s241, %s244
    %p250 = scmp.eq.s32.totalorder %s16, 0
    %p251 = por %p249, %p250
    %p252 = scmp.ne.s32.totalorder %s241, %s244
    %p253 = scmp.eq.s32.totalorder %s21, 1
    %p254 = por %p252, %p253
    %p255 = scmp.ne.s32.totalorder %s244, %s245
    %p256 = scmp.eq.s32.totalorder %s21, 0
    %p257 = por %p255, %p256
    %p258 = scmp.ne.s32.totalorder %s244, %s245
    %p259 = scmp.eq.s32.totalorder %s22, 1
    %p260 = por %p258, %p259
    %p262 = scmp.ne.s32.totalorder %s245, %s261
    %p263 = scmp.eq.s32.totalorder %s22, 0
    %p264 = por %p262, %p263
    %p265 = scmp.le.s32.totalorder 1, %s16
    %p266 = scmp.lt.s32.totalorder %s16, 3
    %p267 = pnand %p265, %p266
    %p268 = pneg %p267
    // Predicated region
    $region9: #{srcnn_forward.1} parent=5 // pred_check
      _
    $region10: #{srcnn_forward.1} parent=5 // pred_check_branch
      %270 = sbr.rel (%p267) target = $region12
    $region11: #{srcnn_forward.1} parent=5 // pred_region
      %s271 = ssub.s32 %s16, 1
      // Predicated region
      $region13: #{srcnn_forward.1} parent=11 // pred_check
        %p272 = pneg %p63
      $region14: #{srcnn_forward.1} parent=11 // pred_check_branch
        %274 = sbr.rel (%p272) target = $region16
      $region15: #{srcnn_forward.1} parent=11 // pred_region
        _
      $region16: #{srcnn_forward.1} parent=11 // pred_fallthru
        _
      // Predicated region
      $region17: #{srcnn_forward.1} parent=11 // pred_check
        %p275 = pneg %p84
      $region18: #{srcnn_forward.1} parent=11 // pred_check_branch
        %277 = sbr.rel (%p275) target = $region20
      $region19: #{srcnn_forward.1} parent=11 // pred_region
        _
      $region20: #{srcnn_forward.1} parent=11 // pred_fallthru
        _
      // Predicated region
      $region21: #{srcnn_forward.1} parent=11 // pred_check
        %p278 = pneg %p105
      $region22: #{srcnn_forward.1} parent=11 // pred_check_branch
        %280 = sbr.rel (%p278) target = $region24
      $region23: #{srcnn_forward.1} parent=11 // pred_region
        _
      $region24: #{srcnn_forward.1} parent=11 // pred_fallthru
        _
      // Predicated region
      $region25: #{srcnn_forward.1} parent=11 // pred_check
        %p281 = pneg %p126
      $region26: #{srcnn_forward.1} parent=11 // pred_check_branch
        %283 = sbr.rel (%p281) target = $region28
      $region27: #{srcnn_forward.1} parent=11 // pred_region
        _
      $region28: #{srcnn_forward.1} parent=11 // pred_fallthru
        _
      // Predicated region
      $region29: #{srcnn_forward.1} parent=11 // pred_check
        %p284 = pneg %p147
      $region30: #{srcnn_forward.1} parent=11 // pred_check_branch
        %286 = sbr.rel (%p284) target = $region32
      $region31: #{srcnn_forward.1} parent=11 // pred_region
        _
      $region32: #{srcnn_forward.1} parent=11 // pred_fallthru
        _
      // Predicated region
      $region33: #{srcnn_forward.1} parent=11 // pred_check
        %p287 = pneg %p168
      $region34: #{srcnn_forward.1} parent=11 // pred_check_branch
        %289 = sbr.rel (%p287) target = $region36
      $region35: #{srcnn_forward.1} parent=11 // pred_region
        _
      $region36: #{srcnn_forward.1} parent=11 // pred_fallthru
        _
      // Predicated region
      $region37: #{srcnn_forward.1} parent=11 // pred_check
        %p290 = pneg %p189
      $region38: #{srcnn_forward.1} parent=11 // pred_check_branch
        %292 = sbr.rel (%p290) target = $region40
      $region39: #{srcnn_forward.1} parent=11 // pred_region
        _
      $region40: #{srcnn_forward.1} parent=11 // pred_fallthru
        _
      // Predicated region
      $region41: #{srcnn_forward.1} parent=11 // pred_check
        %p293 = pneg %p210
      $region42: #{srcnn_forward.1} parent=11 // pred_check_branch
        %295 = sbr.rel (%p293) target = $region44
      $region43: #{srcnn_forward.1} parent=11 // pred_region
        _
      $region44: #{srcnn_forward.1} parent=11 // pred_fallthru
        _
      // Predicated region
      $region45: #{srcnn_forward.1} parent=11 // pred_check
        %p296 = pneg %p231
      $region46: #{srcnn_forward.1} parent=11 // pred_check_branch
        %298 = sbr.rel (%p296) target = $region48
      $region47: #{srcnn_forward.1} parent=11 // pred_region
        _
      $region48: #{srcnn_forward.1} parent=11 // pred_fallthru
        _
    $region12: #{srcnn_forward.1} parent=5 // pred_fallthru
      _
    %p299 = scmp.lt.s32.totalorder %s16, 2
    // Predicated region
    $region49: #{srcnn_forward.1} parent=5 // pred_check
      %p300 = pneg %p299
    $region50: #{srcnn_forward.1} parent=5 // pred_check_branch
      %302 = sbr.rel (%p300) target = $region52
    $region51: #{srcnn_forward.1} parent=5 // pred_region
      // Predicated region
      $region53: #{srcnn_forward.1} parent=51 // pred_check
        %p303 = pneg %p36
      $region54: #{srcnn_forward.1} parent=51 // pred_check_branch
        %305 = sbr.rel (%p303) target = $region56
      $region55: #{srcnn_forward.1} parent=51 // pred_region
        %p306 = scmp.lt.s32.totalorder %s16, 1
        %s307 = scalar_select %p306, %s16, 1
        %s308 = smul.addr %s307, 48
        %s309 = smul.addr %s308, 4
        %s310 = scalar_lea.vmem %s0, %s309
      $region56: #{srcnn_forward.1} parent=51 // pred_fallthru
        _
    $region52: #{srcnn_forward.1} parent=5 // pred_fallthru
      _
    %p311 = scmp.le.s32.totalorder 1, %s16
    %p312 = scmp.lt.s32.totalorder %s16, 3
    %p313 = pnand %p311, %p312
    %p314 = pneg %p313
    // Predicated region
    $region57: #{srcnn_forward.1} parent=5 // pred_check
      _
    $region58: #{srcnn_forward.1} parent=5 // pred_check_branch
      %316 = sbr.rel (%p313) target = $region60
    $region59: #{srcnn_forward.1} parent=5 // pred_region
      %s317 = ssub.s32 %s16, 1
      %p318 = scmp.lt.s32.totalorder %s21, 1
      %s319 = scalar_select %p318, %s21, 1
      %s320 = smul.addr %s319, 48
      %s321 = smul.addr %s320, 4
      %s322 = scalar_lea.vmem %s0, %s321
      %p323 = pneg %p42
      %p324 = pneg %p39
      %p325 = pneg %p63
      %p326 = pneg %p60
      %p327 = pneg %p84
      %p328 = pneg %p81
      %p329 = pneg %p105
      %p330 = pneg %p102
      %p331 = pneg %p126
      %p332 = pneg %p123
      %p333 = pneg %p147
      %p334 = pneg %p144
      %p335 = pneg %p168
      %p336 = pneg %p165
      %p337 = pneg %p189
      %p338 = pneg %p186
      %p339 = pneg %p210
      %p340 = pneg %p207
      %p341 = pneg %p231
      %p342 = pneg %p228
      %p343 = pneg %p257
      %p344 = pneg %p254
      %p345 = scmp.lt.s32.totalorder %s21, 1
      %s346 = scalar_select %p345, %s21, 1
      %s347 = smul.addr %s346, 3
      %s348 = smul.addr %s347, 4
      %s349 = scalar_lea.vmem %s10, %s348
      %p350 = scmp.lt.s32.totalorder %s21, 1
      %s351 = scalar_select %p350, %s21, 1
      %s352 = smul.addr %s351, 48
      %s353 = smul.addr %s352, 4
      %s354 = scalar_lea.vmem %s0, %s353
      %p355 = scmp.lt.s32.totalorder %s21, 1
      %s356 = scalar_select %p355, %s21, 1
      %s357 = smul.addr %s356, 3
      %s358 = smul.addr %s357, 4
      %s359 = scalar_lea.vmem %s10, %s358
      %v361 = vld [vmem:[%s1] sm:$0xff]
      %v362 = vld [vmem:[%s1 + $0x8] sm:$0xff]
      %v363 = vld [vmem:[%s1 + $0x10] sm:$0xff]
      %v364 = vld [vmem:[%s1 + $0x18] sm:$0xff]
      %v365 = vld [vmem:[%s1 + $0x20] sm:$0xff]
      %v366 = vld [vmem:[%s1 + $0x28] sm:$0xff]
      %v367 = vld [vmem:[%s1 + $0x30] sm:$0xff]
      %v368 = vld [vmem:[%s1 + $0x38] sm:$0xff]
      %v369 = vld [vmem:[%s1 + $0x40] sm:$0xff]
      %v370 = vld [vmem:[%s1 + $0x48] sm:$0xff]
      %v371 = vld [vmem:[%s1 + $0x50] sm:$0xff]
      %v372 = vld [vmem:[%s1 + $0x58] sm:$0xff]
      %v373 = vld [vmem:[%s1 + $0x60] sm:$0xff]
      %v374 = vld [vmem:[%s1 + $0x68] sm:$0xff]
      %v375 = vld [vmem:[%s1 + $0x70] sm:$0xff]
      %v376 = vld [vmem:[%s1 + $0x78] sm:$0xff]
      %v377 = vld [vmem:[%s1 + $0x80] sm:$0xff]
      %v378 = vld [vmem:[%s1 + $0x88] sm:$0xff]
      %v379 = vld [vmem:[%s1 + $0x90] sm:$0xff]
      %v380 = vld [vmem:[%s1 + $0x98] sm:$0xff]
      %v381 = vld [vmem:[%s1 + $0xa0] sm:$0xff]
      %v382 = vld [vmem:[%s1 + $0xa8] sm:$0xff]
      %v383 = vld [vmem:[%s1 + $0xb0] sm:$0xff]
      %v384 = vld [vmem:[%s1 + $0xb8] sm:$0xff]
      %v385 = vld [vmem:[%s1 + $0xc0] sm:$0xff]
      %v386 = vld [vmem:[%s1 + $0xc8] sm:$0xff]
      %v387 = vld [vmem:[%s1 + $0xd0] sm:$0xff]
      %v388 = vld [vmem:[%s1 + $0xd8] sm:$0xff]
      %v389 = vld [vmem:[%s1 + $0xe0] sm:$0xff]
      %v390 = vld [vmem:[%s1 + $0xe8] sm:$0xff]
      %v391 = vld [vmem:[%s1 + $0xf0] sm:$0xff]
      %v392 = vld [vmem:[%s1 + $0xf8] sm:$0xff]
      %v393 = vld [vmem:[%s1 + $0x100] sm:$0xff]
      %v394 = vld [vmem:[%s1 + $0x108] sm:$0xff]
      %v395 = vld [vmem:[%s1 + $0x110] sm:$0xff]
      %v396 = vld [vmem:[%s1 + $0x118] sm:$0xff]
      %v397 = vld [vmem:[%s1 + $0x120] sm:$0xff]
      %v398 = vld [vmem:[%s1 + $0x128] sm:$0xff]
      %v399 = vld [vmem:[%s1 + $0x130] sm:$0xff]
      %v400 = vld [vmem:[%s1 + $0x138] sm:$0xff]
      %v401 = vld [vmem:[%s1 + $0x140] sm:$0xff]
      %v402 = vld [vmem:[%s1 + $0x148] sm:$0xff]
      %v403 = vld [vmem:[%s1 + $0x150] sm:$0xff]
      %v404 = vld [vmem:[%s1 + $0x158] sm:$0xff]
      %v405 = vld [vmem:[%s1 + $0x160] sm:$0xff]
      %v406 = vld [vmem:[%s1 + $0x168] sm:$0xff]
      %v407 = vld [vmem:[%s1 + $0x170] sm:$0xff]
      %v408 = vld [vmem:[%s1 + $0x178] sm:$0xff]
      %vm409 = vcmask 523264
      %410 = vst.msk [vmem:[#allocation2] sm:$0xff] %vm409, 0.0
      %411 = vst.msk [vmem:[#allocation2 + $0x8] sm:$0xff] %vm409, 0.0
      %412 = vst.msk [vmem:[#allocation2 + $0x10] sm:$0xff] %vm409, 0.0
      %413 = vst.msk [vmem:[#allocation2 + $0x198] sm:$0xff] %vm409, 0.0
      %414 = vst.msk [vmem:[#allocation2 + $0x1a0] sm:$0xff] %vm409, 0.0
      %415 = vst.msk [vmem:[#allocation2 + $0x1a8] sm:$0xff] %vm409, 0.0
      %v416 = vld [vmem:[%s354] sm:$0xf]
      %v417 = vld [vmem:[%s354 + $0x4] sm:$0xf]
      %v418 = vld [vmem:[%s354 + $0x8] sm:$0xf]
      %v419 = vld [vmem:[%s354 + $0xc] sm:$0xf]
      %v420 = vld [vmem:[%s354 + $0x10] sm:$0xf]
      %v421 = vld [vmem:[%s354 + $0x14] sm:$0xf]
      %v422 = vld [vmem:[%s354 + $0x18] sm:$0xf]
      %v423 = vld [vmem:[%s354 + $0x1c] sm:$0xf]
      %v424 = vld [vmem:[%s354 + $0x20] sm:$0xf]
      %v425 = vld [vmem:[%s354 + $0x24] sm:$0xf]
      %v426 = vld [vmem:[%s354 + $0x28] sm:$0xf]
      %v427 = vld [vmem:[%s354 + $0x2c] sm:$0xf]
      %v428 = vld [vmem:[%s354 + $0x30] sm:$0xf]
      %v429 = vld [vmem:[%s354 + $0x34] sm:$0xf]
      %v430 = vld [vmem:[%s354 + $0x38] sm:$0xf]
      %v431 = vld [vmem:[%s354 + $0x3c] sm:$0xf]
      %v432 = vld [vmem:[%s354 + $0x40] sm:$0xf]
      %v433 = vld [vmem:[%s354 + $0x44] sm:$0xf]
      %v434 = vld [vmem:[%s354 + $0x48] sm:$0xf]
      %v435 = vld [vmem:[%s354 + $0x4c] sm:$0xf]
      %v436 = vld [vmem:[%s354 + $0x50] sm:$0xf]
      %v437 = vld [vmem:[%s354 + $0x54] sm:$0xf]
      %v438 = vld [vmem:[%s354 + $0x58] sm:$0xf]
      %v439 = vld [vmem:[%s354 + $0x5c] sm:$0xf]
      %v440 = vld [vmem:[%s354 + $0x60] sm:$0xf]
      %v441 = vld [vmem:[%s354 + $0x64] sm:$0xf]
      %v442 = vld [vmem:[%s354 + $0x68] sm:$0xf]
      %v443 = vld [vmem:[%s354 + $0x6c] sm:$0xf]
      %v444 = vld [vmem:[%s354 + $0x70] sm:$0xf]
      %v445 = vld [vmem:[%s354 + $0x74] sm:$0xf]
      %v446 = vld [vmem:[%s354 + $0x78] sm:$0xf]
      %v447 = vld [vmem:[%s354 + $0x7c] sm:$0xf]
      %v448 = vld [vmem:[%s354 + $0x80] sm:$0xf]
      %v449 = vld [vmem:[%s354 + $0x84] sm:$0xf]
      %v450 = vld [vmem:[%s354 + $0x88] sm:$0xf]
      %v451 = vld [vmem:[%s354 + $0x8c] sm:$0xf]
      %v452 = vld [vmem:[%s354 + $0x90] sm:$0xf]
      %v453 = vld [vmem:[%s354 + $0x94] sm:$0xf]
      %v454 = vld [vmem:[%s354 + $0x98] sm:$0xf]
      %v455 = vld [vmem:[%s354 + $0x9c] sm:$0xf]
      %v456 = vld [vmem:[%s354 + $0xa0] sm:$0xf]
      %v457 = vld [vmem:[%s354 + $0xa4] sm:$0xf]
      %v458 = vld [vmem:[%s354 + $0xa8] sm:$0xf]
      %v459 = vld [vmem:[%s354 + $0xac] sm:$0xf]
      %v460 = vld [vmem:[%s354 + $0xb0] sm:$0xf]
      %v461 = vld [vmem:[%s354 + $0xb4] sm:$0xf]
      %v462 = vld [vmem:[%s354 + $0xb8] sm:$0xf]
      %v463 = vld [vmem:[%s354 + $0xbc] sm:$0xf]
      %v464 = vld [vmem:[%s2] sm:$0xf]
      %v465 = vld [vmem:[%s2 + $0x4] sm:$0xf]
      %v466 = vld [vmem:[%s2 + $0x8] sm:$0xf]
      %v467 = vld [vmem:[%s2 + $0xc] sm:$0x1]
      %v468 = vld [vmem:[%s3] sm:$0x1]
      %v470 = vlaneseq
      %v471 = vshrl.u32 %v470, 7
      %v472 = vsub.s32 0, %v471
      %v473 = vrot.slane %v468, %v472
      %v523 = vunpack.c.l.b16 %v416
      %v524 = vunpack.c.l.b16 %v417
      %v525 = vunpack.c.l.b16 %v418
      %v526 = vunpack.c.l.b16 %v419
      %v527 = vunpack.c.l.b16 %v420
      %v528 = vunpack.c.l.b16 %v421
      %v529 = vunpack.c.l.b16 %v422
      %v530 = vunpack.c.l.b16 %v423
      %v531 = vunpack.c.l.b16 %v424
      %v532 = vunpack.c.l.b16 %v425
      %v533 = vunpack.c.l.b16 %v426
      %v534 = vunpack.c.l.b16 %v427
      %v535 = vunpack.c.l.b16 %v428
      %v536 = vunpack.c.l.b16 %v429
      %v537 = vunpack.c.l.b16 %v430
      %v538 = vunpack.c.l.b16 %v431
      %v539 = vunpack.c.l.b16 %v432
      %v540 = vunpack.c.l.b16 %v433
      %v541 = vunpack.c.l.b16 %v434
      %v542 = vunpack.c.l.b16 %v435
      %v543 = vunpack.c.l.b16 %v436
      %v544 = vunpack.c.l.b16 %v437
      %v545 = vunpack.c.l.b16 %v438
      %v546 = vunpack.c.l.b16 %v439
      %v547 = vunpack.c.l.b16 %v440
      %v548 = vunpack.c.l.b16 %v441
      %v549 = vunpack.c.l.b16 %v442
      %v550 = vunpack.c.l.b16 %v443
      %v551 = vunpack.c.l.b16 %v444
      %v552 = vunpack.c.l.b16 %v445
      %v553 = vunpack.c.l.b16 %v446
      %v554 = vunpack.c.l.b16 %v447
      %v555 = vunpack.c.l.b16 %v448
      %v556 = vunpack.c.l.b16 %v449
      %v557 = vunpack.c.l.b16 %v450
      %v558 = vunpack.c.l.b16 %v451
      %v559 = vunpack.c.l.b16 %v452
      %v560 = vunpack.c.l.b16 %v453
      %v561 = vunpack.c.l.b16 %v454
      %v562 = vunpack.c.l.b16 %v455
      %v563 = vunpack.c.l.b16 %v456
      %v564 = vunpack.c.l.b16 %v457
      %v565 = vunpack.c.l.b16 %v458
      %v566 = vunpack.c.l.b16 %v459
      %v567 = vunpack.c.l.b16 %v460
      %v568 = vunpack.c.l.b16 %v461
      %v569 = vunpack.c.l.b16 %v462
      %v570 = vunpack.c.l.b16 %v463
      %v571 = vpack.c.b16 %v524, %v523
      %v572 = vpack.c.b16 %v526, %v525
      %v573 = vpack.c.b16 %v528, %v527
      %v574 = vpack.c.b16 %v530, %v529
      %v575 = vpack.c.b16 %v532, %v531
      %v576 = vpack.c.b16 %v534, %v533
      %v577 = vpack.c.b16 %v536, %v535
      %v578 = vpack.c.b16 %v538, %v537
      %v579 = vpack.c.b16 %v540, %v539
      %v580 = vpack.c.b16 %v542, %v541
      %v581 = vpack.c.b16 %v544, %v543
      %v582 = vpack.c.b16 %v546, %v545
      %v583 = vpack.c.b16 %v548, %v547
      %v584 = vpack.c.b16 %v550, %v549
      %v585 = vpack.c.b16 %v552, %v551
      %v586 = vpack.c.b16 %v554, %v553
      %v587 = vpack.c.b16 %v556, %v555
      %v588 = vpack.c.b16 %v558, %v557
      %v589 = vpack.c.b16 %v560, %v559
      %v590 = vpack.c.b16 %v562, %v561
      %v591 = vpack.c.b16 %v564, %v563
      %v592 = vpack.c.b16 %v566, %v565
      %v593 = vpack.c.b16 %v568, %v567
      %v594 = vpack.c.b16 %v570, %v569
      %v599 = vunpack.c.l.b16 %v464
      %v600 = vunpack.c.l.b16 %v465
      %v601 = vunpack.c.l.b16 %v466
      %v602 = vunpack.c.l.b16 %v467
      %v603 = vpack.c.b16 %v600, %v599
      %v604 = vpack.c.b16 %v602, %v601
      %vm606 = vcmask 203776
      %v608 = vsel %vm606, %v571, 0
      %v611 = vsel %vm606, %v572, 0
      %v614 = vsel %vm606, %v573, 0
      %v617 = vsel %vm606, %v574, 0
      %v620 = vsel %vm606, %v575, 0
      %v623 = vsel %vm606, %v576, 0
      %v626 = vsel %vm606, %v577, 0
      %v629 = vsel %vm606, %v578, 0
      %v632 = vsel %vm606, %v579, 0
      %v635 = vsel %vm606, %v580, 0
      %v638 = vsel %vm606, %v581, 0
      %v641 = vsel %vm606, %v582, 0
      %v644 = vsel %vm606, %v583, 0
      %v647 = vsel %vm606, %v584, 0
      %v650 = vsel %vm606, %v585, 0
      %v653 = vsel %vm606, %v586, 0
      %v656 = vsel %vm606, %v587, 0
      %v659 = vsel %vm606, %v588, 0
      %v662 = vsel %vm606, %v589, 0
      %v665 = vsel %vm606, %v590, 0
      %v668 = vsel %vm606, %v591, 0
      %v671 = vsel %vm606, %v592, 0
      %v674 = vsel %vm606, %v593, 0
      %v677 = vsel %vm606, %v594, 0
      %vm679 = vcmask 1043456
      %vm680 = vcmask 1044480
      %v681 = vsel %vm679, 4294967295, 65535
      %v682 = vsel %vm680, %v681, 0
      %v684 = vand.u32 %v604, %v682
      %686 = vmatprep.subr.bf16.mxu0 0
      %687 = vmatpush1.bf16.msra.mxu0 %v603
      %688 = vmatprep.subr.bf16.mxu0 0
      %689 = vmatpush1.bf16.msra.mxu0 %v684
      %690 = vmatprep.subr.bf16.mxu0 0
      %691 = vmatpush1.bf16.msra.mxu0 0
      %692 = vmatprep.subr.bf16.mxu0 0
      %693 = vmatpush1.bf16.msra.mxu0 0
      %694 = vmatprep.subr.bf16.mxu0 0
      %695 = vmatpush1.bf16.msra.mxu0 0
      %696 = vmatprep.subr.bf16.mxu0 0
      %697 = vmatpush1.bf16.msra.mxu0 0
      %698 = vmatprep.subr.bf16.mxu0 0
      %699 = vmatpush1.bf16.msra.mxu0 0
      %700 = vmatprep.subr.bf16.mxu0 0
      %701 = vmatpush1.bf16.msra.mxu0 0
      %702 = vmatprep.subr.bf16.mxu0 0
      %703 = vmatpush1.bf16.msra.mxu0 0
      %704 = vmatprep.subr.bf16.mxu0 0
      %705 = vmatpush1.bf16.msra.mxu0 0
      %706 = vmatprep.subr.bf16.mxu0 0
      %707 = vmatpush1.bf16.msra.mxu0 0
      %708 = vmatprep.subr.bf16.mxu0 0
      %709 = vmatpush1.bf16.msra.mxu0 0
      %710 = vmatprep.subr.bf16.mxu0 0
      %711 = vmatpush1.bf16.msra.mxu0 0
      %712 = vmatprep.subr.bf16.mxu0 0
      %713 = vmatpush1.bf16.msra.mxu0 0
      %714 = vmatprep.subr.bf16.mxu0 0
      %715 = vmatpush1.bf16.msra.mxu0 0
      %716 = vmatprep.subr.bf16.mxu0 0
      %717 = vmatpush1.bf16.msra.mxu0 0
      %718 = vmatprep.mubr.bf16.mxu0 0
      %719 = vmatmul.mubr.bf16.gmra.mrb[0].mxu0 %v608
      %v720 = vpop.f32.mrb[0].mxu0
      %v721 = vadd.f32 %v473, %v720
      %v722 = vpop.f32.mrb[0].mxu0
      %v723 = vpop.f32.mrb[0].mxu0
      %v724 = vadd.f32 %v473, %v723
      %v725 = vpop.f32.mrb[0].mxu0
      %726 = vmatprep.mubr.bf16.mxu0 0
      %727 = vmatmul.mubr.bf16.gmra.mrb[0].mxu0 %v611
      %v728 = vpop.f32.mrb[0].mxu0
      %v729 = vadd.f32 %v473, %v728
      %v730 = vpop.f32.mrb[0].mxu0
      %v731 = vpop.f32.mrb[0].mxu0
      %v732 = vadd.f32 %v473, %v731
      %v733 = vpop.f32.mrb[0].mxu0
      %734 = vmatprep.mubr.bf16.mxu0 0
      %735 = vmatmul.mubr.bf16.gmra.mrb[0].mxu0 %v614
      %v736 = vpop.f32.mrb[0].mxu0
      %v737 = vadd.f32 %v473, %v736
      %v738 = vpop.f32.mrb[0].mxu0
      %v739 = vpop.f32.mrb[0].mxu0
      %v740 = vadd.f32 %v473, %v739
      %v741 = vpop.f32.mrb[0].mxu0
      %742 = vmatprep.mubr.bf16.mxu0 0
      %743 = vmatmul.mubr.bf16.gmra.mrb[0].mxu0 %v617
      %v744 = vpop.f32.mrb[0].mxu0
      %v745 = vadd.f32 %v473, %v744
      %v746 = vpop.f32.mrb[0].mxu0
      %v747 = vpop.f32.mrb[0].mxu0
      %v748 = vadd.f32 %v473, %v747
      %v749 = vpop.f32.mrb[0].mxu0
      %750 = vmatprep.mubr.bf16.mxu0 0
      %751 = vmatmul.mubr.bf16.gmra.mrb[0].mxu0 %v620
      %v752 = vpop.f32.mrb[0].mxu0
      %v753 = vadd.f32 %v473, %v752
      %v754 = vpop.f32.mrb[0].mxu0
      %v755 = vpop.f32.mrb[0].mxu0
      %v756 = vadd.f32 %v473, %v755
      %v757 = vpop.f32.mrb[0].mxu0
      %758 = vmatprep.mubr.bf16.mxu0 0
      %759 = vmatmul.mubr.bf16.gmra.mrb[0].mxu0 %v623
      %v760 = vpop.f32.mrb[0].mxu0
      %v761 = vadd.f32 %v473, %v760
      %v762 = vpop.f32.mrb[0].mxu0
      %v763 = vpop.f32.mrb[0].mxu0
      %v764 = vadd.f32 %v473, %v763
      %v765 = vpop.f32.mrb[0].mxu0
      %766 = vmatprep.mubr.bf16.mxu0 0
      %767 = vmatmul.mubr.bf16.gmra.mrb[0].mxu0 %v626
      %v768 = vpop.f32.mrb[0].mxu0
      %v769 = vadd.f32 %v473, %v768
      %v770 = vpop.f32.mrb[0].mxu0
      %v771 = vpop.f32.mrb[0].mxu0
      %v772 = vadd.f32 %v473, %v771
      %v773 = vpop.f32.mrb[0].mxu0
      %774 = vmatprep.mubr.bf16.mxu0 0
      %775 = vmatmul.mubr.bf16.gmra.mrb[0].mxu0 %v629
      %v776 = vpop.f32.mrb[0].mxu0
      %v777 = vadd.f32 %v473, %v776
      %v778 = vpop.f32.mrb[0].mxu0
      %v779 = vpop.f32.mrb[0].mxu0
      %v780 = vadd.f32 %v473, %v779
      %v781 = vpop.f32.mrb[0].mxu0
      %782 = vmatprep.mubr.bf16.mxu0 0
      %783 = vmatmul.mubr.bf16.gmra.mrb[0].mxu0 %v632
      %v784 = vpop.f32.mrb[0].mxu0
      %v785 = vadd.f32 %v473, %v784
      %v786 = vpop.f32.mrb[0].mxu0
      %v787 = vpop.f32.mrb[0].mxu0
      %v788 = vadd.f32 %v473, %v787
      %v789 = vpop.f32.mrb[0].mxu0
      %790 = vmatprep.mubr.bf16.mxu0 0
      %791 = vmatmul.mubr.bf16.gmra.mrb[0].mxu0 %v635
      %v792 = vpop.f32.mrb[0].mxu0
      %v793 = vadd.f32 %v473, %v792
      %v794 = vpop.f32.mrb[0].mxu0
      %v795 = vpop.f32.mrb[0].mxu0
      %v796 = vadd.f32 %v473, %v795
      %v797 = vpop.f32.mrb[0].mxu0
      %798 = vmatprep.mubr.bf16.mxu0 0
      %799 = vmatmul.mubr.bf16.gmra.mrb[0].mxu0 %v638
      %v800 = vpop.f32.mrb[0].mxu0
      %v801 = vadd.f32 %v473, %v800
      %v802 = vpop.f32.mrb[0].mxu0
      %v803 = vpop.f32.mrb[0].mxu0
      %v804 = vadd.f32 %v473, %v803
      %v805 = vpop.f32.mrb[0].mxu0
      %806 = vmatprep.mubr.bf16.mxu0 0
      %807 = vmatmul.mubr.bf16.gmra.mrb[0].mxu0 %v641
      %v808 = vpop.f32.mrb[0].mxu0
      %v809 = vadd.f32 %v473, %v808
      %v810 = vpop.f32.mrb[0].mxu0
      %v811 = vpop.f32.mrb[0].mxu0
      %v812 = vadd.f32 %v473, %v811
      %v813 = vpop.f32.mrb[0].mxu0
      %814 = vmatprep.mubr.bf16.mxu0 0
      %815 = vmatmul.mubr.bf16.gmra.mrb[0].mxu0 %v644
      %v816 = vpop.f32.mrb[0].mxu0
      %v817 = vadd.f32 %v473, %v816
      %v818 = vpop.f32.mrb[0].mxu0
      %v819 = vpop.f32.mrb[0].mxu0
      %v820 = vadd.f32 %v473, %v819
      %v821 = vpop.f32.mrb[0].mxu0
      %822 = vmatprep.mubr.bf16.mxu0 0
      %823 = vmatmul.mubr.bf16.gmra.mrb[0].mxu0 %v647
      %v824 = vpop.f32.mrb[0].mxu0
      %v825 = vadd.f32 %v473, %v824
      %v826 = vpop.f32.mrb[0].mxu0
      %v827 = vpop.f32.mrb[0].mxu0
      %v828 = vadd.f32 %v473, %v827
      %v829 = vpop.f32.mrb[0].mxu0
      %830 = vmatprep.mubr.bf16.mxu0 0
      %831 = vmatmul.mubr.bf16.gmra.mrb[0].mxu0 %v650
      %v832 = vpop.f32.mrb[0].mxu0
      %v833 = vadd.f32 %v473, %v832
      %v834 = vpop.f32.mrb[0].mxu0
      %v835 = vpop.f32.mrb[0].mxu0
      %v836 = vadd.f32 %v473, %v835
      %v837 = vpop.f32.mrb[0].mxu0
      %838 = vmatprep.mubr.bf16.mxu0 0
      %839 = vmatmul.mubr.bf16.gmra.mrb[0].mxu0 %v653
      %v840 = vpop.f32.mrb[0].mxu0
      %v841 = vadd.f32 %v473, %v840
      %v842 = vpop.f32.mrb[0].mxu0
      %v843 = vpop.f32.mrb[0].mxu0
      %v844 = vadd.f32 %v473, %v843
      %v845 = vpop.f32.mrb[0].mxu0
      %846 = vmatprep.mubr.bf16.mxu0 0
      %847 = vmatmul.mubr.bf16.gmra.mrb[0].mxu0 %v656
      %v848 = vpop.f32.mrb[0].mxu0
      %v849 = vadd.f32 %v473, %v848
      %v850 = vpop.f32.mrb[0].mxu0
      %v851 = vpop.f32.mrb[0].mxu0
      %v852 = vadd.f32 %v473, %v851
      %v853 = vpop.f32.mrb[0].mxu0
      %854 = vmatprep.mubr.bf16.mxu0 0
      %855 = vmatmul.mubr.bf16.gmra.mrb[0].mxu0 %v659
      %v856 = vpop.f32.mrb[0].mxu0
      %v857 = vadd.f32 %v473, %v856
      %v858 = vpop.f32.mrb[0].mxu0
      %v859 = vpop.f32.mrb[0].mxu0
      %v860 = vadd.f32 %v473, %v859
      %v861 = vpop.f32.mrb[0].mxu0
      %862 = vmatprep.mubr.bf16.mxu0 0
      %863 = vmatmul.mubr.bf16.gmra.mrb[0].mxu0 %v662
      %v864 = vpop.f32.mrb[0].mxu0
      %v865 = vadd.f32 %v473, %v864
      %v866 = vpop.f32.mrb[0].mxu0
      %v867 = vpop.f32.mrb[0].mxu0
      %v868 = vadd.f32 %v473, %v867
      %v869 = vpop.f32.mrb[0].mxu0
      %870 = vmatprep.mubr.bf16.mxu0 0
      %871 = vmatmul.mubr.bf16.gmra.mrb[0].mxu0 %v665
      %v872 = vpop.f32.mrb[0].mxu0
      %v873 = vadd.f32 %v473, %v872
      %v874 = vpop.f32.mrb[0].mxu0
      %v875 = vpop.f32.mrb[0].mxu0
      %v876 = vadd.f32 %v473, %v875
      %v877 = vpop.f32.mrb[0].mxu0
      %878 = vmatprep.mubr.bf16.mxu0 0
      %879 = vmatmul.mubr.bf16.gmra.mrb[0].mxu0 %v668
      %v880 = vpop.f32.mrb[0].mxu0
      %v881 = vadd.f32 %v473, %v880
      %v882 = vpop.f32.mrb[0].mxu0
      %v883 = vpop.f32.mrb[0].mxu0
      %v884 = vadd.f32 %v473, %v883
      %v885 = vpop.f32.mrb[0].mxu0
      %886 = vmatprep.mubr.bf16.mxu0 0
      %887 = vmatmul.mubr.bf16.gmra.mrb[0].mxu0 %v671
      %v888 = vpop.f32.mrb[0].mxu0
      %v889 = vadd.f32 %v473, %v888
      %v890 = vpop.f32.mrb[0].mxu0
      %v891 = vpop.f32.mrb[0].mxu0
      %v892 = vadd.f32 %v473, %v891
      %v893 = vpop.f32.mrb[0].mxu0
      %894 = vmatprep.mubr.bf16.mxu0 0
      %895 = vmatmul.mubr.bf16.gmra.mrb[0].mxu0 %v674
      %v896 = vpop.f32.mrb[0].mxu0
      %v897 = vadd.f32 %v473, %v896
      %v898 = vpop.f32.mrb[0].mxu0
      %v899 = vpop.f32.mrb[0].mxu0
      %v900 = vadd.f32 %v473, %v899
      %v901 = vpop.f32.mrb[0].mxu0
      %902 = vmatprep.mubr.bf16.mxu0 0
      %903 = vmatmul.mubr.bf16.gmra.mrb[0].mxu0 %v677
      %v904 = vpop.f32.mrb[0].mxu0
      %v905 = vadd.f32 %v473, %v904
      %v906 = vpop.f32.mrb[0].mxu0
      %v907 = vpop.f32.mrb[0].mxu0
      %v908 = vadd.f32 %v473, %v907
      %v909 = vpop.f32.mrb[0].mxu0
      %910 = vdwg.mxu0
      %v911 = vmax.f32 %v721, 0.0
      %v912 = vmax.f32 %v724, 0.0
      %v913 = vmax.f32 %v729, 0.0
      %v914 = vmax.f32 %v732, 0.0
      %v915 = vmax.f32 %v737, 0.0
      %v916 = vmax.f32 %v740, 0.0
      %v917 = vmax.f32 %v745, 0.0
      %v918 = vmax.f32 %v748, 0.0
      %v919 = vmax.f32 %v753, 0.0
      %v920 = vmax.f32 %v756, 0.0
      %v921 = vmax.f32 %v761, 0.0
      %v922 = vmax.f32 %v764, 0.0
      %v923 = vmax.f32 %v769, 0.0
      %v924 = vmax.f32 %v772, 0.0
      %v925 = vmax.f32 %v777, 0.0
      %v926 = vmax.f32 %v780, 0.0
      %v927 = vmax.f32 %v785, 0.0
      %v928 = vmax.f32 %v788, 0.0
      %v929 = vmax.f32 %v793, 0.0
      %v930 = vmax.f32 %v796, 0.0
      %v931 = vmax.f32 %v801, 0.0
      %v932 = vmax.f32 %v804, 0.0
      %v933 = vmax.f32 %v809, 0.0
      %v934 = vmax.f32 %v812, 0.0
      %v935 = vmax.f32 %v817, 0.0
      %v936 = vmax.f32 %v820, 0.0
      %v937 = vmax.f32 %v825, 0.0
      %v938 = vmax.f32 %v828, 0.0
      %v939 = vmax.f32 %v833, 0.0
      %v940 = vmax.f32 %v836, 0.0
      %v941 = vmax.f32 %v841, 0.0
      %v942 = vmax.f32 %v844, 0.0
      %v943 = vmax.f32 %v849, 0.0
      %v944 = vmax.f32 %v852, 0.0
      %v945 = vmax.f32 %v857, 0.0
      %v946 = vmax.f32 %v860, 0.0
      %v947 = vmax.f32 %v865, 0.0
      %v948 = vmax.f32 %v868, 0.0
      %v949 = vmax.f32 %v873, 0.0
      %v950 = vmax.f32 %v876, 0.0
      %v951 = vmax.f32 %v881, 0.0
      %v952 = vmax.f32 %v884, 0.0
      %v953 = vmax.f32 %v889, 0.0
      %v954 = vmax.f32 %v892, 0.0
      %v955 = vmax.f32 %v897, 0.0
      %v956 = vmax.f32 %v900, 0.0
      %v957 = vmax.f32 %v905, 0.0
      %v958 = vmax.f32 %v908, 0.0
      %960 = vset.pattern.permute.xlu0 0
      %961 = vperm.xlu0 %960, %v361
      %v962 = vpop.permute.xlu0 %961
      %965 = vset.pattern.permute.xlu0 0
      %966 = vperm.xlu0 %965, %v362
      %v967 = vpop.permute.xlu0 %966
      %970 = vset.pattern.permute.xlu0 0
      %971 = vperm.xlu0 %970, %v363
      %v972 = vpop.permute.xlu0 %971
      %975 = vset.pattern.permute.xlu0 0
      %976 = vperm.xlu0 %975, %v364
      %v977 = vpop.permute.xlu0 %976
      %980 = vset.pattern.permute.xlu0 0
      %981 = vperm.xlu0 %980, %v365
      %v982 = vpop.permute.xlu0 %981
      %985 = vset.pattern.permute.xlu0 0
      %986 = vperm.xlu0 %985, %v366
      %v987 = vpop.permute.xlu0 %986
      %990 = vset.pattern.permute.xlu0 0
      %991 = vperm.xlu0 %990, %v367
      %v992 = vpop.permute.xlu0 %991
      %995 = vset.pattern.permute.xlu0 0
      %996 = vperm.xlu0 %995, %v368
      %v997 = vpop.permute.xlu0 %996
      %1000 = vset.pattern.permute.xlu0 0
      %1001 = vperm.xlu0 %1000, %v369
      %v1002 = vpop.permute.xlu0 %1001
      %1005 = vset.pattern.permute.xlu0 0
      %1006 = vperm.xlu0 %1005, %v370
      %v1007 = vpop.permute.xlu0 %1006
      %1010 = vset.pattern.permute.xlu0 0
      %1011 = vperm.xlu0 %1010, %v371
      %v1012 = vpop.permute.xlu0 %1011
      %1015 = vset.pattern.permute.xlu0 0
      %1016 = vperm.xlu0 %1015, %v372
      %v1017 = vpop.permute.xlu0 %1016
      %1020 = vset.pattern.permute.xlu0 0
      %1021 = vperm.xlu0 %1020, %v373
      %v1022 = vpop.permute.xlu0 %1021
      %1025 = vset.pattern.permute.xlu0 0
      %1026 = vperm.xlu0 %1025, %v374
      %v1027 = vpop.permute.xlu0 %1026
      %1030 = vset.pattern.permute.xlu0 0
      %1031 = vperm.xlu0 %1030, %v375
      %v1032 = vpop.permute.xlu0 %1031
      %1035 = vset.pattern.permute.xlu0 0
      %1036 = vperm.xlu0 %1035, %v376
      %v1037 = vpop.permute.xlu0 %1036
      %1040 = vset.pattern.permute.xlu0 0
      %1041 = vperm.xlu0 %1040, %v377
      %v1042 = vpop.permute.xlu0 %1041
      %1045 = vset.pattern.permute.xlu0 0
      %1046 = vperm.xlu0 %1045, %v378
      %v1047 = vpop.permute.xlu0 %1046
      %1050 = vset.pattern.permute.xlu0 0
      %1051 = vperm.xlu0 %1050, %v379
      %v1052 = vpop.permute.xlu0 %1051
      %1055 = vset.pattern.permute.xlu0 0
      %1056 = vperm.xlu0 %1055, %v380
      %v1057 = vpop.permute.xlu0 %1056
      %1060 = vset.pattern.permute.xlu0 0
      %1061 = vperm.xlu0 %1060, %v381
      %v1062 = vpop.permute.xlu0 %1061
      %1065 = vset.pattern.permute.xlu0 0
      %1066 = vperm.xlu0 %1065, %v382
      %v1067 = vpop.permute.xlu0 %1066
      %1070 = vset.pattern.permute.xlu0 0
      %1071 = vperm.xlu0 %1070, %v383
      %v1072 = vpop.permute.xlu0 %1071
      %1075 = vset.pattern.permute.xlu0 0
      %1076 = vperm.xlu0 %1075, %v384
      %v1077 = vpop.permute.xlu0 %1076
      %1080 = vset.pattern.permute.xlu0 0
      %1081 = vperm.xlu0 %1080, %v385
      %v1082 = vpop.permute.xlu0 %1081
      %1085 = vset.pattern.permute.xlu0 0
      %1086 = vperm.xlu0 %1085, %v386
      %v1087 = vpop.permute.xlu0 %1086
      %1090 = vset.pattern.permute.xlu0 0
      %1091 = vperm.xlu0 %1090, %v387
      %v1092 = vpop.permute.xlu0 %1091
      %1095 = vset.pattern.permute.xlu0 0
      %1096 = vperm.xlu0 %1095, %v388
      %v1097 = vpop.permute.xlu0 %1096
      %1100 = vset.pattern.permute.xlu0 0
      %1101 = vperm.xlu0 %1100, %v389
      %v1102 = vpop.permute.xlu0 %1101
      %1105 = vset.pattern.permute.xlu0 0
      %1106 = vperm.xlu0 %1105, %v390
      %v1107 = vpop.permute.xlu0 %1106
      %1110 = vset.pattern.permute.xlu0 0
      %1111 = vperm.xlu0 %1110, %v391
      %v1112 = vpop.permute.xlu0 %1111
      %1115 = vset.pattern.permute.xlu0 0
      %1116 = vperm.xlu0 %1115, %v392
      %v1117 = vpop.permute.xlu0 %1116
      %1120 = vset.pattern.permute.xlu0 0
      %1121 = vperm.xlu0 %1120, %v393
      %v1122 = vpop.permute.xlu0 %1121
      %1125 = vset.pattern.permute.xlu0 0
      %1126 = vperm.xlu0 %1125, %v394
      %v1127 = vpop.permute.xlu0 %1126
      %1130 = vset.pattern.permute.xlu0 0
      %1131 = vperm.xlu0 %1130, %v395
      %v1132 = vpop.permute.xlu0 %1131
      %1135 = vset.pattern.permute.xlu0 0
      %1136 = vperm.xlu0 %1135, %v396
      %v1137 = vpop.permute.xlu0 %1136
      %1140 = vset.pattern.permute.xlu0 0
      %1141 = vperm.xlu0 %1140, %v397
      %v1142 = vpop.permute.xlu0 %1141
      %1145 = vset.pattern.permute.xlu0 0
      %1146 = vperm.xlu0 %1145, %v398
      %v1147 = vpop.permute.xlu0 %1146
      %1150 = vset.pattern.permute.xlu0 0
      %1151 = vperm.xlu0 %1150, %v399
      %v1152 = vpop.permute.xlu0 %1151
      %1155 = vset.pattern.permute.xlu0 0
      %1156 = vperm.xlu0 %1155, %v400
      %v1157 = vpop.permute.xlu0 %1156
      %1160 = vset.pattern.permute.xlu0 0
      %1161 = vperm.xlu0 %1160, %v401
      %v1162 = vpop.permute.xlu0 %1161
      %1165 = vset.pattern.permute.xlu0 0
      %1166 = vperm.xlu0 %1165, %v402
      %v1167 = vpop.permute.xlu0 %1166
      %1170 = vset.pattern.permute.xlu0 0
      %1171 = vperm.xlu0 %1170, %v403
      %v1172 = vpop.permute.xlu0 %1171
      %1175 = vset.pattern.permute.xlu0 0
      %1176 = vperm.xlu0 %1175, %v404
      %v1177 = vpop.permute.xlu0 %1176
      %1180 = vset.pattern.permute.xlu0 0
      %1181 = vperm.xlu0 %1180, %v405
      %v1182 = vpop.permute.xlu0 %1181
      %1185 = vset.pattern.permute.xlu0 0
      %1186 = vperm.xlu0 %1185, %v406
      %v1187 = vpop.permute.xlu0 %1186
      %1190 = vset.pattern.permute.xlu0 0
      %1191 = vperm.xlu0 %1190, %v407
      %v1192 = vpop.permute.xlu0 %1191
      %1195 = vset.pattern.permute.xlu0 0
      %1196 = vperm.xlu0 %1195, %v408
      %v1197 = vpop.permute.xlu0 %1196
      %v1199 = vmul.f32 %v911, %v962
      %v1200 = vmul.f32 %v912, %v967
      %v1201 = vmul.f32 %v913, %v972
      %v1202 = vmul.f32 %v914, %v977
      %v1203 = vmul.f32 %v915, %v982
      %v1204 = vmul.f32 %v916, %v987
      %v1205 = vmul.f32 %v917, %v992
      %v1206 = vmul.f32 %v918, %v997
      %v1207 = vmul.f32 %v919, %v1002
      %v1208 = vmul.f32 %v920, %v1007
      %v1209 = vmul.f32 %v921, %v1012
      %v1210 = vmul.f32 %v922, %v1017
      %v1211 = vmul.f32 %v923, %v1022
      %v1212 = vmul.f32 %v924, %v1027
      %v1213 = vmul.f32 %v925, %v1032
      %v1214 = vmul.f32 %v926, %v1037
      %v1215 = vmul.f32 %v927, %v1042
      %v1216 = vmul.f32 %v928, %v1047
      %v1217 = vmul.f32 %v929, %v1052
      %v1218 = vmul.f32 %v930, %v1057
      %v1219 = vmul.f32 %v931, %v1062
      %v1220 = vmul.f32 %v932, %v1067
      %v1221 = vmul.f32 %v933, %v1072
      %v1222 = vmul.f32 %v934, %v1077
      %v1223 = vmul.f32 %v935, %v1082
      %v1224 = vmul.f32 %v936, %v1087
      %v1225 = vmul.f32 %v937, %v1092
      %v1226 = vmul.f32 %v938, %v1097
      %v1227 = vmul.f32 %v939, %v1102
      %v1228 = vmul.f32 %v940, %v1107
      %v1229 = vmul.f32 %v941, %v1112
      %v1230 = vmul.f32 %v942, %v1117
      %v1231 = vmul.f32 %v943, %v1122
      %v1232 = vmul.f32 %v944, %v1127
      %v1233 = vmul.f32 %v945, %v1132
      %v1234 = vmul.f32 %v946, %v1137
      %v1235 = vmul.f32 %v947, %v1142
      %v1236 = vmul.f32 %v948, %v1147
      %v1237 = vmul.f32 %v949, %v1152
      %v1238 = vmul.f32 %v950, %v1157
      %v1239 = vmul.f32 %v951, %v1162
      %v1240 = vmul.f32 %v952, %v1167
      %v1241 = vmul.f32 %v953, %v1172
      %v1242 = vmul.f32 %v954, %v1177
      %v1243 = vmul.f32 %v955, %v1182
      %v1244 = vmul.f32 %v956, %v1187
      %v1245 = vmul.f32 %v957, %v1192
      %v1246 = vmul.f32 %v958, %v1197
      %1247 = vst.msk [vmem:[#allocation2 + $0x18] sm:$0xff] %vm409, %v1199
      %1248 = vst.msk [vmem:[#allocation2 + $0x20] sm:$0xff] %vm409, %v1200
      %1249 = vst.msk [vmem:[#allocation2 + $0x28] sm:$0xff] %vm409, %v1201
      %1250 = vst.msk [vmem:[#allocation2 + $0x30] sm:$0xff] %vm409, %v1202
      %1251 = vst.msk [vmem:[#allocation2 + $0x38] sm:$0xff] %vm409, %v1203
      %1252 = vst.msk [vmem:[#allocation2 + $0x40] sm:$0xff] %vm409, %v1204
      %1253 = vst.msk [vmem:[#allocation2 + $0x48] sm:$0xff] %vm409, %v1205
      %1254 = vst.msk [vmem:[#allocation2 + $0x50] sm:$0xff] %vm409, %v1206
      %1255 = vst.msk [vmem:[#allocation2 + $0x58] sm:$0xff] %vm409, %v1207
      %1256 = vst.msk [vmem:[#allocation2 + $0x60] sm:$0xff] %vm409, %v1208
      %1257 = vst.msk [vmem:[#allocation2 + $0x68] sm:$0xff] %vm409, %v1209
      %1258 = vst.msk [vmem:[#allocation2 + $0x70] sm:$0xff] %vm409, %v1210
      %1259 = vst.msk [vmem:[#allocation2 + $0x78] sm:$0xff] %vm409, %v1211
      %1260 = vst.msk [vmem:[#allocation2 + $0x80] sm:$0xff] %vm409, %v1212
      %1261 = vst.msk [vmem:[#allocation2 + $0x88] sm:$0xff] %vm409, %v1213
      %1262 = vst.msk [vmem:[#allocation2 + $0x90] sm:$0xff] %vm409, %v1214
      %1263 = vst.msk [vmem:[#allocation2 + $0x98] sm:$0xff] %vm409, %v1215
      %1264 = vst.msk [vmem:[#allocation2 + $0xa0] sm:$0xff] %vm409, %v1216
      %1265 = vst.msk [vmem:[#allocation2 + $0xa8] sm:$0xff] %vm409, %v1217
      %1266 = vst.msk [vmem:[#allocation2 + $0xb0] sm:$0xff] %vm409, %v1218
      %1267 = vst.msk [vmem:[#allocation2 + $0xb8] sm:$0xff] %vm409, %v1219
      %1268 = vst.msk [vmem:[#allocation2 + $0xc0] sm:$0xff] %vm409, %v1220
      %1269 = vst.msk [vmem:[#allocation2 + $0xc8] sm:$0xff] %vm409, %v1221
      %1270 = vst.msk [vmem:[#allocation2 + $0xd0] sm:$0xff] %vm409, %v1222
      %1271 = vst.msk [vmem:[#allocation2 + $0xd8] sm:$0xff] %vm409, %v1223
      %1272 = vst.msk [vmem:[#allocation2 + $0xe0] sm:$0xff] %vm409, %v1224
      %1273 = vst.msk [vmem:[#allocation2 + $0xe8] sm:$0xff] %vm409, %v1225
      %1274 = vst.msk [vmem:[#allocation2 + $0xf0] sm:$0xff] %vm409, %v1226
      %1275 = vst.msk [vmem:[#allocation2 + $0xf8] sm:$0xff] %vm409, %v1227
      %1276 = vst.msk [vmem:[#allocation2 + $0x100] sm:$0xff] %vm409, %v1228
      %1277 = vst.msk [vmem:[#allocation2 + $0x108] sm:$0xff] %vm409, %v1229
      %1278 = vst.msk [vmem:[#allocation2 + $0x110] sm:$0xff] %vm409, %v1230
      %1279 = vst.msk [vmem:[#allocation2 + $0x118] sm:$0xff] %vm409, %v1231
      %1280 = vst.msk [vmem:[#allocation2 + $0x120] sm:$0xff] %vm409, %v1232
      %1281 = vst.msk [vmem:[#allocation2 + $0x128] sm:$0xff] %vm409, %v1233
      %1282 = vst.msk [vmem:[#allocation2 + $0x130] sm:$0xff] %vm409, %v1234
      %1283 = vst.msk [vmem:[#allocation2 + $0x138] sm:$0xff] %vm409, %v1235
      %1284 = vst.msk [vmem:[#allocation2 + $0x140] sm:$0xff] %vm409, %v1236
      %1285 = vst.msk [vmem:[#allocation2 + $0x148] sm:$0xff] %vm409, %v1237
      %1286 = vst.msk [vmem:[#allocation2 + $0x150] sm:$0xff] %vm409, %v1238
      %1287 = vst.msk [vmem:[#allocation2 + $0x158] sm:$0xff] %vm409, %v1239
      %1288 = vst.msk [vmem:[#allocation2 + $0x160] sm:$0xff] %vm409, %v1240
      %1289 = vst.msk [vmem:[#allocation2 + $0x168] sm:$0xff] %vm409, %v1241
      %1290 = vst.msk [vmem:[#allocation2 + $0x170] sm:$0xff] %vm409, %v1242
      %1291 = vst.msk [vmem:[#allocation2 + $0x178] sm:$0xff] %vm409, %v1243
      %1292 = vst.msk [vmem:[#allocation2 + $0x180] sm:$0xff] %vm409, %v1244
      %1293 = vst.msk [vmem:[#allocation2 + $0x188] sm:$0xff] %vm409, %v1245
      %1294 = vst.msk [vmem:[#allocation2 + $0x190] sm:$0xff] %vm409, %v1246
      %v1295 = vld [vmem:[#allocation2 + $0x5] sm:$0xff]
      %v1296 = vld [vmem:[#allocation2 + $0xd] sm:$0xff]
      %v1297 = vld [vmem:[#allocation2 + $0x15] sm:$0xff]
      %v1298 = vld [vmem:[#allocation2 + $0x1d] sm:$0xff]
      %v1299 = vld [vmem:[#allocation2 + $0x25] sm:$0xff]
      %v1300 = vld [vmem:[#allocation2 + $0x2d] sm:$0xff]
      %v1301 = vld [vmem:[#allocation2 + $0x35] sm:$0xff]
      %v1302 = vld [vmem:[#allocation2 + $0x3d] sm:$0xff]
      %v1303 = vld [vmem:[#allocation2 + $0x45] sm:$0xff]
      %v1304 = vld [vmem:[#allocation2 + $0x4d] sm:$0xff]
      %v1305 = vld [vmem:[#allocation2 + $0x55] sm:$0xff]
      %v1306 = vld [vmem:[#allocation2 + $0x5d] sm:$0xff]
      %v1307 = vld [vmem:[#allocation2 + $0x65] sm:$0xff]
      %v1308 = vld [vmem:[#allocation2 + $0x6d] sm:$0xff]
      %v1309 = vld [vmem:[#allocation2 + $0x75] sm:$0xff]
      %v1310 = vld [vmem:[#allocation2 + $0x7d] sm:$0xff]
      %v1311 = vld [vmem:[#allocation2 + $0x85] sm:$0xff]
      %v1312 = vld [vmem:[#allocation2 + $0x8d] sm:$0xff]
      %v1313 = vld [vmem:[#allocation2 + $0x95] sm:$0xff]
      %v1314 = vld [vmem:[#allocation2 + $0x9d] sm:$0xff]
      %v1315 = vld [vmem:[#allocation2 + $0xa5] sm:$0xff]
      %v1316 = vld [vmem:[#allocation2 + $0xad] sm:$0xff]
      %v1317 = vld [vmem:[#allocation2 + $0xb5] sm:$0xff]
      %v1318 = vld [vmem:[#allocation2 + $0xbd] sm:$0xff]
      %v1319 = vld [vmem:[#allocation2 + $0xc5] sm:$0xff]
      %v1320 = vld [vmem:[#allocation2 + $0xcd] sm:$0xff]
      %v1321 = vld [vmem:[#allocation2 + $0xd5] sm:$0xff]
      %v1322 = vld [vmem:[#allocation2 + $0xdd] sm:$0xff]
      %v1323 = vld [vmem:[#allocation2 + $0xe5] sm:$0xff]
      %v1324 = vld [vmem:[#allocation2 + $0xed] sm:$0xff]
      %v1325 = vld [vmem:[#allocation2 + $0xf5] sm:$0xff]
      %v1326 = vld [vmem:[#allocation2 + $0xfd] sm:$0xff]
      %v1327 = vld [vmem:[#allocation2 + $0x105] sm:$0xff]
      %v1328 = vld [vmem:[#allocation2 + $0x10d] sm:$0xff]
      %v1329 = vld [vmem:[#allocation2 + $0x115] sm:$0xff]
      %v1330 = vld [vmem:[#allocation2 + $0x11d] sm:$0xff]
      %v1331 = vld [vmem:[#allocation2 + $0x125] sm:$0xff]
      %v1332 = vld [vmem:[#allocation2 + $0x12d] sm:$0xff]
      %v1333 = vld [vmem:[#allocation2 + $0x135] sm:$0xff]
      %v1334 = vld [vmem:[#allocation2 + $0x13d] sm:$0xff]
      %v1335 = vld [vmem:[#allocation2 + $0x145] sm:$0xff]
      %v1336 = vld [vmem:[#allocation2 + $0x14d] sm:$0xff]
      %v1337 = vld [vmem:[#allocation2 + $0x155] sm:$0xff]
      %v1338 = vld [vmem:[#allocation2 + $0x15d] sm:$0xff]
      %v1339 = vld [vmem:[#allocation2 + $0x165] sm:$0xff]
      %v1340 = vld [vmem:[#allocation2 + $0x16d] sm:$0xff]
      %v1341 = vld [vmem:[#allocation2 + $0x175] sm:$0xff]
      %v1342 = vld [vmem:[#allocation2 + $0x17d] sm:$0xff]
      %v1343 = vpack.c.bf16 %v1296, %v1295
      %v1344 = vpack.c.bf16 %v1298, %v1297
      %v1345 = vpack.c.bf16 %v1300, %v1299
      %v1346 = vpack.c.bf16 %v1302, %v1301
      %v1347 = vpack.c.bf16 %v1304, %v1303
      %v1348 = vpack.c.bf16 %v1306, %v1305
      %v1349 = vpack.c.bf16 %v1308, %v1307
      %v1350 = vpack.c.bf16 %v1310, %v1309
      %v1351 = vpack.c.bf16 %v1312, %v1311
      %v1352 = vpack.c.bf16 %v1314, %v1313
      %v1353 = vpack.c.bf16 %v1316, %v1315
      %v1354 = vpack.c.bf16 %v1318, %v1317
      %v1355 = vpack.c.bf16 %v1320, %v1319
      %v1356 = vpack.c.bf16 %v1322, %v1321
      %v1357 = vpack.c.bf16 %v1324, %v1323
      %v1358 = vpack.c.bf16 %v1326, %v1325
      %v1359 = vpack.c.bf16 %v1328, %v1327
      %v1360 = vpack.c.bf16 %v1330, %v1329
      %v1361 = vpack.c.bf16 %v1332, %v1331
      %v1362 = vpack.c.bf16 %v1334, %v1333
      %v1363 = vpack.c.bf16 %v1336, %v1335
      %v1364 = vpack.c.bf16 %v1338, %v1337
      %v1365 = vpack.c.bf16 %v1340, %v1339
      %v1366 = vpack.c.bf16 %v1342, %v1341
      %1367 = vst.msk [vmem:[#allocation3] sm:$0xff] %vm409, %v1343
      %1368 = vst.msk [vmem:[#allocation3 + $0x28] sm:$0xff] %vm409, %v1344
      %1369 = vst.msk [vmem:[#allocation3 + $0x50] sm:$0xff] %vm409, %v1345
      %1370 = vst.msk [vmem:[#allocation3 + $0x78] sm:$0xff] %vm409, %v1346
      %1371 = vst.msk [vmem:[#allocation3 + $0xa0] sm:$0xff] %vm409, %v1347
      %1372 = vst.msk [vmem:[#allocation3 + $0xc8] sm:$0xff] %vm409, %v1348
      %1373 = vst.msk [vmem:[#allocation3 + $0xf0] sm:$0xff] %vm409, %v1349
      %1374 = vst.msk [vmem:[#allocation3 + $0x118] sm:$0xff] %vm409, %v1350
      %1375 = vst.msk [vmem:[#allocation3 + $0x140] sm:$0xff] %vm409, %v1351
      %1376 = vst.msk [vmem:[#allocation3 + $0x168] sm:$0xff] %vm409, %v1352
      %1377 = vst.msk [vmem:[#allocation3 + $0x190] sm:$0xff] %vm409, %v1353
      %1378 = vst.msk [vmem:[#allocation3 + $0x1b8] sm:$0xff] %vm409, %v1354
      %1379 = vst.msk [vmem:[#allocation3 + $0x1e0] sm:$0xff] %vm409, %v1355
      %1380 = vst.msk [vmem:[#allocation3 + $0x208] sm:$0xff] %vm409, %v1356
      %1381 = vst.msk [vmem:[#allocation3 + $0x230] sm:$0xff] %vm409, %v1357
      %1382 = vst.msk [vmem:[#allocation3 + $0x258] sm:$0xff] %vm409, %v1358
      %1383 = vst.msk [vmem:[#allocation3 + $0x280] sm:$0xff] %vm409, %v1359
      %1384 = vst.msk [vmem:[#allocation3 + $0x2a8] sm:$0xff] %vm409, %v1360
      %1385 = vst.msk [vmem:[#allocation3 + $0x2d0] sm:$0xff] %vm409, %v1361
      %1386 = vst.msk [vmem:[#allocation3 + $0x2f8] sm:$0xff] %vm409, %v1362
      %1387 = vst.msk [vmem:[#allocation3 + $0x320] sm:$0xff] %vm409, %v1363
      %1388 = vst.msk [vmem:[#allocation3 + $0x348] sm:$0xff] %vm409, %v1364
      %1389 = vst.msk [vmem:[#allocation3 + $0x370] sm:$0xff] %vm409, %v1365
      %1390 = vst.msk [vmem:[#allocation3 + $0x398] sm:$0xff] %vm409, %v1366
      %v1391 = vld [vmem:[#allocation2 + $0x6] sm:$0xff]
      %v1392 = vld [vmem:[#allocation2 + $0xe] sm:$0xff]
      %v1393 = vld [vmem:[#allocation2 + $0x16] sm:$0xff]
      %v1394 = vld [vmem:[#allocation2 + $0x1e] sm:$0xff]
      %v1395 = vld [vmem:[#allocation2 + $0x26] sm:$0xff]
      %v1396 = vld [vmem:[#allocation2 + $0x2e] sm:$0xff]
      %v1397 = vld [vmem:[#allocation2 + $0x36] sm:$0xff]
      %v1398 = vld [vmem:[#allocation2 + $0x3e] sm:$0xff]
      %v1399 = vld [vmem:[#allocation2 + $0x46] sm:$0xff]
      %v1400 = vld [vmem:[#allocation2 + $0x4e] sm:$0xff]
      %v1401 = vld [vmem:[#allocation2 + $0x56] sm:$0xff]
      %v1402 = vld [vmem:[#allocation2 + $0x5e] sm:$0xff]
      %v1403 = vld [vmem:[#allocation2 + $0x66] sm:$0xff]
      %v1404 = vld [vmem:[#allocation2 + $0x6e] sm:$0xff]
      %v1405 = vld [vmem:[#allocation2 + $0x76] sm:$0xff]
      %v1406 = vld [vmem:[#allocation2 + $0x7e] sm:$0xff]
      %v1407 = vld [vmem:[#allocation2 + $0x86] sm:$0xff]
      %v1408 = vld [vmem:[#allocation2 + $0x8e] sm:$0xff]
      %v1409 = vld [vmem:[#allocation2 + $0x96] sm:$0xff]
      %v1410 = vld [vmem:[#allocation2 + $0x9e] sm:$0xff]
      %v1411 = vld [vmem:[#allocation2 + $0xa6] sm:$0xff]
      %v1412 = vld [vmem:[#allocation2 + $0xae] sm:$0xff]
      %v1413 = vld [vmem:[#allocation2 + $0xb6] sm:$0xff]
      %v1414 = vld [vmem:[#allocation2 + $0xbe] sm:$0xff]
      %v1415 = vld [vmem:[#allocation2 + $0xc6] sm:$0xff]
      %v1416 = vld [vmem:[#allocation2 + $0xce] sm:$0xff]
      %v1417 = vld [vmem:[#allocation2 + $0xd6] sm:$0xff]
      %v1418 = vld [vmem:[#allocation2 + $0xde] sm:$0xff]
      %v1419 = vld [vmem:[#allocation2 + $0xe6] sm:$0xff]
      %v1420 = vld [vmem:[#allocation2 + $0xee] sm:$0xff]
      %v1421 = vld [vmem:[#allocation2 + $0xf6] sm:$0xff]
      %v1422 = vld [vmem:[#allocation2 + $0xfe] sm:$0xff]
      %v1423 = vld [vmem:[#allocation2 + $0x106] sm:$0xff]
      %v1424 = vld [vmem:[#allocation2 + $0x10e] sm:$0xff]
      %v1425 = vld [vmem:[#allocation2 + $0x116] sm:$0xff]
      %v1426 = vld [vmem:[#allocation2 + $0x11e] sm:$0xff]
      %v1427 = vld [vmem:[#allocation2 + $0x126] sm:$0xff]
      %v1428 = vld [vmem:[#allocation2 + $0x12e] sm:$0xff]
      %v1429 = vld [vmem:[#allocation2 + $0x136] sm:$0xff]
      %v1430 = vld [vmem:[#allocation2 + $0x13e] sm:$0xff]
      %v1431 = vld [vmem:[#allocation2 + $0x146] sm:$0xff]
      %v1432 = vld [vmem:[#allocation2 + $0x14e] sm:$0xff]
      %v1433 = vld [vmem:[#allocation2 + $0x156] sm:$0xff]
      %v1434 = vld [vmem:[#allocation2 + $0x15e] sm:$0xff]
      %v1435 = vld [vmem:[#allocation2 + $0x166] sm:$0xff]
      %v1436 = vld [vmem:[#allocation2 + $0x16e] sm:$0xff]
      %v1437 = vld [vmem:[#allocation2 + $0x176] sm:$0xff]
      %v1438 = vld [vmem:[#allocation2 + $0x17e] sm:$0xff]
      %v1439 = vpack.c.bf16 %v1392, %v1391
      %v1440 = vpack.c.bf16 %v1394, %v1393
      %v1441 = vpack.c.bf16 %v1396, %v1395
      %v1442 = vpack.c.bf16 %v1398, %v1397
      %v1443 = vpack.c.bf16 %v1400, %v1399
      %v1444 = vpack.c.bf16 %v1402, %v1401
      %v1445 = vpack.c.bf16 %v1404, %v1403
      %v1446 = vpack.c.bf16 %v1406, %v1405
      %v1447 = vpack.c.bf16 %v1408, %v1407
      %v1448 = vpack.c.bf16 %v1410, %v1409
      %v1449 = vpack.c.bf16 %v1412, %v1411
      %v1450 = vpack.c.bf16 %v1414, %v1413
      %v1451 = vpack.c.bf16 %v1416, %v1415
      %v1452 = vpack.c.bf16 %v1418, %v1417
      %v1453 = vpack.c.bf16 %v1420, %v1419
      %v1454 = vpack.c.bf16 %v1422, %v1421
      %v1455 = vpack.c.bf16 %v1424, %v1423
      %v1456 = vpack.c.bf16 %v1426, %v1425
      %v1457 = vpack.c.bf16 %v1428, %v1427
      %v1458 = vpack.c.bf16 %v1430, %v1429
      %v1459 = vpack.c.bf16 %v1432, %v1431
      %v1460 = vpack.c.bf16 %v1434, %v1433
      %v1461 = vpack.c.bf16 %v1436, %v1435
      %v1462 = vpack.c.bf16 %v1438, %v1437
      %1487 = vrot.lane.b32.xlu0 %v1439, 64
      %v1488 = vpop.permute.xlu0 %1487
      %1489 = vrot.lane.b32.xlu0 %v1440, 64
      %v1490 = vpop.permute.xlu0 %1489
      %1491 = vrot.lane.b32.xlu0 %v1441, 64
      %v1492 = vpop.permute.xlu0 %1491
      %1493 = vrot.lane.b32.xlu0 %v1442, 64
      %v1494 = vpop.permute.xlu0 %1493
      %1495 = vrot.lane.b32.xlu0 %v1443, 64
      %v1496 = vpop.permute.xlu0 %1495
      %1497 = vrot.lane.b32.xlu0 %v1444, 64
      %v1498 = vpop.permute.xlu0 %1497
      %1499 = vrot.lane.b32.xlu0 %v1445, 64
      %v1500 = vpop.permute.xlu0 %1499
      %1501 = vrot.lane.b32.xlu0 %v1446, 64
      %v1502 = vpop.permute.xlu0 %1501
      %1503 = vrot.lane.b32.xlu0 %v1447, 64
      %v1504 = vpop.permute.xlu0 %1503
      %1505 = vrot.lane.b32.xlu0 %v1448, 64
      %v1506 = vpop.permute.xlu0 %1505
      %1507 = vrot.lane.b32.xlu0 %v1449, 64
      %v1508 = vpop.permute.xlu0 %1507
      %1509 = vrot.lane.b32.xlu0 %v1450, 64
      %v1510 = vpop.permute.xlu0 %1509
      %1511 = vrot.lane.b32.xlu0 %v1451, 64
      %v1512 = vpop.permute.xlu0 %1511
      %1513 = vrot.lane.b32.xlu0 %v1452, 64
      %v1514 = vpop.permute.xlu0 %1513
      %1515 = vrot.lane.b32.xlu0 %v1453, 64
      %v1516 = vpop.permute.xlu0 %1515
      %1517 = vrot.lane.b32.xlu0 %v1454, 64
      %v1518 = vpop.permute.xlu0 %1517
      %1519 = vrot.lane.b32.xlu0 %v1455, 64
      %v1520 = vpop.permute.xlu0 %1519
      %1521 = vrot.lane.b32.xlu0 %v1456, 64
      %v1522 = vpop.permute.xlu0 %1521
      %1523 = vrot.lane.b32.xlu0 %v1457, 64
      %v1524 = vpop.permute.xlu0 %1523
      %1525 = vrot.lane.b32.xlu0 %v1458, 64
      %v1526 = vpop.permute.xlu0 %1525
      %1527 = vrot.lane.b32.xlu0 %v1459, 64
      %v1528 = vpop.permute.xlu0 %1527
      %1529 = vrot.lane.b32.xlu0 %v1460, 64
      %v1530 = vpop.permute.xlu0 %1529
      %1531 = vrot.lane.b32.xlu0 %v1461, 64
      %v1532 = vpop.permute.xlu0 %1531
      %1533 = vrot.lane.b32.xlu0 %v1462, 64
      %v1534 = vpop.permute.xlu0 %1533
      %vm1559 = vcmask 1048064
      %1560 = vst.msk [vmem:[#allocation3] sm:$0xff] %vm1559, %v1488
      %1561 = vst.msk [vmem:[#allocation3 + $0x28] sm:$0xff] %vm1559, %v1490
      %1562 = vst.msk [vmem:[#allocation3 + $0x50] sm:$0xff] %vm1559, %v1492
      %1563 = vst.msk [vmem:[#allocation3 + $0x78] sm:$0xff] %vm1559, %v1494
      %1564 = vst.msk [vmem:[#allocation3 + $0xa0] sm:$0xff] %vm1559, %v1496
      %1565 = vst.msk [vmem:[#allocation3 + $0xc8] sm:$0xff] %vm1559, %v1498
      %1566 = vst.msk [vmem:[#allocation3 + $0xf0] sm:$0xff] %vm1559, %v1500
      %1567 = vst.msk [vmem:[#allocation3 + $0x118] sm:$0xff] %vm1559, %v1502
      %1568 = vst.msk [vmem:[#allocation3 + $0x140] sm:$0xff] %vm1559, %v1504
      %1569 = vst.msk [vmem:[#allocation3 + $0x168] sm:$0xff] %vm1559, %v1506
      %1570 = vst.msk [vmem:[#allocation3 + $0x190] sm:$0xff] %vm1559, %v1508
      %1571 = vst.msk [vmem:[#allocation3 + $0x1b8] sm:$0xff] %vm1559, %v1510
      %1572 = vst.msk [vmem:[#allocation3 + $0x1e0] sm:$0xff] %vm1559, %v1512
      %1573 = vst.msk [vmem:[#allocation3 + $0x208] sm:$0xff] %vm1559, %v1514
      %1574 = vst.msk [vmem:[#allocation3 + $0x230] sm:$0xff] %vm1559, %v1516
      %1575 = vst.msk [vmem:[#allocation3 + $0x258] sm:$0xff] %vm1559, %v1518
      %1576 = vst.msk [vmem:[#allocation3 + $0x280] sm:$0xff] %vm1559, %v1520
      %1577 = vst.msk [vmem:[#allocation3 + $0x2a8] sm:$0xff] %vm1559, %v1522
      %1578 = vst.msk [vmem:[#allocation3 + $0x2d0] sm:$0xff] %vm1559, %v1524
      %1579 = vst.msk [vmem:[#allocation3 + $0x2f8] sm:$0xff] %vm1559, %v1526
      %1580 = vst.msk [vmem:[#allocation3 + $0x320] sm:$0xff] %vm1559, %v1528
      %1581 = vst.msk [vmem:[#allocation3 + $0x348] sm:$0xff] %vm1559, %v1530
      %1582 = vst.msk [vmem:[#allocation3 + $0x370] sm:$0xff] %vm1559, %v1532
      %1583 = vst.msk [vmem:[#allocation3 + $0x398] sm:$0xff] %vm1559, %v1534
      %v1584 = vld [vmem:[#allocation2 + $0x7] sm:$0xff]
      %v1585 = vld [vmem:[#allocation2 + $0xf] sm:$0xff]
      %v1586 = vld [vmem:[#allocation2 + $0x17] sm:$0xff]
      %v1587 = vld [vmem:[#allocation2 + $0x1f] sm:$0xff]
      %v1588 = vld [vmem:[#allocation2 + $0x27] sm:$0xff]
      %v1589 = vld [vmem:[#allocation2 + $0x2f] sm:$0xff]
      %v1590 = vld [vmem:[#allocation2 + $0x37] sm:$0xff]
      %v1591 = vld [vmem:[#allocation2 + $0x3f] sm:$0xff]
      %v1592 = vld [vmem:[#allocation2 + $0x47] sm:$0xff]
      %v1593 = vld [vmem:[#allocation2 + $0x4f] sm:$0xff]
      %v1594 = vld [vmem:[#allocation2 + $0x57] sm:$0xff]
      %v1595 = vld [vmem:[#allocation2 + $0x5f] sm:$0xff]
      %v1596 = vld [vmem:[#allocation2 + $0x67] sm:$0xff]
      %v1597 = vld [vmem:[#allocation2 + $0x6f] sm:$0xff]
      %v1598 = vld [vmem:[#allocation2 + $0x77] sm:$0xff]
      %v1599 = vld [vmem:[#allocation2 + $0x7f] sm:$0xff]
      %v1600 = vld [vmem:[#allocation2 + $0x87] sm:$0xff]
      %v1601 = vld [vmem:[#allocation2 + $0x8f] sm:$0xff]
      %v1602 = vld [vmem:[#allocation2 + $0x97] sm:$0xff]
      %v1603 = vld [vmem:[#allocation2 + $0x9f] sm:$0xff]
      %v1604 = vld [vmem:[#allocation2 + $0xa7] sm:$0xff]
      %v1605 = vld [vmem:[#allocation2 + $0xaf] sm:$0xff]
      %v1606 = vld [vmem:[#allocation2 + $0xb7] sm:$0xff]
      %v1607 = vld [vmem:[#allocation2 + $0xbf] sm:$0xff]
      %v1608 = vld [vmem:[#allocation2 + $0xc7] sm:$0xff]
      %v1609 = vld [vmem:[#allocation2 + $0xcf] sm:$0xff]
      %v1610 = vld [vmem:[#allocation2 + $0xd7] sm:$0xff]
      %v1611 = vld [vmem:[#allocation2 + $0xdf] sm:$0xff]
      %v1612 = vld [vmem:[#allocation2 + $0xe7] sm:$0xff]
      %v1613 = vld [vmem:[#allocation2 + $0xef] sm:$0xff]
      %v1614 = vld [vmem:[#allocation2 + $0xf7] sm:$0xff]
      %v1615 = vld [vmem:[#allocation2 + $0xff] sm:$0xff]
      %v1616 = vld [vmem:[#allocation2 + $0x107] sm:$0xff]
      %v1617 = vld [vmem:[#allocation2 + $0x10f] sm:$0xff]
      %v1618 = vld [vmem:[#allocation2 + $0x117] sm:$0xff]
      %v1619 = vld [vmem:[#allocation2 + $0x11f] sm:$0xff]
      %v1620 = vld [vmem:[#allocation2 + $0x127] sm:$0xff]
      %v1621 = vld [vmem:[#allocation2 + $0x12f] sm:$0xff]
      %v1622 = vld [vmem:[#allocation2 + $0x137] sm:$0xff]
      %v1623 = vld [vmem:[#allocation2 + $0x13f] sm:$0xff]
      %v1624 = vld [vmem:[#allocation2 + $0x147] sm:$0xff]
      %v1625 = vld [vmem:[#allocation2 + $0x14f] sm:$0xff]
      %v1626 = vld [vmem:[#allocation2 + $0x157] sm:$0xff]
      %v1627 = vld [vmem:[#allocation2 + $0x15f] sm:$0xff]
      %v1628 = vld [vmem:[#allocation2 + $0x167] sm:$0xff]
      %v1629 = vld [vmem:[#allocation2 + $0x16f] sm:$0xff]
      %v1630 = vld [vmem:[#allocation2 + $0x177] sm:$0xff]
      %v1631 = vld [vmem:[#allocation2 + $0x17f] sm:$0xff]
      %v1632 = vpack.c.bf16 %v1585, %v1584
      %v1633 = vpack.c.bf16 %v1587, %v1586
      %v1634 = vpack.c.bf16 %v1589, %v1588
      %v1635 = vpack.c.bf16 %v1591, %v1590
      %v1636 = vpack.c.bf16 %v1593, %v1592
      %v1637 = vpack.c.bf16 %v1595, %v1594
      %v1638 = vpack.c.bf16 %v1597, %v1596
      %v1639 = vpack.c.bf16 %v1599, %v1598
      %v1640 = vpack.c.bf16 %v1601, %v1600
      %v1641 = vpack.c.bf16 %v1603, %v1602
      %v1642 = vpack.c.bf16 %v1605, %v1604
      %v1643 = vpack.c.bf16 %v1607, %v1606
      %v1644 = vpack.c.bf16 %v1609, %v1608
      %v1645 = vpack.c.bf16 %v1611, %v1610
      %v1646 = vpack.c.bf16 %v1613, %v1612
      %v1647 = vpack.c.bf16 %v1615, %v1614
      %v1648 = vpack.c.bf16 %v1617, %v1616
      %v1649 = vpack.c.bf16 %v1619, %v1618
      %v1650 = vpack.c.bf16 %v1621, %v1620
      %v1651 = vpack.c.bf16 %v1623, %v1622
      %v1652 = vpack.c.bf16 %v1625, %v1624
      %v1653 = vpack.c.bf16 %v1627, %v1626
      %v1654 = vpack.c.bf16 %v1629, %v1628
      %v1655 = vpack.c.bf16 %v1631, %v1630
      %1656 = vst.msk [vmem:[#allocation3 + $0x8] sm:$0xff] %vm409, %v1632
      %1657 = vst.msk [vmem:[#allocation3 + $0x30] sm:$0xff] %vm409, %v1633
      %1658 = vst.msk [vmem:[#allocation3 + $0x58] sm:$0xff] %vm409, %v1634
      %1659 = vst.msk [vmem:[#allocation3 + $0x80] sm:$0xff] %vm409, %v1635
      %1660 = vst.msk [vmem:[#allocation3 + $0xa8] sm:$0xff] %vm409, %v1636
      %1661 = vst.msk [vmem:[#allocation3 + $0xd0] sm:$0xff] %vm409, %v1637
      %1662 = vst.msk [vmem:[#allocation3 + $0xf8] sm:$0xff] %vm409, %v1638
      %1663 = vst.msk [vmem:[#allocation3 + $0x120] sm:$0xff] %vm409, %v1639
      %1664 = vst.msk [vmem:[#allocation3 + $0x148] sm:$0xff] %vm409, %v1640
      %1665 = vst.msk [vmem:[#allocation3 + $0x170] sm:$0xff] %vm409, %v1641
      %1666 = vst.msk [vmem:[#allocation3 + $0x198] sm:$0xff] %vm409, %v1642
      %1667 = vst.msk [vmem:[#allocation3 + $0x1c0] sm:$0xff] %vm409, %v1643
      %1668 = vst.msk [vmem:[#allocation3 + $0x1e8] sm:$0xff] %vm409, %v1644
      %1669 = vst.msk [vmem:[#allocation3 + $0x210] sm:$0xff] %vm409, %v1645
      %1670 = vst.msk [vmem:[#allocation3 + $0x238] sm:$0xff] %vm409, %v1646
      %1671 = vst.msk [vmem:[#allocation3 + $0x260] sm:$0xff] %vm409, %v1647
      %1672 = vst.msk [vmem:[#allocation3 + $0x288] sm:$0xff] %vm409, %v1648
      %1673 = vst.msk [vmem:[#allocation3 + $0x2b0] sm:$0xff] %vm409, %v1649
      %1674 = vst.msk [vmem:[#allocation3 + $0x2d8] sm:$0xff] %vm409, %v1650
      %1675 = vst.msk [vmem:[#allocation3 + $0x300] sm:$0xff] %vm409, %v1651
      %1676 = vst.msk [vmem:[#allocation3 + $0x328] sm:$0xff] %vm409, %v1652
      %1677 = vst.msk [vmem:[#allocation3 + $0x350] sm:$0xff] %vm409, %v1653
      %1678 = vst.msk [vmem:[#allocation3 + $0x378] sm:$0xff] %vm409, %v1654
      %1679 = vst.msk [vmem:[#allocation3 + $0x3a0] sm:$0xff] %vm409, %v1655
      %v1680 = vld [vmem:[#allocation2 + $0x17] sm:$0xff]
      %v1681 = vld [vmem:[#allocation2 + $0x1f] sm:$0xff]
      %v1682 = vld [vmem:[#allocation2 + $0x27] sm:$0xff]
      %v1683 = vld [vmem:[#allocation2 + $0x2f] sm:$0xff]
      %v1684 = vld [vmem:[#allocation2 + $0x37] sm:$0xff]
      %v1685 = vld [vmem:[#allocation2 + $0x3f] sm:$0xff]
      %v1686 = vld [vmem:[#allocation2 + $0x47] sm:$0xff]
      %v1687 = vld [vmem:[#allocation2 + $0x4f] sm:$0xff]
      %v1688 = vld [vmem:[#allocation2 + $0x57] sm:$0xff]
      %v1689 = vld [vmem:[#allocation2 + $0x5f] sm:$0xff]
      %v1690 = vld [vmem:[#allocation2 + $0x67] sm:$0xff]
      %v1691 = vld [vmem:[#allocation2 + $0x6f] sm:$0xff]
      %v1692 = vld [vmem:[#allocation2 + $0x77] sm:$0xff]
      %v1693 = vld [vmem:[#allocation2 + $0x7f] sm:$0xff]
      %v1694 = vld [vmem:[#allocation2 + $0x87] sm:$0xff]
      %v1695 = vld [vmem:[#allocation2 + $0x8f] sm:$0xff]
      %v1696 = vld [vmem:[#allocation2 + $0x97] sm:$0xff]
      %v1697 = vld [vmem:[#allocation2 + $0x9f] sm:$0xff]
      %v1698 = vld [vmem:[#allocation2 + $0xa7] sm:$0xff]
      %v1699 = vld [vmem:[#allocation2 + $0xaf] sm:$0xff]
      %v1700 = vld [vmem:[#allocation2 + $0xb7] sm:$0xff]
      %v1701 = vld [vmem:[#allocation2 + $0xbf] sm:$0xff]
      %v1702 = vld [vmem:[#allocation2 + $0xc7] sm:$0xff]
      %v1703 = vld [vmem:[#allocation2 + $0xcf] sm:$0xff]
      %v1704 = vld [vmem:[#allocation2 + $0xd7] sm:$0xff]
      %v1705 = vld [vmem:[#allocation2 + $0xdf] sm:$0xff]
      %v1706 = vld [vmem:[#allocation2 + $0xe7] sm:$0xff]
      %v1707 = vld [vmem:[#allocation2 + $0xef] sm:$0xff]
      %v1708 = vld [vmem:[#allocation2 + $0xf7] sm:$0xff]
      %v1709 = vld [vmem:[#allocation2 + $0xff] sm:$0xff]
      %v1710 = vld [vmem:[#allocation2 + $0x107] sm:$0xff]
      %v1711 = vld [vmem:[#allocation2 + $0x10f] sm:$0xff]
      %v1712 = vld [vmem:[#allocation2 + $0x117] sm:$0xff]
      %v1713 = vld [vmem:[#allocation2 + $0x11f] sm:$0xff]
      %v1714 = vld [vmem:[#allocation2 + $0x127] sm:$0xff]
      %v1715 = vld [vmem:[#allocation2 + $0x12f] sm:$0xff]
      %v1716 = vld [vmem:[#allocation2 + $0x137] sm:$0xff]
      %v1717 = vld [vmem:[#allocation2 + $0x13f] sm:$0xff]
      %v1718 = vld [vmem:[#allocation2 + $0x147] sm:$0xff]
      %v1719 = vld [vmem:[#allocation2 + $0x14f] sm:$0xff]
      %v1720 = vld [vmem:[#allocation2 + $0x157] sm:$0xff]
      %v1721 = vld [vmem:[#allocation2 + $0x15f] sm:$0xff]
      %v1722 = vld [vmem:[#allocation2 + $0x167] sm:$0xff]
      %v1723 = vld [vmem:[#allocation2 + $0x16f] sm:$0xff]
      %v1724 = vld [vmem:[#allocation2 + $0x177] sm:$0xff]
      %v1725 = vld [vmem:[#allocation2 + $0x17f] sm:$0xff]
      %v1726 = vld [vmem:[#allocation2 + $0x187] sm:$0xff]
      %v1727 = vld [vmem:[#allocation2 + $0x18f] sm:$0xff]
      %v1728 = vpack.c.bf16 %v1681, %v1680
      %v1729 = vpack.c.bf16 %v1683, %v1682
      %v1730 = vpack.c.bf16 %v1685, %v1684
      %v1731 = vpack.c.bf16 %v1687, %v1686
      %v1732 = vpack.c.bf16 %v1689, %v1688
      %v1733 = vpack.c.bf16 %v1691, %v1690
      %v1734 = vpack.c.bf16 %v1693, %v1692
      %v1735 = vpack.c.bf16 %v1695, %v1694
      %v1736 = vpack.c.bf16 %v1697, %v1696
      %v1737 = vpack.c.bf16 %v1699, %v1698
      %v1738 = vpack.c.bf16 %v1701, %v1700
      %v1739 = vpack.c.bf16 %v1703, %v1702
      %v1740 = vpack.c.bf16 %v1705, %v1704
      %v1741 = vpack.c.bf16 %v1707, %v1706
      %v1742 = vpack.c.bf16 %v1709, %v1708
      %v1743 = vpack.c.bf16 %v1711, %v1710
      %v1744 = vpack.c.bf16 %v1713, %v1712
      %v1745 = vpack.c.bf16 %v1715, %v1714
      %v1746 = vpack.c.bf16 %v1717, %v1716
      %v1747 = vpack.c.bf16 %v1719, %v1718
      %v1748 = vpack.c.bf16 %v1721, %v1720
      %v1749 = vpack.c.bf16 %v1723, %v1722
      %v1750 = vpack.c.bf16 %v1725, %v1724
      %v1751 = vpack.c.bf16 %v1727, %v1726
      %1776 = vrot.lane.b32.xlu0 %v1728, 64
      %v1777 = vpop.permute.xlu0 %1776
      %1778 = vrot.lane.b32.xlu0 %v1729, 64
      %v1779 = vpop.permute.xlu0 %1778
      %1780 = vrot.lane.b32.xlu0 %v1730, 64
      %v1781 = vpop.permute.xlu0 %1780
      %1782 = vrot.lane.b32.xlu0 %v1731, 64
      %v1783 = vpop.permute.xlu0 %1782
      %1784 = vrot.lane.b32.xlu0 %v1732, 64
      %v1785 = vpop.permute.xlu0 %1784
      %1786 = vrot.lane.b32.xlu0 %v1733, 64
      %v1787 = vpop.permute.xlu0 %1786
      %1788 = vrot.lane.b32.xlu0 %v1734, 64
      %v1789 = vpop.permute.xlu0 %1788
      %1790 = vrot.lane.b32.xlu0 %v1735, 64
      %v1791 = vpop.permute.xlu0 %1790
      %1792 = vrot.lane.b32.xlu0 %v1736, 64
      %v1793 = vpop.permute.xlu0 %1792
      %1794 = vrot.lane.b32.xlu0 %v1737, 64
      %v1795 = vpop.permute.xlu0 %1794
      %1796 = vrot.lane.b32.xlu0 %v1738, 64
      %v1797 = vpop.permute.xlu0 %1796
      %1798 = vrot.lane.b32.xlu0 %v1739, 64
      %v1799 = vpop.permute.xlu0 %1798
      %1800 = vrot.lane.b32.xlu0 %v1740, 64
      %v1801 = vpop.permute.xlu0 %1800
      %1802 = vrot.lane.b32.xlu0 %v1741, 64
      %v1803 = vpop.permute.xlu0 %1802
      %1804 = vrot.lane.b32.xlu0 %v1742, 64
      %v1805 = vpop.permute.xlu0 %1804
      %1806 = vrot.lane.b32.xlu0 %v1743, 64
      %v1807 = vpop.permute.xlu0 %1806
      %1808 = vrot.lane.b32.xlu0 %v1744, 64
      %v1809 = vpop.permute.xlu0 %1808
      %1810 = vrot.lane.b32.xlu0 %v1745, 64
      %v1811 = vpop.permute.xlu0 %1810
      %1812 = vrot.lane.b32.xlu0 %v1746, 64
      %v1813 = vpop.permute.xlu0 %1812
      %1814 = vrot.lane.b32.xlu0 %v1747, 64
      %v1815 = vpop.permute.xlu0 %1814
      %1816 = vrot.lane.b32.xlu0 %v1748, 64
      %v1817 = vpop.permute.xlu0 %1816
      %1818 = vrot.lane.b32.xlu0 %v1749, 64
      %v1819 = vpop.permute.xlu0 %1818
      %1820 = vrot.lane.b32.xlu0 %v1750, 64
      %v1821 = vpop.permute.xlu0 %1820
      %1822 = vrot.lane.b32.xlu0 %v1751, 64
      %v1823 = vpop.permute.xlu0 %1822
      %1848 = vst.msk [vmem:[#allocation3 + $0x8] sm:$0xff] %vm1559, %v1777
      %1849 = vst.msk [vmem:[#allocation3 + $0x30] sm:$0xff] %vm1559, %v1779
      %1850 = vst.msk [vmem:[#allocation3 + $0x58] sm:$0xff] %vm1559, %v1781
      %1851 = vst.msk [vmem:[#allocation3 + $0x80] sm:$0xff] %vm1559, %v1783
      %1852 = vst.msk [vmem:[#allocation3 + $0xa8] sm:$0xff] %vm1559, %v1785
      %1853 = vst.msk [vmem:[#allocation3 + $0xd0] sm:$0xff] %vm1559, %v1787
      %1854 = vst.msk [vmem:[#allocation3 + $0xf8] sm:$0xff] %vm1559, %v1789
      %1855 = vst.msk [vmem:[#allocation3 + $0x120] sm:$0xff] %vm1559, %v1791
      %1856 = vst.msk [vmem:[#allocation3 + $0x148] sm:$0xff] %vm1559, %v1793
      %1857 = vst.msk [vmem:[#allocation3 + $0x170] sm:$0xff] %vm1559, %v1795
      %1858 = vst.msk [vmem:[#allocation3 + $0x198] sm:$0xff] %vm1559, %v1797
      %1859 = vst.msk [vmem:[#allocation3 + $0x1c0] sm:$0xff] %vm1559, %v1799
      %1860 = vst.msk [vmem:[#allocation3 + $0x1e8] sm:$0xff] %vm1559, %v1801
      %1861 = vst.msk [vmem:[#allocation3 + $0x210] sm:$0xff] %vm1559, %v1803
      %1862 = vst.msk [vmem:[#allocation3 + $0x238] sm:$0xff] %vm1559, %v1805
      %1863 = vst.msk [vmem:[#allocation3 + $0x260] sm:$0xff] %vm1559, %v1807
      %1864 = vst.msk [vmem:[#allocation3 + $0x288] sm:$0xff] %vm1559, %v1809
      %1865 = vst.msk [vmem:[#allocation3 + $0x2b0] sm:$0xff] %vm1559, %v1811
      %1866 = vst.msk [vmem:[#allocation3 + $0x2d8] sm:$0xff] %vm1559, %v1813
      %1867 = vst.msk [vmem:[#allocation3 + $0x300] sm:$0xff] %vm1559, %v1815
      %1868 = vst.msk [vmem:[#allocation3 + $0x328] sm:$0xff] %vm1559, %v1817
      %1869 = vst.msk [vmem:[#allocation3 + $0x350] sm:$0xff] %vm1559, %v1819
      %1870 = vst.msk [vmem:[#allocation3 + $0x378] sm:$0xff] %vm1559, %v1821
      %1871 = vst.msk [vmem:[#allocation3 + $0x3a0] sm:$0xff] %vm1559, %v1823
      %v1872 = vld [vmem:[#allocation2 + $0x18] sm:$0xff]
      %v1873 = vld [vmem:[#allocation2 + $0x20] sm:$0xff]
      %v1874 = vld [vmem:[#allocation2 + $0x28] sm:$0xff]
      %v1875 = vld [vmem:[#allocation2 + $0x30] sm:$0xff]
      %v1876 = vld [vmem:[#allocation2 + $0x38] sm:$0xff]
      %v1877 = vld [vmem:[#allocation2 + $0x40] sm:$0xff]
      %v1878 = vld [vmem:[#allocation2 + $0x48] sm:$0xff]
      %v1879 = vld [vmem:[#allocation2 + $0x50] sm:$0xff]
      %v1880 = vld [vmem:[#allocation2 + $0x58] sm:$0xff]
      %v1881 = vld [vmem:[#allocation2 + $0x60] sm:$0xff]
      %v1882 = vld [vmem:[#allocation2 + $0x68] sm:$0xff]
      %v1883 = vld [vmem:[#allocation2 + $0x70] sm:$0xff]
      %v1884 = vld [vmem:[#allocation2 + $0x78] sm:$0xff]
      %v1885 = vld [vmem:[#allocation2 + $0x80] sm:$0xff]
      %v1886 = vld [vmem:[#allocation2 + $0x88] sm:$0xff]
      %v1887 = vld [vmem:[#allocation2 + $0x90] sm:$0xff]
      %v1888 = vld [vmem:[#allocation2 + $0x98] sm:$0xff]
      %v1889 = vld [vmem:[#allocation2 + $0xa0] sm:$0xff]
      %v1890 = vld [vmem:[#allocation2 + $0xa8] sm:$0xff]
      %v1891 = vld [vmem:[#allocation2 + $0xb0] sm:$0xff]
      %v1892 = vld [vmem:[#allocation2 + $0xb8] sm:$0xff]
      %v1893 = vld [vmem:[#allocation2 + $0xc0] sm:$0xff]
      %v1894 = vld [vmem:[#allocation2 + $0xc8] sm:$0xff]
      %v1895 = vld [vmem:[#allocation2 + $0xd0] sm:$0xff]
      %v1896 = vld [vmem:[#allocation2 + $0xd8] sm:$0xff]
      %v1897 = vld [vmem:[#allocation2 + $0xe0] sm:$0xff]
      %v1898 = vld [vmem:[#allocation2 + $0xe8] sm:$0xff]
      %v1899 = vld [vmem:[#allocation2 + $0xf0] sm:$0xff]
      %v1900 = vld [vmem:[#allocation2 + $0xf8] sm:$0xff]
      %v1901 = vld [vmem:[#allocation2 + $0x100] sm:$0xff]
      %v1902 = vld [vmem:[#allocation2 + $0x108] sm:$0xff]
      %v1903 = vld [vmem:[#allocation2 + $0x110] sm:$0xff]
      %v1904 = vld [vmem:[#allocation2 + $0x118] sm:$0xff]
      %v1905 = vld [vmem:[#allocation2 + $0x120] sm:$0xff]
      %v1906 = vld [vmem:[#allocation2 + $0x128] sm:$0xff]
      %v1907 = vld [vmem:[#allocation2 + $0x130] sm:$0xff]
      %v1908 = vld [vmem:[#allocation2 + $0x138] sm:$0xff]
      %v1909 = vld [vmem:[#allocation2 + $0x140] sm:$0xff]
      %v1910 = vld [vmem:[#allocation2 + $0x148] sm:$0xff]
      %v1911 = vld [vmem:[#allocation2 + $0x150] sm:$0xff]
      %v1912 = vld [vmem:[#allocation2 + $0x158] sm:$0xff]
      %v1913 = vld [vmem:[#allocation2 + $0x160] sm:$0xff]
      %v1914 = vld [vmem:[#allocation2 + $0x168] sm:$0xff]
      %v1915 = vld [vmem:[#allocation2 + $0x170] sm:$0xff]
      %v1916 = vld [vmem:[#allocation2 + $0x178] sm:$0xff]
      %v1917 = vld [vmem:[#allocation2 + $0x180] sm:$0xff]
      %v1918 = vld [vmem:[#allocation2 + $0x188] sm:$0xff]
      %v1919 = vld [vmem:[#allocation2 + $0x190] sm:$0xff]
      %v1920 = vpack.c.bf16 %v1873, %v1872
      %v1921 = vpack.c.bf16 %v1875, %v1874
      %v1922 = vpack.c.bf16 %v1877, %v1876
      %v1923 = vpack.c.bf16 %v1879, %v1878
      %v1924 = vpack.c.bf16 %v1881, %v1880
      %v1925 = vpack.c.bf16 %v1883, %v1882
      %v1926 = vpack.c.bf16 %v1885, %v1884
      %v1927 = vpack.c.bf16 %v1887, %v1886
      %v1928 = vpack.c.bf16 %v1889, %v1888
      %v1929 = vpack.c.bf16 %v1891, %v1890
      %v1930 = vpack.c.bf16 %v1893, %v1892
      %v1931 = vpack.c.bf16 %v1895, %v1894
      %v1932 = vpack.c.bf16 %v1897, %v1896
      %v1933 = vpack.c.bf16 %v1899, %v1898
      %v1934 = vpack.c.bf16 %v1901, %v1900
      %v1935 = vpack.c.bf16 %v1903, %v1902
      %v1936 = vpack.c.bf16 %v1905, %v1904
      %v1937 = vpack.c.bf16 %v1907, %v1906
      %v1938 = vpack.c.bf16 %v1909, %v1908
      %v1939 = vpack.c.bf16 %v1911, %v1910
      %v1940 = vpack.c.bf16 %v1913, %v1912
      %v1941 = vpack.c.bf16 %v1915, %v1914
      %v1942 = vpack.c.bf16 %v1917, %v1916
      %v1943 = vpack.c.bf16 %v1919, %v1918
      %1944 = vst.msk [vmem:[#allocation3 + $0x10] sm:$0xff] %vm409, %v1920
      %1945 = vst.msk [vmem:[#allocation3 + $0x38] sm:$0xff] %vm409, %v1921
      %1946 = vst.msk [vmem:[#allocation3 + $0x60] sm:$0xff] %vm409, %v1922
      %1947 = vst.msk [vmem:[#allocation3 + $0x88] sm:$0xff] %vm409, %v1923
      %1948 = vst.msk [vmem:[#allocation3 + $0xb0] sm:$0xff] %vm409, %v1924
      %1949 = vst.msk [vmem:[#allocation3 + $0xd8] sm:$0xff] %vm409, %v1925
      %1950 = vst.msk [vmem:[#allocation3 + $0x100] sm:$0xff] %vm409, %v1926
      %1951 = vst.msk [vmem:[#allocation3 + $0x128] sm:$0xff] %vm409, %v1927
      %1952 = vst.msk [vmem:[#allocation3 + $0x150] sm:$0xff] %vm409, %v1928
      %1953 = vst.msk [vmem:[#allocation3 + $0x178] sm:$0xff] %vm409, %v1929
      %1954 = vst.msk [vmem:[#allocation3 + $0x1a0] sm:$0xff] %vm409, %v1930
      %1955 = vst.msk [vmem:[#allocation3 + $0x1c8] sm:$0xff] %vm409, %v1931
      %1956 = vst.msk [vmem:[#allocation3 + $0x1f0] sm:$0xff] %vm409, %v1932
      %1957 = vst.msk [vmem:[#allocation3 + $0x218] sm:$0xff] %vm409, %v1933
      %1958 = vst.msk [vmem:[#allocation3 + $0x240] sm:$0xff] %vm409, %v1934
      %1959 = vst.msk [vmem:[#allocation3 + $0x268] sm:$0xff] %vm409, %v1935
      %1960 = vst.msk [vmem:[#allocation3 + $0x290] sm:$0xff] %vm409, %v1936
      %1961 = vst.msk [vmem:[#allocation3 + $0x2b8] sm:$0xff] %vm409, %v1937
      %1962 = vst.msk [vmem:[#allocation3 + $0x2e0] sm:$0xff] %vm409, %v1938
      %1963 = vst.msk [vmem:[#allocation3 + $0x308] sm:$0xff] %vm409, %v1939
      %1964 = vst.msk [vmem:[#allocation3 + $0x330] sm:$0xff] %vm409, %v1940
      %1965 = vst.msk [vmem:[#allocation3 + $0x358] sm:$0xff] %vm409, %v1941
      %1966 = vst.msk [vmem:[#allocation3 + $0x380] sm:$0xff] %vm409, %v1942
      %1967 = vst.msk [vmem:[#allocation3 + $0x3a8] sm:$0xff] %vm409, %v1943
      %v1968 = vld [vmem:[#allocation2 + $0x19] sm:$0xff]
      %v1969 = vld [vmem:[#allocation2 + $0x21] sm:$0xff]
      %v1970 = vld [vmem:[#allocation2 + $0x29] sm:$0xff]
      %v1971 = vld [vmem:[#allocation2 + $0x31] sm:$0xff]
      %v1972 = vld [vmem:[#allocation2 + $0x39] sm:$0xff]
      %v1973 = vld [vmem:[#allocation2 + $0x41] sm:$0xff]
      %v1974 = vld [vmem:[#allocation2 + $0x49] sm:$0xff]
      %v1975 = vld [vmem:[#allocation2 + $0x51] sm:$0xff]
      %v1976 = vld [vmem:[#allocation2 + $0x59] sm:$0xff]
      %v1977 = vld [vmem:[#allocation2 + $0x61] sm:$0xff]
      %v1978 = vld [vmem:[#allocation2 + $0x69] sm:$0xff]
      %v1979 = vld [vmem:[#allocation2 + $0x71] sm:$0xff]
      %v1980 = vld [vmem:[#allocation2 + $0x79] sm:$0xff]
      %v1981 = vld [vmem:[#allocation2 + $0x81] sm:$0xff]
      %v1982 = vld [vmem:[#allocation2 + $0x89] sm:$0xff]
      %v1983 = vld [vmem:[#allocation2 + $0x91] sm:$0xff]
      %v1984 = vld [vmem:[#allocation2 + $0x99] sm:$0xff]
      %v1985 = vld [vmem:[#allocation2 + $0xa1] sm:$0xff]
      %v1986 = vld [vmem:[#allocation2 + $0xa9] sm:$0xff]
      %v1987 = vld [vmem:[#allocation2 + $0xb1] sm:$0xff]
      %v1988 = vld [vmem:[#allocation2 + $0xb9] sm:$0xff]
      %v1989 = vld [vmem:[#allocation2 + $0xc1] sm:$0xff]
      %v1990 = vld [vmem:[#allocation2 + $0xc9] sm:$0xff]
      %v1991 = vld [vmem:[#allocation2 + $0xd1] sm:$0xff]
      %v1992 = vld [vmem:[#allocation2 + $0xd9] sm:$0xff]
      %v1993 = vld [vmem:[#allocation2 + $0xe1] sm:$0xff]
      %v1994 = vld [vmem:[#allocation2 + $0xe9] sm:$0xff]
      %v1995 = vld [vmem:[#allocation2 + $0xf1] sm:$0xff]
      %v1996 = vld [vmem:[#allocation2 + $0xf9] sm:$0xff]
      %v1997 = vld [vmem:[#allocation2 + $0x101] sm:$0xff]
      %v1998 = vld [vmem:[#allocation2 + $0x109] sm:$0xff]
      %v1999 = vld [vmem:[#allocation2 + $0x111] sm:$0xff]
      %v2000 = vld [vmem:[#allocation2 + $0x119] sm:$0xff]
      %v2001 = vld [vmem:[#allocation2 + $0x121] sm:$0xff]
      %v2002 = vld [vmem:[#allocation2 + $0x129] sm:$0xff]
      %v2003 = vld [vmem:[#allocation2 + $0x131] sm:$0xff]
      %v2004 = vld [vmem:[#allocation2 + $0x139] sm:$0xff]
      %v2005 = vld [vmem:[#allocation2 + $0x141] sm:$0xff]
      %v2006 = vld [vmem:[#allocation2 + $0x149] sm:$0xff]
      %v2007 = vld [vmem:[#allocation2 + $0x151] sm:$0xff]
      %v2008 = vld [vmem:[#allocation2 + $0x159] sm:$0xff]
      %v2009 = vld [vmem:[#allocation2 + $0x161] sm:$0xff]
      %v2010 = vld [vmem:[#allocation2 + $0x169] sm:$0xff]
      %v2011 = vld [vmem:[#allocation2 + $0x171] sm:$0xff]
      %v2012 = vld [vmem:[#allocation2 + $0x179] sm:$0xff]
      %v2013 = vld [vmem:[#allocation2 + $0x181] sm:$0xff]
      %v2014 = vld [vmem:[#allocation2 + $0x189] sm:$0xff]
      %v2015 = vld [vmem:[#allocation2 + $0x191] sm:$0xff]
      %v2016 = vpack.c.bf16 %v1969, %v1968
      %v2017 = vpack.c.bf16 %v1971, %v1970
      %v2018 = vpack.c.bf16 %v1973, %v1972
      %v2019 = vpack.c.bf16 %v1975, %v1974
      %v2020 = vpack.c.bf16 %v1977, %v1976
      %v2021 = vpack.c.bf16 %v1979, %v1978
      %v2022 = vpack.c.bf16 %v1981, %v1980
      %v2023 = vpack.c.bf16 %v1983, %v1982
      %v2024 = vpack.c.bf16 %v1985, %v1984
      %v2025 = vpack.c.bf16 %v1987, %v1986
      %v2026 = vpack.c.bf16 %v1989, %v1988
      %v2027 = vpack.c.bf16 %v1991, %v1990
      %v2028 = vpack.c.bf16 %v1993, %v1992
      %v2029 = vpack.c.bf16 %v1995, %v1994
      %v2030 = vpack.c.bf16 %v1997, %v1996
      %v2031 = vpack.c.bf16 %v1999, %v1998
      %v2032 = vpack.c.bf16 %v2001, %v2000
      %v2033 = vpack.c.bf16 %v2003, %v2002
      %v2034 = vpack.c.bf16 %v2005, %v2004
      %v2035 = vpack.c.bf16 %v2007, %v2006
      %v2036 = vpack.c.bf16 %v2009, %v2008
      %v2037 = vpack.c.bf16 %v2011, %v2010
      %v2038 = vpack.c.bf16 %v2013, %v2012
      %v2039 = vpack.c.bf16 %v2015, %v2014
      %2064 = vrot.lane.b32.xlu0 %v2016, 64
      %v2065 = vpop.permute.xlu0 %2064
      %2066 = vrot.lane.b32.xlu0 %v2017, 64
      %v2067 = vpop.permute.xlu0 %2066
      %2068 = vrot.lane.b32.xlu0 %v2018, 64
      %v2069 = vpop.permute.xlu0 %2068
      %2070 = vrot.lane.b32.xlu0 %v2019, 64
      %v2071 = vpop.permute.xlu0 %2070
      %2072 = vrot.lane.b32.xlu0 %v2020, 64
      %v2073 = vpop.permute.xlu0 %2072
      %2074 = vrot.lane.b32.xlu0 %v2021, 64
      %v2075 = vpop.permute.xlu0 %2074
      %2076 = vrot.lane.b32.xlu0 %v2022, 64
      %v2077 = vpop.permute.xlu0 %2076
      %2078 = vrot.lane.b32.xlu0 %v2023, 64
      %v2079 = vpop.permute.xlu0 %2078
      %2080 = vrot.lane.b32.xlu0 %v2024, 64
      %v2081 = vpop.permute.xlu0 %2080
      %2082 = vrot.lane.b32.xlu0 %v2025, 64
      %v2083 = vpop.permute.xlu0 %2082
      %2084 = vrot.lane.b32.xlu0 %v2026, 64
      %v2085 = vpop.permute.xlu0 %2084
      %2086 = vrot.lane.b32.xlu0 %v2027, 64
      %v2087 = vpop.permute.xlu0 %2086
      %2088 = vrot.lane.b32.xlu0 %v2028, 64
      %v2089 = vpop.permute.xlu0 %2088
      %2090 = vrot.lane.b32.xlu0 %v2029, 64
      %v2091 = vpop.permute.xlu0 %2090
      %2092 = vrot.lane.b32.xlu0 %v2030, 64
      %v2093 = vpop.permute.xlu0 %2092
      %2094 = vrot.lane.b32.xlu0 %v2031, 64
      %v2095 = vpop.permute.xlu0 %2094
      %2096 = vrot.lane.b32.xlu0 %v2032, 64
      %v2097 = vpop.permute.xlu0 %2096
      %2098 = vrot.lane.b32.xlu0 %v2033, 64
      %v2099 = vpop.permute.xlu0 %2098
      %2100 = vrot.lane.b32.xlu0 %v2034, 64
      %v2101 = vpop.permute.xlu0 %2100
      %2102 = vrot.lane.b32.xlu0 %v2035, 64
      %v2103 = vpop.permute.xlu0 %2102
      %2104 = vrot.lane.b32.xlu0 %v2036, 64
      %v2105 = vpop.permute.xlu0 %2104
      %2106 = vrot.lane.b32.xlu0 %v2037, 64
      %v2107 = vpop.permute.xlu0 %2106
      %2108 = vrot.lane.b32.xlu0 %v2038, 64
      %v2109 = vpop.permute.xlu0 %2108
      %2110 = vrot.lane.b32.xlu0 %v2039, 64
      %v2111 = vpop.permute.xlu0 %2110
      %2136 = vst.msk [vmem:[#allocation3 + $0x10] sm:$0xff] %vm1559, %v2065
      %2137 = vst.msk [vmem:[#allocation3 + $0x38] sm:$0xff] %vm1559, %v2067
      %2138 = vst.msk [vmem:[#allocation3 + $0x60] sm:$0xff] %vm1559, %v2069
      %2139 = vst.msk [vmem:[#allocation3 + $0x88] sm:$0xff] %vm1559, %v2071
      %2140 = vst.msk [vmem:[#allocation3 + $0xb0] sm:$0xff] %vm1559, %v2073
      %2141 = vst.msk [vmem:[#allocation3 + $0xd8] sm:$0xff] %vm1559, %v2075
      %2142 = vst.msk [vmem:[#allocation3 + $0x100] sm:$0xff] %vm1559, %v2077
      %2143 = vst.msk [vmem:[#allocation3 + $0x128] sm:$0xff] %vm1559, %v2079
      %2144 = vst.msk [vmem:[#allocation3 + $0x150] sm:$0xff] %vm1559, %v2081
      %2145 = vst.msk [vmem:[#allocation3 + $0x178] sm:$0xff] %vm1559, %v2083
      %2146 = vst.msk [vmem:[#allocation3 + $0x1a0] sm:$0xff] %vm1559, %v2085
      %2147 = vst.msk [vmem:[#allocation3 + $0x1c8] sm:$0xff] %vm1559, %v2087
      %2148 = vst.msk [vmem:[#allocation3 + $0x1f0] sm:$0xff] %vm1559, %v2089
      %2149 = vst.msk [vmem:[#allocation3 + $0x218] sm:$0xff] %vm1559, %v2091
      %2150 = vst.msk [vmem:[#allocation3 + $0x240] sm:$0xff] %vm1559, %v2093
      %2151 = vst.msk [vmem:[#allocation3 + $0x268] sm:$0xff] %vm1559, %v2095
      %2152 = vst.msk [vmem:[#allocation3 + $0x290] sm:$0xff] %vm1559, %v2097
      %2153 = vst.msk [vmem:[#allocation3 + $0x2b8] sm:$0xff] %vm1559, %v2099
      %2154 = vst.msk [vmem:[#allocation3 + $0x2e0] sm:$0xff] %vm1559, %v2101
      %2155 = vst.msk [vmem:[#allocation3 + $0x308] sm:$0xff] %vm1559, %v2103
      %2156 = vst.msk [vmem:[#allocation3 + $0x330] sm:$0xff] %vm1559, %v2105
      %2157 = vst.msk [vmem:[#allocation3 + $0x358] sm:$0xff] %vm1559, %v2107
      %2158 = vst.msk [vmem:[#allocation3 + $0x380] sm:$0xff] %vm1559, %v2109
      %2159 = vst.msk [vmem:[#allocation3 + $0x3a8] sm:$0xff] %vm1559, %v2111
      %v2160 = vld [vmem:[#allocation2 + $0x29] sm:$0xff]
      %v2161 = vld [vmem:[#allocation2 + $0x31] sm:$0xff]
      %v2162 = vld [vmem:[#allocation2 + $0x39] sm:$0xff]
      %v2163 = vld [vmem:[#allocation2 + $0x41] sm:$0xff]
      %v2164 = vld [vmem:[#allocation2 + $0x49] sm:$0xff]
      %v2165 = vld [vmem:[#allocation2 + $0x51] sm:$0xff]
      %v2166 = vld [vmem:[#allocation2 + $0x59] sm:$0xff]
      %v2167 = vld [vmem:[#allocation2 + $0x61] sm:$0xff]
      %v2168 = vld [vmem:[#allocation2 + $0x69] sm:$0xff]
      %v2169 = vld [vmem:[#allocation2 + $0x71] sm:$0xff]
      %v2170 = vld [vmem:[#allocation2 + $0x79] sm:$0xff]
      %v2171 = vld [vmem:[#allocation2 + $0x81] sm:$0xff]
      %v2172 = vld [vmem:[#allocation2 + $0x89] sm:$0xff]
      %v2173 = vld [vmem:[#allocation2 + $0x91] sm:$0xff]
      %v2174 = vld [vmem:[#allocation2 + $0x99] sm:$0xff]
      %v2175 = vld [vmem:[#allocation2 + $0xa1] sm:$0xff]
      %v2176 = vld [vmem:[#allocation2 + $0xa9] sm:$0xff]
      %v2177 = vld [vmem:[#allocation2 + $0xb1] sm:$0xff]
      %v2178 = vld [vmem:[#allocation2 + $0xb9] sm:$0xff]
      %v2179 = vld [vmem:[#allocation2 + $0xc1] sm:$0xff]
      %v2180 = vld [vmem:[#allocation2 + $0xc9] sm:$0xff]
      %v2181 = vld [vmem:[#allocation2 + $0xd1] sm:$0xff]
      %v2182 = vld [vmem:[#allocation2 + $0xd9] sm:$0xff]
      %v2183 = vld [vmem:[#allocation2 + $0xe1] sm:$0xff]
      %v2184 = vld [vmem:[#allocation2 + $0xe9] sm:$0xff]
      %v2185 = vld [vmem:[#allocation2 + $0xf1] sm:$0xff]
      %v2186 = vld [vmem:[#allocation2 + $0xf9] sm:$0xff]
      %v2187 = vld [vmem:[#allocation2 + $0x101] sm:$0xff]
      %v2188 = vld [vmem:[#allocation2 + $0x109] sm:$0xff]
      %v2189 = vld [vmem:[#allocation2 + $0x111] sm:$0xff]
      %v2190 = vld [vmem:[#allocation2 + $0x119] sm:$0xff]
      %v2191 = vld [vmem:[#allocation2 + $0x121] sm:$0xff]
      %v2192 = vld [vmem:[#allocation2 + $0x129] sm:$0xff]
      %v2193 = vld [vmem:[#allocation2 + $0x131] sm:$0xff]
      %v2194 = vld [vmem:[#allocation2 + $0x139] sm:$0xff]
      %v2195 = vld [vmem:[#allocation2 + $0x141] sm:$0xff]
      %v2196 = vld [vmem:[#allocation2 + $0x149] sm:$0xff]
      %v2197 = vld [vmem:[#allocation2 + $0x151] sm:$0xff]
      %v2198 = vld [vmem:[#allocation2 + $0x159] sm:$0xff]
      %v2199 = vld [vmem:[#allocation2 + $0x161] sm:$0xff]
      %v2200 = vld [vmem:[#allocation2 + $0x169] sm:$0xff]
      %v2201 = vld [vmem:[#allocation2 + $0x171] sm:$0xff]
      %v2202 = vld [vmem:[#allocation2 + $0x179] sm:$0xff]
      %v2203 = vld [vmem:[#allocation2 + $0x181] sm:$0xff]
      %v2204 = vld [vmem:[#allocation2 + $0x189] sm:$0xff]
      %v2205 = vld [vmem:[#allocation2 + $0x191] sm:$0xff]
      %v2206 = vld [vmem:[#allocation2 + $0x199] sm:$0xff]
      %v2207 = vld [vmem:[#allocation2 + $0x1a1] sm:$0xff]
      %v2208 = vpack.c.bf16 %v2161, %v2160
      %v2209 = vpack.c.bf16 %v2163, %v2162
      %v2210 = vpack.c.bf16 %v2165, %v2164
      %v2211 = vpack.c.bf16 %v2167, %v2166
      %v2212 = vpack.c.bf16 %v2169, %v2168
      %v2213 = vpack.c.bf16 %v2171, %v2170
      %v2214 = vpack.c.bf16 %v2173, %v2172
      %v2215 = vpack.c.bf16 %v2175, %v2174
      %v2216 = vpack.c.bf16 %v2177, %v2176
      %v2217 = vpack.c.bf16 %v2179, %v2178
      %v2218 = vpack.c.bf16 %v2181, %v2180
      %v2219 = vpack.c.bf16 %v2183, %v2182
      %v2220 = vpack.c.bf16 %v2185, %v2184
      %v2221 = vpack.c.bf16 %v2187, %v2186
      %v2222 = vpack.c.bf16 %v2189, %v2188
      %v2223 = vpack.c.bf16 %v2191, %v2190
      %v2224 = vpack.c.bf16 %v2193, %v2192
      %v2225 = vpack.c.bf16 %v2195, %v2194
      %v2226 = vpack.c.bf16 %v2197, %v2196
      %v2227 = vpack.c.bf16 %v2199, %v2198
      %v2228 = vpack.c.bf16 %v2201, %v2200
      %v2229 = vpack.c.bf16 %v2203, %v2202
      %v2230 = vpack.c.bf16 %v2205, %v2204
      %v2231 = vpack.c.bf16 %v2207, %v2206
      %2232 = vst.msk [vmem:[#allocation3 + $0x18] sm:$0xff] %vm409, %v2208
      %2233 = vst.msk [vmem:[#allocation3 + $0x40] sm:$0xff] %vm409, %v2209
      %2234 = vst.msk [vmem:[#allocation3 + $0x68] sm:$0xff] %vm409, %v2210
      %2235 = vst.msk [vmem:[#allocation3 + $0x90] sm:$0xff] %vm409, %v2211
      %2236 = vst.msk [vmem:[#allocation3 + $0xb8] sm:$0xff] %vm409, %v2212
      %2237 = vst.msk [vmem:[#allocation3 + $0xe0] sm:$0xff] %vm409, %v2213
      %2238 = vst.msk [vmem:[#allocation3 + $0x108] sm:$0xff] %vm409, %v2214
      %2239 = vst.msk [vmem:[#allocation3 + $0x130] sm:$0xff] %vm409, %v2215
      %2240 = vst.msk [vmem:[#allocation3 + $0x158] sm:$0xff] %vm409, %v2216
      %2241 = vst.msk [vmem:[#allocation3 + $0x180] sm:$0xff] %vm409, %v2217
      %2242 = vst.msk [vmem:[#allocation3 + $0x1a8] sm:$0xff] %vm409, %v2218
      %2243 = vst.msk [vmem:[#allocation3 + $0x1d0] sm:$0xff] %vm409, %v2219
      %2244 = vst.msk [vmem:[#allocation3 + $0x1f8] sm:$0xff] %vm409, %v2220
      %2245 = vst.msk [vmem:[#allocation3 + $0x220] sm:$0xff] %vm409, %v2221
      %2246 = vst.msk [vmem:[#allocation3 + $0x248] sm:$0xff] %vm409, %v2222
      %2247 = vst.msk [vmem:[#allocation3 + $0x270] sm:$0xff] %vm409, %v2223
      %2248 = vst.msk [vmem:[#allocation3 + $0x298] sm:$0xff] %vm409, %v2224
      %2249 = vst.msk [vmem:[#allocation3 + $0x2c0] sm:$0xff] %vm409, %v2225
      %2250 = vst.msk [vmem:[#allocation3 + $0x2e8] sm:$0xff] %vm409, %v2226
      %2251 = vst.msk [vmem:[#allocation3 + $0x310] sm:$0xff] %vm409, %v2227
      %2252 = vst.msk [vmem:[#allocation3 + $0x338] sm:$0xff] %vm409, %v2228
      %2253 = vst.msk [vmem:[#allocation3 + $0x360] sm:$0xff] %vm409, %v2229
      %2254 = vst.msk [vmem:[#allocation3 + $0x388] sm:$0xff] %vm409, %v2230
      %2255 = vst.msk [vmem:[#allocation3 + $0x3b0] sm:$0xff] %vm409, %v2231
      %v2256 = vld [vmem:[#allocation2 + $0x2a] sm:$0xff]
      %v2257 = vld [vmem:[#allocation2 + $0x32] sm:$0xff]
      %v2258 = vld [vmem:[#allocation2 + $0x3a] sm:$0xff]
      %v2259 = vld [vmem:[#allocation2 + $0x42] sm:$0xff]
      %v2260 = vld [vmem:[#allocation2 + $0x4a] sm:$0xff]
      %v2261 = vld [vmem:[#allocation2 + $0x52] sm:$0xff]
      %v2262 = vld [vmem:[#allocation2 + $0x5a] sm:$0xff]
      %v2263 = vld [vmem:[#allocation2 + $0x62] sm:$0xff]
      %v2264 = vld [vmem:[#allocation2 + $0x6a] sm:$0xff]
      %v2265 = vld [vmem:[#allocation2 + $0x72] sm:$0xff]
      %v2266 = vld [vmem:[#allocation2 + $0x7a] sm:$0xff]
      %v2267 = vld [vmem:[#allocation2 + $0x82] sm:$0xff]
      %v2268 = vld [vmem:[#allocation2 + $0x8a] sm:$0xff]
      %v2269 = vld [vmem:[#allocation2 + $0x92] sm:$0xff]
      %v2270 = vld [vmem:[#allocation2 + $0x9a] sm:$0xff]
      %v2271 = vld [vmem:[#allocation2 + $0xa2] sm:$0xff]
      %v2272 = vld [vmem:[#allocation2 + $0xaa] sm:$0xff]
      %v2273 = vld [vmem:[#allocation2 + $0xb2] sm:$0xff]
      %v2274 = vld [vmem:[#allocation2 + $0xba] sm:$0xff]
      %v2275 = vld [vmem:[#allocation2 + $0xc2] sm:$0xff]
      %v2276 = vld [vmem:[#allocation2 + $0xca] sm:$0xff]
      %v2277 = vld [vmem:[#allocation2 + $0xd2] sm:$0xff]
      %v2278 = vld [vmem:[#allocation2 + $0xda] sm:$0xff]
      %v2279 = vld [vmem:[#allocation2 + $0xe2] sm:$0xff]
      %v2280 = vld [vmem:[#allocation2 + $0xea] sm:$0xff]
      %v2281 = vld [vmem:[#allocation2 + $0xf2] sm:$0xff]
      %v2282 = vld [vmem:[#allocation2 + $0xfa] sm:$0xff]
      %v2283 = vld [vmem:[#allocation2 + $0x102] sm:$0xff]
      %v2284 = vld [vmem:[#allocation2 + $0x10a] sm:$0xff]
      %v2285 = vld [vmem:[#allocation2 + $0x112] sm:$0xff]
      %v2286 = vld [vmem:[#allocation2 + $0x11a] sm:$0xff]
      %v2287 = vld [vmem:[#allocation2 + $0x122] sm:$0xff]
      %v2288 = vld [vmem:[#allocation2 + $0x12a] sm:$0xff]
      %v2289 = vld [vmem:[#allocation2 + $0x132] sm:$0xff]
      %v2290 = vld [vmem:[#allocation2 + $0x13a] sm:$0xff]
      %v2291 = vld [vmem:[#allocation2 + $0x142] sm:$0xff]
      %v2292 = vld [vmem:[#allocation2 + $0x14a] sm:$0xff]
      %v2293 = vld [vmem:[#allocation2 + $0x152] sm:$0xff]
      %v2294 = vld [vmem:[#allocation2 + $0x15a] sm:$0xff]
      %v2295 = vld [vmem:[#allocation2 + $0x162] sm:$0xff]
      %v2296 = vld [vmem:[#allocation2 + $0x16a] sm:$0xff]
      %v2297 = vld [vmem:[#allocation2 + $0x172] sm:$0xff]
      %v2298 = vld [vmem:[#allocation2 + $0x17a] sm:$0xff]
      %v2299 = vld [vmem:[#allocation2 + $0x182] sm:$0xff]
      %v2300 = vld [vmem:[#allocation2 + $0x18a] sm:$0xff]
      %v2301 = vld [vmem:[#allocation2 + $0x192] sm:$0xff]
      %v2302 = vld [vmem:[#allocation2 + $0x19a] sm:$0xff]
      %v2303 = vld [vmem:[#allocation2 + $0x1a2] sm:$0xff]
      %v2304 = vpack.c.bf16 %v2257, %v2256
      %v2305 = vpack.c.bf16 %v2259, %v2258
      %v2306 = vpack.c.bf16 %v2261, %v2260
      %v2307 = vpack.c.bf16 %v2263, %v2262
      %v2308 = vpack.c.bf16 %v2265, %v2264
      %v2309 = vpack.c.bf16 %v2267, %v2266
      %v2310 = vpack.c.bf16 %v2269, %v2268
      %v2311 = vpack.c.bf16 %v2271, %v2270
      %v2312 = vpack.c.bf16 %v2273, %v2272
      %v2313 = vpack.c.bf16 %v2275, %v2274
      %v2314 = vpack.c.bf16 %v2277, %v2276
      %v2315 = vpack.c.bf16 %v2279, %v2278
      %v2316 = vpack.c.bf16 %v2281, %v2280
      %v2317 = vpack.c.bf16 %v2283, %v2282
      %v2318 = vpack.c.bf16 %v2285, %v2284
      %v2319 = vpack.c.bf16 %v2287, %v2286
      %v2320 = vpack.c.bf16 %v2289, %v2288
      %v2321 = vpack.c.bf16 %v2291, %v2290
      %v2322 = vpack.c.bf16 %v2293, %v2292
      %v2323 = vpack.c.bf16 %v2295, %v2294
      %v2324 = vpack.c.bf16 %v2297, %v2296
      %v2325 = vpack.c.bf16 %v2299, %v2298
      %v2326 = vpack.c.bf16 %v2301, %v2300
      %v2327 = vpack.c.bf16 %v2303, %v2302
      %2352 = vrot.lane.b32.xlu0 %v2304, 64
      %v2353 = vpop.permute.xlu0 %2352
      %2354 = vrot.lane.b32.xlu0 %v2305, 64
      %v2355 = vpop.permute.xlu0 %2354
      %2356 = vrot.lane.b32.xlu0 %v2306, 64
      %v2357 = vpop.permute.xlu0 %2356
      %2358 = vrot.lane.b32.xlu0 %v2307, 64
      %v2359 = vpop.permute.xlu0 %2358
      %2360 = vrot.lane.b32.xlu0 %v2308, 64
      %v2361 = vpop.permute.xlu0 %2360
      %2362 = vrot.lane.b32.xlu0 %v2309, 64
      %v2363 = vpop.permute.xlu0 %2362
      %2364 = vrot.lane.b32.xlu0 %v2310, 64
      %v2365 = vpop.permute.xlu0 %2364
      %2366 = vrot.lane.b32.xlu0 %v2311, 64
      %v2367 = vpop.permute.xlu0 %2366
      %2368 = vrot.lane.b32.xlu0 %v2312, 64
      %v2369 = vpop.permute.xlu0 %2368
      %2370 = vrot.lane.b32.xlu0 %v2313, 64
      %v2371 = vpop.permute.xlu0 %2370
      %2372 = vrot.lane.b32.xlu0 %v2314, 64
      %v2373 = vpop.permute.xlu0 %2372
      %2374 = vrot.lane.b32.xlu0 %v2315, 64
      %v2375 = vpop.permute.xlu0 %2374
      %2376 = vrot.lane.b32.xlu0 %v2316, 64
      %v2377 = vpop.permute.xlu0 %2376
      %2378 = vrot.lane.b32.xlu0 %v2317, 64
      %v2379 = vpop.permute.xlu0 %2378
      %2380 = vrot.lane.b32.xlu0 %v2318, 64
      %v2381 = vpop.permute.xlu0 %2380
      %2382 = vrot.lane.b32.xlu0 %v2319, 64
      %v2383 = vpop.permute.xlu0 %2382
      %2384 = vrot.lane.b32.xlu0 %v2320, 64
      %v2385 = vpop.permute.xlu0 %2384
      %2386 = vrot.lane.b32.xlu0 %v2321, 64
      %v2387 = vpop.permute.xlu0 %2386
      %2388 = vrot.lane.b32.xlu0 %v2322, 64
      %v2389 = vpop.permute.xlu0 %2388
      %2390 = vrot.lane.b32.xlu0 %v2323, 64
      %v2391 = vpop.permute.xlu0 %2390
      %2392 = vrot.lane.b32.xlu0 %v2324, 64
      %v2393 = vpop.permute.xlu0 %2392
      %2394 = vrot.lane.b32.xlu0 %v2325, 64
      %v2395 = vpop.permute.xlu0 %2394
      %2396 = vrot.lane.b32.xlu0 %v2326, 64
      %v2397 = vpop.permute.xlu0 %2396
      %2398 = vrot.lane.b32.xlu0 %v2327, 64
      %v2399 = vpop.permute.xlu0 %2398
      %2424 = vst.msk [vmem:[#allocation3 + $0x18] sm:$0xff] %vm1559, %v2353
      %2425 = vst.msk [vmem:[#allocation3 + $0x40] sm:$0xff] %vm1559, %v2355
      %2426 = vst.msk [vmem:[#allocation3 + $0x68] sm:$0xff] %vm1559, %v2357
      %2427 = vst.msk [vmem:[#allocation3 + $0x90] sm:$0xff] %vm1559, %v2359
      %2428 = vst.msk [vmem:[#allocation3 + $0xb8] sm:$0xff] %vm1559, %v2361
      %2429 = vst.msk [vmem:[#allocation3 + $0xe0] sm:$0xff] %vm1559, %v2363
      %2430 = vst.msk [vmem:[#allocation3 + $0x108] sm:$0xff] %vm1559, %v2365
      %2431 = vst.msk [vmem:[#allocation3 + $0x130] sm:$0xff] %vm1559, %v2367
      %2432 = vst.msk [vmem:[#allocation3 + $0x158] sm:$0xff] %vm1559, %v2369
      %2433 = vst.msk [vmem:[#allocation3 + $0x180] sm:$0xff] %vm1559, %v2371
      %2434 = vst.msk [vmem:[#allocation3 + $0x1a8] sm:$0xff] %vm1559, %v2373
      %2435 = vst.msk [vmem:[#allocation3 + $0x1d0] sm:$0xff] %vm1559, %v2375
      %2436 = vst.msk [vmem:[#allocation3 + $0x1f8] sm:$0xff] %vm1559, %v2377
      %2437 = vst.msk [vmem:[#allocation3 + $0x220] sm:$0xff] %vm1559, %v2379
      %2438 = vst.msk [vmem:[#allocation3 + $0x248] sm:$0xff] %vm1559, %v2381
      %2439 = vst.msk [vmem:[#allocation3 + $0x270] sm:$0xff] %vm1559, %v2383
      %2440 = vst.msk [vmem:[#allocation3 + $0x298] sm:$0xff] %vm1559, %v2385
      %2441 = vst.msk [vmem:[#allocation3 + $0x2c0] sm:$0xff] %vm1559, %v2387
      %2442 = vst.msk [vmem:[#allocation3 + $0x2e8] sm:$0xff] %vm1559, %v2389
      %2443 = vst.msk [vmem:[#allocation3 + $0x310] sm:$0xff] %vm1559, %v2391
      %2444 = vst.msk [vmem:[#allocation3 + $0x338] sm:$0xff] %vm1559, %v2393
      %2445 = vst.msk [vmem:[#allocation3 + $0x360] sm:$0xff] %vm1559, %v2395
      %2446 = vst.msk [vmem:[#allocation3 + $0x388] sm:$0xff] %vm1559, %v2397
      %2447 = vst.msk [vmem:[#allocation3 + $0x3b0] sm:$0xff] %vm1559, %v2399
      %v2448 = vld [vmem:[#allocation2 + $0x2b] sm:$0xff]
      %v2449 = vld [vmem:[#allocation2 + $0x33] sm:$0xff]
      %v2450 = vld [vmem:[#allocation2 + $0x3b] sm:$0xff]
      %v2451 = vld [vmem:[#allocation2 + $0x43] sm:$0xff]
      %v2452 = vld [vmem:[#allocation2 + $0x4b] sm:$0xff]
      %v2453 = vld [vmem:[#allocation2 + $0x53] sm:$0xff]
      %v2454 = vld [vmem:[#allocation2 + $0x5b] sm:$0xff]
      %v2455 = vld [vmem:[#allocation2 + $0x63] sm:$0xff]
      %v2456 = vld [vmem:[#allocation2 + $0x6b] sm:$0xff]
      %v2457 = vld [vmem:[#allocation2 + $0x73] sm:$0xff]
      %v2458 = vld [vmem:[#allocation2 + $0x7b] sm:$0xff]
      %v2459 = vld [vmem:[#allocation2 + $0x83] sm:$0xff]
      %v2460 = vld [vmem:[#allocation2 + $0x8b] sm:$0xff]
      %v2461 = vld [vmem:[#allocation2 + $0x93] sm:$0xff]
      %v2462 = vld [vmem:[#allocation2 + $0x9b] sm:$0xff]
      %v2463 = vld [vmem:[#allocation2 + $0xa3] sm:$0xff]
      %v2464 = vld [vmem:[#allocation2 + $0xab] sm:$0xff]
      %v2465 = vld [vmem:[#allocation2 + $0xb3] sm:$0xff]
      %v2466 = vld [vmem:[#allocation2 + $0xbb] sm:$0xff]
      %v2467 = vld [vmem:[#allocation2 + $0xc3] sm:$0xff]
      %v2468 = vld [vmem:[#allocation2 + $0xcb] sm:$0xff]
      %v2469 = vld [vmem:[#allocation2 + $0xd3] sm:$0xff]
      %v2470 = vld [vmem:[#allocation2 + $0xdb] sm:$0xff]
      %v2471 = vld [vmem:[#allocation2 + $0xe3] sm:$0xff]
      %v2472 = vld [vmem:[#allocation2 + $0xeb] sm:$0xff]
      %v2473 = vld [vmem:[#allocation2 + $0xf3] sm:$0xff]
      %v2474 = vld [vmem:[#allocation2 + $0xfb] sm:$0xff]
      %v2475 = vld [vmem:[#allocation2 + $0x103] sm:$0xff]
      %v2476 = vld [vmem:[#allocation2 + $0x10b] sm:$0xff]
      %v2477 = vld [vmem:[#allocation2 + $0x113] sm:$0xff]
      %v2478 = vld [vmem:[#allocation2 + $0x11b] sm:$0xff]
      %v2479 = vld [vmem:[#allocation2 + $0x123] sm:$0xff]
      %v2480 = vld [vmem:[#allocation2 + $0x12b] sm:$0xff]
      %v2481 = vld [vmem:[#allocation2 + $0x133] sm:$0xff]
      %v2482 = vld [vmem:[#allocation2 + $0x13b] sm:$0xff]
      %v2483 = vld [vmem:[#allocation2 + $0x143] sm:$0xff]
      %v2484 = vld [vmem:[#allocation2 + $0x14b] sm:$0xff]
      %v2485 = vld [vmem:[#allocation2 + $0x153] sm:$0xff]
      %v2486 = vld [vmem:[#allocation2 + $0x15b] sm:$0xff]
      %v2487 = vld [vmem:[#allocation2 + $0x163] sm:$0xff]
      %v2488 = vld [vmem:[#allocation2 + $0x16b] sm:$0xff]
      %v2489 = vld [vmem:[#allocation2 + $0x173] sm:$0xff]
      %v2490 = vld [vmem:[#allocation2 + $0x17b] sm:$0xff]
      %v2491 = vld [vmem:[#allocation2 + $0x183] sm:$0xff]
      %v2492 = vld [vmem:[#allocation2 + $0x18b] sm:$0xff]
      %v2493 = vld [vmem:[#allocation2 + $0x193] sm:$0xff]
      %v2494 = vld [vmem:[#allocation2 + $0x19b] sm:$0xff]
      %v2495 = vld [vmem:[#allocation2 + $0x1a3] sm:$0xff]
      %v2496 = vpack.c.bf16 %v2449, %v2448
      %v2497 = vpack.c.bf16 %v2451, %v2450
      %v2498 = vpack.c.bf16 %v2453, %v2452
      %v2499 = vpack.c.bf16 %v2455, %v2454
      %v2500 = vpack.c.bf16 %v2457, %v2456
      %v2501 = vpack.c.bf16 %v2459, %v2458
      %v2502 = vpack.c.bf16 %v2461, %v2460
      %v2503 = vpack.c.bf16 %v2463, %v2462
      %v2504 = vpack.c.bf16 %v2465, %v2464
      %v2505 = vpack.c.bf16 %v2467, %v2466
      %v2506 = vpack.c.bf16 %v2469, %v2468
      %v2507 = vpack.c.bf16 %v2471, %v2470
      %v2508 = vpack.c.bf16 %v2473, %v2472
      %v2509 = vpack.c.bf16 %v2475, %v2474
      %v2510 = vpack.c.bf16 %v2477, %v2476
      %v2511 = vpack.c.bf16 %v2479, %v2478
      %v2512 = vpack.c.bf16 %v2481, %v2480
      %v2513 = vpack.c.bf16 %v2483, %v2482
      %v2514 = vpack.c.bf16 %v2485, %v2484
      %v2515 = vpack.c.bf16 %v2487, %v2486
      %v2516 = vpack.c.bf16 %v2489, %v2488
      %v2517 = vpack.c.bf16 %v2491, %v2490
      %v2518 = vpack.c.bf16 %v2493, %v2492
      %v2519 = vpack.c.bf16 %v2495, %v2494
      %2520 = vst.msk [vmem:[#allocation3 + $0x20] sm:$0xff] %vm409, %v2496
      %2521 = vst.msk [vmem:[#allocation3 + $0x48] sm:$0xff] %vm409, %v2497
      %2522 = vst.msk [vmem:[#allocation3 + $0x70] sm:$0xff] %vm409, %v2498
      %2523 = vst.msk [vmem:[#allocation3 + $0x98] sm:$0xff] %vm409, %v2499
      %2524 = vst.msk [vmem:[#allocation3 + $0xc0] sm:$0xff] %vm409, %v2500
      %2525 = vst.msk [vmem:[#allocation3 + $0xe8] sm:$0xff] %vm409, %v2501
      %2526 = vst.msk [vmem:[#allocation3 + $0x110] sm:$0xff] %vm409, %v2502
      %2527 = vst.msk [vmem:[#allocation3 + $0x138] sm:$0xff] %vm409, %v2503
      %2528 = vst.msk [vmem:[#allocation3 + $0x160] sm:$0xff] %vm409, %v2504
      %2529 = vst.msk [vmem:[#allocation3 + $0x188] sm:$0xff] %vm409, %v2505
      %2530 = vst.msk [vmem:[#allocation3 + $0x1b0] sm:$0xff] %vm409, %v2506
      %2531 = vst.msk [vmem:[#allocation3 + $0x1d8] sm:$0xff] %vm409, %v2507
      %2532 = vst.msk [vmem:[#allocation3 + $0x200] sm:$0xff] %vm409, %v2508
      %2533 = vst.msk [vmem:[#allocation3 + $0x228] sm:$0xff] %vm409, %v2509
      %2534 = vst.msk [vmem:[#allocation3 + $0x250] sm:$0xff] %vm409, %v2510
      %2535 = vst.msk [vmem:[#allocation3 + $0x278] sm:$0xff] %vm409, %v2511
      %2536 = vst.msk [vmem:[#allocation3 + $0x2a0] sm:$0xff] %vm409, %v2512
      %2537 = vst.msk [vmem:[#allocation3 + $0x2c8] sm:$0xff] %vm409, %v2513
      %2538 = vst.msk [vmem:[#allocation3 + $0x2f0] sm:$0xff] %vm409, %v2514
      %2539 = vst.msk [vmem:[#allocation3 + $0x318] sm:$0xff] %vm409, %v2515
      %2540 = vst.msk [vmem:[#allocation3 + $0x340] sm:$0xff] %vm409, %v2516
      %2541 = vst.msk [vmem:[#allocation3 + $0x368] sm:$0xff] %vm409, %v2517
      %2542 = vst.msk [vmem:[#allocation3 + $0x390] sm:$0xff] %vm409, %v2518
      %2543 = vst.msk [vmem:[#allocation3 + $0x3b8] sm:$0xff] %vm409, %v2519
      %v2544 = vld [vmem:[#allocation3] sm:$0xff]
      %v2545 = vld [vmem:[#allocation3 + $0x8] sm:$0xff]
      %v2546 = vld [vmem:[#allocation3 + $0x10] sm:$0xff]
      %v2547 = vld [vmem:[#allocation3 + $0x18] sm:$0xff]
      %v2548 = vld [vmem:[#allocation3 + $0x20] sm:$0xff]
      %v2549 = vld [vmem:[#allocation3 + $0x28] sm:$0xff]
      %v2550 = vld [vmem:[#allocation3 + $0x30] sm:$0xff]
      %v2551 = vld [vmem:[#allocation3 + $0x38] sm:$0xff]
      %v2552 = vld [vmem:[#allocation3 + $0x40] sm:$0xff]
      %v2553 = vld [vmem:[#allocation3 + $0x48] sm:$0xff]
      %v2554 = vld [vmem:[#allocation3 + $0x50] sm:$0xff]
      %v2555 = vld [vmem:[#allocation3 + $0x58] sm:$0xff]
      %v2556 = vld [vmem:[#allocation3 + $0x60] sm:$0xff]
      %v2557 = vld [vmem:[#allocation3 + $0x68] sm:$0xff]
      %v2558 = vld [vmem:[#allocation3 + $0x70] sm:$0xff]
      %v2559 = vld [vmem:[#allocation3 + $0x78] sm:$0xff]
      %v2560 = vld [vmem:[#allocation3 + $0x80] sm:$0xff]
      %v2561 = vld [vmem:[#allocation3 + $0x88] sm:$0xff]
      %v2562 = vld [vmem:[#allocation3 + $0x90] sm:$0xff]
      %v2563 = vld [vmem:[#allocation3 + $0x98] sm:$0xff]
      %v2564 = vld [vmem:[#allocation3 + $0xa0] sm:$0xff]
      %v2565 = vld [vmem:[#allocation3 + $0xa8] sm:$0xff]
      %v2566 = vld [vmem:[#allocation3 + $0xb0] sm:$0xff]
      %v2567 = vld [vmem:[#allocation3 + $0xb8] sm:$0xff]
      %v2568 = vld [vmem:[#allocation3 + $0xc0] sm:$0xff]
      %v2569 = vld [vmem:[#allocation3 + $0xc8] sm:$0xff]
      %v2570 = vld [vmem:[#allocation3 + $0xd0] sm:$0xff]
      %v2571 = vld [vmem:[#allocation3 + $0xd8] sm:$0xff]
      %v2572 = vld [vmem:[#allocation3 + $0xe0] sm:$0xff]
      %v2573 = vld [vmem:[#allocation3 + $0xe8] sm:$0xff]
      %v2574 = vld [vmem:[#allocation3 + $0xf0] sm:$0xff]
      %v2575 = vld [vmem:[#allocation3 + $0xf8] sm:$0xff]
      %v2576 = vld [vmem:[#allocation3 + $0x100] sm:$0xff]
      %v2577 = vld [vmem:[#allocation3 + $0x108] sm:$0xff]
      %v2578 = vld [vmem:[#allocation3 + $0x110] sm:$0xff]
      %v2579 = vld [vmem:[#allocation3 + $0x118] sm:$0xff]
      %v2580 = vld [vmem:[#allocation3 + $0x120] sm:$0xff]
      %v2581 = vld [vmem:[#allocation3 + $0x128] sm:$0xff]
      %v2582 = vld [vmem:[#allocation3 + $0x130] sm:$0xff]
      %v2583 = vld [vmem:[#allocation3 + $0x138] sm:$0xff]
      %v2584 = vld [vmem:[#allocation3 + $0x140] sm:$0xff]
      %v2585 = vld [vmem:[#allocation3 + $0x148] sm:$0xff]
      %v2586 = vld [vmem:[#allocation3 + $0x150] sm:$0xff]
      %v2587 = vld [vmem:[#allocation3 + $0x158] sm:$0xff]
      %v2588 = vld [vmem:[#allocation3 + $0x160] sm:$0xff]
      %v2589 = vld [vmem:[#allocation3 + $0x168] sm:$0xff]
      %v2590 = vld [vmem:[#allocation3 + $0x170] sm:$0xff]
      %v2591 = vld [vmem:[#allocation3 + $0x178] sm:$0xff]
      %v2592 = vld [vmem:[#allocation3 + $0x180] sm:$0xff]
      %v2593 = vld [vmem:[#allocation3 + $0x188] sm:$0xff]
      %v2594 = vld [vmem:[#allocation3 + $0x190] sm:$0xff]
      %v2595 = vld [vmem:[#allocation3 + $0x198] sm:$0xff]
      %v2596 = vld [vmem:[#allocation3 + $0x1a0] sm:$0xff]
      %v2597 = vld [vmem:[#allocation3 + $0x1a8] sm:$0xff]
      %v2598 = vld [vmem:[#allocation3 + $0x1b0] sm:$0xff]
      %v2599 = vld [vmem:[#allocation3 + $0x1b8] sm:$0xff]
      %v2600 = vld [vmem:[#allocation3 + $0x1c0] sm:$0xff]
      %v2601 = vld [vmem:[#allocation3 + $0x1c8] sm:$0xff]
      %v2602 = vld [vmem:[#allocation3 + $0x1d0] sm:$0xff]
      %v2603 = vld [vmem:[#allocation3 + $0x1d8] sm:$0xff]
      %v2604 = vld [vmem:[#allocation3 + $0x1e0] sm:$0xff]
      %v2605 = vld [vmem:[#allocation3 + $0x1e8] sm:$0xff]
      %v2606 = vld [vmem:[#allocation3 + $0x1f0] sm:$0xff]
      %v2607 = vld [vmem:[#allocation3 + $0x1f8] sm:$0xff]
      %v2608 = vld [vmem:[#allocation3 + $0x200] sm:$0xff]
      %v2609 = vld [vmem:[#allocation3 + $0x208] sm:$0xff]
      %v2610 = vld [vmem:[#allocation3 + $0x210] sm:$0xff]
      %v2611 = vld [vmem:[#allocation3 + $0x218] sm:$0xff]
      %v2612 = vld [vmem:[#allocation3 + $0x220] sm:$0xff]
      %v2613 = vld [vmem:[#allocation3 + $0x228] sm:$0xff]
      %v2614 = vld [vmem:[#allocation3 + $0x230] sm:$0xff]
      %v2615 = vld [vmem:[#allocation3 + $0x238] sm:$0xff]
      %v2616 = vld [vmem:[#allocation3 + $0x240] sm:$0xff]
      %v2617 = vld [vmem:[#allocation3 + $0x248] sm:$0xff]
      %v2618 = vld [vmem:[#allocation3 + $0x250] sm:$0xff]
      %v2619 = vld [vmem:[#allocation3 + $0x258] sm:$0xff]
      %v2620 = vld [vmem:[#allocation3 + $0x260] sm:$0xff]
      %v2621 = vld [vmem:[#allocation3 + $0x268] sm:$0xff]
      %v2622 = vld [vmem:[#allocation3 + $0x270] sm:$0xff]
      %v2623 = vld [vmem:[#allocation3 + $0x278] sm:$0xff]
      %v2624 = vld [vmem:[#allocation3 + $0x280] sm:$0xff]
      %v2625 = vld [vmem:[#allocation3 + $0x288] sm:$0xff]
      %v2626 = vld [vmem:[#allocation3 + $0x290] sm:$0xff]
      %v2627 = vld [vmem:[#allocation3 + $0x298] sm:$0xff]
      %v2628 = vld [vmem:[#allocation3 + $0x2a0] sm:$0xff]
      %v2629 = vld [vmem:[#allocation3 + $0x2a8] sm:$0xff]
      %v2630 = vld [vmem:[#allocation3 + $0x2b0] sm:$0xff]
      %v2631 = vld [vmem:[#allocation3 + $0x2b8] sm:$0xff]
      %v2632 = vld [vmem:[#allocation3 + $0x2c0] sm:$0xff]
      %v2633 = vld [vmem:[#allocation3 + $0x2c8] sm:$0xff]
      %v2634 = vld [vmem:[#allocation3 + $0x2d0] sm:$0xff]
      %v2635 = vld [vmem:[#allocation3 + $0x2d8] sm:$0xff]
      %v2636 = vld [vmem:[#allocation3 + $0x2e0] sm:$0xff]
      %v2637 = vld [vmem:[#allocation3 + $0x2e8] sm:$0xff]
      %v2638 = vld [vmem:[#allocation3 + $0x2f0] sm:$0xff]
      %v2639 = vld [vmem:[#allocation3 + $0x2f8] sm:$0xff]
      %v2640 = vld [vmem:[#allocation3 + $0x300] sm:$0xff]
      %v2641 = vld [vmem:[#allocation3 + $0x308] sm:$0xff]
      %v2642 = vld [vmem:[#allocation3 + $0x310] sm:$0xff]
      %v2643 = vld [vmem:[#allocation3 + $0x318] sm:$0xff]
      %v2644 = vld [vmem:[#allocation3 + $0x320] sm:$0xff]
      %v2645 = vld [vmem:[#allocation3 + $0x328] sm:$0xff]
      %v2646 = vld [vmem:[#allocation3 + $0x330] sm:$0xff]
      %v2647 = vld [vmem:[#allocation3 + $0x338] sm:$0xff]
      %v2648 = vld [vmem:[#allocation3 + $0x340] sm:$0xff]
      %v2649 = vld [vmem:[#allocation3 + $0x348] sm:$0xff]
      %v2650 = vld [vmem:[#allocation3 + $0x350] sm:$0xff]
      %v2651 = vld [vmem:[#allocation3 + $0x358] sm:$0xff]
      %v2652 = vld [vmem:[#allocation3 + $0x360] sm:$0xff]
      %v2653 = vld [vmem:[#allocation3 + $0x368] sm:$0xff]
      %v2654 = vld [vmem:[#allocation3 + $0x370] sm:$0xff]
      %v2655 = vld [vmem:[#allocation3 + $0x378] sm:$0xff]
      %v2656 = vld [vmem:[#allocation3 + $0x380] sm:$0xff]
      %v2657 = vld [vmem:[#allocation3 + $0x388] sm:$0xff]
      %v2658 = vld [vmem:[#allocation3 + $0x390] sm:$0xff]
      %v2659 = vld [vmem:[#allocation3 + $0x398] sm:$0xff]
      %v2660 = vld [vmem:[#allocation3 + $0x3a0] sm:$0xff]
      %v2661 = vld [vmem:[#allocation3 + $0x3a8] sm:$0xff]
      %v2662 = vld [vmem:[#allocation3 + $0x3b0] sm:$0xff]
      %v2663 = vld [vmem:[#allocation3 + $0x3b8] sm:$0xff]
      %v2664 = vld [vmem:[%s4] sm:$0xf]
      %v2665 = vld [vmem:[%s4 + $0x4] sm:$0xf]
      %v2666 = vld [vmem:[%s4 + $0x8] sm:$0xf]
      %v2667 = vld [vmem:[%s4 + $0xc] sm:$0xf]
      %v2668 = vld [vmem:[%s4 + $0x10] sm:$0xf]
      %v2669 = vld [vmem:[%s4 + $0x14] sm:$0xf]
      %v2670 = vld [vmem:[%s4 + $0x18] sm:$0xf]
      %v2671 = vld [vmem:[%s4 + $0x1c] sm:$0xf]
      %v2672 = vld [vmem:[%s4 + $0x20] sm:$0xf]
      %v2673 = vld [vmem:[%s4 + $0x24] sm:$0xf]
      %v2674 = vld [vmem:[%s4 + $0x28] sm:$0xf]
      %v2675 = vld [vmem:[%s4 + $0x2c] sm:$0xf]
      %v2676 = vld [vmem:[%s4 + $0x30] sm:$0xf]
      %v2677 = vld [vmem:[%s4 + $0x34] sm:$0xf]
      %v2678 = vld [vmem:[%s4 + $0x38] sm:$0xf]
      %v2679 = vld [vmem:[%s4 + $0x3c] sm:$0xf]
      %v2680 = vld [vmem:[%s4 + $0x40] sm:$0xf]
      %v2681 = vld [vmem:[%s4 + $0x44] sm:$0xf]
      %v2682 = vld [vmem:[%s4 + $0x48] sm:$0xf]
      %v2683 = vld [vmem:[%s4 + $0x4c] sm:$0xf]
      %v2684 = vld [vmem:[%s4 + $0x50] sm:$0xf]
      %v2685 = vld [vmem:[%s4 + $0x54] sm:$0xf]
      %v2686 = vld [vmem:[%s4 + $0x58] sm:$0xf]
      %v2687 = vld [vmem:[%s4 + $0x5c] sm:$0xf]
      %v2688 = vld [vmem:[%s4 + $0x60] sm:$0xf]
      %v2689 = vld [vmem:[%s4 + $0x64] sm:$0xf]
      %v2690 = vld [vmem:[%s4 + $0x68] sm:$0xf]
      %v2691 = vld [vmem:[%s4 + $0x6c] sm:$0xf]
      %v2692 = vld [vmem:[%s4 + $0x70] sm:$0xf]
      %v2693 = vld [vmem:[%s4 + $0x74] sm:$0xf]
      %v2694 = vld [vmem:[%s4 + $0x78] sm:$0xf]
      %v2695 = vld [vmem:[%s4 + $0x7c] sm:$0xf]
      %v2696 = vld [vmem:[%s4 + $0x80] sm:$0xf]
      %v2697 = vld [vmem:[%s4 + $0x84] sm:$0xf]
      %v2698 = vld [vmem:[%s4 + $0x88] sm:$0xf]
      %v2699 = vld [vmem:[%s4 + $0x8c] sm:$0xf]
      %v2700 = vld [vmem:[%s4 + $0x90] sm:$0xf]
      %v2701 = vld [vmem:[%s4 + $0x94] sm:$0xf]
      %v2702 = vld [vmem:[%s4 + $0x98] sm:$0xf]
      %v2703 = vld [vmem:[%s4 + $0x9c] sm:$0xf]
      %v2704 = vld [vmem:[%s4 + $0xa0] sm:$0xf]
      %v2705 = vld [vmem:[%s4 + $0xa4] sm:$0xf]
      %v2706 = vld [vmem:[%s4 + $0xa8] sm:$0xf]
      %v2707 = vld [vmem:[%s4 + $0xac] sm:$0xf]
      %v2708 = vld [vmem:[%s4 + $0xb0] sm:$0xf]
      %v2709 = vld [vmem:[%s4 + $0xb4] sm:$0xf]
      %v2710 = vld [vmem:[%s4 + $0xb8] sm:$0xf]
      %v2711 = vld [vmem:[%s4 + $0xbc] sm:$0xf]
      %v2712 = vld [vmem:[%s4 + $0xc0] sm:$0xf]
      %v2713 = vld [vmem:[%s4 + $0xc4] sm:$0xf]
      %v2714 = vld [vmem:[%s4 + $0xc8] sm:$0xf]
      %v2715 = vld [vmem:[%s4 + $0xcc] sm:$0xf]
      %v2716 = vld [vmem:[%s4 + $0xd0] sm:$0xf]
      %v2717 = vld [vmem:[%s4 + $0xd4] sm:$0xf]
      %v2718 = vld [vmem:[%s4 + $0xd8] sm:$0xf]
      %v2719 = vld [vmem:[%s4 + $0xdc] sm:$0xf]
      %v2720 = vld [vmem:[%s4 + $0xe0] sm:$0xf]
      %v2721 = vld [vmem:[%s4 + $0xe4] sm:$0xf]
      %v2722 = vld [vmem:[%s4 + $0xe8] sm:$0xf]
      %v2723 = vld [vmem:[%s4 + $0xec] sm:$0xf]
      %v2724 = vld [vmem:[%s4 + $0xf0] sm:$0xf]
      %v2725 = vld [vmem:[%s4 + $0xf4] sm:$0xf]
      %v2726 = vld [vmem:[%s4 + $0xf8] sm:$0xf]
      %v2727 = vld [vmem:[%s4 + $0xfc] sm:$0xf]
      %v2728 = vld [vmem:[%s4 + $0x100] sm:$0xf]
      %v2729 = vld [vmem:[%s4 + $0x104] sm:$0xf]
      %v2730 = vld [vmem:[%s4 + $0x108] sm:$0xf]
      %v2731 = vld [vmem:[%s4 + $0x10c] sm:$0xf]
      %v2732 = vld [vmem:[%s4 + $0x110] sm:$0xf]
      %v2733 = vld [vmem:[%s4 + $0x114] sm:$0xf]
      %v2734 = vld [vmem:[%s4 + $0x118] sm:$0xf]
      %v2735 = vld [vmem:[%s4 + $0x11c] sm:$0xf]
      %v2736 = vld [vmem:[%s5] sm:$0x1]
      %v2738 = vlaneseq
      %v2739 = vshrl.u32 %v2738, 7
      %v2740 = vsub.s32 0, %v2739
      %v2741 = vrot.slane %v2736, %v2740
      %v2815 = vunpack.c.l.b16 %v2664
      %v2816 = vunpack.c.l.b16 %v2665
      %v2817 = vunpack.c.l.b16 %v2666
      %v2818 = vunpack.c.l.b16 %v2667
      %v2819 = vunpack.c.l.b16 %v2668
      %v2820 = vunpack.c.l.b16 %v2669
      %v2821 = vunpack.c.l.b16 %v2670
      %v2822 = vunpack.c.l.b16 %v2671
      %v2823 = vunpack.c.l.b16 %v2672
      %v2824 = vunpack.c.l.b16 %v2673
      %v2825 = vunpack.c.l.b16 %v2674
      %v2826 = vunpack.c.l.b16 %v2675
      %v2827 = vunpack.c.l.b16 %v2676
      %v2828 = vunpack.c.l.b16 %v2677
      %v2829 = vunpack.c.l.b16 %v2678
      %v2830 = vunpack.c.l.b16 %v2679
      %v2831 = vunpack.c.l.b16 %v2680
      %v2832 = vunpack.c.l.b16 %v2681
      %v2833 = vunpack.c.l.b16 %v2682
      %v2834 = vunpack.c.l.b16 %v2683
      %v2835 = vunpack.c.l.b16 %v2684
      %v2836 = vunpack.c.l.b16 %v2685
      %v2837 = vunpack.c.l.b16 %v2686
      %v2838 = vunpack.c.l.b16 %v2687
      %v2839 = vunpack.c.l.b16 %v2688
      %v2840 = vunpack.c.l.b16 %v2689
      %v2841 = vunpack.c.l.b16 %v2690
      %v2842 = vunpack.c.l.b16 %v2691
      %v2843 = vunpack.c.l.b16 %v2692
      %v2844 = vunpack.c.l.b16 %v2693
      %v2845 = vunpack.c.l.b16 %v2694
      %v2846 = vunpack.c.l.b16 %v2695
      %v2847 = vunpack.c.l.b16 %v2696
      %v2848 = vunpack.c.l.b16 %v2697
      %v2849 = vunpack.c.l.b16 %v2698
      %v2850 = vunpack.c.l.b16 %v2699
      %v2851 = vunpack.c.l.b16 %v2700
      %v2852 = vunpack.c.l.b16 %v2701
      %v2853 = vunpack.c.l.b16 %v2702
      %v2854 = vunpack.c.l.b16 %v2703
      %v2855 = vunpack.c.l.b16 %v2704
      %v2856 = vunpack.c.l.b16 %v2705
      %v2857 = vunpack.c.l.b16 %v2706
      %v2858 = vunpack.c.l.b16 %v2707
      %v2859 = vunpack.c.l.b16 %v2708
      %v2860 = vunpack.c.l.b16 %v2709
      %v2861 = vunpack.c.l.b16 %v2710
      %v2862 = vunpack.c.l.b16 %v2711
      %v2863 = vunpack.c.l.b16 %v2712
      %v2864 = vunpack.c.l.b16 %v2713
      %v2865 = vunpack.c.l.b16 %v2714
      %v2866 = vunpack.c.l.b16 %v2715
      %v2867 = vunpack.c.l.b16 %v2716
      %v2868 = vunpack.c.l.b16 %v2717
      %v2869 = vunpack.c.l.b16 %v2718
      %v2870 = vunpack.c.l.b16 %v2719
      %v2871 = vunpack.c.l.b16 %v2720
      %v2872 = vunpack.c.l.b16 %v2721
      %v2873 = vunpack.c.l.b16 %v2722
      %v2874 = vunpack.c.l.b16 %v2723
      %v2875 = vunpack.c.l.b16 %v2724
      %v2876 = vunpack.c.l.b16 %v2725
      %v2877 = vunpack.c.l.b16 %v2726
      %v2878 = vunpack.c.l.b16 %v2727
      %v2879 = vunpack.c.l.b16 %v2728
      %v2880 = vunpack.c.l.b16 %v2729
      %v2881 = vunpack.c.l.b16 %v2730
      %v2882 = vunpack.c.l.b16 %v2731
      %v2883 = vunpack.c.l.b16 %v2732
      %v2884 = vunpack.c.l.b16 %v2733
      %v2885 = vunpack.c.l.b16 %v2734
      %v2886 = vunpack.c.l.b16 %v2735
      %v2887 = vpack.c.b16 %v2816, %v2815
      %v2888 = vpack.c.b16 %v2818, %v2817
      %v2889 = vpack.c.b16 %v2820, %v2819
      %v2890 = vpack.c.b16 %v2822, %v2821
      %v2891 = vpack.c.b16 %v2824, %v2823
      %v2892 = vpack.c.b16 %v2826, %v2825
      %v2893 = vpack.c.b16 %v2828, %v2827
      %v2894 = vpack.c.b16 %v2830, %v2829
      %v2895 = vpack.c.b16 %v2832, %v2831
      %v2896 = vpack.c.b16 %v2834, %v2833
      %v2897 = vpack.c.b16 %v2836, %v2835
      %v2898 = vpack.c.b16 %v2838, %v2837
      %v2899 = vpack.c.b16 %v2840, %v2839
      %v2900 = vpack.c.b16 %v2842, %v2841
      %v2901 = vpack.c.b16 %v2844, %v2843
      %v2902 = vpack.c.b16 %v2846, %v2845
      %v2903 = vpack.c.b16 %v2848, %v2847
      %v2904 = vpack.c.b16 %v2850, %v2849
      %v2905 = vpack.c.b16 %v2852, %v2851
      %v2906 = vpack.c.b16 %v2854, %v2853
      %v2907 = vpack.c.b16 %v2856, %v2855
      %v2908 = vpack.c.b16 %v2858, %v2857
      %v2909 = vpack.c.b16 %v2860, %v2859
      %v2910 = vpack.c.b16 %v2862, %v2861
      %v2911 = vpack.c.b16 %v2864, %v2863
      %v2912 = vpack.c.b16 %v2866, %v2865
      %v2913 = vpack.c.b16 %v2868, %v2867
      %v2914 = vpack.c.b16 %v2870, %v2869
      %v2915 = vpack.c.b16 %v2872, %v2871
      %v2916 = vpack.c.b16 %v2874, %v2873
      %v2917 = vpack.c.b16 %v2876, %v2875
      %v2918 = vpack.c.b16 %v2878, %v2877
      %v2919 = vpack.c.b16 %v2880, %v2879
      %v2920 = vpack.c.b16 %v2882, %v2881
      %v2921 = vpack.c.b16 %v2884, %v2883
      %v2922 = vpack.c.b16 %v2886, %v2885
      %v2960 = vsel %vm409, %v2548, 0
      %v2963 = vsel %vm409, %v2553, 0
      %v2966 = vsel %vm409, %v2558, 0
      %v2969 = vsel %vm409, %v2563, 0
      %v2972 = vsel %vm409, %v2568, 0
      %v2975 = vsel %vm409, %v2573, 0
      %v2978 = vsel %vm409, %v2578, 0
      %v2981 = vsel %vm409, %v2583, 0
      %v2984 = vsel %vm409, %v2588, 0
      %v2987 = vsel %vm409, %v2593, 0
      %v2990 = vsel %vm409, %v2598, 0
      %v2993 = vsel %vm409, %v2603, 0
      %v2996 = vsel %vm409, %v2608, 0
      %v2999 = vsel %vm409, %v2613, 0
      %v3002 = vsel %vm409, %v2618, 0
      %v3005 = vsel %vm409, %v2623, 0
      %v3008 = vsel %vm409, %v2628, 0
      %v3011 = vsel %vm409, %v2633, 0
      %v3014 = vsel %vm409, %v2638, 0
      %v3017 = vsel %vm409, %v2643, 0
      %v3020 = vsel %vm409, %v2648, 0
      %v3023 = vsel %vm409, %v2653, 0
      %v3026 = vsel %vm409, %v2658, 0
      %v3029 = vsel %vm409, %v2663, 0
      %3031 = vmatprep.subr.bf16.mxu0 0
      %3032 = vmatpush1.bf16.msra.mxu0 %v2887
      %3033 = vmatprep.subr.bf16.mxu0 0
      %3034 = vmatpush1.bf16.msra.mxu0 %v2888
      %3035 = vmatprep.subr.bf16.mxu0 0
      %3036 = vmatpush1.bf16.msra.mxu0 %v2889
      %3037 = vmatprep.subr.bf16.mxu0 0
      %3038 = vmatpush1.bf16.msra.mxu0 %v2890
      %3039 = vmatprep.subr.bf16.mxu0 0
      %3040 = vmatpush1.bf16.msra.mxu0 %v2891
      %3041 = vmatprep.subr.bf16.mxu0 0
      %3042 = vmatpush1.bf16.msra.mxu0 %v2892
      %3043 = vmatprep.subr.bf16.mxu0 0
      %3044 = vmatpush1.bf16.msra.mxu0 %v2893
      %3045 = vmatprep.subr.bf16.mxu0 0
      %3046 = vmatpush1.bf16.msra.mxu0 %v2894
      %3047 = vmatprep.subr.bf16.mxu0 0
      %3048 = vmatpush1.bf16.msra.mxu0 %v2895
      %3049 = vmatprep.subr.bf16.mxu0 0
      %3050 = vmatpush1.bf16.msra.mxu0 %v2896
      %3051 = vmatprep.subr.bf16.mxu0 0
      %3052 = vmatpush1.bf16.msra.mxu0 %v2897
      %3053 = vmatprep.subr.bf16.mxu0 0
      %3054 = vmatpush1.bf16.msra.mxu0 %v2898
      %3055 = vmatprep.subr.bf16.mxu0 0
      %3056 = vmatpush1.bf16.msra.mxu0 %v2899
      %3057 = vmatprep.subr.bf16.mxu0 0
      %3058 = vmatpush1.bf16.msra.mxu0 %v2900
      %3059 = vmatprep.subr.bf16.mxu0 0
      %3060 = vmatpush1.bf16.msra.mxu0 %v2901
      %3061 = vmatprep.subr.bf16.mxu0 0
      %3062 = vmatpush1.bf16.msra.mxu0 %v2902
      %3063 = vmatprep.mubr.bf16.mxu0 %v2545
      %3064 = vmatmul.mubr.bf16.gmra.mrb[0].mxu0 %v2544
      %v3065 = vpop.f32.mrb[0].mxu0
      %v3066 = vadd.f32 %v2741, %v3065
      %v3067 = vpop.f32.mrb[0].mxu0
      %v3068 = vpop.f32.mrb[0].mxu0
      %v3069 = vadd.f32 %v2741, %v3068
      %v3070 = vpop.f32.mrb[0].mxu0
      %3071 = vmatprep.mubr.bf16.mxu0 %v2550
      %3072 = vmatmul.mubr.bf16.gmra.mrb[0].mxu0 %v2549
      %v3073 = vpop.f32.mrb[0].mxu0
      %v3074 = vadd.f32 %v2741, %v3073
      %v3075 = vpop.f32.mrb[0].mxu0
      %v3076 = vpop.f32.mrb[0].mxu0
      %v3077 = vadd.f32 %v2741, %v3076
      %v3078 = vpop.f32.mrb[0].mxu0
      %3079 = vmatprep.mubr.bf16.mxu0 %v2555
      %3080 = vmatmul.mubr.bf16.gmra.mrb[0].mxu0 %v2554
      %v3081 = vpop.f32.mrb[0].mxu0
      %v3082 = vadd.f32 %v2741, %v3081
      %v3083 = vpop.f32.mrb[0].mxu0
      %v3084 = vpop.f32.mrb[0].mxu0
      %v3085 = vadd.f32 %v2741, %v3084
      %v3086 = vpop.f32.mrb[0].mxu0
      %3087 = vmatprep.mubr.bf16.mxu0 %v2560
      %3088 = vmatmul.mubr.bf16.gmra.mrb[0].mxu0 %v2559
      %v3089 = vpop.f32.mrb[0].mxu0
      %v3090 = vadd.f32 %v2741, %v3089
      %v3091 = vpop.f32.mrb[0].mxu0
      %v3092 = vpop.f32.mrb[0].mxu0
      %v3093 = vadd.f32 %v2741, %v3092
      %v3094 = vpop.f32.mrb[0].mxu0
      %3095 = vmatprep.mubr.bf16.mxu0 %v2565
      %3096 = vmatmul.mubr.bf16.gmra.mrb[0].mxu0 %v2564
      %v3097 = vpop.f32.mrb[0].mxu0
      %v3098 = vadd.f32 %v2741, %v3097
      %v3099 = vpop.f32.mrb[0].mxu0
      %v3100 = vpop.f32.mrb[0].mxu0
      %v3101 = vadd.f32 %v2741, %v3100
      %v3102 = vpop.f32.mrb[0].mxu0
      %3103 = vmatprep.mubr.bf16.mxu0 %v2570
      %3104 = vmatmul.mubr.bf16.gmra.mrb[0].mxu0 %v2569
      %v3105 = vpop.f32.mrb[0].mxu0
      %v3106 = vadd.f32 %v2741, %v3105
      %v3107 = vpop.f32.mrb[0].mxu0
      %v3108 = vpop.f32.mrb[0].mxu0
      %v3109 = vadd.f32 %v2741, %v3108
      %v3110 = vpop.f32.mrb[0].mxu0
      %3111 = vmatprep.mubr.bf16.mxu0 %v2575
      %3112 = vmatmul.mubr.bf16.gmra.mrb[0].mxu0 %v2574
      %v3113 = vpop.f32.mrb[0].mxu0
      %v3114 = vadd.f32 %v2741, %v3113
      %v3115 = vpop.f32.mrb[0].mxu0
      %v3116 = vpop.f32.mrb[0].mxu0
      %v3117 = vadd.f32 %v2741, %v3116
      %v3118 = vpop.f32.mrb[0].mxu0
      %3119 = vmatprep.mubr.bf16.mxu0 %v2580
      %3120 = vmatmul.mubr.bf16.gmra.mrb[0].mxu0 %v2579
      %v3121 = vpop.f32.mrb[0].mxu0
      %v3122 = vadd.f32 %v2741, %v3121
      %v3123 = vpop.f32.mrb[0].mxu0
      %v3124 = vpop.f32.mrb[0].mxu0
      %v3125 = vadd.f32 %v2741, %v3124
      %v3126 = vpop.f32.mrb[0].mxu0
      %3127 = vmatprep.mubr.bf16.mxu0 %v2585
      %3128 = vmatmul.mubr.bf16.gmra.mrb[0].mxu0 %v2584
      %v3129 = vpop.f32.mrb[0].mxu0
      %v3130 = vadd.f32 %v2741, %v3129
      %v3131 = vpop.f32.mrb[0].mxu0
      %v3132 = vpop.f32.mrb[0].mxu0
      %v3133 = vadd.f32 %v2741, %v3132
      %v3134 = vpop.f32.mrb[0].mxu0
      %3135 = vmatprep.mubr.bf16.mxu0 %v2590
      %3136 = vmatmul.mubr.bf16.gmra.mrb[0].mxu0 %v2589
      %v3137 = vpop.f32.mrb[0].mxu0
      %v3138 = vadd.f32 %v2741, %v3137
      %v3139 = vpop.f32.mrb[0].mxu0
      %v3140 = vpop.f32.mrb[0].mxu0
      %v3141 = vadd.f32 %v2741, %v3140
      %v3142 = vpop.f32.mrb[0].mxu0
      %3143 = vmatprep.mubr.bf16.mxu0 %v2595
      %3144 = vmatmul.mubr.bf16.gmra.mrb[0].mxu0 %v2594
      %v3145 = vpop.f32.mrb[0].mxu0
      %v3146 = vadd.f32 %v2741, %v3145
      %v3147 = vpop.f32.mrb[0].mxu0
      %v3148 = vpop.f32.mrb[0].mxu0
      %v3149 = vadd.f32 %v2741, %v3148
      %v3150 = vpop.f32.mrb[0].mxu0
      %3151 = vmatprep.mubr.bf16.mxu0 %v2600
      %3152 = vmatmul.mubr.bf16.gmra.mrb[0].mxu0 %v2599
      %v3153 = vpop.f32.mrb[0].mxu0
      %v3154 = vadd.f32 %v2741, %v3153
      %v3155 = vpop.f32.mrb[0].mxu0
      %v3156 = vpop.f32.mrb[0].mxu0
      %v3157 = vadd.f32 %v2741, %v3156
      %v3158 = vpop.f32.mrb[0].mxu0
      %3159 = vmatprep.mubr.bf16.mxu0 %v2605
      %3160 = vmatmul.mubr.bf16.gmra.mrb[0].mxu0 %v2604
      %v3161 = vpop.f32.mrb[0].mxu0
      %v3162 = vadd.f32 %v2741, %v3161
      %v3163 = vpop.f32.mrb[0].mxu0
      %v3164 = vpop.f32.mrb[0].mxu0
      %v3165 = vadd.f32 %v2741, %v3164
      %v3166 = vpop.f32.mrb[0].mxu0
      %3167 = vmatprep.mubr.bf16.mxu0 %v2610
      %3168 = vmatmul.mubr.bf16.gmra.mrb[0].mxu0 %v2609
      %v3169 = vpop.f32.mrb[0].mxu0
      %v3170 = vadd.f32 %v2741, %v3169
      %v3171 = vpop.f32.mrb[0].mxu0
      %v3172 = vpop.f32.mrb[0].mxu0
      %v3173 = vadd.f32 %v2741, %v3172
      %v3174 = vpop.f32.mrb[0].mxu0
      %3175 = vmatprep.mubr.bf16.mxu0 %v2615
      %3176 = vmatmul.mubr.bf16.gmra.mrb[0].mxu0 %v2614
      %v3177 = vpop.f32.mrb[0].mxu0
      %v3178 = vadd.f32 %v2741, %v3177
      %v3179 = vpop.f32.mrb[0].mxu0
      %v3180 = vpop.f32.mrb[0].mxu0
      %v3181 = vadd.f32 %v2741, %v3180
      %v3182 = vpop.f32.mrb[0].mxu0
      %3183 = vmatprep.mubr.bf16.mxu0 %v2620
      %3184 = vmatmul.mubr.bf16.gmra.mrb[0].mxu0 %v2619
      %v3185 = vpop.f32.mrb[0].mxu0
      %v3186 = vadd.f32 %v2741, %v3185
      %v3187 = vpop.f32.mrb[0].mxu0
      %v3188 = vpop.f32.mrb[0].mxu0
      %v3189 = vadd.f32 %v2741, %v3188
      %v3190 = vpop.f32.mrb[0].mxu0
      %3191 = vmatprep.mubr.bf16.mxu0 %v2625
      %3192 = vmatmul.mubr.bf16.gmra.mrb[0].mxu0 %v2624
      %v3193 = vpop.f32.mrb[0].mxu0
      %v3194 = vadd.f32 %v2741, %v3193
      %v3195 = vpop.f32.mrb[0].mxu0
      %v3196 = vpop.f32.mrb[0].mxu0
      %v3197 = vadd.f32 %v2741, %v3196
      %v3198 = vpop.f32.mrb[0].mxu0
      %3199 = vmatprep.mubr.bf16.mxu0 %v2630
      %3200 = vmatmul.mubr.bf16.gmra.mrb[0].mxu0 %v2629
      %v3201 = vpop.f32.mrb[0].mxu0
      %v3202 = vadd.f32 %v2741, %v3201
      %v3203 = vpop.f32.mrb[0].mxu0
      %v3204 = vpop.f32.mrb[0].mxu0
      %v3205 = vadd.f32 %v2741, %v3204
      %v3206 = vpop.f32.mrb[0].mxu0
      %3207 = vmatprep.mubr.bf16.mxu0 %v2635
      %3208 = vmatmul.mubr.bf16.gmra.mrb[0].mxu0 %v2634
      %v3209 = vpop.f32.mrb[0].mxu0
      %v3210 = vadd.f32 %v2741, %v3209
      %v3211 = vpop.f32.mrb[0].mxu0
      %v3212 = vpop.f32.mrb[0].mxu0
      %v3213 = vadd.f32 %v2741, %v3212
      %v3214 = vpop.f32.mrb[0].mxu0
      %3215 = vmatprep.mubr.bf16.mxu0 %v2640
      %3216 = vmatmul.mubr.bf16.gmra.mrb[0].mxu0 %v2639
      %v3217 = vpop.f32.mrb[0].mxu0
      %v3218 = vadd.f32 %v2741, %v3217
      %v3219 = vpop.f32.mrb[0].mxu0
      %v3220 = vpop.f32.mrb[0].mxu0
      %v3221 = vadd.f32 %v2741, %v3220
      %v3222 = vpop.f32.mrb[0].mxu0
      %3223 = vmatprep.mubr.bf16.mxu0 %v2645
      %3224 = vmatmul.mubr.bf16.gmra.mrb[0].mxu0 %v2644
      %v3225 = vpop.f32.mrb[0].mxu0
      %v3226 = vadd.f32 %v2741, %v3225
      %v3227 = vpop.f32.mrb[0].mxu0
      %v3228 = vpop.f32.mrb[0].mxu0
      %v3229 = vadd.f32 %v2741, %v3228
      %v3230 = vpop.f32.mrb[0].mxu0
      %3231 = vmatprep.mubr.bf16.mxu0 %v2650
      %3232 = vmatmul.mubr.bf16.gmra.mrb[0].mxu0 %v2649
      %v3233 = vpop.f32.mrb[0].mxu0
      %v3234 = vadd.f32 %v2741, %v3233
      %v3235 = vpop.f32.mrb[0].mxu0
      %v3236 = vpop.f32.mrb[0].mxu0
      %v3237 = vadd.f32 %v2741, %v3236
      %v3238 = vpop.f32.mrb[0].mxu0
      %3239 = vmatprep.mubr.bf16.mxu0 %v2655
      %3240 = vmatmul.mubr.bf16.gmra.mrb[0].mxu0 %v2654
      %v3241 = vpop.f32.mrb[0].mxu0
      %v3242 = vadd.f32 %v2741, %v3241
      %v3243 = vpop.f32.mrb[0].mxu0
      %v3244 = vpop.f32.mrb[0].mxu0
      %v3245 = vadd.f32 %v2741, %v3244
      %v3246 = vpop.f32.mrb[0].mxu0
      %3247 = vmatprep.mubr.bf16.mxu0 %v2660
      %3248 = vmatmul.mubr.bf16.gmra.mrb[0].mxu0 %v2659
      %v3249 = vpop.f32.mrb[0].mxu0
      %v3250 = vadd.f32 %v2741, %v3249
      %v3251 = vpop.f32.mrb[0].mxu0
      %v3252 = vpop.f32.mrb[0].mxu0
      %v3253 = vadd.f32 %v2741, %v3252
      %v3254 = vpop.f32.mrb[0].mxu0
      %3255 = vdwg.mxu0
      %3256 = vmatprep.subr.bf16.mxu0 0
      %3257 = vmatpush1.bf16.msra.mxu0 %v2903
      %3258 = vmatprep.subr.bf16.mxu0 0
      %3259 = vmatpush1.bf16.msra.mxu0 %v2904
      %3260 = vmatprep.subr.bf16.mxu0 0
      %3261 = vmatpush1.bf16.msra.mxu0 %v2905
      %3262 = vmatprep.subr.bf16.mxu0 0
      %3263 = vmatpush1.bf16.msra.mxu0 %v2906
      %3264 = vmatprep.subr.bf16.mxu0 0
      %3265 = vmatpush1.bf16.msra.mxu0 %v2907
      %3266 = vmatprep.subr.bf16.mxu0 0
      %3267 = vmatpush1.bf16.msra.mxu0 %v2908
      %3268 = vmatprep.subr.bf16.mxu0 0
      %3269 = vmatpush1.bf16.msra.mxu0 %v2909
      %3270 = vmatprep.subr.bf16.mxu0 0
      %3271 = vmatpush1.bf16.msra.mxu0 %v2910
      %3272 = vmatprep.subr.bf16.mxu0 0
      %3273 = vmatpush1.bf16.msra.mxu0 %v2911
      %3274 = vmatprep.subr.bf16.mxu0 0
      %3275 = vmatpush1.bf16.msra.mxu0 %v2912
      %3276 = vmatprep.subr.bf16.mxu0 0
      %3277 = vmatpush1.bf16.msra.mxu0 %v2913
      %3278 = vmatprep.subr.bf16.mxu0 0
      %3279 = vmatpush1.bf16.msra.mxu0 %v2914
      %3280 = vmatprep.subr.bf16.mxu0 0
      %3281 = vmatpush1.bf16.msra.mxu0 %v2915
      %3282 = vmatprep.subr.bf16.mxu0 0
      %3283 = vmatpush1.bf16.msra.mxu0 %v2916
      %3284 = vmatprep.subr.bf16.mxu0 0
      %3285 = vmatpush1.bf16.msra.mxu0 %v2917
      %3286 = vmatprep.subr.bf16.mxu0 0
      %3287 = vmatpush1.bf16.msra.mxu0 %v2918
      %3288 = vmatprep.mubr.bf16.mxu0 %v2547
      %3289 = vmatmul.mubr.bf16.gmra.mrb[0].mxu0 %v2546
      %v3290 = vpop.f32.mrb[0].mxu0
      %v3291 = vadd.f32 %v3066, %v3290
      %v3292 = vpop.f32.mrb[0].mxu0
      %v3293 = vpop.f32.mrb[0].mxu0
      %v3294 = vadd.f32 %v3069, %v3293
      %v3295 = vpop.f32.mrb[0].mxu0
      %3296 = vmatprep.mubr.bf16.mxu0 %v2552
      %3297 = vmatmul.mubr.bf16.gmra.mrb[0].mxu0 %v2551
      %v3298 = vpop.f32.mrb[0].mxu0
      %v3299 = vadd.f32 %v3074, %v3298
      %v3300 = vpop.f32.mrb[0].mxu0
      %v3301 = vpop.f32.mrb[0].mxu0
      %v3302 = vadd.f32 %v3077, %v3301
      %v3303 = vpop.f32.mrb[0].mxu0
      %3304 = vmatprep.mubr.bf16.mxu0 %v2557
      %3305 = vmatmul.mubr.bf16.gmra.mrb[0].mxu0 %v2556
      %v3306 = vpop.f32.mrb[0].mxu0
      %v3307 = vadd.f32 %v3082, %v3306
      %v3308 = vpop.f32.mrb[0].mxu0
      %v3309 = vpop.f32.mrb[0].mxu0
      %v3310 = vadd.f32 %v3085, %v3309
      %v3311 = vpop.f32.mrb[0].mxu0
      %3312 = vmatprep.mubr.bf16.mxu0 %v2562
      %3313 = vmatmul.mubr.bf16.gmra.mrb[0].mxu0 %v2561
      %v3314 = vpop.f32.mrb[0].mxu0
      %v3315 = vadd.f32 %v3090, %v3314
      %v3316 = vpop.f32.mrb[0].mxu0
      %v3317 = vpop.f32.mrb[0].mxu0
      %v3318 = vadd.f32 %v3093, %v3317
      %v3319 = vpop.f32.mrb[0].mxu0
      %3320 = vmatprep.mubr.bf16.mxu0 %v2567
      %3321 = vmatmul.mubr.bf16.gmra.mrb[0].mxu0 %v2566
      %v3322 = vpop.f32.mrb[0].mxu0
      %v3323 = vadd.f32 %v3098, %v3322
      %v3324 = vpop.f32.mrb[0].mxu0
      %v3325 = vpop.f32.mrb[0].mxu0
      %v3326 = vadd.f32 %v3101, %v3325
      %v3327 = vpop.f32.mrb[0].mxu0
      %3328 = vmatprep.mubr.bf16.mxu0 %v2572
      %3329 = vmatmul.mubr.bf16.gmra.mrb[0].mxu0 %v2571
      %v3330 = vpop.f32.mrb[0].mxu0
      %v3331 = vadd.f32 %v3106, %v3330
      %v3332 = vpop.f32.mrb[0].mxu0
      %v3333 = vpop.f32.mrb[0].mxu0
      %v3334 = vadd.f32 %v3109, %v3333
      %v3335 = vpop.f32.mrb[0].mxu0
      %3336 = vmatprep.mubr.bf16.mxu0 %v2577
      %3337 = vmatmul.mubr.bf16.gmra.mrb[0].mxu0 %v2576
      %v3338 = vpop.f32.mrb[0].mxu0
      %v3339 = vadd.f32 %v3114, %v3338
      %v3340 = vpop.f32.mrb[0].mxu0
      %v3341 = vpop.f32.mrb[0].mxu0
      %v3342 = vadd.f32 %v3117, %v3341
      %v3343 = vpop.f32.mrb[0].mxu0
      %3344 = vmatprep.mubr.bf16.mxu0 %v2582
      %3345 = vmatmul.mubr.bf16.gmra.mrb[0].mxu0 %v2581
      %v3346 = vpop.f32.mrb[0].mxu0
      %v3347 = vadd.f32 %v3122, %v3346
      %v3348 = vpop.f32.mrb[0].mxu0
      %v3349 = vpop.f32.mrb[0].mxu0
      %v3350 = vadd.f32 %v3125, %v3349
      %v3351 = vpop.f32.mrb[0].mxu0
      %3352 = vmatprep.mubr.bf16.mxu0 %v2587
      %3353 = vmatmul.mubr.bf16.gmra.mrb[0].mxu0 %v2586
      %v3354 = vpop.f32.mrb[0].mxu0
      %v3355 = vadd.f32 %v3130, %v3354
      %v3356 = vpop.f32.mrb[0].mxu0
      %v3357 = vpop.f32.mrb[0].mxu0
      %v3358 = vadd.f32 %v3133, %v3357
      %v3359 = vpop.f32.mrb[0].mxu0
      %3360 = vmatprep.mubr.bf16.mxu0 %v2592
      %3361 = vmatmul.mubr.bf16.gmra.mrb[0].mxu0 %v2591
      %v3362 = vpop.f32.mrb[0].mxu0
      %v3363 = vadd.f32 %v3138, %v3362
      %v3364 = vpop.f32.mrb[0].mxu0
      %v3365 = vpop.f32.mrb[0].mxu0
      %v3366 = vadd.f32 %v3141, %v3365
      %v3367 = vpop.f32.mrb[0].mxu0
      %3368 = vmatprep.mubr.bf16.mxu0 %v2597
      %3369 = vmatmul.mubr.bf16.gmra.mrb[0].mxu0 %v2596
      %v3370 = vpop.f32.mrb[0].mxu0
      %v3371 = vadd.f32 %v3146, %v3370
      %v3372 = vpop.f32.mrb[0].mxu0
      %v3373 = vpop.f32.mrb[0].mxu0
      %v3374 = vadd.f32 %v3149, %v3373
      %v3375 = vpop.f32.mrb[0].mxu0
      %3376 = vmatprep.mubr.bf16.mxu0 %v2602
      %3377 = vmatmul.mubr.bf16.gmra.mrb[0].mxu0 %v2601
      %v3378 = vpop.f32.mrb[0].mxu0
      %v3379 = vadd.f32 %v3154, %v3378
      %v3380 = vpop.f32.mrb[0].mxu0
      %v3381 = vpop.f32.mrb[0].mxu0
      %v3382 = vadd.f32 %v3157, %v3381
      %v3383 = vpop.f32.mrb[0].mxu0
      %3384 = vmatprep.mubr.bf16.mxu0 %v2607
      %3385 = vmatmul.mubr.bf16.gmra.mrb[0].mxu0 %v2606
      %v3386 = vpop.f32.mrb[0].mxu0
      %v3387 = vadd.f32 %v3162, %v3386
      %v3388 = vpop.f32.mrb[0].mxu0
      %v3389 = vpop.f32.mrb[0].mxu0
      %v3390 = vadd.f32 %v3165, %v3389
      %v3391 = vpop.f32.mrb[0].mxu0
      %3392 = vmatprep.mubr.bf16.mxu0 %v2612
      %3393 = vmatmul.mubr.bf16.gmra.mrb[0].mxu0 %v2611
      %v3394 = vpop.f32.mrb[0].mxu0
      %v3395 = vadd.f32 %v3170, %v3394
      %v3396 = vpop.f32.mrb[0].mxu0
      %v3397 = vpop.f32.mrb[0].mxu0
      %v3398 = vadd.f32 %v3173, %v3397
      %v3399 = vpop.f32.mrb[0].mxu0
      %3400 = vmatprep.mubr.bf16.mxu0 %v2617
      %3401 = vmatmul.mubr.bf16.gmra.mrb[0].mxu0 %v2616
      %v3402 = vpop.f32.mrb[0].mxu0
      %v3403 = vadd.f32 %v3178, %v3402
      %v3404 = vpop.f32.mrb[0].mxu0
      %v3405 = vpop.f32.mrb[0].mxu0
      %v3406 = vadd.f32 %v3181, %v3405
      %v3407 = vpop.f32.mrb[0].mxu0
      %3408 = vmatprep.mubr.bf16.mxu0 %v2622
      %3409 = vmatmul.mubr.bf16.gmra.mrb[0].mxu0 %v2621
      %v3410 = vpop.f32.mrb[0].mxu0
      %v3411 = vadd.f32 %v3186, %v3410
      %v3412 = vpop.f32.mrb[0].mxu0
      %v3413 = vpop.f32.mrb[0].mxu0
      %v3414 = vadd.f32 %v3189, %v3413
      %v3415 = vpop.f32.mrb[0].mxu0
      %3416 = vmatprep.mubr.bf16.mxu0 %v2627
      %3417 = vmatmul.mubr.bf16.gmra.mrb[0].mxu0 %v2626
      %v3418 = vpop.f32.mrb[0].mxu0
      %v3419 = vadd.f32 %v3194, %v3418
      %v3420 = vpop.f32.mrb[0].mxu0
      %v3421 = vpop.f32.mrb[0].mxu0
      %v3422 = vadd.f32 %v3197, %v3421
      %v3423 = vpop.f32.mrb[0].mxu0
      %3424 = vmatprep.mubr.bf16.mxu0 %v2632
      %3425 = vmatmul.mubr.bf16.gmra.mrb[0].mxu0 %v2631
      %v3426 = vpop.f32.mrb[0].mxu0
      %v3427 = vadd.f32 %v3202, %v3426
      %v3428 = vpop.f32.mrb[0].mxu0
      %v3429 = vpop.f32.mrb[0].mxu0
      %v3430 = vadd.f32 %v3205, %v3429
      %v3431 = vpop.f32.mrb[0].mxu0
      %3432 = vmatprep.mubr.bf16.mxu0 %v2637
      %3433 = vmatmul.mubr.bf16.gmra.mrb[0].mxu0 %v2636
      %v3434 = vpop.f32.mrb[0].mxu0
      %v3435 = vadd.f32 %v3210, %v3434
      %v3436 = vpop.f32.mrb[0].mxu0
      %v3437 = vpop.f32.mrb[0].mxu0
      %v3438 = vadd.f32 %v3213, %v3437
      %v3439 = vpop.f32.mrb[0].mxu0
      %3440 = vmatprep.mubr.bf16.mxu0 %v2642
      %3441 = vmatmul.mubr.bf16.gmra.mrb[0].mxu0 %v2641
      %v3442 = vpop.f32.mrb[0].mxu0
      %v3443 = vadd.f32 %v3218, %v3442
      %v3444 = vpop.f32.mrb[0].mxu0
      %v3445 = vpop.f32.mrb[0].mxu0
      %v3446 = vadd.f32 %v3221, %v3445
      %v3447 = vpop.f32.mrb[0].mxu0
      %3448 = vmatprep.mubr.bf16.mxu0 %v2647
      %3449 = vmatmul.mubr.bf16.gmra.mrb[0].mxu0 %v2646
      %v3450 = vpop.f32.mrb[0].mxu0
      %v3451 = vadd.f32 %v3226, %v3450
      %v3452 = vpop.f32.mrb[0].mxu0
      %v3453 = vpop.f32.mrb[0].mxu0
      %v3454 = vadd.f32 %v3229, %v3453
      %v3455 = vpop.f32.mrb[0].mxu0
      %3456 = vmatprep.mubr.bf16.mxu0 %v2652
      %3457 = vmatmul.mubr.bf16.gmra.mrb[0].mxu0 %v2651
      %v3458 = vpop.f32.mrb[0].mxu0
      %v3459 = vadd.f32 %v3234, %v3458
      %v3460 = vpop.f32.mrb[0].mxu0
      %v3461 = vpop.f32.mrb[0].mxu0
      %v3462 = vadd.f32 %v3237, %v3461
      %v3463 = vpop.f32.mrb[0].mxu0
      %3464 = vmatprep.mubr.bf16.mxu0 %v2657
      %3465 = vmatmul.mubr.bf16.gmra.mrb[0].mxu0 %v2656
      %v3466 = vpop.f32.mrb[0].mxu0
      %v3467 = vadd.f32 %v3242, %v3466
      %v3468 = vpop.f32.mrb[0].mxu0
      %v3469 = vpop.f32.mrb[0].mxu0
      %v3470 = vadd.f32 %v3245, %v3469
      %v3471 = vpop.f32.mrb[0].mxu0
      %3472 = vmatprep.mubr.bf16.mxu0 %v2662
      %3473 = vmatmul.mubr.bf16.gmra.mrb[0].mxu0 %v2661
      %v3474 = vpop.f32.mrb[0].mxu0
      %v3475 = vadd.f32 %v3250, %v3474
      %v3476 = vpop.f32.mrb[0].mxu0
      %v3477 = vpop.f32.mrb[0].mxu0
      %v3478 = vadd.f32 %v3253, %v3477
      %v3479 = vpop.f32.mrb[0].mxu0
      %3480 = vdwg.mxu0
      %3481 = vmatprep.subr.bf16.mxu0 0
      %3482 = vmatpush1.bf16.msra.mxu0 %v2919
      %3483 = vmatprep.subr.bf16.mxu0 0
      %3484 = vmatpush1.bf16.msra.mxu0 %v2920
      %3485 = vmatprep.subr.bf16.mxu0 0
      %3486 = vmatpush1.bf16.msra.mxu0 %v2921
      %3487 = vmatprep.subr.bf16.mxu0 0
      %3488 = vmatpush1.bf16.msra.mxu0 %v2922
      %3489 = vmatprep.subr.bf16.mxu0 0
      %3490 = vmatpush1.bf16.msra.mxu0 0
      %3491 = vmatprep.subr.bf16.mxu0 0
      %3492 = vmatpush1.bf16.msra.mxu0 0
      %3493 = vmatprep.subr.bf16.mxu0 0
      %3494 = vmatpush1.bf16.msra.mxu0 0
      %3495 = vmatprep.subr.bf16.mxu0 0
      %3496 = vmatpush1.bf16.msra.mxu0 0
      %3497 = vmatprep.subr.bf16.mxu0 0
      %3498 = vmatpush1.bf16.msra.mxu0 0
      %3499 = vmatprep.subr.bf16.mxu0 0
      %3500 = vmatpush1.bf16.msra.mxu0 0
      %3501 = vmatprep.subr.bf16.mxu0 0
      %3502 = vmatpush1.bf16.msra.mxu0 0
      %3503 = vmatprep.subr.bf16.mxu0 0
      %3504 = vmatpush1.bf16.msra.mxu0 0
      %3505 = vmatprep.subr.bf16.mxu0 0
      %3506 = vmatpush1.bf16.msra.mxu0 0
      %3507 = vmatprep.subr.bf16.mxu0 0
      %3508 = vmatpush1.bf16.msra.mxu0 0
      %3509 = vmatprep.subr.bf16.mxu0 0
      %3510 = vmatpush1.bf16.msra.mxu0 0
      %3511 = vmatprep.subr.bf16.mxu0 0
      %3512 = vmatpush1.bf16.msra.mxu0 0
      %3513 = vmatprep.mubr.bf16.mxu0 0
      %3514 = vmatmul.mubr.bf16.gmra.mrb[0].mxu0 %v2960
      %v3515 = vpop.f32.mrb[0].mxu0
      %v3516 = vadd.f32 %v3291, %v3515
      %v3517 = vpop.f32.mrb[0].mxu0
      %v3518 = vpop.f32.mrb[0].mxu0
      %v3519 = vadd.f32 %v3294, %v3518
      %v3520 = vpop.f32.mrb[0].mxu0
      %3521 = vmatprep.mubr.bf16.mxu0 0
      %3522 = vmatmul.mubr.bf16.gmra.mrb[0].mxu0 %v2963
      %v3523 = vpop.f32.mrb[0].mxu0
      %v3524 = vadd.f32 %v3299, %v3523
      %v3525 = vpop.f32.mrb[0].mxu0
      %v3526 = vpop.f32.mrb[0].mxu0
      %v3527 = vadd.f32 %v3302, %v3526
      %v3528 = vpop.f32.mrb[0].mxu0
      %3529 = vmatprep.mubr.bf16.mxu0 0
      %3530 = vmatmul.mubr.bf16.gmra.mrb[0].mxu0 %v2966
      %v3531 = vpop.f32.mrb[0].mxu0
      %v3532 = vadd.f32 %v3307, %v3531
      %v3533 = vpop.f32.mrb[0].mxu0
      %v3534 = vpop.f32.mrb[0].mxu0
      %v3535 = vadd.f32 %v3310, %v3534
      %v3536 = vpop.f32.mrb[0].mxu0
      %3537 = vmatprep.mubr.bf16.mxu0 0
      %3538 = vmatmul.mubr.bf16.gmra.mrb[0].mxu0 %v2969
      %v3539 = vpop.f32.mrb[0].mxu0
      %v3540 = vadd.f32 %v3315, %v3539
      %v3541 = vpop.f32.mrb[0].mxu0
      %v3542 = vpop.f32.mrb[0].mxu0
      %v3543 = vadd.f32 %v3318, %v3542
      %v3544 = vpop.f32.mrb[0].mxu0
      %3545 = vmatprep.mubr.bf16.mxu0 0
      %3546 = vmatmul.mubr.bf16.gmra.mrb[0].mxu0 %v2972
      %v3547 = vpop.f32.mrb[0].mxu0
      %v3548 = vadd.f32 %v3323, %v3547
      %v3549 = vpop.f32.mrb[0].mxu0
      %v3550 = vpop.f32.mrb[0].mxu0
      %v3551 = vadd.f32 %v3326, %v3550
      %v3552 = vpop.f32.mrb[0].mxu0
      %3553 = vmatprep.mubr.bf16.mxu0 0
      %3554 = vmatmul.mubr.bf16.gmra.mrb[0].mxu0 %v2975
      %v3555 = vpop.f32.mrb[0].mxu0
      %v3556 = vadd.f32 %v3331, %v3555
      %v3557 = vpop.f32.mrb[0].mxu0
      %v3558 = vpop.f32.mrb[0].mxu0
      %v3559 = vadd.f32 %v3334, %v3558
      %v3560 = vpop.f32.mrb[0].mxu0
      %3561 = vmatprep.mubr.bf16.mxu0 0
      %3562 = vmatmul.mubr.bf16.gmra.mrb[0].mxu0 %v2978
      %v3563 = vpop.f32.mrb[0].mxu0
      %v3564 = vadd.f32 %v3339, %v3563
      %v3565 = vpop.f32.mrb[0].mxu0
      %v3566 = vpop.f32.mrb[0].mxu0
      %v3567 = vadd.f32 %v3342, %v3566
      %v3568 = vpop.f32.mrb[0].mxu0
      %3569 = vmatprep.mubr.bf16.mxu0 0
      %3570 = vmatmul.mubr.bf16.gmra.mrb[0].mxu0 %v2981
      %v3571 = vpop.f32.mrb[0].mxu0
      %v3572 = vadd.f32 %v3347, %v3571
      %v3573 = vpop.f32.mrb[0].mxu0
      %v3574 = vpop.f32.mrb[0].mxu0
      %v3575 = vadd.f32 %v3350, %v3574
      %v3576 = vpop.f32.mrb[0].mxu0
      %3577 = vmatprep.mubr.bf16.mxu0 0
      %3578 = vmatmul.mubr.bf16.gmra.mrb[0].mxu0 %v2984
      %v3579 = vpop.f32.mrb[0].mxu0
      %v3580 = vadd.f32 %v3355, %v3579
      %v3581 = vpop.f32.mrb[0].mxu0
      %v3582 = vpop.f32.mrb[0].mxu0
      %v3583 = vadd.f32 %v3358, %v3582
      %v3584 = vpop.f32.mrb[0].mxu0
      %3585 = vmatprep.mubr.bf16.mxu0 0
      %3586 = vmatmul.mubr.bf16.gmra.mrb[0].mxu0 %v2987
      %v3587 = vpop.f32.mrb[0].mxu0
      %v3588 = vadd.f32 %v3363, %v3587
      %v3589 = vpop.f32.mrb[0].mxu0
      %v3590 = vpop.f32.mrb[0].mxu0
      %v3591 = vadd.f32 %v3366, %v3590
      %v3592 = vpop.f32.mrb[0].mxu0
      %3593 = vmatprep.mubr.bf16.mxu0 0
      %3594 = vmatmul.mubr.bf16.gmra.mrb[0].mxu0 %v2990
      %v3595 = vpop.f32.mrb[0].mxu0
      %v3596 = vadd.f32 %v3371, %v3595
      %v3597 = vpop.f32.mrb[0].mxu0
      %v3598 = vpop.f32.mrb[0].mxu0
      %v3599 = vadd.f32 %v3374, %v3598
      %v3600 = vpop.f32.mrb[0].mxu0
      %3601 = vmatprep.mubr.bf16.mxu0 0
      %3602 = vmatmul.mubr.bf16.gmra.mrb[0].mxu0 %v2993
      %v3603 = vpop.f32.mrb[0].mxu0
      %v3604 = vadd.f32 %v3379, %v3603
      %v3605 = vpop.f32.mrb[0].mxu0
      %v3606 = vpop.f32.mrb[0].mxu0
      %v3607 = vadd.f32 %v3382, %v3606
      %v3608 = vpop.f32.mrb[0].mxu0
      %3609 = vmatprep.mubr.bf16.mxu0 0
      %3610 = vmatmul.mubr.bf16.gmra.mrb[0].mxu0 %v2996
      %v3611 = vpop.f32.mrb[0].mxu0
      %v3612 = vadd.f32 %v3387, %v3611
      %v3613 = vpop.f32.mrb[0].mxu0
      %v3614 = vpop.f32.mrb[0].mxu0
      %v3615 = vadd.f32 %v3390, %v3614
      %v3616 = vpop.f32.mrb[0].mxu0
      %3617 = vmatprep.mubr.bf16.mxu0 0
      %3618 = vmatmul.mubr.bf16.gmra.mrb[0].mxu0 %v2999
      %v3619 = vpop.f32.mrb[0].mxu0
      %v3620 = vadd.f32 %v3395, %v3619
      %v3621 = vpop.f32.mrb[0].mxu0
      %v3622 = vpop.f32.mrb[0].mxu0
      %v3623 = vadd.f32 %v3398, %v3622
      %v3624 = vpop.f32.mrb[0].mxu0
      %3625 = vmatprep.mubr.bf16.mxu0 0
      %3626 = vmatmul.mubr.bf16.gmra.mrb[0].mxu0 %v3002
      %v3627 = vpop.f32.mrb[0].mxu0
      %v3628 = vadd.f32 %v3403, %v3627
      %v3629 = vpop.f32.mrb[0].mxu0
      %v3630 = vpop.f32.mrb[0].mxu0
      %v3631 = vadd.f32 %v3406, %v3630
      %v3632 = vpop.f32.mrb[0].mxu0
      %3633 = vmatprep.mubr.bf16.mxu0 0
      %3634 = vmatmul.mubr.bf16.gmra.mrb[0].mxu0 %v3005
      %v3635 = vpop.f32.mrb[0].mxu0
      %v3636 = vadd.f32 %v3411, %v3635
      %v3637 = vpop.f32.mrb[0].mxu0
      %v3638 = vpop.f32.mrb[0].mxu0
      %v3639 = vadd.f32 %v3414, %v3638
      %v3640 = vpop.f32.mrb[0].mxu0
      %3641 = vmatprep.mubr.bf16.mxu0 0
      %3642 = vmatmul.mubr.bf16.gmra.mrb[0].mxu0 %v3008
      %v3643 = vpop.f32.mrb[0].mxu0
      %v3644 = vadd.f32 %v3419, %v3643
      %v3645 = vpop.f32.mrb[0].mxu0
      %v3646 = vpop.f32.mrb[0].mxu0
      %v3647 = vadd.f32 %v3422, %v3646
      %v3648 = vpop.f32.mrb[0].mxu0
      %3649 = vmatprep.mubr.bf16.mxu0 0
      %3650 = vmatmul.mubr.bf16.gmra.mrb[0].mxu0 %v3011
      %v3651 = vpop.f32.mrb[0].mxu0
      %v3652 = vadd.f32 %v3427, %v3651
      %v3653 = vpop.f32.mrb[0].mxu0
      %v3654 = vpop.f32.mrb[0].mxu0
      %v3655 = vadd.f32 %v3430, %v3654
      %v3656 = vpop.f32.mrb[0].mxu0
      %3657 = vmatprep.mubr.bf16.mxu0 0
      %3658 = vmatmul.mubr.bf16.gmra.mrb[0].mxu0 %v3014
      %v3659 = vpop.f32.mrb[0].mxu0
      %v3660 = vadd.f32 %v3435, %v3659
      %v3661 = vpop.f32.mrb[0].mxu0
      %v3662 = vpop.f32.mrb[0].mxu0
      %v3663 = vadd.f32 %v3438, %v3662
      %v3664 = vpop.f32.mrb[0].mxu0
      %3665 = vmatprep.mubr.bf16.mxu0 0
      %3666 = vmatmul.mubr.bf16.gmra.mrb[0].mxu0 %v3017
      %v3667 = vpop.f32.mrb[0].mxu0
      %v3668 = vadd.f32 %v3443, %v3667
      %v3669 = vpop.f32.mrb[0].mxu0
      %v3670 = vpop.f32.mrb[0].mxu0
      %v3671 = vadd.f32 %v3446, %v3670
      %v3672 = vpop.f32.mrb[0].mxu0
      %3673 = vmatprep.mubr.bf16.mxu0 0
      %3674 = vmatmul.mubr.bf16.gmra.mrb[0].mxu0 %v3020
      %v3675 = vpop.f32.mrb[0].mxu0
      %v3676 = vadd.f32 %v3451, %v3675
      %v3677 = vpop.f32.mrb[0].mxu0
      %v3678 = vpop.f32.mrb[0].mxu0
      %v3679 = vadd.f32 %v3454, %v3678
      %v3680 = vpop.f32.mrb[0].mxu0
      %3681 = vmatprep.mubr.bf16.mxu0 0
      %3682 = vmatmul.mubr.bf16.gmra.mrb[0].mxu0 %v3023
      %v3683 = vpop.f32.mrb[0].mxu0
      %v3684 = vadd.f32 %v3459, %v3683
      %v3685 = vpop.f32.mrb[0].mxu0
      %v3686 = vpop.f32.mrb[0].mxu0
      %v3687 = vadd.f32 %v3462, %v3686
      %v3688 = vpop.f32.mrb[0].mxu0
      %3689 = vmatprep.mubr.bf16.mxu0 0
      %3690 = vmatmul.mubr.bf16.gmra.mrb[0].mxu0 %v3026
      %v3691 = vpop.f32.mrb[0].mxu0
      %v3692 = vadd.f32 %v3467, %v3691
      %v3693 = vpop.f32.mrb[0].mxu0
      %v3694 = vpop.f32.mrb[0].mxu0
      %v3695 = vadd.f32 %v3470, %v3694
      %v3696 = vpop.f32.mrb[0].mxu0
      %3697 = vmatprep.mubr.bf16.mxu0 0
      %3698 = vmatmul.mubr.bf16.gmra.mrb[0].mxu0 %v3029
      %v3699 = vpop.f32.mrb[0].mxu0
      %v3700 = vadd.f32 %v3475, %v3699
      %v3701 = vpop.f32.mrb[0].mxu0
      %v3702 = vpop.f32.mrb[0].mxu0
      %v3703 = vadd.f32 %v3478, %v3702
      %v3704 = vpop.f32.mrb[0].mxu0
      %3705 = vdwg.mxu0
      %v3706 = vmax.f32 %v3516, 0.0
      %v3707 = vmax.f32 %v3519, 0.0
      %v3708 = vmax.f32 %v3524, 0.0
      %v3709 = vmax.f32 %v3527, 0.0
      %v3710 = vmax.f32 %v3532, 0.0
      %v3711 = vmax.f32 %v3535, 0.0
      %v3712 = vmax.f32 %v3540, 0.0
      %v3713 = vmax.f32 %v3543, 0.0
      %v3714 = vmax.f32 %v3548, 0.0
      %v3715 = vmax.f32 %v3551, 0.0
      %v3716 = vmax.f32 %v3556, 0.0
      %v3717 = vmax.f32 %v3559, 0.0
      %v3718 = vmax.f32 %v3564, 0.0
      %v3719 = vmax.f32 %v3567, 0.0
      %v3720 = vmax.f32 %v3572, 0.0
      %v3721 = vmax.f32 %v3575, 0.0
      %v3722 = vmax.f32 %v3580, 0.0
      %v3723 = vmax.f32 %v3583, 0.0
      %v3724 = vmax.f32 %v3588, 0.0
      %v3725 = vmax.f32 %v3591, 0.0
      %v3726 = vmax.f32 %v3596, 0.0
      %v3727 = vmax.f32 %v3599, 0.0
      %v3728 = vmax.f32 %v3604, 0.0
      %v3729 = vmax.f32 %v3607, 0.0
      %v3730 = vmax.f32 %v3612, 0.0
      %v3731 = vmax.f32 %v3615, 0.0
      %v3732 = vmax.f32 %v3620, 0.0
      %v3733 = vmax.f32 %v3623, 0.0
      %v3734 = vmax.f32 %v3628, 0.0
      %v3735 = vmax.f32 %v3631, 0.0
      %v3736 = vmax.f32 %v3636, 0.0
      %v3737 = vmax.f32 %v3639, 0.0
      %v3738 = vmax.f32 %v3644, 0.0
      %v3739 = vmax.f32 %v3647, 0.0
      %v3740 = vmax.f32 %v3652, 0.0
      %v3741 = vmax.f32 %v3655, 0.0
      %v3742 = vmax.f32 %v3660, 0.0
      %v3743 = vmax.f32 %v3663, 0.0
      %v3744 = vmax.f32 %v3668, 0.0
      %v3745 = vmax.f32 %v3671, 0.0
      %v3746 = vmax.f32 %v3676, 0.0
      %v3747 = vmax.f32 %v3679, 0.0
      %v3748 = vmax.f32 %v3684, 0.0
      %v3749 = vmax.f32 %v3687, 0.0
      %v3750 = vmax.f32 %v3692, 0.0
      %v3751 = vmax.f32 %v3695, 0.0
      %v3752 = vmax.f32 %v3700, 0.0
      %v3753 = vmax.f32 %v3703, 0.0
      %v3754 = vmul.f32 %v3706, %v962
      %v3755 = vmul.f32 %v3707, %v967
      %v3756 = vmul.f32 %v3708, %v972
      %v3757 = vmul.f32 %v3709, %v977
      %v3758 = vmul.f32 %v3710, %v982
      %v3759 = vmul.f32 %v3711, %v987
      %v3760 = vmul.f32 %v3712, %v992
      %v3761 = vmul.f32 %v3713, %v997
      %v3762 = vmul.f32 %v3714, %v1002
      %v3763 = vmul.f32 %v3715, %v1007
      %v3764 = vmul.f32 %v3716, %v1012
      %v3765 = vmul.f32 %v3717, %v1017
      %v3766 = vmul.f32 %v3718, %v1022
      %v3767 = vmul.f32 %v3719, %v1027
      %v3768 = vmul.f32 %v3720, %v1032
      %v3769 = vmul.f32 %v3721, %v1037
      %v3770 = vmul.f32 %v3722, %v1042
      %v3771 = vmul.f32 %v3723, %v1047
      %v3772 = vmul.f32 %v3724, %v1052
      %v3773 = vmul.f32 %v3725, %v1057
      %v3774 = vmul.f32 %v3726, %v1062
      %v3775 = vmul.f32 %v3727, %v1067
      %v3776 = vmul.f32 %v3728, %v1072
      %v3777 = vmul.f32 %v3729, %v1077
      %v3778 = vmul.f32 %v3730, %v1082
      %v3779 = vmul.f32 %v3731, %v1087
      %v3780 = vmul.f32 %v3732, %v1092
      %v3781 = vmul.f32 %v3733, %v1097
      %v3782 = vmul.f32 %v3734, %v1102
      %v3783 = vmul.f32 %v3735, %v1107
      %v3784 = vmul.f32 %v3736, %v1112
      %v3785 = vmul.f32 %v3737, %v1117
      %v3786 = vmul.f32 %v3738, %v1122
      %v3787 = vmul.f32 %v3739, %v1127
      %v3788 = vmul.f32 %v3740, %v1132
      %v3789 = vmul.f32 %v3741, %v1137
      %v3790 = vmul.f32 %v3742, %v1142
      %v3791 = vmul.f32 %v3743, %v1147
      %v3792 = vmul.f32 %v3744, %v1152
      %v3793 = vmul.f32 %v3745, %v1157
      %v3794 = vmul.f32 %v3746, %v1162
      %v3795 = vmul.f32 %v3747, %v1167
      %v3796 = vmul.f32 %v3748, %v1172
      %v3797 = vmul.f32 %v3749, %v1177
      %v3798 = vmul.f32 %v3750, %v1182
      %v3799 = vmul.f32 %v3751, %v1187
      %v3800 = vmul.f32 %v3752, %v1192
      %v3801 = vmul.f32 %v3753, %v1197
      %3802 = vst.msk [vmem:[#allocation2 + $0x18] sm:$0xff] %vm409, %v3754
      %3803 = vst.msk [vmem:[#allocation2 + $0x20] sm:$0xff] %vm409, %v3755
      %3804 = vst.msk [vmem:[#allocation2 + $0x28] sm:$0xff] %vm409, %v3756
      %3805 = vst.msk [vmem:[#allocation2 + $0x30] sm:$0xff] %vm409, %v3757
      %3806 = vst.msk [vmem:[#allocation2 + $0x38] sm:$0xff] %vm409, %v3758
      %3807 = vst.msk [vmem:[#allocation2 + $0x40] sm:$0xff] %vm409, %v3759
      %3808 = vst.msk [vmem:[#allocation2 + $0x48] sm:$0xff] %vm409, %v3760
      %3809 = vst.msk [vmem:[#allocation2 + $0x50] sm:$0xff] %vm409, %v3761
      %3810 = vst.msk [vmem:[#allocation2 + $0x58] sm:$0xff] %vm409, %v3762
      %3811 = vst.msk [vmem:[#allocation2 + $0x60] sm:$0xff] %vm409, %v3763
      %3812 = vst.msk [vmem:[#allocation2 + $0x68] sm:$0xff] %vm409, %v3764
      %3813 = vst.msk [vmem:[#allocation2 + $0x70] sm:$0xff] %vm409, %v3765
      %3814 = vst.msk [vmem:[#allocation2 + $0x78] sm:$0xff] %vm409, %v3766
      %3815 = vst.msk [vmem:[#allocation2 + $0x80] sm:$0xff] %vm409, %v3767
      %3816 = vst.msk [vmem:[#allocation2 + $0x88] sm:$0xff] %vm409, %v3768
      %3817 = vst.msk [vmem:[#allocation2 + $0x90] sm:$0xff] %vm409, %v3769
      %3818 = vst.msk [vmem:[#allocation2 + $0x98] sm:$0xff] %vm409, %v3770
      %3819 = vst.msk [vmem:[#allocation2 + $0xa0] sm:$0xff] %vm409, %v3771
      %3820 = vst.msk [vmem:[#allocation2 + $0xa8] sm:$0xff] %vm409, %v3772
      %3821 = vst.msk [vmem:[#allocation2 + $0xb0] sm:$0xff] %vm409, %v3773
      %3822 = vst.msk [vmem:[#allocation2 + $0xb8] sm:$0xff] %vm409, %v3774
      %3823 = vst.msk [vmem:[#allocation2 + $0xc0] sm:$0xff] %vm409, %v3775
      %3824 = vst.msk [vmem:[#allocation2 + $0xc8] sm:$0xff] %vm409, %v3776
      %3825 = vst.msk [vmem:[#allocation2 + $0xd0] sm:$0xff] %vm409, %v3777
      %3826 = vst.msk [vmem:[#allocation2 + $0xd8] sm:$0xff] %vm409, %v3778
      %3827 = vst.msk [vmem:[#allocation2 + $0xe0] sm:$0xff] %vm409, %v3779
      %3828 = vst.msk [vmem:[#allocation2 + $0xe8] sm:$0xff] %vm409, %v3780
      %3829 = vst.msk [vmem:[#allocation2 + $0xf0] sm:$0xff] %vm409, %v3781
      %3830 = vst.msk [vmem:[#allocation2 + $0xf8] sm:$0xff] %vm409, %v3782
      %3831 = vst.msk [vmem:[#allocation2 + $0x100] sm:$0xff] %vm409, %v3783
      %3832 = vst.msk [vmem:[#allocation2 + $0x108] sm:$0xff] %vm409, %v3784
      %3833 = vst.msk [vmem:[#allocation2 + $0x110] sm:$0xff] %vm409, %v3785
      %3834 = vst.msk [vmem:[#allocation2 + $0x118] sm:$0xff] %vm409, %v3786
      %3835 = vst.msk [vmem:[#allocation2 + $0x120] sm:$0xff] %vm409, %v3787
      %3836 = vst.msk [vmem:[#allocation2 + $0x128] sm:$0xff] %vm409, %v3788
      %3837 = vst.msk [vmem:[#allocation2 + $0x130] sm:$0xff] %vm409, %v3789
      %3838 = vst.msk [vmem:[#allocation2 + $0x138] sm:$0xff] %vm409, %v3790
      %3839 = vst.msk [vmem:[#allocation2 + $0x140] sm:$0xff] %vm409, %v3791
      %3840 = vst.msk [vmem:[#allocation2 + $0x148] sm:$0xff] %vm409, %v3792
      %3841 = vst.msk [vmem:[#allocation2 + $0x150] sm:$0xff] %vm409, %v3793
      %3842 = vst.msk [vmem:[#allocation2 + $0x158] sm:$0xff] %vm409, %v3794
      %3843 = vst.msk [vmem:[#allocation2 + $0x160] sm:$0xff] %vm409, %v3795
      %3844 = vst.msk [vmem:[#allocation2 + $0x168] sm:$0xff] %vm409, %v3796
      %3845 = vst.msk [vmem:[#allocation2 + $0x170] sm:$0xff] %vm409, %v3797
      %3846 = vst.msk [vmem:[#allocation2 + $0x178] sm:$0xff] %vm409, %v3798
      %3847 = vst.msk [vmem:[#allocation2 + $0x180] sm:$0xff] %vm409, %v3799
      %3848 = vst.msk [vmem:[#allocation2 + $0x188] sm:$0xff] %vm409, %v3800
      %3849 = vst.msk [vmem:[#allocation2 + $0x190] sm:$0xff] %vm409, %v3801
      %v3850 = vld [vmem:[#allocation2 + $0x5] sm:$0xff]
      %v3851 = vld [vmem:[#allocation2 + $0xd] sm:$0xff]
      %v3852 = vld [vmem:[#allocation2 + $0x15] sm:$0xff]
      %v3853 = vld [vmem:[#allocation2 + $0x1d] sm:$0xff]
      %v3854 = vld [vmem:[#allocation2 + $0x25] sm:$0xff]
      %v3855 = vld [vmem:[#allocation2 + $0x2d] sm:$0xff]
      %v3856 = vld [vmem:[#allocation2 + $0x35] sm:$0xff]
      %v3857 = vld [vmem:[#allocation2 + $0x3d] sm:$0xff]
      %v3858 = vld [vmem:[#allocation2 + $0x45] sm:$0xff]
      %v3859 = vld [vmem:[#allocation2 + $0x4d] sm:$0xff]
      %v3860 = vld [vmem:[#allocation2 + $0x55] sm:$0xff]
      %v3861 = vld [vmem:[#allocation2 + $0x5d] sm:$0xff]
      %v3862 = vld [vmem:[#allocation2 + $0x65] sm:$0xff]
      %v3863 = vld [vmem:[#allocation2 + $0x6d] sm:$0xff]
      %v3864 = vld [vmem:[#allocation2 + $0x75] sm:$0xff]
      %v3865 = vld [vmem:[#allocation2 + $0x7d] sm:$0xff]
      %v3866 = vld [vmem:[#allocation2 + $0x85] sm:$0xff]
      %v3867 = vld [vmem:[#allocation2 + $0x8d] sm:$0xff]
      %v3868 = vld [vmem:[#allocation2 + $0x95] sm:$0xff]
      %v3869 = vld [vmem:[#allocation2 + $0x9d] sm:$0xff]
      %v3870 = vld [vmem:[#allocation2 + $0xa5] sm:$0xff]
      %v3871 = vld [vmem:[#allocation2 + $0xad] sm:$0xff]
      %v3872 = vld [vmem:[#allocation2 + $0xb5] sm:$0xff]
      %v3873 = vld [vmem:[#allocation2 + $0xbd] sm:$0xff]
      %v3874 = vld [vmem:[#allocation2 + $0xc5] sm:$0xff]
      %v3875 = vld [vmem:[#allocation2 + $0xcd] sm:$0xff]
      %v3876 = vld [vmem:[#allocation2 + $0xd5] sm:$0xff]
      %v3877 = vld [vmem:[#allocation2 + $0xdd] sm:$0xff]
      %v3878 = vld [vmem:[#allocation2 + $0xe5] sm:$0xff]
      %v3879 = vld [vmem:[#allocation2 + $0xed] sm:$0xff]
      %v3880 = vld [vmem:[#allocation2 + $0xf5] sm:$0xff]
      %v3881 = vld [vmem:[#allocation2 + $0xfd] sm:$0xff]
      %v3882 = vld [vmem:[#allocation2 + $0x105] sm:$0xff]
      %v3883 = vld [vmem:[#allocation2 + $0x10d] sm:$0xff]
      %v3884 = vld [vmem:[#allocation2 + $0x115] sm:$0xff]
      %v3885 = vld [vmem:[#allocation2 + $0x11d] sm:$0xff]
      %v3886 = vld [vmem:[#allocation2 + $0x125] sm:$0xff]
      %v3887 = vld [vmem:[#allocation2 + $0x12d] sm:$0xff]
      %v3888 = vld [vmem:[#allocation2 + $0x135] sm:$0xff]
      %v3889 = vld [vmem:[#allocation2 + $0x13d] sm:$0xff]
      %v3890 = vld [vmem:[#allocation2 + $0x145] sm:$0xff]
      %v3891 = vld [vmem:[#allocation2 + $0x14d] sm:$0xff]
      %v3892 = vld [vmem:[#allocation2 + $0x155] sm:$0xff]
      %v3893 = vld [vmem:[#allocation2 + $0x15d] sm:$0xff]
      %v3894 = vld [vmem:[#allocation2 + $0x165] sm:$0xff]
      %v3895 = vld [vmem:[#allocation2 + $0x16d] sm:$0xff]
      %v3896 = vld [vmem:[#allocation2 + $0x175] sm:$0xff]
      %v3897 = vld [vmem:[#allocation2 + $0x17d] sm:$0xff]
      %v3898 = vpack.c.bf16 %v3851, %v3850
      %v3899 = vpack.c.bf16 %v3853, %v3852
      %v3900 = vpack.c.bf16 %v3855, %v3854
      %v3901 = vpack.c.bf16 %v3857, %v3856
      %v3902 = vpack.c.bf16 %v3859, %v3858
      %v3903 = vpack.c.bf16 %v3861, %v3860
      %v3904 = vpack.c.bf16 %v3863, %v3862
      %v3905 = vpack.c.bf16 %v3865, %v3864
      %v3906 = vpack.c.bf16 %v3867, %v3866
      %v3907 = vpack.c.bf16 %v3869, %v3868
      %v3908 = vpack.c.bf16 %v3871, %v3870
      %v3909 = vpack.c.bf16 %v3873, %v3872
      %v3910 = vpack.c.bf16 %v3875, %v3874
      %v3911 = vpack.c.bf16 %v3877, %v3876
      %v3912 = vpack.c.bf16 %v3879, %v3878
      %v3913 = vpack.c.bf16 %v3881, %v3880
      %v3914 = vpack.c.bf16 %v3883, %v3882
      %v3915 = vpack.c.bf16 %v3885, %v3884
      %v3916 = vpack.c.bf16 %v3887, %v3886
      %v3917 = vpack.c.bf16 %v3889, %v3888
      %v3918 = vpack.c.bf16 %v3891, %v3890
      %v3919 = vpack.c.bf16 %v3893, %v3892
      %v3920 = vpack.c.bf16 %v3895, %v3894
      %v3921 = vpack.c.bf16 %v3897, %v3896
      %3922 = vst.msk [vmem:[#allocation3] sm:$0xff] %vm409, %v3898
      %3923 = vst.msk [vmem:[#allocation3 + $0x28] sm:$0xff] %vm409, %v3899
      %3924 = vst.msk [vmem:[#allocation3 + $0x50] sm:$0xff] %vm409, %v3900
      %3925 = vst.msk [vmem:[#allocation3 + $0x78] sm:$0xff] %vm409, %v3901
      %3926 = vst.msk [vmem:[#allocation3 + $0xa0] sm:$0xff] %vm409, %v3902
      %3927 = vst.msk [vmem:[#allocation3 + $0xc8] sm:$0xff] %vm409, %v3903
      %3928 = vst.msk [vmem:[#allocation3 + $0xf0] sm:$0xff] %vm409, %v3904
      %3929 = vst.msk [vmem:[#allocation3 + $0x118] sm:$0xff] %vm409, %v3905
      %3930 = vst.msk [vmem:[#allocation3 + $0x140] sm:$0xff] %vm409, %v3906
      %3931 = vst.msk [vmem:[#allocation3 + $0x168] sm:$0xff] %vm409, %v3907
      %3932 = vst.msk [vmem:[#allocation3 + $0x190] sm:$0xff] %vm409, %v3908
      %3933 = vst.msk [vmem:[#allocation3 + $0x1b8] sm:$0xff] %vm409, %v3909
      %3934 = vst.msk [vmem:[#allocation3 + $0x1e0] sm:$0xff] %vm409, %v3910
      %3935 = vst.msk [vmem:[#allocation3 + $0x208] sm:$0xff] %vm409, %v3911
      %3936 = vst.msk [vmem:[#allocation3 + $0x230] sm:$0xff] %vm409, %v3912
      %3937 = vst.msk [vmem:[#allocation3 + $0x258] sm:$0xff] %vm409, %v3913
      %3938 = vst.msk [vmem:[#allocation3 + $0x280] sm:$0xff] %vm409, %v3914
      %3939 = vst.msk [vmem:[#allocation3 + $0x2a8] sm:$0xff] %vm409, %v3915
      %3940 = vst.msk [vmem:[#allocation3 + $0x2d0] sm:$0xff] %vm409, %v3916
      %3941 = vst.msk [vmem:[#allocation3 + $0x2f8] sm:$0xff] %vm409, %v3917
      %3942 = vst.msk [vmem:[#allocation3 + $0x320] sm:$0xff] %vm409, %v3918
      %3943 = vst.msk [vmem:[#allocation3 + $0x348] sm:$0xff] %vm409, %v3919
      %3944 = vst.msk [vmem:[#allocation3 + $0x370] sm:$0xff] %vm409, %v3920
      %3945 = vst.msk [vmem:[#allocation3 + $0x398] sm:$0xff] %vm409, %v3921
      %v3946 = vld [vmem:[#allocation2 + $0x6] sm:$0xff]
      %v3947 = vld [vmem:[#allocation2 + $0xe] sm:$0xff]
      %v3948 = vld [vmem:[#allocation2 + $0x16] sm:$0xff]
      %v3949 = vld [vmem:[#allocation2 + $0x1e] sm:$0xff]
      %v3950 = vld [vmem:[#allocation2 + $0x26] sm:$0xff]
      %v3951 = vld [vmem:[#allocation2 + $0x2e] sm:$0xff]
      %v3952 = vld [vmem:[#allocation2 + $0x36] sm:$0xff]
      %v3953 = vld [vmem:[#allocation2 + $0x3e] sm:$0xff]
      %v3954 = vld [vmem:[#allocation2 + $0x46] sm:$0xff]
      %v3955 = vld [vmem:[#allocation2 + $0x4e] sm:$0xff]
      %v3956 = vld [vmem:[#allocation2 + $0x56] sm:$0xff]
      %v3957 = vld [vmem:[#allocation2 + $0x5e] sm:$0xff]
      %v3958 = vld [vmem:[#allocation2 + $0x66] sm:$0xff]
      %v3959 = vld [vmem:[#allocation2 + $0x6e] sm:$0xff]
      %v3960 = vld [vmem:[#allocation2 + $0x76] sm:$0xff]
      %v3961 = vld [vmem:[#allocation2 + $0x7e] sm:$0xff]
      %v3962 = vld [vmem:[#allocation2 + $0x86] sm:$0xff]
      %v3963 = vld [vmem:[#allocation2 + $0x8e] sm:$0xff]
      %v3964 = vld [vmem:[#allocation2 + $0x96] sm:$0xff]
      %v3965 = vld [vmem:[#allocation2 + $0x9e] sm:$0xff]
      %v3966 = vld [vmem:[#allocation2 + $0xa6] sm:$0xff]
      %v3967 = vld [vmem:[#allocation2 + $0xae] sm:$0xff]
      %v3968 = vld [vmem:[#allocation2 + $0xb6] sm:$0xff]
      %v3969 = vld [vmem:[#allocation2 + $0xbe] sm:$0xff]
      %v3970 = vld [vmem:[#allocation2 + $0xc6] sm:$0xff]
      %v3971 = vld [vmem:[#allocation2 + $0xce] sm:$0xff]
      %v3972 = vld [vmem:[#allocation2 + $0xd6] sm:$0xff]
      %v3973 = vld [vmem:[#allocation2 + $0xde] sm:$0xff]
      %v3974 = vld [vmem:[#allocation2 + $0xe6] sm:$0xff]
      %v3975 = vld [vmem:[#allocation2 + $0xee] sm:$0xff]
      %v3976 = vld [vmem:[#allocation2 + $0xf6] sm:$0xff]
      %v3977 = vld [vmem:[#allocation2 + $0xfe] sm:$0xff]
      %v3978 = vld [vmem:[#allocation2 + $0x106] sm:$0xff]
      %v3979 = vld [vmem:[#allocation2 + $0x10e] sm:$0xff]
      %v3980 = vld [vmem:[#allocation2 + $0x116] sm:$0xff]
      %v3981 = vld [vmem:[#allocation2 + $0x11e] sm:$0xff]
      %v3982 = vld [vmem:[#allocation2 + $0x126] sm:$0xff]
      %v3983 = vld [vmem:[#allocation2 + $0x12e] sm:$0xff]
      %v3984 = vld [vmem:[#allocation2 + $0x136] sm:$0xff]
      %v3985 = vld [vmem:[#allocation2 + $0x13e] sm:$0xff]
      %v3986 = vld [vmem:[#allocation2 + $0x146] sm:$0xff]
      %v3987 = vld [vmem:[#allocation2 + $0x14e] sm:$0xff]
      %v3988 = vld [vmem:[#allocation2 + $0x156] sm:$0xff]
      %v3989 = vld [vmem:[#allocation2 + $0x15e] sm:$0xff]
      %v3990 = vld [vmem:[#allocation2 + $0x166] sm:$0xff]
      %v3991 = vld [vmem:[#allocation2 + $0x16e] sm:$0xff]
      %v3992 = vld [vmem:[#allocation2 + $0x176] sm:$0xff]
      %v3993 = vld [vmem:[#allocation2 + $0x17e] sm:$0xff]
      %v3994 = vpack.c.bf16 %v3947, %v3946
      %v3995 = vpack.c.bf16 %v3949, %v3948
      %v3996 = vpack.c.bf16 %v3951, %v3950
      %v3997 = vpack.c.bf16 %v3953, %v3952
      %v3998 = vpack.c.bf16 %v3955, %v3954
      %v3999 = vpack.c.bf16 %v3957, %v3956
      %v4000 = vpack.c.bf16 %v3959, %v3958
      %v4001 = vpack.c.bf16 %v3961, %v3960
      %v4002 = vpack.c.bf16 %v3963, %v3962
      %v4003 = vpack.c.bf16 %v3965, %v3964
      %v4004 = vpack.c.bf16 %v3967, %v3966
      %v4005 = vpack.c.bf16 %v3969, %v3968
      %v4006 = vpack.c.bf16 %v3971, %v3970
      %v4007 = vpack.c.bf16 %v3973, %v3972
      %v4008 = vpack.c.bf16 %v3975, %v3974
      %v4009 = vpack.c.bf16 %v3977, %v3976
      %v4010 = vpack.c.bf16 %v3979, %v3978
      %v4011 = vpack.c.bf16 %v3981, %v3980
      %v4012 = vpack.c.bf16 %v3983, %v3982
      %v4013 = vpack.c.bf16 %v3985, %v3984
      %v4014 = vpack.c.bf16 %v3987, %v3986
      %v4015 = vpack.c.bf16 %v3989, %v3988
      %v4016 = vpack.c.bf16 %v3991, %v3990
      %v4017 = vpack.c.bf16 %v3993, %v3992
      %4042 = vrot.lane.b32.xlu0 %v3994, 64
      %v4043 = vpop.permute.xlu0 %4042
      %4044 = vrot.lane.b32.xlu0 %v3995, 64
      %v4045 = vpop.permute.xlu0 %4044
      %4046 = vrot.lane.b32.xlu0 %v3996, 64
      %v4047 = vpop.permute.xlu0 %4046
      %4048 = vrot.lane.b32.xlu0 %v3997, 64
      %v4049 = vpop.permute.xlu0 %4048
      %4050 = vrot.lane.b32.xlu0 %v3998, 64
      %v4051 = vpop.permute.xlu0 %4050
      %4052 = vrot.lane.b32.xlu0 %v3999, 64
      %v4053 = vpop.permute.xlu0 %4052
      %4054 = vrot.lane.b32.xlu0 %v4000, 64
      %v4055 = vpop.permute.xlu0 %4054
      %4056 = vrot.lane.b32.xlu0 %v4001, 64
      %v4057 = vpop.permute.xlu0 %4056
      %4058 = vrot.lane.b32.xlu0 %v4002, 64
      %v4059 = vpop.permute.xlu0 %4058
      %4060 = vrot.lane.b32.xlu0 %v4003, 64
      %v4061 = vpop.permute.xlu0 %4060
      %4062 = vrot.lane.b32.xlu0 %v4004, 64
      %v4063 = vpop.permute.xlu0 %4062
      %4064 = vrot.lane.b32.xlu0 %v4005, 64
      %v4065 = vpop.permute.xlu0 %4064
      %4066 = vrot.lane.b32.xlu0 %v4006, 64
      %v4067 = vpop.permute.xlu0 %4066
      %4068 = vrot.lane.b32.xlu0 %v4007, 64
      %v4069 = vpop.permute.xlu0 %4068
      %4070 = vrot.lane.b32.xlu0 %v4008, 64
      %v4071 = vpop.permute.xlu0 %4070
      %4072 = vrot.lane.b32.xlu0 %v4009, 64
      %v4073 = vpop.permute.xlu0 %4072
      %4074 = vrot.lane.b32.xlu0 %v4010, 64
      %v4075 = vpop.permute.xlu0 %4074
      %4076 = vrot.lane.b32.xlu0 %v4011, 64
      %v4077 = vpop.permute.xlu0 %4076
      %4078 = vrot.lane.b32.xlu0 %v4012, 64
      %v4079 = vpop.permute.xlu0 %4078
      %4080 = vrot.lane.b32.xlu0 %v4013, 64
      %v4081 = vpop.permute.xlu0 %4080
      %4082 = vrot.lane.b32.xlu0 %v4014, 64
      %v4083 = vpop.permute.xlu0 %4082
      %4084 = vrot.lane.b32.xlu0 %v4015, 64
      %v4085 = vpop.permute.xlu0 %4084
      %4086 = vrot.lane.b32.xlu0 %v4016, 64
      %v4087 = vpop.permute.xlu0 %4086
      %4088 = vrot.lane.b32.xlu0 %v4017, 64
      %v4089 = vpop.permute.xlu0 %4088
      %4114 = vst.msk [vmem:[#allocation3] sm:$0xff] %vm1559, %v4043
      %4115 = vst.msk [vmem:[#allocation3 + $0x28] sm:$0xff] %vm1559, %v4045
      %4116 = vst.msk [vmem:[#allocation3 + $0x50] sm:$0xff] %vm1559, %v4047
      %4117 = vst.msk [vmem:[#allocation3 + $0x78] sm:$0xff] %vm1559, %v4049
      %4118 = vst.msk [vmem:[#allocation3 + $0xa0] sm:$0xff] %vm1559, %v4051
      %4119 = vst.msk [vmem:[#allocation3 + $0xc8] sm:$0xff] %vm1559, %v4053
      %4120 = vst.msk [vmem:[#allocation3 + $0xf0] sm:$0xff] %vm1559, %v4055
      %4121 = vst.msk [vmem:[#allocation3 + $0x118] sm:$0xff] %vm1559, %v4057
      %4122 = vst.msk [vmem:[#allocation3 + $0x140] sm:$0xff] %vm1559, %v4059
      %4123 = vst.msk [vmem:[#allocation3 + $0x168] sm:$0xff] %vm1559, %v4061
      %4124 = vst.msk [vmem:[#allocation3 + $0x190] sm:$0xff] %vm1559, %v4063
      %4125 = vst.msk [vmem:[#allocation3 + $0x1b8] sm:$0xff] %vm1559, %v4065
      %4126 = vst.msk [vmem:[#allocation3 + $0x1e0] sm:$0xff] %vm1559, %v4067
      %4127 = vst.msk [vmem:[#allocation3 + $0x208] sm:$0xff] %vm1559, %v4069
      %4128 = vst.msk [vmem:[#allocation3 + $0x230] sm:$0xff] %vm1559, %v4071
      %4129 = vst.msk [vmem:[#allocation3 + $0x258] sm:$0xff] %vm1559, %v4073
      %4130 = vst.msk [vmem:[#allocation3 + $0x280] sm:$0xff] %vm1559, %v4075
      %4131 = vst.msk [vmem:[#allocation3 + $0x2a8] sm:$0xff] %vm1559, %v4077
      %4132 = vst.msk [vmem:[#allocation3 + $0x2d0] sm:$0xff] %vm1559, %v4079
      %4133 = vst.msk [vmem:[#allocation3 + $0x2f8] sm:$0xff] %vm1559, %v4081
      %4134 = vst.msk [vmem:[#allocation3 + $0x320] sm:$0xff] %vm1559, %v4083
      %4135 = vst.msk [vmem:[#allocation3 + $0x348] sm:$0xff] %vm1559, %v4085
      %4136 = vst.msk [vmem:[#allocation3 + $0x370] sm:$0xff] %vm1559, %v4087
      %4137 = vst.msk [vmem:[#allocation3 + $0x398] sm:$0xff] %vm1559, %v4089
      %v4138 = vld [vmem:[#allocation2 + $0x7] sm:$0xff]
      %v4139 = vld [vmem:[#allocation2 + $0xf] sm:$0xff]
      %v4140 = vld [vmem:[#allocation2 + $0x17] sm:$0xff]
      %v4141 = vld [vmem:[#allocation2 + $0x1f] sm:$0xff]
      %v4142 = vld [vmem:[#allocation2 + $0x27] sm:$0xff]
      %v4143 = vld [vmem:[#allocation2 + $0x2f] sm:$0xff]
      %v4144 = vld [vmem:[#allocation2 + $0x37] sm:$0xff]
      %v4145 = vld [vmem:[#allocation2 + $0x3f] sm:$0xff]
      %v4146 = vld [vmem:[#allocation2 + $0x47] sm:$0xff]
      %v4147 = vld [vmem:[#allocation2 + $0x4f] sm:$0xff]
      %v4148 = vld [vmem:[#allocation2 + $0x57] sm:$0xff]
      %v4149 = vld [vmem:[#allocation2 + $0x5f] sm:$0xff]
      %v4150 = vld [vmem:[#allocation2 + $0x67] sm:$0xff]
      %v4151 = vld [vmem:[#allocation2 + $0x6f] sm:$0xff]
      %v4152 = vld [vmem:[#allocation2 + $0x77] sm:$0xff]
      %v4153 = vld [vmem:[#allocation2 + $0x7f] sm:$0xff]
      %v4154 = vld [vmem:[#allocation2 + $0x87] sm:$0xff]
      %v4155 = vld [vmem:[#allocation2 + $0x8f] sm:$0xff]
      %v4156 = vld [vmem:[#allocation2 + $0x97] sm:$0xff]
      %v4157 = vld [vmem:[#allocation2 + $0x9f] sm:$0xff]
      %v4158 = vld [vmem:[#allocation2 + $0xa7] sm:$0xff]
      %v4159 = vld [vmem:[#allocation2 + $0xaf] sm:$0xff]
      %v4160 = vld [vmem:[#allocation2 + $0xb7] sm:$0xff]
      %v4161 = vld [vmem:[#allocation2 + $0xbf] sm:$0xff]
      %v4162 = vld [vmem:[#allocation2 + $0xc7] sm:$0xff]
      %v4163 = vld [vmem:[#allocation2 + $0xcf] sm:$0xff]
      %v4164 = vld [vmem:[#allocation2 + $0xd7] sm:$0xff]
      %v4165 = vld [vmem:[#allocation2 + $0xdf] sm:$0xff]
      %v4166 = vld [vmem:[#allocation2 + $0xe7] sm:$0xff]
      %v4167 = vld [vmem:[#allocation2 + $0xef] sm:$0xff]
      %v4168 = vld [vmem:[#allocation2 + $0xf7] sm:$0xff]
      %v4169 = vld [vmem:[#allocation2 + $0xff] sm:$0xff]
      %v4170 = vld [vmem:[#allocation2 + $0x107] sm:$0xff]
      %v4171 = vld [vmem:[#allocation2 + $0x10f] sm:$0xff]
      %v4172 = vld [vmem:[#allocation2 + $0x117] sm:$0xff]
      %v4173 = vld [vmem:[#allocation2 + $0x11f] sm:$0xff]
      %v4174 = vld [vmem:[#allocation2 + $0x127] sm:$0xff]
      %v4175 = vld [vmem:[#allocation2 + $0x12f] sm:$0xff]
      %v4176 = vld [vmem:[#allocation2 + $0x137] sm:$0xff]
      %v4177 = vld [vmem:[#allocation2 + $0x13f] sm:$0xff]
      %v4178 = vld [vmem:[#allocation2 + $0x147] sm:$0xff]
      %v4179 = vld [vmem:[#allocation2 + $0x14f] sm:$0xff]
      %v4180 = vld [vmem:[#allocation2 + $0x157] sm:$0xff]
      %v4181 = vld [vmem:[#allocation2 + $0x15f] sm:$0xff]
      %v4182 = vld [vmem:[#allocation2 + $0x167] sm:$0xff]
      %v4183 = vld [vmem:[#allocation2 + $0x16f] sm:$0xff]
      %v4184 = vld [vmem:[#allocation2 + $0x177] sm:$0xff]
      %v4185 = vld [vmem:[#allocation2 + $0x17f] sm:$0xff]
      %v4186 = vpack.c.bf16 %v4139, %v4138
      %v4187 = vpack.c.bf16 %v4141, %v4140
      %v4188 = vpack.c.bf16 %v4143, %v4142
      %v4189 = vpack.c.bf16 %v4145, %v4144
      %v4190 = vpack.c.bf16 %v4147, %v4146
      %v4191 = vpack.c.bf16 %v4149, %v4148
      %v4192 = vpack.c.bf16 %v4151, %v4150
      %v4193 = vpack.c.bf16 %v4153, %v4152
      %v4194 = vpack.c.bf16 %v4155, %v4154
      %v4195 = vpack.c.bf16 %v4157, %v4156
      %v4196 = vpack.c.bf16 %v4159, %v4158
      %v4197 = vpack.c.bf16 %v4161, %v4160
      %v4198 = vpack.c.bf16 %v4163, %v4162
      %v4199 = vpack.c.bf16 %v4165, %v4164
      %v4200 = vpack.c.bf16 %v4167, %v4166
      %v4201 = vpack.c.bf16 %v4169, %v4168
      %v4202 = vpack.c.bf16 %v4171, %v4170
      %v4203 = vpack.c.bf16 %v4173, %v4172
      %v4204 = vpack.c.bf16 %v4175, %v4174
      %v4205 = vpack.c.bf16 %v4177, %v4176
      %v4206 = vpack.c.bf16 %v4179, %v4178
      %v4207 = vpack.c.bf16 %v4181, %v4180
      %v4208 = vpack.c.bf16 %v4183, %v4182
      %v4209 = vpack.c.bf16 %v4185, %v4184
      %4210 = vst.msk [vmem:[#allocation3 + $0x8] sm:$0xff] %vm409, %v4186
      %4211 = vst.msk [vmem:[#allocation3 + $0x30] sm:$0xff] %vm409, %v4187
      %4212 = vst.msk [vmem:[#allocation3 + $0x58] sm:$0xff] %vm409, %v4188
      %4213 = vst.msk [vmem:[#allocation3 + $0x80] sm:$0xff] %vm409, %v4189
      %4214 = vst.msk [vmem:[#allocation3 + $0xa8] sm:$0xff] %vm409, %v4190
      %4215 = vst.msk [vmem:[#allocation3 + $0xd0] sm:$0xff] %vm409, %v4191
      %4216 = vst.msk [vmem:[#allocation3 + $0xf8] sm:$0xff] %vm409, %v4192
      %4217 = vst.msk [vmem:[#allocation3 + $0x120] sm:$0xff] %vm409, %v4193
      %4218 = vst.msk [vmem:[#allocation3 + $0x148] sm:$0xff] %vm409, %v4194
      %4219 = vst.msk [vmem:[#allocation3 + $0x170] sm:$0xff] %vm409, %v4195
      %4220 = vst.msk [vmem:[#allocation3 + $0x198] sm:$0xff] %vm409, %v4196
      %4221 = vst.msk [vmem:[#allocation3 + $0x1c0] sm:$0xff] %vm409, %v4197
      %4222 = vst.msk [vmem:[#allocation3 + $0x1e8] sm:$0xff] %vm409, %v4198
      %4223 = vst.msk [vmem:[#allocation3 + $0x210] sm:$0xff] %vm409, %v4199
      %4224 = vst.msk [vmem:[#allocation3 + $0x238] sm:$0xff] %vm409, %v4200
      %4225 = vst.msk [vmem:[#allocation3 + $0x260] sm:$0xff] %vm409, %v4201
      %4226 = vst.msk [vmem:[#allocation3 + $0x288] sm:$0xff] %vm409, %v4202
      %4227 = vst.msk [vmem:[#allocation3 + $0x2b0] sm:$0xff] %vm409, %v4203
      %4228 = vst.msk [vmem:[#allocation3 + $0x2d8] sm:$0xff] %vm409, %v4204
      %4229 = vst.msk [vmem:[#allocation3 + $0x300] sm:$0xff] %vm409, %v4205
      %4230 = vst.msk [vmem:[#allocation3 + $0x328] sm:$0xff] %vm409, %v4206
      %4231 = vst.msk [vmem:[#allocation3 + $0x350] sm:$0xff] %vm409, %v4207
      %4232 = vst.msk [vmem:[#allocation3 + $0x378] sm:$0xff] %vm409, %v4208
      %4233 = vst.msk [vmem:[#allocation3 + $0x3a0] sm:$0xff] %vm409, %v4209
      %v4234 = vld [vmem:[#allocation2 + $0x17] sm:$0xff]
      %v4235 = vld [vmem:[#allocation2 + $0x1f] sm:$0xff]
      %v4236 = vld [vmem:[#allocation2 + $0x27] sm:$0xff]
      %v4237 = vld [vmem:[#allocation2 + $0x2f] sm:$0xff]
      %v4238 = vld [vmem:[#allocation2 + $0x37] sm:$0xff]
      %v4239 = vld [vmem:[#allocation2 + $0x3f] sm:$0xff]
      %v4240 = vld [vmem:[#allocation2 + $0x47] sm:$0xff]
      %v4241 = vld [vmem:[#allocation2 + $0x4f] sm:$0xff]
      %v4242 = vld [vmem:[#allocation2 + $0x57] sm:$0xff]
      %v4243 = vld [vmem:[#allocation2 + $0x5f] sm:$0xff]
      %v4244 = vld [vmem:[#allocation2 + $0x67] sm:$0xff]
      %v4245 = vld [vmem:[#allocation2 + $0x6f] sm:$0xff]
      %v4246 = vld [vmem:[#allocation2 + $0x77] sm:$0xff]
      %v4247 = vld [vmem:[#allocation2 + $0x7f] sm:$0xff]
      %v4248 = vld [vmem:[#allocation2 + $0x87] sm:$0xff]
      %v4249 = vld [vmem:[#allocation2 + $0x8f] sm:$0xff]
      %v4250 = vld [vmem:[#allocation2 + $0x97] sm:$0xff]
      %v4251 = vld [vmem:[#allocation2 + $0x9f] sm:$0xff]
      %v4252 = vld [vmem:[#allocation2 + $0xa7] sm:$0xff]
      %v4253 = vld [vmem:[#allocation2 + $0xaf] sm:$0xff]
      %v4254 = vld [vmem:[#allocation2 + $0xb7] sm:$0xff]
      %v4255 = vld [vmem:[#allocation2 + $0xbf] sm:$0xff]
      %v4256 = vld [vmem:[#allocation2 + $0xc7] sm:$0xff]
      %v4257 = vld [vmem:[#allocation2 + $0xcf] sm:$0xff]
      %v4258 = vld [vmem:[#allocation2 + $0xd7] sm:$0xff]
      %v4259 = vld [vmem:[#allocation2 + $0xdf] sm:$0xff]
      %v4260 = vld [vmem:[#allocation2 + $0xe7] sm:$0xff]
      %v4261 = vld [vmem:[#allocation2 + $0xef] sm:$0xff]
      %v4262 = vld [vmem:[#allocation2 + $0xf7] sm:$0xff]
      %v4263 = vld [vmem:[#allocation2 + $0xff] sm:$0xff]
      %v4264 = vld [vmem:[#allocation2 + $0x107] sm:$0xff]
      %v4265 = vld [vmem:[#allocation2 + $0x10f] sm:$0xff]
      %v4266 = vld [vmem:[#allocation2 + $0x117] sm:$0xff]
      %v4267 = vld [vmem:[#allocation2 + $0x11f] sm:$0xff]
      %v4268 = vld [vmem:[#allocation2 + $0x127] sm:$0xff]
      %v4269 = vld [vmem:[#allocation2 + $0x12f] sm:$0xff]
      %v4270 = vld [vmem:[#allocation2 + $0x137] sm:$0xff]
      %v4271 = vld [vmem:[#allocation2 + $0x13f] sm:$0xff]
      %v4272 = vld [vmem:[#allocation2 + $0x147] sm:$0xff]
      %v4273 = vld [vmem:[#allocation2 + $0x14f] sm:$0xff]
      %v4274 = vld [vmem:[#allocation2 + $0x157] sm:$0xff]
      %v4275 = vld [vmem:[#allocation2 + $0x15f] sm:$0xff]
      %v4276 = vld [vmem:[#allocation2 + $0x167] sm:$0xff]
      %v4277 = vld [vmem:[#allocation2 + $0x16f] sm:$0xff]
      %v4278 = vld [vmem:[#allocation2 + $0x177] sm:$0xff]
      %v4279 = vld [vmem:[#allocation2 + $0x17f] sm:$0xff]
      %v4280 = vld [vmem:[#allocation2 + $0x187] sm:$0xff]
      %v4281 = vld [vmem:[#allocation2 + $0x18f] sm:$0xff]
      %v4282 = vpack.c.bf16 %v4235, %v4234
      %v4283 = vpack.c.bf16 %v4237, %v4236
      %v4284 = vpack.c.bf16 %v4239, %v4238
      %v4285 = vpack.c.bf16 %v4241, %v4240
      %v4286 = vpack.c.bf16 %v4243, %v4242
      %v4287 = vpack.c.bf16 %v4245, %v4244
      %v4288 = vpack.c.bf16 %v4247, %v4246
      %v4289 = vpack.c.bf16 %v4249, %v4248
      %v4290 = vpack.c.bf16 %v4251, %v4250
      %v4291 = vpack.c.bf16 %v4253, %v4252
      %v4292 = vpack.c.bf16 %v4255, %v4254
      %v4293 = vpack.c.bf16 %v4257, %v4256
      %v4294 = vpack.c.bf16 %v4259, %v4258
      %v4295 = vpack.c.bf16 %v4261, %v4260
      %v4296 = vpack.c.bf16 %v4263, %v4262
      %v4297 = vpack.c.bf16 %v4265, %v4264
      %v4298 = vpack.c.bf16 %v4267, %v4266
      %v4299 = vpack.c.bf16 %v4269, %v4268
      %v4300 = vpack.c.bf16 %v4271, %v4270
      %v4301 = vpack.c.bf16 %v4273, %v4272
      %v4302 = vpack.c.bf16 %v4275, %v4274
      %v4303 = vpack.c.bf16 %v4277, %v4276
      %v4304 = vpack.c.bf16 %v4279, %v4278
      %v4305 = vpack.c.bf16 %v4281, %v4280
      %4330 = vrot.lane.b32.xlu0 %v4282, 64
      %v4331 = vpop.permute.xlu0 %4330
      %4332 = vrot.lane.b32.xlu0 %v4283, 64
      %v4333 = vpop.permute.xlu0 %4332
      %4334 = vrot.lane.b32.xlu0 %v4284, 64
      %v4335 = vpop.permute.xlu0 %4334
      %4336 = vrot.lane.b32.xlu0 %v4285, 64
      %v4337 = vpop.permute.xlu0 %4336
      %4338 = vrot.lane.b32.xlu0 %v4286, 64
      %v4339 = vpop.permute.xlu0 %4338
      %4340 = vrot.lane.b32.xlu0 %v4287, 64
      %v4341 = vpop.permute.xlu0 %4340
      %4342 = vrot.lane.b32.xlu0 %v4288, 64
      %v4343 = vpop.permute.xlu0 %4342
      %4344 = vrot.lane.b32.xlu0 %v4289, 64
      %v4345 = vpop.permute.xlu0 %4344
      %4346 = vrot.lane.b32.xlu0 %v4290, 64
      %v4347 = vpop.permute.xlu0 %4346
      %4348 = vrot.lane.b32.xlu0 %v4291, 64
      %v4349 = vpop.permute.xlu0 %4348
      %4350 = vrot.lane.b32.xlu0 %v4292, 64
      %v4351 = vpop.permute.xlu0 %4350
      %4352 = vrot.lane.b32.xlu0 %v4293, 64
      %v4353 = vpop.permute.xlu0 %4352
      %4354 = vrot.lane.b32.xlu0 %v4294, 64
      %v4355 = vpop.permute.xlu0 %4354
      %4356 = vrot.lane.b32.xlu0 %v4295, 64
      %v4357 = vpop.permute.xlu0 %4356
      %4358 = vrot.lane.b32.xlu0 %v4296, 64
      %v4359 = vpop.permute.xlu0 %4358
      %4360 = vrot.lane.b32.xlu0 %v4297, 64
      %v4361 = vpop.permute.xlu0 %4360
      %4362 = vrot.lane.b32.xlu0 %v4298, 64
      %v4363 = vpop.permute.xlu0 %4362
      %4364 = vrot.lane.b32.xlu0 %v4299, 64
      %v4365 = vpop.permute.xlu0 %4364
      %4366 = vrot.lane.b32.xlu0 %v4300, 64
      %v4367 = vpop.permute.xlu0 %4366
      %4368 = vrot.lane.b32.xlu0 %v4301, 64
      %v4369 = vpop.permute.xlu0 %4368
      %4370 = vrot.lane.b32.xlu0 %v4302, 64
      %v4371 = vpop.permute.xlu0 %4370
      %4372 = vrot.lane.b32.xlu0 %v4303, 64
      %v4373 = vpop.permute.xlu0 %4372
      %4374 = vrot.lane.b32.xlu0 %v4304, 64
      %v4375 = vpop.permute.xlu0 %4374
      %4376 = vrot.lane.b32.xlu0 %v4305, 64
      %v4377 = vpop.permute.xlu0 %4376
      %4402 = vst.msk [vmem:[#allocation3 + $0x8] sm:$0xff] %vm1559, %v4331
      %4403 = vst.msk [vmem:[#allocation3 + $0x30] sm:$0xff] %vm1559, %v4333
      %4404 = vst.msk [vmem:[#allocation3 + $0x58] sm:$0xff] %vm1559, %v4335
      %4405 = vst.msk [vmem:[#allocation3 + $0x80] sm:$0xff] %vm1559, %v4337
      %4406 = vst.msk [vmem:[#allocation3 + $0xa8] sm:$0xff] %vm1559, %v4339
      %4407 = vst.msk [vmem:[#allocation3 + $0xd0] sm:$0xff] %vm1559, %v4341
      %4408 = vst.msk [vmem:[#allocation3 + $0xf8] sm:$0xff] %vm1559, %v4343
      %4409 = vst.msk [vmem:[#allocation3 + $0x120] sm:$0xff] %vm1559, %v4345
      %4410 = vst.msk [vmem:[#allocation3 + $0x148] sm:$0xff] %vm1559, %v4347
      %4411 = vst.msk [vmem:[#allocation3 + $0x170] sm:$0xff] %vm1559, %v4349
      %4412 = vst.msk [vmem:[#allocation3 + $0x198] sm:$0xff] %vm1559, %v4351
      %4413 = vst.msk [vmem:[#allocation3 + $0x1c0] sm:$0xff] %vm1559, %v4353
      %4414 = vst.msk [vmem:[#allocation3 + $0x1e8] sm:$0xff] %vm1559, %v4355
      %4415 = vst.msk [vmem:[#allocation3 + $0x210] sm:$0xff] %vm1559, %v4357
      %4416 = vst.msk [vmem:[#allocation3 + $0x238] sm:$0xff] %vm1559, %v4359
      %4417 = vst.msk [vmem:[#allocation3 + $0x260] sm:$0xff] %vm1559, %v4361
      %4418 = vst.msk [vmem:[#allocation3 + $0x288] sm:$0xff] %vm1559, %v4363
      %4419 = vst.msk [vmem:[#allocation3 + $0x2b0] sm:$0xff] %vm1559, %v4365
      %4420 = vst.msk [vmem:[#allocation3 + $0x2d8] sm:$0xff] %vm1559, %v4367
      %4421 = vst.msk [vmem:[#allocation3 + $0x300] sm:$0xff] %vm1559, %v4369
      %4422 = vst.msk [vmem:[#allocation3 + $0x328] sm:$0xff] %vm1559, %v4371
      %4423 = vst.msk [vmem:[#allocation3 + $0x350] sm:$0xff] %vm1559, %v4373
      %4424 = vst.msk [vmem:[#allocation3 + $0x378] sm:$0xff] %vm1559, %v4375
      %4425 = vst.msk [vmem:[#allocation3 + $0x3a0] sm:$0xff] %vm1559, %v4377
      %v4426 = vld [vmem:[#allocation2 + $0x18] sm:$0xff]
      %v4427 = vld [vmem:[#allocation2 + $0x20] sm:$0xff]
      %v4428 = vld [vmem:[#allocation2 + $0x28] sm:$0xff]
      %v4429 = vld [vmem:[#allocation2 + $0x30] sm:$0xff]
      %v4430 = vld [vmem:[#allocation2 + $0x38] sm:$0xff]
      %v4431 = vld [vmem:[#allocation2 + $0x40] sm:$0xff]
      %v4432 = vld [vmem:[#allocation2 + $0x48] sm:$0xff]
      %v4433 = vld [vmem:[#allocation2 + $0x50] sm:$0xff]
      %v4434 = vld [vmem:[#allocation2 + $0x58] sm:$0xff]
      %v4435 = vld [vmem:[#allocation2 + $0x60] sm:$0xff]
      %v4436 = vld [vmem:[#allocation2 + $0x68] sm:$0xff]
      %v4437 = vld [vmem:[#allocation2 + $0x70] sm:$0xff]
      %v4438 = vld [vmem:[#allocation2 + $0x78] sm:$0xff]
      %v4439 = vld [vmem:[#allocation2 + $0x80] sm:$0xff]
      %v4440 = vld [vmem:[#allocation2 + $0x88] sm:$0xff]
      %v4441 = vld [vmem:[#allocation2 + $0x90] sm:$0xff]
      %v4442 = vld [vmem:[#allocation2 + $0x98] sm:$0xff]
      %v4443 = vld [vmem:[#allocation2 + $0xa0] sm:$0xff]
      %v4444 = vld [vmem:[#allocation2 + $0xa8] sm:$0xff]
      %v4445 = vld [vmem:[#allocation2 + $0xb0] sm:$0xff]
      %v4446 = vld [vmem:[#allocation2 + $0xb8] sm:$0xff]
      %v4447 = vld [vmem:[#allocation2 + $0xc0] sm:$0xff]
      %v4448 = vld [vmem:[#allocation2 + $0xc8] sm:$0xff]
      %v4449 = vld [vmem:[#allocation2 + $0xd0] sm:$0xff]
      %v4450 = vld [vmem:[#allocation2 + $0xd8] sm:$0xff]
      %v4451 = vld [vmem:[#allocation2 + $0xe0] sm:$0xff]
      %v4452 = vld [vmem:[#allocation2 + $0xe8] sm:$0xff]
      %v4453 = vld [vmem:[#allocation2 + $0xf0] sm:$0xff]
      %v4454 = vld [vmem:[#allocation2 + $0xf8] sm:$0xff]
      %v4455 = vld [vmem:[#allocation2 + $0x100] sm:$0xff]
      %v4456 = vld [vmem:[#allocation2 + $0x108] sm:$0xff]
      %v4457 = vld [vmem:[#allocation2 + $0x110] sm:$0xff]
      %v4458 = vld [vmem:[#allocation2 + $0x118] sm:$0xff]
      %v4459 = vld [vmem:[#allocation2 + $0x120] sm:$0xff]
      %v4460 = vld [vmem:[#allocation2 + $0x128] sm:$0xff]
      %v4461 = vld [vmem:[#allocation2 + $0x130] sm:$0xff]
      %v4462 = vld [vmem:[#allocation2 + $0x138] sm:$0xff]
      %v4463 = vld [vmem:[#allocation2 + $0x140] sm:$0xff]
      %v4464 = vld [vmem:[#allocation2 + $0x148] sm:$0xff]
      %v4465 = vld [vmem:[#allocation2 + $0x150] sm:$0xff]
      %v4466 = vld [vmem:[#allocation2 + $0x158] sm:$0xff]
      %v4467 = vld [vmem:[#allocation2 + $0x160] sm:$0xff]
      %v4468 = vld [vmem:[#allocation2 + $0x168] sm:$0xff]
      %v4469 = vld [vmem:[#allocation2 + $0x170] sm:$0xff]
      %v4470 = vld [vmem:[#allocation2 + $0x178] sm:$0xff]
      %v4471 = vld [vmem:[#allocation2 + $0x180] sm:$0xff]
      %v4472 = vld [vmem:[#allocation2 + $0x188] sm:$0xff]
      %v4473 = vld [vmem:[#allocation2 + $0x190] sm:$0xff]
      %v4474 = vpack.c.bf16 %v4427, %v4426
      %v4475 = vpack.c.bf16 %v4429, %v4428
      %v4476 = vpack.c.bf16 %v4431, %v4430
      %v4477 = vpack.c.bf16 %v4433, %v4432
      %v4478 = vpack.c.bf16 %v4435, %v4434
      %v4479 = vpack.c.bf16 %v4437, %v4436
      %v4480 = vpack.c.bf16 %v4439, %v4438
      %v4481 = vpack.c.bf16 %v4441, %v4440
      %v4482 = vpack.c.bf16 %v4443, %v4442
      %v4483 = vpack.c.bf16 %v4445, %v4444
      %v4484 = vpack.c.bf16 %v4447, %v4446
      %v4485 = vpack.c.bf16 %v4449, %v4448
      %v4486 = vpack.c.bf16 %v4451, %v4450
      %v4487 = vpack.c.bf16 %v4453, %v4452
      %v4488 = vpack.c.bf16 %v4455, %v4454
      %v4489 = vpack.c.bf16 %v4457, %v4456
      %v4490 = vpack.c.bf16 %v4459, %v4458
      %v4491 = vpack.c.bf16 %v4461, %v4460
      %v4492 = vpack.c.bf16 %v4463, %v4462
      %v4493 = vpack.c.bf16 %v4465, %v4464
      %v4494 = vpack.c.bf16 %v4467, %v4466
      %v4495 = vpack.c.bf16 %v4469, %v4468
      %v4496 = vpack.c.bf16 %v4471, %v4470
      %v4497 = vpack.c.bf16 %v4473, %v4472
      %4498 = vst.msk [vmem:[#allocation3 + $0x10] sm:$0xff] %vm409, %v4474
      %4499 = vst.msk [vmem:[#allocation3 + $0x38] sm:$0xff] %vm409, %v4475
      %4500 = vst.msk [vmem:[#allocation3 + $0x60] sm:$0xff] %vm409, %v4476
      %4501 = vst.msk [vmem:[#allocation3 + $0x88] sm:$0xff] %vm409, %v4477
      %4502 = vst.msk [vmem:[#allocation3 + $0xb0] sm:$0xff] %vm409, %v4478
      %4503 = vst.msk [vmem:[#allocation3 + $0xd8] sm:$0xff] %vm409, %v4479
      %4504 = vst.msk [vmem:[#allocation3 + $0x100] sm:$0xff] %vm409, %v4480
      %4505 = vst.msk [vmem:[#allocation3 + $0x128] sm:$0xff] %vm409, %v4481
      %4506 = vst.msk [vmem:[#allocation3 + $0x150] sm:$0xff] %vm409, %v4482
      %4507 = vst.msk [vmem:[#allocation3 + $0x178] sm:$0xff] %vm409, %v4483
      %4508 = vst.msk [vmem:[#allocation3 + $0x1a0] sm:$0xff] %vm409, %v4484
      %4509 = vst.msk [vmem:[#allocation3 + $0x1c8] sm:$0xff] %vm409, %v4485
      %4510 = vst.msk [vmem:[#allocation3 + $0x1f0] sm:$0xff] %vm409, %v4486
      %4511 = vst.msk [vmem:[#allocation3 + $0x218] sm:$0xff] %vm409, %v4487
      %4512 = vst.msk [vmem:[#allocation3 + $0x240] sm:$0xff] %vm409, %v4488
      %4513 = vst.msk [vmem:[#allocation3 + $0x268] sm:$0xff] %vm409, %v4489
      %4514 = vst.msk [vmem:[#allocation3 + $0x290] sm:$0xff] %vm409, %v4490
      %4515 = vst.msk [vmem:[#allocation3 + $0x2b8] sm:$0xff] %vm409, %v4491
      %4516 = vst.msk [vmem:[#allocation3 + $0x2e0] sm:$0xff] %vm409, %v4492
      %4517 = vst.msk [vmem:[#allocation3 + $0x308] sm:$0xff] %vm409, %v4493
      %4518 = vst.msk [vmem:[#allocation3 + $0x330] sm:$0xff] %vm409, %v4494
      %4519 = vst.msk [vmem:[#allocation3 + $0x358] sm:$0xff] %vm409, %v4495
      %4520 = vst.msk [vmem:[#allocation3 + $0x380] sm:$0xff] %vm409, %v4496
      %4521 = vst.msk [vmem:[#allocation3 + $0x3a8] sm:$0xff] %vm409, %v4497
      %v4522 = vld [vmem:[#allocation2 + $0x19] sm:$0xff]
      %v4523 = vld [vmem:[#allocation2 + $0x21] sm:$0xff]
      %v4524 = vld [vmem:[#allocation2 + $0x29] sm:$0xff]
      %v4525 = vld [vmem:[#allocation2 + $0x31] sm:$0xff]
      %v4526 = vld [vmem:[#allocation2 + $0x39] sm:$0xff]
      %v4527 = vld [vmem:[#allocation2 + $0x41] sm:$0xff]
      %v4528 = vld [vmem:[#allocation2 + $0x49] sm:$0xff]
      %v4529 = vld [vmem:[#allocation2 + $0x51] sm:$0xff]
      %v4530 = vld [vmem:[#allocation2 + $0x59] sm:$0xff]
      %v4531 = vld [vmem:[#allocation2 + $0x61] sm:$0xff]
      %v4532 = vld [vmem:[#allocation2 + $0x69] sm:$0xff]
      %v4533 = vld [vmem:[#allocation2 + $0x71] sm:$0xff]
      %v4534 = vld [vmem:[#allocation2 + $0x79] sm:$0xff]
      %v4535 = vld [vmem:[#allocation2 + $0x81] sm:$0xff]
      %v4536 = vld [vmem:[#allocation2 + $0x89] sm:$0xff]
      %v4537 = vld [vmem:[#allocation2 + $0x91] sm:$0xff]
      %v4538 = vld [vmem:[#allocation2 + $0x99] sm:$0xff]
      %v4539 = vld [vmem:[#allocation2 + $0xa1] sm:$0xff]
      %v4540 = vld [vmem:[#allocation2 + $0xa9] sm:$0xff]
      %v4541 = vld [vmem:[#allocation2 + $0xb1] sm:$0xff]
      %v4542 = vld [vmem:[#allocation2 + $0xb9] sm:$0xff]
      %v4543 = vld [vmem:[#allocation2 + $0xc1] sm:$0xff]
      %v4544 = vld [vmem:[#allocation2 + $0xc9] sm:$0xff]
      %v4545 = vld [vmem:[#allocation2 + $0xd1] sm:$0xff]
      %v4546 = vld [vmem:[#allocation2 + $0xd9] sm:$0xff]
      %v4547 = vld [vmem:[#allocation2 + $0xe1] sm:$0xff]
      %v4548 = vld [vmem:[#allocation2 + $0xe9] sm:$0xff]
      %v4549 = vld [vmem:[#allocation2 + $0xf1] sm:$0xff]
      %v4550 = vld [vmem:[#allocation2 + $0xf9] sm:$0xff]
      %v4551 = vld [vmem:[#allocation2 + $0x101] sm:$0xff]
      %v4552 = vld [vmem:[#allocation2 + $0x109] sm:$0xff]
      %v4553 = vld [vmem:[#allocation2 + $0x111] sm:$0xff]
      %v4554 = vld [vmem:[#allocation2 + $0x119] sm:$0xff]
      %v4555 = vld [vmem:[#allocation2 + $0x121] sm:$0xff]
      %v4556 = vld [vmem:[#allocation2 + $0x129] sm:$0xff]
      %v4557 = vld [vmem:[#allocation2 + $0x131] sm:$0xff]
      %v4558 = vld [vmem:[#allocation2 + $0x139] sm:$0xff]
      %v4559 = vld [vmem:[#allocation2 + $0x141] sm:$0xff]
      %v4560 = vld [vmem:[#allocation2 + $0x149] sm:$0xff]
      %v4561 = vld [vmem:[#allocation2 + $0x151] sm:$0xff]
      %v4562 = vld [vmem:[#allocation2 + $0x159] sm:$0xff]
      %v4563 = vld [vmem:[#allocation2 + $0x161] sm:$0xff]
      %v4564 = vld [vmem:[#allocation2 + $0x169] sm:$0xff]
      %v4565 = vld [vmem:[#allocation2 + $0x171] sm:$0xff]
      %v4566 = vld [vmem:[#allocation2 + $0x179] sm:$0xff]
      %v4567 = vld [vmem:[#allocation2 + $0x181] sm:$0xff]
      %v4568 = vld [vmem:[#allocation2 + $0x189] sm:$0xff]
      %v4569 = vld [vmem:[#allocation2 + $0x191] sm:$0xff]
      %v4570 = vpack.c.bf16 %v4523, %v4522
      %v4571 = vpack.c.bf16 %v4525, %v4524
      %v4572 = vpack.c.bf16 %v4527, %v4526
      %v4573 = vpack.c.bf16 %v4529, %v4528
      %v4574 = vpack.c.bf16 %v4531, %v4530
      %v4575 = vpack.c.bf16 %v4533, %v4532
      %v4576 = vpack.c.bf16 %v4535, %v4534
      %v4577 = vpack.c.bf16 %v4537, %v4536
      %v4578 = vpack.c.bf16 %v4539, %v4538
      %v4579 = vpack.c.bf16 %v4541, %v4540
      %v4580 = vpack.c.bf16 %v4543, %v4542
      %v4581 = vpack.c.bf16 %v4545, %v4544
      %v4582 = vpack.c.bf16 %v4547, %v4546
      %v4583 = vpack.c.bf16 %v4549, %v4548
      %v4584 = vpack.c.bf16 %v4551, %v4550
      %v4585 = vpack.c.bf16 %v4553, %v4552
      %v4586 = vpack.c.bf16 %v4555, %v4554
      %v4587 = vpack.c.bf16 %v4557, %v4556
      %v4588 = vpack.c.bf16 %v4559, %v4558
      %v4589 = vpack.c.bf16 %v4561, %v4560
      %v4590 = vpack.c.bf16 %v4563, %v4562
      %v4591 = vpack.c.bf16 %v4565, %v4564
      %v4592 = vpack.c.bf16 %v4567, %v4566
      %v4593 = vpack.c.bf16 %v4569, %v4568
      %4618 = vrot.lane.b32.xlu0 %v4570, 64
      %v4619 = vpop.permute.xlu0 %4618
      %4620 = vrot.lane.b32.xlu0 %v4571, 64
      %v4621 = vpop.permute.xlu0 %4620
      %4622 = vrot.lane.b32.xlu0 %v4572, 64
      %v4623 = vpop.permute.xlu0 %4622
      %4624 = vrot.lane.b32.xlu0 %v4573, 64
      %v4625 = vpop.permute.xlu0 %4624
      %4626 = vrot.lane.b32.xlu0 %v4574, 64
      %v4627 = vpop.permute.xlu0 %4626
      %4628 = vrot.lane.b32.xlu0 %v4575, 64
      %v4629 = vpop.permute.xlu0 %4628
      %4630 = vrot.lane.b32.xlu0 %v4576, 64
      %v4631 = vpop.permute.xlu0 %4630
      %4632 = vrot.lane.b32.xlu0 %v4577, 64
      %v4633 = vpop.permute.xlu0 %4632
      %4634 = vrot.lane.b32.xlu0 %v4578, 64
      %v4635 = vpop.permute.xlu0 %4634
      %4636 = vrot.lane.b32.xlu0 %v4579, 64
      %v4637 = vpop.permute.xlu0 %4636
      %4638 = vrot.lane.b32.xlu0 %v4580, 64
      %v4639 = vpop.permute.xlu0 %4638
      %4640 = vrot.lane.b32.xlu0 %v4581, 64
      %v4641 = vpop.permute.xlu0 %4640
      %4642 = vrot.lane.b32.xlu0 %v4582, 64
      %v4643 = vpop.permute.xlu0 %4642
      %4644 = vrot.lane.b32.xlu0 %v4583, 64
      %v4645 = vpop.permute.xlu0 %4644
      %4646 = vrot.lane.b32.xlu0 %v4584, 64
      %v4647 = vpop.permute.xlu0 %4646
      %4648 = vrot.lane.b32.xlu0 %v4585, 64
      %v4649 = vpop.permute.xlu0 %4648
      %4650 = vrot.lane.b32.xlu0 %v4586, 64
      %v4651 = vpop.permute.xlu0 %4650
      %4652 = vrot.lane.b32.xlu0 %v4587, 64
      %v4653 = vpop.permute.xlu0 %4652
      %4654 = vrot.lane.b32.xlu0 %v4588, 64
      %v4655 = vpop.permute.xlu0 %4654
      %4656 = vrot.lane.b32.xlu0 %v4589, 64
      %v4657 = vpop.permute.xlu0 %4656
      %4658 = vrot.lane.b32.xlu0 %v4590, 64
      %v4659 = vpop.permute.xlu0 %4658
      %4660 = vrot.lane.b32.xlu0 %v4591, 64
      %v4661 = vpop.permute.xlu0 %4660
      %4662 = vrot.lane.b32.xlu0 %v4592, 64
      %v4663 = vpop.permute.xlu0 %4662
      %4664 = vrot.lane.b32.xlu0 %v4593, 64
      %v4665 = vpop.permute.xlu0 %4664
      %4690 = vst.msk [vmem:[#allocation3 + $0x10] sm:$0xff] %vm1559, %v4619
      %4691 = vst.msk [vmem:[#allocation3 + $0x38] sm:$0xff] %vm1559, %v4621
      %4692 = vst.msk [vmem:[#allocation3 + $0x60] sm:$0xff] %vm1559, %v4623
      %4693 = vst.msk [vmem:[#allocation3 + $0x88] sm:$0xff] %vm1559, %v4625
      %4694 = vst.msk [vmem:[#allocation3 + $0xb0] sm:$0xff] %vm1559, %v4627
      %4695 = vst.msk [vmem:[#allocation3 + $0xd8] sm:$0xff] %vm1559, %v4629
      %4696 = vst.msk [vmem:[#allocation3 + $0x100] sm:$0xff] %vm1559, %v4631
      %4697 = vst.msk [vmem:[#allocation3 + $0x128] sm:$0xff] %vm1559, %v4633
      %4698 = vst.msk [vmem:[#allocation3 + $0x150] sm:$0xff] %vm1559, %v4635
      %4699 = vst.msk [vmem:[#allocation3 + $0x178] sm:$0xff] %vm1559, %v4637
      %4700 = vst.msk [vmem:[#allocation3 + $0x1a0] sm:$0xff] %vm1559, %v4639
      %4701 = vst.msk [vmem:[#allocation3 + $0x1c8] sm:$0xff] %vm1559, %v4641
      %4702 = vst.msk [vmem:[#allocation3 + $0x1f0] sm:$0xff] %vm1559, %v4643
      %4703 = vst.msk [vmem:[#allocation3 + $0x218] sm:$0xff] %vm1559, %v4645
      %4704 = vst.msk [vmem:[#allocation3 + $0x240] sm:$0xff] %vm1559, %v4647
      %4705 = vst.msk [vmem:[#allocation3 + $0x268] sm:$0xff] %vm1559, %v4649
      %4706 = vst.msk [vmem:[#allocation3 + $0x290] sm:$0xff] %vm1559, %v4651
      %4707 = vst.msk [vmem:[#allocation3 + $0x2b8] sm:$0xff] %vm1559, %v4653
      %4708 = vst.msk [vmem:[#allocation3 + $0x2e0] sm:$0xff] %vm1559, %v4655
      %4709 = vst.msk [vmem:[#allocation3 + $0x308] sm:$0xff] %vm1559, %v4657
      %4710 = vst.msk [vmem:[#allocation3 + $0x330] sm:$0xff] %vm1559, %v4659
      %4711 = vst.msk [vmem:[#allocation3 + $0x358] sm:$0xff] %vm1559, %v4661
      %4712 = vst.msk [vmem:[#allocation3 + $0x380] sm:$0xff] %vm1559, %v4663
      %4713 = vst.msk [vmem:[#allocation3 + $0x3a8] sm:$0xff] %vm1559, %v4665
      %v4714 = vld [vmem:[#allocation2 + $0x29] sm:$0xff]
      %v4715 = vld [vmem:[#allocation2 + $0x31] sm:$0xff]
      %v4716 = vld [vmem:[#allocation2 + $0x39] sm:$0xff]
      %v4717 = vld [vmem:[#allocation2 + $0x41] sm:$0xff]
      %v4718 = vld [vmem:[#allocation2 + $0x49] sm:$0xff]
      %v4719 = vld [vmem:[#allocation2 + $0x51] sm:$0xff]
      %v4720 = vld [vmem:[#allocation2 + $0x59] sm:$0xff]
      %v4721 = vld [vmem:[#allocation2 + $0x61] sm:$0xff]
      %v4722 = vld [vmem:[#allocation2 + $0x69] sm:$0xff]
      %v4723 = vld [vmem:[#allocation2 + $0x71] sm:$0xff]
      %v4724 = vld [vmem:[#allocation2 + $0x79] sm:$0xff]
      %v4725 = vld [vmem:[#allocation2 + $0x81] sm:$0xff]
      %v4726 = vld [vmem:[#allocation2 + $0x89] sm:$0xff]
      %v4727 = vld [vmem:[#allocation2 + $0x91] sm:$0xff]
      %v4728 = vld [vmem:[#allocation2 + $0x99] sm:$0xff]
      %v4729 = vld [vmem:[#allocation2 + $0xa1] sm:$0xff]
      %v4730 = vld [vmem:[#allocation2 + $0xa9] sm:$0xff]
      %v4731 = vld [vmem:[#allocation2 + $0xb1] sm:$0xff]
      %v4732 = vld [vmem:[#allocation2 + $0xb9] sm:$0xff]
      %v4733 = vld [vmem:[#allocation2 + $0xc1] sm:$0xff]
      %v4734 = vld [vmem:[#allocation2 + $0xc9] sm:$0xff]
      %v4735 = vld [vmem:[#allocation2 + $0xd1] sm:$0xff]
      %v4736 = vld [vmem:[#allocation2 + $0xd9] sm:$0xff]
      %v4737 = vld [vmem:[#allocation2 + $0xe1] sm:$0xff]
      %v4738 = vld [vmem:[#allocation2 + $0xe9] sm:$0xff]
      %v4739 = vld [vmem:[#allocation2 + $0xf1] sm:$0xff]
      %v4740 = vld [vmem:[#allocation2 + $0xf9] sm:$0xff]
      %v4741 = vld [vmem:[#allocation2 + $0x101] sm:$0xff]
      %v4742 = vld [vmem:[#allocation2 + $0x109] sm:$0xff]
      %v4743 = vld [vmem:[#allocation2 + $0x111] sm:$0xff]
      %v4744 = vld [vmem:[#allocation2 + $0x119] sm:$0xff]
      %v4745 = vld [vmem:[#allocation2 + $0x121] sm:$0xff]
      %v4746 = vld [vmem:[#allocation2 + $0x129] sm:$0xff]
      %v4747 = vld [vmem:[#allocation2 + $0x131] sm:$0xff]
      %v4748 = vld [vmem:[#allocation2 + $0x139] sm:$0xff]
      %v4749 = vld [vmem:[#allocation2 + $0x141] sm:$0xff]
      %v4750 = vld [vmem:[#allocation2 + $0x149] sm:$0xff]
      %v4751 = vld [vmem:[#allocation2 + $0x151] sm:$0xff]
      %v4752 = vld [vmem:[#allocation2 + $0x159] sm:$0xff]
      %v4753 = vld [vmem:[#allocation2 + $0x161] sm:$0xff]
      %v4754 = vld [vmem:[#allocation2 + $0x169] sm:$0xff]
      %v4755 = vld [vmem:[#allocation2 + $0x171] sm:$0xff]
      %v4756 = vld [vmem:[#allocation2 + $0x179] sm:$0xff]
      %v4757 = vld [vmem:[#allocation2 + $0x181] sm:$0xff]
      %v4758 = vld [vmem:[#allocation2 + $0x189] sm:$0xff]
      %v4759 = vld [vmem:[#allocation2 + $0x191] sm:$0xff]
      %v4760 = vld [vmem:[#allocation2 + $0x199] sm:$0xff]
      %v4761 = vld [vmem:[#allocation2 + $0x1a1] sm:$0xff]
      %v4762 = vpack.c.bf16 %v4715, %v4714
      %v4763 = vpack.c.bf16 %v4717, %v4716
      %v4764 = vpack.c.bf16 %v4719, %v4718
      %v4765 = vpack.c.bf16 %v4721, %v4720
      %v4766 = vpack.c.bf16 %v4723, %v4722
      %v4767 = vpack.c.bf16 %v4725, %v4724
      %v4768 = vpack.c.bf16 %v4727, %v4726
      %v4769 = vpack.c.bf16 %v4729, %v4728
      %v4770 = vpack.c.bf16 %v4731, %v4730
      %v4771 = vpack.c.bf16 %v4733, %v4732
      %v4772 = vpack.c.bf16 %v4735, %v4734
      %v4773 = vpack.c.bf16 %v4737, %v4736
      %v4774 = vpack.c.bf16 %v4739, %v4738
      %v4775 = vpack.c.bf16 %v4741, %v4740
      %v4776 = vpack.c.bf16 %v4743, %v4742
      %v4777 = vpack.c.bf16 %v4745, %v4744
      %v4778 = vpack.c.bf16 %v4747, %v4746
      %v4779 = vpack.c.bf16 %v4749, %v4748
      %v4780 = vpack.c.bf16 %v4751, %v4750
      %v4781 = vpack.c.bf16 %v4753, %v4752
      %v4782 = vpack.c.bf16 %v4755, %v4754
      %v4783 = vpack.c.bf16 %v4757, %v4756
      %v4784 = vpack.c.bf16 %v4759, %v4758
      %v4785 = vpack.c.bf16 %v4761, %v4760
      %4786 = vst.msk [vmem:[#allocation3 + $0x18] sm:$0xff] %vm409, %v4762
      %4787 = vst.msk [vmem:[#allocation3 + $0x40] sm:$0xff] %vm409, %v4763
      %4788 = vst.msk [vmem:[#allocation3 + $0x68] sm:$0xff] %vm409, %v4764
      %4789 = vst.msk [vmem:[#allocation3 + $0x90] sm:$0xff] %vm409, %v4765
      %4790 = vst.msk [vmem:[#allocation3 + $0xb8] sm:$0xff] %vm409, %v4766
      %4791 = vst.msk [vmem:[#allocation3 + $0xe0] sm:$0xff] %vm409, %v4767
      %4792 = vst.msk [vmem:[#allocation3 + $0x108] sm:$0xff] %vm409, %v4768
      %4793 = vst.msk [vmem:[#allocation3 + $0x130] sm:$0xff] %vm409, %v4769
      %4794 = vst.msk [vmem:[#allocation3 + $0x158] sm:$0xff] %vm409, %v4770
      %4795 = vst.msk [vmem:[#allocation3 + $0x180] sm:$0xff] %vm409, %v4771
      %4796 = vst.msk [vmem:[#allocation3 + $0x1a8] sm:$0xff] %vm409, %v4772
      %4797 = vst.msk [vmem:[#allocation3 + $0x1d0] sm:$0xff] %vm409, %v4773
      %4798 = vst.msk [vmem:[#allocation3 + $0x1f8] sm:$0xff] %vm409, %v4774
      %4799 = vst.msk [vmem:[#allocation3 + $0x220] sm:$0xff] %vm409, %v4775
      %4800 = vst.msk [vmem:[#allocation3 + $0x248] sm:$0xff] %vm409, %v4776
      %4801 = vst.msk [vmem:[#allocation3 + $0x270] sm:$0xff] %vm409, %v4777
      %4802 = vst.msk [vmem:[#allocation3 + $0x298] sm:$0xff] %vm409, %v4778
      %4803 = vst.msk [vmem:[#allocation3 + $0x2c0] sm:$0xff] %vm409, %v4779
      %4804 = vst.msk [vmem:[#allocation3 + $0x2e8] sm:$0xff] %vm409, %v4780
      %4805 = vst.msk [vmem:[#allocation3 + $0x310] sm:$0xff] %vm409, %v4781
      %4806 = vst.msk [vmem:[#allocation3 + $0x338] sm:$0xff] %vm409, %v4782
      %4807 = vst.msk [vmem:[#allocation3 + $0x360] sm:$0xff] %vm409, %v4783
      %4808 = vst.msk [vmem:[#allocation3 + $0x388] sm:$0xff] %vm409, %v4784
      %4809 = vst.msk [vmem:[#allocation3 + $0x3b0] sm:$0xff] %vm409, %v4785
      %v4810 = vld [vmem:[#allocation2 + $0x2a] sm:$0xff]
      %v4811 = vld [vmem:[#allocation2 + $0x32] sm:$0xff]
      %v4812 = vld [vmem:[#allocation2 + $0x3a] sm:$0xff]
      %v4813 = vld [vmem:[#allocation2 + $0x42] sm:$0xff]
      %v4814 = vld [vmem:[#allocation2 + $0x4a] sm:$0xff]
      %v4815 = vld [vmem:[#allocation2 + $0x52] sm:$0xff]
      %v4816 = vld [vmem:[#allocation2 + $0x5a] sm:$0xff]
      %v4817 = vld [vmem:[#allocation2 + $0x62] sm:$0xff]
      %v4818 = vld [vmem:[#allocation2 + $0x6a] sm:$0xff]
      %v4819 = vld [vmem:[#allocation2 + $0x72] sm:$0xff]
      %v4820 = vld [vmem:[#allocation2 + $0x7a] sm:$0xff]
      %v4821 = vld [vmem:[#allocation2 + $0x82] sm:$0xff]
      %v4822 = vld [vmem:[#allocation2 + $0x8a] sm:$0xff]
      %v4823 = vld [vmem:[#allocation2 + $0x92] sm:$0xff]
      %v4824 = vld [vmem:[#allocation2 + $0x9a] sm:$0xff]
      %v4825 = vld [vmem:[#allocation2 + $0xa2] sm:$0xff]
      %v4826 = vld [vmem:[#allocation2 + $0xaa] sm:$0xff]
      %v4827 = vld [vmem:[#allocation2 + $0xb2] sm:$0xff]
      %v4828 = vld [vmem:[#allocation2 + $0xba] sm:$0xff]
      %v4829 = vld [vmem:[#allocation2 + $0xc2] sm:$0xff]
      %v4830 = vld [vmem:[#allocation2 + $0xca] sm:$0xff]
      %v4831 = vld [vmem:[#allocation2 + $0xd2] sm:$0xff]
      %v4832 = vld [vmem:[#allocation2 + $0xda] sm:$0xff]
      %v4833 = vld [vmem:[#allocation2 + $0xe2] sm:$0xff]
      %v4834 = vld [vmem:[#allocation2 + $0xea] sm:$0xff]
      %v4835 = vld [vmem:[#allocation2 + $0xf2] sm:$0xff]
      %v4836 = vld [vmem:[#allocation2 + $0xfa] sm:$0xff]
      %v4837 = vld [vmem:[#allocation2 + $0x102] sm:$0xff]
      %v4838 = vld [vmem:[#allocation2 + $0x10a] sm:$0xff]
      %v4839 = vld [vmem:[#allocation2 + $0x112] sm:$0xff]
      %v4840 = vld [vmem:[#allocation2 + $0x11a] sm:$0xff]
      %v4841 = vld [vmem:[#allocation2 + $0x122] sm:$0xff]
      %v4842 = vld [vmem:[#allocation2 + $0x12a] sm:$0xff]
      %v4843 = vld [vmem:[#allocation2 + $0x132] sm:$0xff]
      %v4844 = vld [vmem:[#allocation2 + $0x13a] sm:$0xff]
      %v4845 = vld [vmem:[#allocation2 + $0x142] sm:$0xff]
      %v4846 = vld [vmem:[#allocation2 + $0x14a] sm:$0xff]
      %v4847 = vld [vmem:[#allocation2 + $0x152] sm:$0xff]
      %v4848 = vld [vmem:[#allocation2 + $0x15a] sm:$0xff]
      %v4849 = vld [vmem:[#allocation2 + $0x162] sm:$0xff]
      %v4850 = vld [vmem:[#allocation2 + $0x16a] sm:$0xff]
      %v4851 = vld [vmem:[#allocation2 + $0x172] sm:$0xff]
      %v4852 = vld [vmem:[#allocation2 + $0x17a] sm:$0xff]
      %v4853 = vld [vmem:[#allocation2 + $0x182] sm:$0xff]
      %v4854 = vld [vmem:[#allocation2 + $0x18a] sm:$0xff]
      %v4855 = vld [vmem:[#allocation2 + $0x192] sm:$0xff]
      %v4856 = vld [vmem:[#allocation2 + $0x19a] sm:$0xff]
      %v4857 = vld [vmem:[#allocation2 + $0x1a2] sm:$0xff]
      %v4858 = vpack.c.bf16 %v4811, %v4810
      %v4859 = vpack.c.bf16 %v4813, %v4812
      %v4860 = vpack.c.bf16 %v4815, %v4814
      %v4861 = vpack.c.bf16 %v4817, %v4816
      %v4862 = vpack.c.bf16 %v4819, %v4818
      %v4863 = vpack.c.bf16 %v4821, %v4820
      %v4864 = vpack.c.bf16 %v4823, %v4822
      %v4865 = vpack.c.bf16 %v4825, %v4824
      %v4866 = vpack.c.bf16 %v4827, %v4826
      %v4867 = vpack.c.bf16 %v4829, %v4828
      %v4868 = vpack.c.bf16 %v4831, %v4830
      %v4869 = vpack.c.bf16 %v4833, %v4832
      %v4870 = vpack.c.bf16 %v4835, %v4834
      %v4871 = vpack.c.bf16 %v4837, %v4836
      %v4872 = vpack.c.bf16 %v4839, %v4838
      %v4873 = vpack.c.bf16 %v4841, %v4840
      %v4874 = vpack.c.bf16 %v4843, %v4842
      %v4875 = vpack.c.bf16 %v4845, %v4844
      %v4876 = vpack.c.bf16 %v4847, %v4846
      %v4877 = vpack.c.bf16 %v4849, %v4848
      %v4878 = vpack.c.bf16 %v4851, %v4850
      %v4879 = vpack.c.bf16 %v4853, %v4852
      %v4880 = vpack.c.bf16 %v4855, %v4854
      %v4881 = vpack.c.bf16 %v4857, %v4856
      %4906 = vrot.lane.b32.xlu0 %v4858, 64
      %v4907 = vpop.permute.xlu0 %4906
      %4908 = vrot.lane.b32.xlu0 %v4859, 64
      %v4909 = vpop.permute.xlu0 %4908
      %4910 = vrot.lane.b32.xlu0 %v4860, 64
      %v4911 = vpop.permute.xlu0 %4910
      %4912 = vrot.lane.b32.xlu0 %v4861, 64
      %v4913 = vpop.permute.xlu0 %4912
      %4914 = vrot.lane.b32.xlu0 %v4862, 64
      %v4915 = vpop.permute.xlu0 %4914
      %4916 = vrot.lane.b32.xlu0 %v4863, 64
      %v4917 = vpop.permute.xlu0 %4916
      %4918 = vrot.lane.b32.xlu0 %v4864, 64
      %v4919 = vpop.permute.xlu0 %4918
      %4920 = vrot.lane.b32.xlu0 %v4865, 64
      %v4921 = vpop.permute.xlu0 %4920
      %4922 = vrot.lane.b32.xlu0 %v4866, 64
      %v4923 = vpop.permute.xlu0 %4922
      %4924 = vrot.lane.b32.xlu0 %v4867, 64
      %v4925 = vpop.permute.xlu0 %4924
      %4926 = vrot.lane.b32.xlu0 %v4868, 64
      %v4927 = vpop.permute.xlu0 %4926
      %4928 = vrot.lane.b32.xlu0 %v4869, 64
      %v4929 = vpop.permute.xlu0 %4928
      %4930 = vrot.lane.b32.xlu0 %v4870, 64
      %v4931 = vpop.permute.xlu0 %4930
      %4932 = vrot.lane.b32.xlu0 %v4871, 64
      %v4933 = vpop.permute.xlu0 %4932
      %4934 = vrot.lane.b32.xlu0 %v4872, 64
      %v4935 = vpop.permute.xlu0 %4934
      %4936 = vrot.lane.b32.xlu0 %v4873, 64
      %v4937 = vpop.permute.xlu0 %4936
      %4938 = vrot.lane.b32.xlu0 %v4874, 64
      %v4939 = vpop.permute.xlu0 %4938
      %4940 = vrot.lane.b32.xlu0 %v4875, 64
      %v4941 = vpop.permute.xlu0 %4940
      %4942 = vrot.lane.b32.xlu0 %v4876, 64
      %v4943 = vpop.permute.xlu0 %4942
      %4944 = vrot.lane.b32.xlu0 %v4877, 64
      %v4945 = vpop.permute.xlu0 %4944
      %4946 = vrot.lane.b32.xlu0 %v4878, 64
      %v4947 = vpop.permute.xlu0 %4946
      %4948 = vrot.lane.b32.xlu0 %v4879, 64
      %v4949 = vpop.permute.xlu0 %4948
      %4950 = vrot.lane.b32.xlu0 %v4880, 64
      %v4951 = vpop.permute.xlu0 %4950
      %4952 = vrot.lane.b32.xlu0 %v4881, 64
      %v4953 = vpop.permute.xlu0 %4952
      %4978 = vst.msk [vmem:[#allocation3 + $0x18] sm:$0xff] %vm1559, %v4907
      %4979 = vst.msk [vmem:[#allocation3 + $0x40] sm:$0xff] %vm1559, %v4909
      %4980 = vst.msk [vmem:[#allocation3 + $0x68] sm:$0xff] %vm1559, %v4911
      %4981 = vst.msk [vmem:[#allocation3 + $0x90] sm:$0xff] %vm1559, %v4913
      %4982 = vst.msk [vmem:[#allocation3 + $0xb8] sm:$0xff] %vm1559, %v4915
      %4983 = vst.msk [vmem:[#allocation3 + $0xe0] sm:$0xff] %vm1559, %v4917
      %4984 = vst.msk [vmem:[#allocation3 + $0x108] sm:$0xff] %vm1559, %v4919
      %4985 = vst.msk [vmem:[#allocation3 + $0x130] sm:$0xff] %vm1559, %v4921
      %4986 = vst.msk [vmem:[#allocation3 + $0x158] sm:$0xff] %vm1559, %v4923
      %4987 = vst.msk [vmem:[#allocation3 + $0x180] sm:$0xff] %vm1559, %v4925
      %4988 = vst.msk [vmem:[#allocation3 + $0x1a8] sm:$0xff] %vm1559, %v4927
      %4989 = vst.msk [vmem:[#allocation3 + $0x1d0] sm:$0xff] %vm1559, %v4929
      %4990 = vst.msk [vmem:[#allocation3 + $0x1f8] sm:$0xff] %vm1559, %v4931
      %4991 = vst.msk [vmem:[#allocation3 + $0x220] sm:$0xff] %vm1559, %v4933
      %4992 = vst.msk [vmem:[#allocation3 + $0x248] sm:$0xff] %vm1559, %v4935
      %4993 = vst.msk [vmem:[#allocation3 + $0x270] sm:$0xff] %vm1559, %v4937
      %4994 = vst.msk [vmem:[#allocation3 + $0x298] sm:$0xff] %vm1559, %v4939
      %4995 = vst.msk [vmem:[#allocation3 + $0x2c0] sm:$0xff] %vm1559, %v4941
      %4996 = vst.msk [vmem:[#allocation3 + $0x2e8] sm:$0xff] %vm1559, %v4943
      %4997 = vst.msk [vmem:[#allocation3 + $0x310] sm:$0xff] %vm1559, %v4945
      %4998 = vst.msk [vmem:[#allocation3 + $0x338] sm:$0xff] %vm1559, %v4947
      %4999 = vst.msk [vmem:[#allocation3 + $0x360] sm:$0xff] %vm1559, %v4949
      %5000 = vst.msk [vmem:[#allocation3 + $0x388] sm:$0xff] %vm1559, %v4951
      %5001 = vst.msk [vmem:[#allocation3 + $0x3b0] sm:$0xff] %vm1559, %v4953
      %v5002 = vld [vmem:[#allocation2 + $0x2b] sm:$0xff]
      %v5003 = vld [vmem:[#allocation2 + $0x33] sm:$0xff]
      %v5004 = vld [vmem:[#allocation2 + $0x3b] sm:$0xff]
      %v5005 = vld [vmem:[#allocation2 + $0x43] sm:$0xff]
      %v5006 = vld [vmem:[#allocation2 + $0x4b] sm:$0xff]
      %v5007 = vld [vmem:[#allocation2 + $0x53] sm:$0xff]
      %v5008 = vld [vmem:[#allocation2 + $0x5b] sm:$0xff]
      %v5009 = vld [vmem:[#allocation2 + $0x63] sm:$0xff]
      %v5010 = vld [vmem:[#allocation2 + $0x6b] sm:$0xff]
      %v5011 = vld [vmem:[#allocation2 + $0x73] sm:$0xff]
      %v5012 = vld [vmem:[#allocation2 + $0x7b] sm:$0xff]
      %v5013 = vld [vmem:[#allocation2 + $0x83] sm:$0xff]
      %v5014 = vld [vmem:[#allocation2 + $0x8b] sm:$0xff]
      %v5015 = vld [vmem:[#allocation2 + $0x93] sm:$0xff]
      %v5016 = vld [vmem:[#allocation2 + $0x9b] sm:$0xff]
      %v5017 = vld [vmem:[#allocation2 + $0xa3] sm:$0xff]
      %v5018 = vld [vmem:[#allocation2 + $0xab] sm:$0xff]
      %v5019 = vld [vmem:[#allocation2 + $0xb3] sm:$0xff]
      %v5020 = vld [vmem:[#allocation2 + $0xbb] sm:$0xff]
      %v5021 = vld [vmem:[#allocation2 + $0xc3] sm:$0xff]
      %v5022 = vld [vmem:[#allocation2 + $0xcb] sm:$0xff]
      %v5023 = vld [vmem:[#allocation2 + $0xd3] sm:$0xff]
      %v5024 = vld [vmem:[#allocation2 + $0xdb] sm:$0xff]
      %v5025 = vld [vmem:[#allocation2 + $0xe3] sm:$0xff]
      %v5026 = vld [vmem:[#allocation2 + $0xeb] sm:$0xff]
      %v5027 = vld [vmem:[#allocation2 + $0xf3] sm:$0xff]
      %v5028 = vld [vmem:[#allocation2 + $0xfb] sm:$0xff]
      %v5029 = vld [vmem:[#allocation2 + $0x103] sm:$0xff]
      %v5030 = vld [vmem:[#allocation2 + $0x10b] sm:$0xff]
      %v5031 = vld [vmem:[#allocation2 + $0x113] sm:$0xff]
      %v5032 = vld [vmem:[#allocation2 + $0x11b] sm:$0xff]
      %v5033 = vld [vmem:[#allocation2 + $0x123] sm:$0xff]
      %v5034 = vld [vmem:[#allocation2 + $0x12b] sm:$0xff]
      %v5035 = vld [vmem:[#allocation2 + $0x133] sm:$0xff]
      %v5036 = vld [vmem:[#allocation2 + $0x13b] sm:$0xff]
      %v5037 = vld [vmem:[#allocation2 + $0x143] sm:$0xff]
      %v5038 = vld [vmem:[#allocation2 + $0x14b] sm:$0xff]
      %v5039 = vld [vmem:[#allocation2 + $0x153] sm:$0xff]
      %v5040 = vld [vmem:[#allocation2 + $0x15b] sm:$0xff]
      %v5041 = vld [vmem:[#allocation2 + $0x163] sm:$0xff]
      %v5042 = vld [vmem:[#allocation2 + $0x16b] sm:$0xff]
      %v5043 = vld [vmem:[#allocation2 + $0x173] sm:$0xff]
      %v5044 = vld [vmem:[#allocation2 + $0x17b] sm:$0xff]
      %v5045 = vld [vmem:[#allocation2 + $0x183] sm:$0xff]
      %v5046 = vld [vmem:[#allocation2 + $0x18b] sm:$0xff]
      %v5047 = vld [vmem:[#allocation2 + $0x193] sm:$0xff]
      %v5048 = vld [vmem:[#allocation2 + $0x19b] sm:$0xff]
      %v5049 = vld [vmem:[#allocation2 + $0x1a3] sm:$0xff]
      %v5050 = vpack.c.bf16 %v5003, %v5002
      %v5051 = vpack.c.bf16 %v5005, %v5004
      %v5052 = vpack.c.bf16 %v5007, %v5006
      %v5053 = vpack.c.bf16 %v5009, %v5008
      %v5054 = vpack.c.bf16 %v5011, %v5010
      %v5055 = vpack.c.bf16 %v5013, %v5012
      %v5056 = vpack.c.bf16 %v5015, %v5014
      %v5057 = vpack.c.bf16 %v5017, %v5016
      %v5058 = vpack.c.bf16 %v5019, %v5018
      %v5059 = vpack.c.bf16 %v5021, %v5020
      %v5060 = vpack.c.bf16 %v5023, %v5022
      %v5061 = vpack.c.bf16 %v5025, %v5024
      %v5062 = vpack.c.bf16 %v5027, %v5026
      %v5063 = vpack.c.bf16 %v5029, %v5028
      %v5064 = vpack.c.bf16 %v5031, %v5030
      %v5065 = vpack.c.bf16 %v5033, %v5032
      %v5066 = vpack.c.bf16 %v5035, %v5034
      %v5067 = vpack.c.bf16 %v5037, %v5036
      %v5068 = vpack.c.bf16 %v5039, %v5038
      %v5069 = vpack.c.bf16 %v5041, %v5040
      %v5070 = vpack.c.bf16 %v5043, %v5042
      %v5071 = vpack.c.bf16 %v5045, %v5044
      %v5072 = vpack.c.bf16 %v5047, %v5046
      %v5073 = vpack.c.bf16 %v5049, %v5048
      %5074 = vst.msk [vmem:[#allocation3 + $0x20] sm:$0xff] %vm409, %v5050
      %5075 = vst.msk [vmem:[#allocation3 + $0x48] sm:$0xff] %vm409, %v5051
      %5076 = vst.msk [vmem:[#allocation3 + $0x70] sm:$0xff] %vm409, %v5052
      %5077 = vst.msk [vmem:[#allocation3 + $0x98] sm:$0xff] %vm409, %v5053
      %5078 = vst.msk [vmem:[#allocation3 + $0xc0] sm:$0xff] %vm409, %v5054
      %5079 = vst.msk [vmem:[#allocation3 + $0xe8] sm:$0xff] %vm409, %v5055
      %5080 = vst.msk [vmem:[#allocation3 + $0x110] sm:$0xff] %vm409, %v5056
      %5081 = vst.msk [vmem:[#allocation3 + $0x138] sm:$0xff] %vm409, %v5057
      %5082 = vst.msk [vmem:[#allocation3 + $0x160] sm:$0xff] %vm409, %v5058
      %5083 = vst.msk [vmem:[#allocation3 + $0x188] sm:$0xff] %vm409, %v5059
      %5084 = vst.msk [vmem:[#allocation3 + $0x1b0] sm:$0xff] %vm409, %v5060
      %5085 = vst.msk [vmem:[#allocation3 + $0x1d8] sm:$0xff] %vm409, %v5061
      %5086 = vst.msk [vmem:[#allocation3 + $0x200] sm:$0xff] %vm409, %v5062
      %5087 = vst.msk [vmem:[#allocation3 + $0x228] sm:$0xff] %vm409, %v5063
      %5088 = vst.msk [vmem:[#allocation3 + $0x250] sm:$0xff] %vm409, %v5064
      %5089 = vst.msk [vmem:[#allocation3 + $0x278] sm:$0xff] %vm409, %v5065
      %5090 = vst.msk [vmem:[#allocation3 + $0x2a0] sm:$0xff] %vm409, %v5066
      %5091 = vst.msk [vmem:[#allocation3 + $0x2c8] sm:$0xff] %vm409, %v5067
      %5092 = vst.msk [vmem:[#allocation3 + $0x2f0] sm:$0xff] %vm409, %v5068
      %5093 = vst.msk [vmem:[#allocation3 + $0x318] sm:$0xff] %vm409, %v5069
      %5094 = vst.msk [vmem:[#allocation3 + $0x340] sm:$0xff] %vm409, %v5070
      %5095 = vst.msk [vmem:[#allocation3 + $0x368] sm:$0xff] %vm409, %v5071
      %5096 = vst.msk [vmem:[#allocation3 + $0x390] sm:$0xff] %vm409, %v5072
      %5097 = vst.msk [vmem:[#allocation3 + $0x3b8] sm:$0xff] %vm409, %v5073
      %v5098 = vld [vmem:[#allocation3] sm:$0xff]
      %v5099 = vld [vmem:[#allocation3 + $0x8] sm:$0xff]
      %v5100 = vld [vmem:[#allocation3 + $0x10] sm:$0xff]
      %v5101 = vld [vmem:[#allocation3 + $0x18] sm:$0xff]
      %v5102 = vld [vmem:[#allocation3 + $0x20] sm:$0xff]
      %v5103 = vld [vmem:[#allocation3 + $0x28] sm:$0xff]
      %v5104 = vld [vmem:[#allocation3 + $0x30] sm:$0xff]
      %v5105 = vld [vmem:[#allocation3 + $0x38] sm:$0xff]
      %v5106 = vld [vmem:[#allocation3 + $0x40] sm:$0xff]
      %v5107 = vld [vmem:[#allocation3 + $0x48] sm:$0xff]
      %v5108 = vld [vmem:[#allocation3 + $0x50] sm:$0xff]
      %v5109 = vld [vmem:[#allocation3 + $0x58] sm:$0xff]
      %v5110 = vld [vmem:[#allocation3 + $0x60] sm:$0xff]
      %v5111 = vld [vmem:[#allocation3 + $0x68] sm:$0xff]
      %v5112 = vld [vmem:[#allocation3 + $0x70] sm:$0xff]
      %v5113 = vld [vmem:[#allocation3 + $0x78] sm:$0xff]
      %v5114 = vld [vmem:[#allocation3 + $0x80] sm:$0xff]
      %v5115 = vld [vmem:[#allocation3 + $0x88] sm:$0xff]
      %v5116 = vld [vmem:[#allocation3 + $0x90] sm:$0xff]
      %v5117 = vld [vmem:[#allocation3 + $0x98] sm:$0xff]
      %v5118 = vld [vmem:[#allocation3 + $0xa0] sm:$0xff]
      %v5119 = vld [vmem:[#allocation3 + $0xa8] sm:$0xff]
      %v5120 = vld [vmem:[#allocation3 + $0xb0] sm:$0xff]
      %v5121 = vld [vmem:[#allocation3 + $0xb8] sm:$0xff]
      %v5122 = vld [vmem:[#allocation3 + $0xc0] sm:$0xff]
      %v5123 = vld [vmem:[#allocation3 + $0xc8] sm:$0xff]
      %v5124 = vld [vmem:[#allocation3 + $0xd0] sm:$0xff]
      %v5125 = vld [vmem:[#allocation3 + $0xd8] sm:$0xff]
      %v5126 = vld [vmem:[#allocation3 + $0xe0] sm:$0xff]
      %v5127 = vld [vmem:[#allocation3 + $0xe8] sm:$0xff]
      %v5128 = vld [vmem:[#allocation3 + $0xf0] sm:$0xff]
      %v5129 = vld [vmem:[#allocation3 + $0xf8] sm:$0xff]
      %v5130 = vld [vmem:[#allocation3 + $0x100] sm:$0xff]
      %v5131 = vld [vmem:[#allocation3 + $0x108] sm:$0xff]
      %v5132 = vld [vmem:[#allocation3 + $0x110] sm:$0xff]
      %v5133 = vld [vmem:[#allocation3 + $0x118] sm:$0xff]
      %v5134 = vld [vmem:[#allocation3 + $0x120] sm:$0xff]
      %v5135 = vld [vmem:[#allocation3 + $0x128] sm:$0xff]
      %v5136 = vld [vmem:[#allocation3 + $0x130] sm:$0xff]
      %v5137 = vld [vmem:[#allocation3 + $0x138] sm:$0xff]
      %v5138 = vld [vmem:[#allocation3 + $0x140] sm:$0xff]
      %v5139 = vld [vmem:[#allocation3 + $0x148] sm:$0xff]
      %v5140 = vld [vmem:[#allocation3 + $0x150] sm:$0xff]
      %v5141 = vld [vmem:[#allocation3 + $0x158] sm:$0xff]
      %v5142 = vld [vmem:[#allocation3 + $0x160] sm:$0xff]
      %v5143 = vld [vmem:[#allocation3 + $0x168] sm:$0xff]
      %v5144 = vld [vmem:[#allocation3 + $0x170] sm:$0xff]
      %v5145 = vld [vmem:[#allocation3 + $0x178] sm:$0xff]
      %v5146 = vld [vmem:[#allocation3 + $0x180] sm:$0xff]
      %v5147 = vld [vmem:[#allocation3 + $0x188] sm:$0xff]
      %v5148 = vld [vmem:[#allocation3 + $0x190] sm:$0xff]
      %v5149 = vld [vmem:[#allocation3 + $0x198] sm:$0xff]
      %v5150 = vld [vmem:[#allocation3 + $0x1a0] sm:$0xff]
      %v5151 = vld [vmem:[#allocation3 + $0x1a8] sm:$0xff]
      %v5152 = vld [vmem:[#allocation3 + $0x1b0] sm:$0xff]
      %v5153 = vld [vmem:[#allocation3 + $0x1b8] sm:$0xff]
      %v5154 = vld [vmem:[#allocation3 + $0x1c0] sm:$0xff]
      %v5155 = vld [vmem:[#allocation3 + $0x1c8] sm:$0xff]
      %v5156 = vld [vmem:[#allocation3 + $0x1d0] sm:$0xff]
      %v5157 = vld [vmem:[#allocation3 + $0x1d8] sm:$0xff]
      %v5158 = vld [vmem:[#allocation3 + $0x1e0] sm:$0xff]
      %v5159 = vld [vmem:[#allocation3 + $0x1e8] sm:$0xff]
      %v5160 = vld [vmem:[#allocation3 + $0x1f0] sm:$0xff]
      %v5161 = vld [vmem:[#allocation3 + $0x1f8] sm:$0xff]
      %v5162 = vld [vmem:[#allocation3 + $0x200] sm:$0xff]
      %v5163 = vld [vmem:[#allocation3 + $0x208] sm:$0xff]
      %v5164 = vld [vmem:[#allocation3 + $0x210] sm:$0xff]
      %v5165 = vld [vmem:[#allocation3 + $0x218] sm:$0xff]
      %v5166 = vld [vmem:[#allocation3 + $0x220] sm:$0xff]
      %v5167 = vld [vmem:[#allocation3 + $0x228] sm:$0xff]
      %v5168 = vld [vmem:[#allocation3 + $0x230] sm:$0xff]
      %v5169 = vld [vmem:[#allocation3 + $0x238] sm:$0xff]
      %v5170 = vld [vmem:[#allocation3 + $0x240] sm:$0xff]
      %v5171 = vld [vmem:[#allocation3 + $0x248] sm:$0xff]
      %v5172 = vld [vmem:[#allocation3 + $0x250] sm:$0xff]
      %v5173 = vld [vmem:[#allocation3 + $0x258] sm:$0xff]
      %v5174 = vld [vmem:[#allocation3 + $0x260] sm:$0xff]
      %v5175 = vld [vmem:[#allocation3 + $0x268] sm:$0xff]
      %v5176 = vld [vmem:[#allocation3 + $0x270] sm:$0xff]
      %v5177 = vld [vmem:[#allocation3 + $0x278] sm:$0xff]
      %v5178 = vld [vmem:[#allocation3 + $0x280] sm:$0xff]
      %v5179 = vld [vmem:[#allocation3 + $0x288] sm:$0xff]
      %v5180 = vld [vmem:[#allocation3 + $0x290] sm:$0xff]
      %v5181 = vld [vmem:[#allocation3 + $0x298] sm:$0xff]
      %v5182 = vld [vmem:[#allocation3 + $0x2a0] sm:$0xff]
      %v5183 = vld [vmem:[#allocation3 + $0x2a8] sm:$0xff]
      %v5184 = vld [vmem:[#allocation3 + $0x2b0] sm:$0xff]
      %v5185 = vld [vmem:[#allocation3 + $0x2b8] sm:$0xff]
      %v5186 = vld [vmem:[#allocation3 + $0x2c0] sm:$0xff]
      %v5187 = vld [vmem:[#allocation3 + $0x2c8] sm:$0xff]
      %v5188 = vld [vmem:[#allocation3 + $0x2d0] sm:$0xff]
      %v5189 = vld [vmem:[#allocation3 + $0x2d8] sm:$0xff]
      %v5190 = vld [vmem:[#allocation3 + $0x2e0] sm:$0xff]
      %v5191 = vld [vmem:[#allocation3 + $0x2e8] sm:$0xff]
      %v5192 = vld [vmem:[#allocation3 + $0x2f0] sm:$0xff]
      %v5193 = vld [vmem:[#allocation3 + $0x2f8] sm:$0xff]
      %v5194 = vld [vmem:[#allocation3 + $0x300] sm:$0xff]
      %v5195 = vld [vmem:[#allocation3 + $0x308] sm:$0xff]
      %v5196 = vld [vmem:[#allocation3 + $0x310] sm:$0xff]
      %v5197 = vld [vmem:[#allocation3 + $0x318] sm:$0xff]
      %v5198 = vld [vmem:[#allocation3 + $0x320] sm:$0xff]
      %v5199 = vld [vmem:[#allocation3 + $0x328] sm:$0xff]
      %v5200 = vld [vmem:[#allocation3 + $0x330] sm:$0xff]
      %v5201 = vld [vmem:[#allocation3 + $0x338] sm:$0xff]
      %v5202 = vld [vmem:[#allocation3 + $0x340] sm:$0xff]
      %v5203 = vld [vmem:[#allocation3 + $0x348] sm:$0xff]
      %v5204 = vld [vmem:[#allocation3 + $0x350] sm:$0xff]
      %v5205 = vld [vmem:[#allocation3 + $0x358] sm:$0xff]
      %v5206 = vld [vmem:[#allocation3 + $0x360] sm:$0xff]
      %v5207 = vld [vmem:[#allocation3 + $0x368] sm:$0xff]
      %v5208 = vld [vmem:[#allocation3 + $0x370] sm:$0xff]
      %v5209 = vld [vmem:[#allocation3 + $0x378] sm:$0xff]
      %v5210 = vld [vmem:[#allocation3 + $0x380] sm:$0xff]
      %v5211 = vld [vmem:[#allocation3 + $0x388] sm:$0xff]
      %v5212 = vld [vmem:[#allocation3 + $0x390] sm:$0xff]
      %v5213 = vld [vmem:[#allocation3 + $0x398] sm:$0xff]
      %v5214 = vld [vmem:[#allocation3 + $0x3a0] sm:$0xff]
      %v5215 = vld [vmem:[#allocation3 + $0x3a8] sm:$0xff]
      %v5216 = vld [vmem:[#allocation3 + $0x3b0] sm:$0xff]
      %v5217 = vld [vmem:[#allocation3 + $0x3b8] sm:$0xff]
      %v5218 = vld [vmem:[%s6] sm:$0xf]
      %v5219 = vld [vmem:[%s6 + $0x4] sm:$0xf]
      %v5220 = vld [vmem:[%s6 + $0x8] sm:$0xf]
      %v5221 = vld [vmem:[%s6 + $0xc] sm:$0xf]
      %v5222 = vld [vmem:[%s6 + $0x10] sm:$0xf]
      %v5223 = vld [vmem:[%s6 + $0x14] sm:$0xf]
      %v5224 = vld [vmem:[%s6 + $0x18] sm:$0xf]
      %v5225 = vld [vmem:[%s6 + $0x1c] sm:$0xf]
      %v5226 = vld [vmem:[%s6 + $0x20] sm:$0xf]
      %v5227 = vld [vmem:[%s6 + $0x24] sm:$0xf]
      %v5228 = vld [vmem:[%s6 + $0x28] sm:$0xf]
      %v5229 = vld [vmem:[%s6 + $0x2c] sm:$0xf]
      %v5230 = vld [vmem:[%s6 + $0x30] sm:$0xf]
      %v5231 = vld [vmem:[%s6 + $0x34] sm:$0xf]
      %v5232 = vld [vmem:[%s6 + $0x38] sm:$0xf]
      %v5233 = vld [vmem:[%s6 + $0x3c] sm:$0xf]
      %v5234 = vld [vmem:[%s6 + $0x40] sm:$0xf]
      %v5235 = vld [vmem:[%s6 + $0x44] sm:$0xf]
      %v5236 = vld [vmem:[%s6 + $0x48] sm:$0xf]
      %v5237 = vld [vmem:[%s6 + $0x4c] sm:$0xf]
      %v5238 = vld [vmem:[%s6 + $0x50] sm:$0xf]
      %v5239 = vld [vmem:[%s6 + $0x54] sm:$0xf]
      %v5240 = vld [vmem:[%s6 + $0x58] sm:$0xf]
      %v5241 = vld [vmem:[%s6 + $0x5c] sm:$0xf]
      %v5242 = vld [vmem:[%s6 + $0x60] sm:$0xf]
      %v5243 = vld [vmem:[%s6 + $0x64] sm:$0xf]
      %v5244 = vld [vmem:[%s6 + $0x68] sm:$0xf]
      %v5245 = vld [vmem:[%s6 + $0x6c] sm:$0xf]
      %v5246 = vld [vmem:[%s6 + $0x70] sm:$0xf]
      %v5247 = vld [vmem:[%s6 + $0x74] sm:$0xf]
      %v5248 = vld [vmem:[%s6 + $0x78] sm:$0xf]
      %v5249 = vld [vmem:[%s6 + $0x7c] sm:$0xf]
      %v5250 = vld [vmem:[%s6 + $0x80] sm:$0xf]
      %v5251 = vld [vmem:[%s6 + $0x84] sm:$0xf]
      %v5252 = vld [vmem:[%s6 + $0x88] sm:$0xf]
      %v5253 = vld [vmem:[%s6 + $0x8c] sm:$0xf]
      %v5254 = vld [vmem:[%s6 + $0x90] sm:$0xf]
      %v5255 = vld [vmem:[%s6 + $0x94] sm:$0xf]
      %v5256 = vld [vmem:[%s6 + $0x98] sm:$0xf]
      %v5257 = vld [vmem:[%s6 + $0x9c] sm:$0xf]
      %v5258 = vld [vmem:[%s6 + $0xa0] sm:$0xf]
      %v5259 = vld [vmem:[%s6 + $0xa4] sm:$0xf]
      %v5260 = vld [vmem:[%s6 + $0xa8] sm:$0xf]
      %v5261 = vld [vmem:[%s6 + $0xac] sm:$0xf]
      %v5262 = vld [vmem:[%s6 + $0xb0] sm:$0xf]
      %v5263 = vld [vmem:[%s6 + $0xb4] sm:$0xf]
      %v5264 = vld [vmem:[%s6 + $0xb8] sm:$0xf]
      %v5265 = vld [vmem:[%s6 + $0xbc] sm:$0xf]
      %v5266 = vld [vmem:[%s6 + $0xc0] sm:$0xf]
      %v5267 = vld [vmem:[%s6 + $0xc4] sm:$0xf]
      %v5268 = vld [vmem:[%s6 + $0xc8] sm:$0xf]
      %v5269 = vld [vmem:[%s6 + $0xcc] sm:$0xf]
      %v5270 = vld [vmem:[%s6 + $0xd0] sm:$0xf]
      %v5271 = vld [vmem:[%s6 + $0xd4] sm:$0xf]
      %v5272 = vld [vmem:[%s6 + $0xd8] sm:$0xf]
      %v5273 = vld [vmem:[%s6 + $0xdc] sm:$0xf]
      %v5274 = vld [vmem:[%s6 + $0xe0] sm:$0xf]
      %v5275 = vld [vmem:[%s6 + $0xe4] sm:$0xf]
      %v5276 = vld [vmem:[%s6 + $0xe8] sm:$0xf]
      %v5277 = vld [vmem:[%s6 + $0xec] sm:$0xf]
      %v5278 = vld [vmem:[%s6 + $0xf0] sm:$0xf]
      %v5279 = vld [vmem:[%s6 + $0xf4] sm:$0xf]
      %v5280 = vld [vmem:[%s6 + $0xf8] sm:$0xf]
      %v5281 = vld [vmem:[%s6 + $0xfc] sm:$0xf]
      %v5282 = vld [vmem:[%s6 + $0x100] sm:$0xf]
      %v5283 = vld [vmem:[%s6 + $0x104] sm:$0xf]
      %v5284 = vld [vmem:[%s6 + $0x108] sm:$0xf]
      %v5285 = vld [vmem:[%s6 + $0x10c] sm:$0xf]
      %v5286 = vld [vmem:[%s6 + $0x110] sm:$0xf]
      %v5287 = vld [vmem:[%s6 + $0x114] sm:$0xf]
      %v5288 = vld [vmem:[%s6 + $0x118] sm:$0xf]
      %v5289 = vld [vmem:[%s6 + $0x11c] sm:$0xf]
      %v5290 = vld [vmem:[%s7] sm:$0x1]
      %v5292 = vlaneseq
      %v5293 = vshrl.u32 %v5292, 7
      %v5294 = vsub.s32 0, %v5293
      %v5295 = vrot.slane %v5290, %v5294
      %v5369 = vunpack.c.l.b16 %v5218
      %v5370 = vunpack.c.l.b16 %v5219
      %v5371 = vunpack.c.l.b16 %v5220
      %v5372 = vunpack.c.l.b16 %v5221
      %v5373 = vunpack.c.l.b16 %v5222
      %v5374 = vunpack.c.l.b16 %v5223
      %v5375 = vunpack.c.l.b16 %v5224
      %v5376 = vunpack.c.l.b16 %v5225
      %v5377 = vunpack.c.l.b16 %v5226
      %v5378 = vunpack.c.l.b16 %v5227
      %v5379 = vunpack.c.l.b16 %v5228
      %v5380 = vunpack.c.l.b16 %v5229
      %v5381 = vunpack.c.l.b16 %v5230
      %v5382 = vunpack.c.l.b16 %v5231
      %v5383 = vunpack.c.l.b16 %v5232
      %v5384 = vunpack.c.l.b16 %v5233
      %v5385 = vunpack.c.l.b16 %v5234
      %v5386 = vunpack.c.l.b16 %v5235
      %v5387 = vunpack.c.l.b16 %v5236
      %v5388 = vunpack.c.l.b16 %v5237
      %v5389 = vunpack.c.l.b16 %v5238
      %v5390 = vunpack.c.l.b16 %v5239
      %v5391 = vunpack.c.l.b16 %v5240
      %v5392 = vunpack.c.l.b16 %v5241
      %v5393 = vunpack.c.l.b16 %v5242
      %v5394 = vunpack.c.l.b16 %v5243
      %v5395 = vunpack.c.l.b16 %v5244
      %v5396 = vunpack.c.l.b16 %v5245
      %v5397 = vunpack.c.l.b16 %v5246
      %v5398 = vunpack.c.l.b16 %v5247
      %v5399 = vunpack.c.l.b16 %v5248
      %v5400 = vunpack.c.l.b16 %v5249
      %v5401 = vunpack.c.l.b16 %v5250
      %v5402 = vunpack.c.l.b16 %v5251
      %v5403 = vunpack.c.l.b16 %v5252
      %v5404 = vunpack.c.l.b16 %v5253
      %v5405 = vunpack.c.l.b16 %v5254
      %v5406 = vunpack.c.l.b16 %v5255
      %v5407 = vunpack.c.l.b16 %v5256
      %v5408 = vunpack.c.l.b16 %v5257
      %v5409 = vunpack.c.l.b16 %v5258
      %v5410 = vunpack.c.l.b16 %v5259
      %v5411 = vunpack.c.l.b16 %v5260
      %v5412 = vunpack.c.l.b16 %v5261
      %v5413 = vunpack.c.l.b16 %v5262
      %v5414 = vunpack.c.l.b16 %v5263
      %v5415 = vunpack.c.l.b16 %v5264
      %v5416 = vunpack.c.l.b16 %v5265
      %v5417 = vunpack.c.l.b16 %v5266
      %v5418 = vunpack.c.l.b16 %v5267
      %v5419 = vunpack.c.l.b16 %v5268
      %v5420 = vunpack.c.l.b16 %v5269
      %v5421 = vunpack.c.l.b16 %v5270
      %v5422 = vunpack.c.l.b16 %v5271
      %v5423 = vunpack.c.l.b16 %v5272
      %v5424 = vunpack.c.l.b16 %v5273
      %v5425 = vunpack.c.l.b16 %v5274
      %v5426 = vunpack.c.l.b16 %v5275
      %v5427 = vunpack.c.l.b16 %v5276
      %v5428 = vunpack.c.l.b16 %v5277
      %v5429 = vunpack.c.l.b16 %v5278
      %v5430 = vunpack.c.l.b16 %v5279
      %v5431 = vunpack.c.l.b16 %v5280
      %v5432 = vunpack.c.l.b16 %v5281
      %v5433 = vunpack.c.l.b16 %v5282
      %v5434 = vunpack.c.l.b16 %v5283
      %v5435 = vunpack.c.l.b16 %v5284
      %v5436 = vunpack.c.l.b16 %v5285
      %v5437 = vunpack.c.l.b16 %v5286
      %v5438 = vunpack.c.l.b16 %v5287
      %v5439 = vunpack.c.l.b16 %v5288
      %v5440 = vunpack.c.l.b16 %v5289
      %v5441 = vpack.c.b16 %v5370, %v5369
      %v5442 = vpack.c.b16 %v5372, %v5371
      %v5443 = vpack.c.b16 %v5374, %v5373
      %v5444 = vpack.c.b16 %v5376, %v5375
      %v5445 = vpack.c.b16 %v5378, %v5377
      %v5446 = vpack.c.b16 %v5380, %v5379
      %v5447 = vpack.c.b16 %v5382, %v5381
      %v5448 = vpack.c.b16 %v5384, %v5383
      %v5449 = vpack.c.b16 %v5386, %v5385
      %v5450 = vpack.c.b16 %v5388, %v5387
      %v5451 = vpack.c.b16 %v5390, %v5389
      %v5452 = vpack.c.b16 %v5392, %v5391
      %v5453 = vpack.c.b16 %v5394, %v5393
      %v5454 = vpack.c.b16 %v5396, %v5395
      %v5455 = vpack.c.b16 %v5398, %v5397
      %v5456 = vpack.c.b16 %v5400, %v5399
      %v5457 = vpack.c.b16 %v5402, %v5401
      %v5458 = vpack.c.b16 %v5404, %v5403
      %v5459 = vpack.c.b16 %v5406, %v5405
      %v5460 = vpack.c.b16 %v5408, %v5407
      %v5461 = vpack.c.b16 %v5410, %v5409
      %v5462 = vpack.c.b16 %v5412, %v5411
      %v5463 = vpack.c.b16 %v5414, %v5413
      %v5464 = vpack.c.b16 %v5416, %v5415
      %v5465 = vpack.c.b16 %v5418, %v5417
      %v5466 = vpack.c.b16 %v5420, %v5419
      %v5467 = vpack.c.b16 %v5422, %v5421
      %v5468 = vpack.c.b16 %v5424, %v5423
      %v5469 = vpack.c.b16 %v5426, %v5425
      %v5470 = vpack.c.b16 %v5428, %v5427
      %v5471 = vpack.c.b16 %v5430, %v5429
      %v5472 = vpack.c.b16 %v5432, %v5431
      %v5473 = vpack.c.b16 %v5434, %v5433
      %v5474 = vpack.c.b16 %v5436, %v5435
      %v5475 = vpack.c.b16 %v5438, %v5437
      %v5476 = vpack.c.b16 %v5440, %v5439
      %v5514 = vsel %vm409, %v5102, 0
      %v5517 = vsel %vm409, %v5107, 0
      %v5520 = vsel %vm409, %v5112, 0
      %v5523 = vsel %vm409, %v5117, 0
      %v5526 = vsel %vm409, %v5122, 0
      %v5529 = vsel %vm409, %v5127, 0
      %v5532 = vsel %vm409, %v5132, 0
      %v5535 = vsel %vm409, %v5137, 0
      %v5538 = vsel %vm409, %v5142, 0
      %v5541 = vsel %vm409, %v5147, 0
      %v5544 = vsel %vm409, %v5152, 0
      %v5547 = vsel %vm409, %v5157, 0
      %v5550 = vsel %vm409, %v5162, 0
      %v5553 = vsel %vm409, %v5167, 0
      %v5556 = vsel %vm409, %v5172, 0
      %v5559 = vsel %vm409, %v5177, 0
      %v5562 = vsel %vm409, %v5182, 0
      %v5565 = vsel %vm409, %v5187, 0
      %v5568 = vsel %vm409, %v5192, 0
      %v5571 = vsel %vm409, %v5197, 0
      %v5574 = vsel %vm409, %v5202, 0
      %v5577 = vsel %vm409, %v5207, 0
      %v5580 = vsel %vm409, %v5212, 0
      %v5583 = vsel %vm409, %v5217, 0
      %5585 = vmatprep.subr.bf16.mxu0 0
      %5586 = vmatpush1.bf16.msra.mxu0 %v5441
      %5587 = vmatprep.subr.bf16.mxu0 0
      %5588 = vmatpush1.bf16.msra.mxu0 %v5442
      %5589 = vmatprep.subr.bf16.mxu0 0
      %5590 = vmatpush1.bf16.msra.mxu0 %v5443
      %5591 = vmatprep.subr.bf16.mxu0 0
      %5592 = vmatpush1.bf16.msra.mxu0 %v5444
      %5593 = vmatprep.subr.bf16.mxu0 0
      %5594 = vmatpush1.bf16.msra.mxu0 %v5445
      %5595 = vmatprep.subr.bf16.mxu0 0
      %5596 = vmatpush1.bf16.msra.mxu0 %v5446
      %5597 = vmatprep.subr.bf16.mxu0 0
      %5598 = vmatpush1.bf16.msra.mxu0 %v5447
      %5599 = vmatprep.subr.bf16.mxu0 0
      %5600 = vmatpush1.bf16.msra.mxu0 %v5448
      %5601 = vmatprep.subr.bf16.mxu0 0
      %5602 = vmatpush1.bf16.msra.mxu0 %v5449
      %5603 = vmatprep.subr.bf16.mxu0 0
      %5604 = vmatpush1.bf16.msra.mxu0 %v5450
      %5605 = vmatprep.subr.bf16.mxu0 0
      %5606 = vmatpush1.bf16.msra.mxu0 %v5451
      %5607 = vmatprep.subr.bf16.mxu0 0
      %5608 = vmatpush1.bf16.msra.mxu0 %v5452
      %5609 = vmatprep.subr.bf16.mxu0 0
      %5610 = vmatpush1.bf16.msra.mxu0 %v5453
      %5611 = vmatprep.subr.bf16.mxu0 0
      %5612 = vmatpush1.bf16.msra.mxu0 %v5454
      %5613 = vmatprep.subr.bf16.mxu0 0
      %5614 = vmatpush1.bf16.msra.mxu0 %v5455
      %5615 = vmatprep.subr.bf16.mxu0 0
      %5616 = vmatpush1.bf16.msra.mxu0 %v5456
      %5617 = vmatprep.mubr.bf16.mxu0 %v5099
      %5618 = vmatmul.mubr.bf16.gmra.mrb[0].mxu0 %v5098
      %v5619 = vpop.f32.mrb[0].mxu0
      %v5620 = vadd.f32 %v5295, %v5619
      %v5621 = vpop.f32.mrb[0].mxu0
      %v5622 = vpop.f32.mrb[0].mxu0
      %v5623 = vadd.f32 %v5295, %v5622
      %v5624 = vpop.f32.mrb[0].mxu0
      %5625 = vmatprep.mubr.bf16.mxu0 %v5104
      %5626 = vmatmul.mubr.bf16.gmra.mrb[0].mxu0 %v5103
      %v5627 = vpop.f32.mrb[0].mxu0
      %v5628 = vadd.f32 %v5295, %v5627
      %v5629 = vpop.f32.mrb[0].mxu0
      %v5630 = vpop.f32.mrb[0].mxu0
      %v5631 = vadd.f32 %v5295, %v5630
      %v5632 = vpop.f32.mrb[0].mxu0
      %5633 = vmatprep.mubr.bf16.mxu0 %v5109
      %5634 = vmatmul.mubr.bf16.gmra.mrb[0].mxu0 %v5108
      %v5635 = vpop.f32.mrb[0].mxu0
      %v5636 = vadd.f32 %v5295, %v5635
      %v5637 = vpop.f32.mrb[0].mxu0
      %v5638 = vpop.f32.mrb[0].mxu0
      %v5639 = vadd.f32 %v5295, %v5638
      %v5640 = vpop.f32.mrb[0].mxu0
      %5641 = vmatprep.mubr.bf16.mxu0 %v5114
      %5642 = vmatmul.mubr.bf16.gmra.mrb[0].mxu0 %v5113
      %v5643 = vpop.f32.mrb[0].mxu0
      %v5644 = vadd.f32 %v5295, %v5643
      %v5645 = vpop.f32.mrb[0].mxu0
      %v5646 = vpop.f32.mrb[0].mxu0
      %v5647 = vadd.f32 %v5295, %v5646
      %v5648 = vpop.f32.mrb[0].mxu0
      %5649 = vmatprep.mubr.bf16.mxu0 %v5119
      %5650 = vmatmul.mubr.bf16.gmra.mrb[0].mxu0 %v5118
      %v5651 = vpop.f32.mrb[0].mxu0
      %v5652 = vadd.f32 %v5295, %v5651
      %v5653 = vpop.f32.mrb[0].mxu0
      %v5654 = vpop.f32.mrb[0].mxu0
      %v5655 = vadd.f32 %v5295, %v5654
      %v5656 = vpop.f32.mrb[0].mxu0
      %5657 = vmatprep.mubr.bf16.mxu0 %v5124
      %5658 = vmatmul.mubr.bf16.gmra.mrb[0].mxu0 %v5123
      %v5659 = vpop.f32.mrb[0].mxu0
      %v5660 = vadd.f32 %v5295, %v5659
      %v5661 = vpop.f32.mrb[0].mxu0
      %v5662 = vpop.f32.mrb[0].mxu0
      %v5663 = vadd.f32 %v5295, %v5662
      %v5664 = vpop.f32.mrb[0].mxu0
      %5665 = vmatprep.mubr.bf16.mxu0 %v5129
      %5666 = vmatmul.mubr.bf16.gmra.mrb[0].mxu0 %v5128
      %v5667 = vpop.f32.mrb[0].mxu0
      %v5668 = vadd.f32 %v5295, %v5667
      %v5669 = vpop.f32.mrb[0].mxu0
      %v5670 = vpop.f32.mrb[0].mxu0
      %v5671 = vadd.f32 %v5295, %v5670
      %v5672 = vpop.f32.mrb[0].mxu0
      %5673 = vmatprep.mubr.bf16.mxu0 %v5134
      %5674 = vmatmul.mubr.bf16.gmra.mrb[0].mxu0 %v5133
      %v5675 = vpop.f32.mrb[0].mxu0
      %v5676 = vadd.f32 %v5295, %v5675
      %v5677 = vpop.f32.mrb[0].mxu0
      %v5678 = vpop.f32.mrb[0].mxu0
      %v5679 = vadd.f32 %v5295, %v5678
      %v5680 = vpop.f32.mrb[0].mxu0
      %5681 = vmatprep.mubr.bf16.mxu0 %v5139
      %5682 = vmatmul.mubr.bf16.gmra.mrb[0].mxu0 %v5138
      %v5683 = vpop.f32.mrb[0].mxu0
      %v5684 = vadd.f32 %v5295, %v5683
      %v5685 = vpop.f32.mrb[0].mxu0
      %v5686 = vpop.f32.mrb[0].mxu0
      %v5687 = vadd.f32 %v5295, %v5686
      %v5688 = vpop.f32.mrb[0].mxu0
      %5689 = vmatprep.mubr.bf16.mxu0 %v5144
      %5690 = vmatmul.mubr.bf16.gmra.mrb[0].mxu0 %v5143
      %v5691 = vpop.f32.mrb[0].mxu0
      %v5692 = vadd.f32 %v5295, %v5691
      %v5693 = vpop.f32.mrb[0].mxu0
      %v5694 = vpop.f32.mrb[0].mxu0
      %v5695 = vadd.f32 %v5295, %v5694
      %v5696 = vpop.f32.mrb[0].mxu0
      %5697 = vmatprep.mubr.bf16.mxu0 %v5149
      %5698 = vmatmul.mubr.bf16.gmra.mrb[0].mxu0 %v5148
      %v5699 = vpop.f32.mrb[0].mxu0
      %v5700 = vadd.f32 %v5295, %v5699
      %v5701 = vpop.f32.mrb[0].mxu0
      %v5702 = vpop.f32.mrb[0].mxu0
      %v5703 = vadd.f32 %v5295, %v5702
      %v5704 = vpop.f32.mrb[0].mxu0
      %5705 = vmatprep.mubr.bf16.mxu0 %v5154
      %5706 = vmatmul.mubr.bf16.gmra.mrb[0].mxu0 %v5153
      %v5707 = vpop.f32.mrb[0].mxu0
      %v5708 = vadd.f32 %v5295, %v5707
      %v5709 = vpop.f32.mrb[0].mxu0
      %v5710 = vpop.f32.mrb[0].mxu0
      %v5711 = vadd.f32 %v5295, %v5710
      %v5712 = vpop.f32.mrb[0].mxu0
      %5713 = vmatprep.mubr.bf16.mxu0 %v5159
      %5714 = vmatmul.mubr.bf16.gmra.mrb[0].mxu0 %v5158
      %v5715 = vpop.f32.mrb[0].mxu0
      %v5716 = vadd.f32 %v5295, %v5715
      %v5717 = vpop.f32.mrb[0].mxu0
      %v5718 = vpop.f32.mrb[0].mxu0
      %v5719 = vadd.f32 %v5295, %v5718
      %v5720 = vpop.f32.mrb[0].mxu0
      %5721 = vmatprep.mubr.bf16.mxu0 %v5164
      %5722 = vmatmul.mubr.bf16.gmra.mrb[0].mxu0 %v5163
      %v5723 = vpop.f32.mrb[0].mxu0
      %v5724 = vadd.f32 %v5295, %v5723
      %v5725 = vpop.f32.mrb[0].mxu0
      %v5726 = vpop.f32.mrb[0].mxu0
      %v5727 = vadd.f32 %v5295, %v5726
      %v5728 = vpop.f32.mrb[0].mxu0
      %5729 = vmatprep.mubr.bf16.mxu0 %v5169
      %5730 = vmatmul.mubr.bf16.gmra.mrb[0].mxu0 %v5168
      %v5731 = vpop.f32.mrb[0].mxu0
      %v5732 = vadd.f32 %v5295, %v5731
      %v5733 = vpop.f32.mrb[0].mxu0
      %v5734 = vpop.f32.mrb[0].mxu0
      %v5735 = vadd.f32 %v5295, %v5734
      %v5736 = vpop.f32.mrb[0].mxu0
      %5737 = vmatprep.mubr.bf16.mxu0 %v5174
      %5738 = vmatmul.mubr.bf16.gmra.mrb[0].mxu0 %v5173
      %v5739 = vpop.f32.mrb[0].mxu0
      %v5740 = vadd.f32 %v5295, %v5739
      %v5741 = vpop.f32.mrb[0].mxu0
      %v5742 = vpop.f32.mrb[0].mxu0
      %v5743 = vadd.f32 %v5295, %v5742
      %v5744 = vpop.f32.mrb[0].mxu0
      %5745 = vmatprep.mubr.bf16.mxu0 %v5179
      %5746 = vmatmul.mubr.bf16.gmra.mrb[0].mxu0 %v5178
      %v5747 = vpop.f32.mrb[0].mxu0
      %v5748 = vadd.f32 %v5295, %v5747
      %v5749 = vpop.f32.mrb[0].mxu0
      %v5750 = vpop.f32.mrb[0].mxu0
      %v5751 = vadd.f32 %v5295, %v5750
      %v5752 = vpop.f32.mrb[0].mxu0
      %5753 = vmatprep.mubr.bf16.mxu0 %v5184
      %5754 = vmatmul.mubr.bf16.gmra.mrb[0].mxu0 %v5183
      %v5755 = vpop.f32.mrb[0].mxu0
      %v5756 = vadd.f32 %v5295, %v5755
      %v5757 = vpop.f32.mrb[0].mxu0
      %v5758 = vpop.f32.mrb[0].mxu0
      %v5759 = vadd.f32 %v5295, %v5758
      %v5760 = vpop.f32.mrb[0].mxu0
      %5761 = vmatprep.mubr.bf16.mxu0 %v5189
      %5762 = vmatmul.mubr.bf16.gmra.mrb[0].mxu0 %v5188
      %v5763 = vpop.f32.mrb[0].mxu0
      %v5764 = vadd.f32 %v5295, %v5763
      %v5765 = vpop.f32.mrb[0].mxu0
      %v5766 = vpop.f32.mrb[0].mxu0
      %v5767 = vadd.f32 %v5295, %v5766
      %v5768 = vpop.f32.mrb[0].mxu0
      %5769 = vmatprep.mubr.bf16.mxu0 %v5194
      %5770 = vmatmul.mubr.bf16.gmra.mrb[0].mxu0 %v5193
      %v5771 = vpop.f32.mrb[0].mxu0
      %v5772 = vadd.f32 %v5295, %v5771
      %v5773 = vpop.f32.mrb[0].mxu0
      %v5774 = vpop.f32.mrb[0].mxu0
      %v5775 = vadd.f32 %v5295, %v5774
      %v5776 = vpop.f32.mrb[0].mxu0
      %5777 = vmatprep.mubr.bf16.mxu0 %v5199
      %5778 = vmatmul.mubr.bf16.gmra.mrb[0].mxu0 %v5198
      %v5779 = vpop.f32.mrb[0].mxu0
      %v5780 = vadd.f32 %v5295, %v5779
      %v5781 = vpop.f32.mrb[0].mxu0
      %v5782 = vpop.f32.mrb[0].mxu0
      %v5783 = vadd.f32 %v5295, %v5782
      %v5784 = vpop.f32.mrb[0].mxu0
      %5785 = vmatprep.mubr.bf16.mxu0 %v5204
      %5786 = vmatmul.mubr.bf16.gmra.mrb[0].mxu0 %v5203
      %v5787 = vpop.f32.mrb[0].mxu0
      %v5788 = vadd.f32 %v5295, %v5787
      %v5789 = vpop.f32.mrb[0].mxu0
      %v5790 = vpop.f32.mrb[0].mxu0
      %v5791 = vadd.f32 %v5295, %v5790
      %v5792 = vpop.f32.mrb[0].mxu0
      %5793 = vmatprep.mubr.bf16.mxu0 %v5209
      %5794 = vmatmul.mubr.bf16.gmra.mrb[0].mxu0 %v5208
      %v5795 = vpop.f32.mrb[0].mxu0
      %v5796 = vadd.f32 %v5295, %v5795
      %v5797 = vpop.f32.mrb[0].mxu0
      %v5798 = vpop.f32.mrb[0].mxu0
      %v5799 = vadd.f32 %v5295, %v5798
      %v5800 = vpop.f32.mrb[0].mxu0
      %5801 = vmatprep.mubr.bf16.mxu0 %v5214
      %5802 = vmatmul.mubr.bf16.gmra.mrb[0].mxu0 %v5213
      %v5803 = vpop.f32.mrb[0].mxu0
      %v5804 = vadd.f32 %v5295, %v5803
      %v5805 = vpop.f32.mrb[0].mxu0
      %v5806 = vpop.f32.mrb[0].mxu0
      %v5807 = vadd.f32 %v5295, %v5806
      %v5808 = vpop.f32.mrb[0].mxu0
      %5809 = vdwg.mxu0
      %5810 = vmatprep.subr.bf16.mxu0 0
      %5811 = vmatpush1.bf16.msra.mxu0 %v5457
      %5812 = vmatprep.subr.bf16.mxu0 0
      %5813 = vmatpush1.bf16.msra.mxu0 %v5458
      %5814 = vmatprep.subr.bf16.mxu0 0
      %5815 = vmatpush1.bf16.msra.mxu0 %v5459
      %5816 = vmatprep.subr.bf16.mxu0 0
      %5817 = vmatpush1.bf16.msra.mxu0 %v5460
      %5818 = vmatprep.subr.bf16.mxu0 0
      %5819 = vmatpush1.bf16.msra.mxu0 %v5461
      %5820 = vmatprep.subr.bf16.mxu0 0
      %5821 = vmatpush1.bf16.msra.mxu0 %v5462
      %5822 = vmatprep.subr.bf16.mxu0 0
      %5823 = vmatpush1.bf16.msra.mxu0 %v5463
      %5824 = vmatprep.subr.bf16.mxu0 0
      %5825 = vmatpush1.bf16.msra.mxu0 %v5464
      %5826 = vmatprep.subr.bf16.mxu0 0
      %5827 = vmatpush1.bf16.msra.mxu0 %v5465
      %5828 = vmatprep.subr.bf16.mxu0 0
      %5829 = vmatpush1.bf16.msra.mxu0 %v5466
      %5830 = vmatprep.subr.bf16.mxu0 0
      %5831 = vmatpush1.bf16.msra.mxu0 %v5467
      %5832 = vmatprep.subr.bf16.mxu0 0
      %5833 = vmatpush1.bf16.msra.mxu0 %v5468
      %5834 = vmatprep.subr.bf16.mxu0 0
      %5835 = vmatpush1.bf16.msra.mxu0 %v5469
      %5836 = vmatprep.subr.bf16.mxu0 0
      %5837 = vmatpush1.bf16.msra.mxu0 %v5470
      %5838 = vmatprep.subr.bf16.mxu0 0
      %5839 = vmatpush1.bf16.msra.mxu0 %v5471
      %5840 = vmatprep.subr.bf16.mxu0 0
      %5841 = vmatpush1.bf16.msra.mxu0 %v5472
      %5842 = vmatprep.mubr.bf16.mxu0 %v5101
      %5843 = vmatmul.mubr.bf16.gmra.mrb[0].mxu0 %v5100
      %v5844 = vpop.f32.mrb[0].mxu0
      %v5845 = vadd.f32 %v5620, %v5844
      %v5846 = vpop.f32.mrb[0].mxu0
      %v5847 = vpop.f32.mrb[0].mxu0
      %v5848 = vadd.f32 %v5623, %v5847
      %v5849 = vpop.f32.mrb[0].mxu0
      %5850 = vmatprep.mubr.bf16.mxu0 %v5106
      %5851 = vmatmul.mubr.bf16.gmra.mrb[0].mxu0 %v5105
      %v5852 = vpop.f32.mrb[0].mxu0
      %v5853 = vadd.f32 %v5628, %v5852
      %v5854 = vpop.f32.mrb[0].mxu0
      %v5855 = vpop.f32.mrb[0].mxu0
      %v5856 = vadd.f32 %v5631, %v5855
      %v5857 = vpop.f32.mrb[0].mxu0
      %5858 = vmatprep.mubr.bf16.mxu0 %v5111
      %5859 = vmatmul.mubr.bf16.gmra.mrb[0].mxu0 %v5110
      %v5860 = vpop.f32.mrb[0].mxu0
      %v5861 = vadd.f32 %v5636, %v5860
      %v5862 = vpop.f32.mrb[0].mxu0
      %v5863 = vpop.f32.mrb[0].mxu0
      %v5864 = vadd.f32 %v5639, %v5863
      %v5865 = vpop.f32.mrb[0].mxu0
      %5866 = vmatprep.mubr.bf16.mxu0 %v5116
      %5867 = vmatmul.mubr.bf16.gmra.mrb[0].mxu0 %v5115
      %v5868 = vpop.f32.mrb[0].mxu0
      %v5869 = vadd.f32 %v5644, %v5868
      %v5870 = vpop.f32.mrb[0].mxu0
      %v5871 = vpop.f32.mrb[0].mxu0
      %v5872 = vadd.f32 %v5647, %v5871
      %v5873 = vpop.f32.mrb[0].mxu0
      %5874 = vmatprep.mubr.bf16.mxu0 %v5121
      %5875 = vmatmul.mubr.bf16.gmra.mrb[0].mxu0 %v5120
      %v5876 = vpop.f32.mrb[0].mxu0
      %v5877 = vadd.f32 %v5652, %v5876
      %v5878 = vpop.f32.mrb[0].mxu0
      %v5879 = vpop.f32.mrb[0].mxu0
      %v5880 = vadd.f32 %v5655, %v5879
      %v5881 = vpop.f32.mrb[0].mxu0
      %5882 = vmatprep.mubr.bf16.mxu0 %v5126
      %5883 = vmatmul.mubr.bf16.gmra.mrb[0].mxu0 %v5125
      %v5884 = vpop.f32.mrb[0].mxu0
      %v5885 = vadd.f32 %v5660, %v5884
      %v5886 = vpop.f32.mrb[0].mxu0
      %v5887 = vpop.f32.mrb[0].mxu0
      %v5888 = vadd.f32 %v5663, %v5887
      %v5889 = vpop.f32.mrb[0].mxu0
      %5890 = vmatprep.mubr.bf16.mxu0 %v5131
      %5891 = vmatmul.mubr.bf16.gmra.mrb[0].mxu0 %v5130
      %v5892 = vpop.f32.mrb[0].mxu0
      %v5893 = vadd.f32 %v5668, %v5892
      %v5894 = vpop.f32.mrb[0].mxu0
      %v5895 = vpop.f32.mrb[0].mxu0
      %v5896 = vadd.f32 %v5671, %v5895
      %v5897 = vpop.f32.mrb[0].mxu0
      %5898 = vmatprep.mubr.bf16.mxu0 %v5136
      %5899 = vmatmul.mubr.bf16.gmra.mrb[0].mxu0 %v5135
      %v5900 = vpop.f32.mrb[0].mxu0
      %v5901 = vadd.f32 %v5676, %v5900
      %v5902 = vpop.f32.mrb[0].mxu0
      %v5903 = vpop.f32.mrb[0].mxu0
      %v5904 = vadd.f32 %v5679, %v5903
      %v5905 = vpop.f32.mrb[0].mxu0
      %5906 = vmatprep.mubr.bf16.mxu0 %v5141
      %5907 = vmatmul.mubr.bf16.gmra.mrb[0].mxu0 %v5140
      %v5908 = vpop.f32.mrb[0].mxu0
      %v5909 = vadd.f32 %v5684, %v5908
      %v5910 = vpop.f32.mrb[0].mxu0
      %v5911 = vpop.f32.mrb[0].mxu0
      %v5912 = vadd.f32 %v5687, %v5911
      %v5913 = vpop.f32.mrb[0].mxu0
      %5914 = vmatprep.mubr.bf16.mxu0 %v5146
      %5915 = vmatmul.mubr.bf16.gmra.mrb[0].mxu0 %v5145
      %v5916 = vpop.f32.mrb[0].mxu0
      %v5917 = vadd.f32 %v5692, %v5916
      %v5918 = vpop.f32.mrb[0].mxu0
      %v5919 = vpop.f32.mrb[0].mxu0
      %v5920 = vadd.f32 %v5695, %v5919
      %v5921 = vpop.f32.mrb[0].mxu0
      %5922 = vmatprep.mubr.bf16.mxu0 %v5151
      %5923 = vmatmul.mubr.bf16.gmra.mrb[0].mxu0 %v5150
      %v5924 = vpop.f32.mrb[0].mxu0
      %v5925 = vadd.f32 %v5700, %v5924
      %v5926 = vpop.f32.mrb[0].mxu0
      %v5927 = vpop.f32.mrb[0].mxu0
      %v5928 = vadd.f32 %v5703, %v5927
      %v5929 = vpop.f32.mrb[0].mxu0
      %5930 = vmatprep.mubr.bf16.mxu0 %v5156
      %5931 = vmatmul.mubr.bf16.gmra.mrb[0].mxu0 %v5155
      %v5932 = vpop.f32.mrb[0].mxu0
      %v5933 = vadd.f32 %v5708, %v5932
      %v5934 = vpop.f32.mrb[0].mxu0
      %v5935 = vpop.f32.mrb[0].mxu0
      %v5936 = vadd.f32 %v5711, %v5935
      %v5937 = vpop.f32.mrb[0].mxu0
      %5938 = vmatprep.mubr.bf16.mxu0 %v5161
      %5939 = vmatmul.mubr.bf16.gmra.mrb[0].mxu0 %v5160
      %v5940 = vpop.f32.mrb[0].mxu0
      %v5941 = vadd.f32 %v5716, %v5940
      %v5942 = vpop.f32.mrb[0].mxu0
      %v5943 = vpop.f32.mrb[0].mxu0
      %v5944 = vadd.f32 %v5719, %v5943
      %v5945 = vpop.f32.mrb[0].mxu0
      %5946 = vmatprep.mubr.bf16.mxu0 %v5166
      %5947 = vmatmul.mubr.bf16.gmra.mrb[0].mxu0 %v5165
      %v5948 = vpop.f32.mrb[0].mxu0
      %v5949 = vadd.f32 %v5724, %v5948
      %v5950 = vpop.f32.mrb[0].mxu0
      %v5951 = vpop.f32.mrb[0].mxu0
      %v5952 = vadd.f32 %v5727, %v5951
      %v5953 = vpop.f32.mrb[0].mxu0
      %5954 = vmatprep.mubr.bf16.mxu0 %v5171
      %5955 = vmatmul.mubr.bf16.gmra.mrb[0].mxu0 %v5170
      %v5956 = vpop.f32.mrb[0].mxu0
      %v5957 = vadd.f32 %v5732, %v5956
      %v5958 = vpop.f32.mrb[0].mxu0
      %v5959 = vpop.f32.mrb[0].mxu0
      %v5960 = vadd.f32 %v5735, %v5959
      %v5961 = vpop.f32.mrb[0].mxu0
      %5962 = vmatprep.mubr.bf16.mxu0 %v5176
      %5963 = vmatmul.mubr.bf16.gmra.mrb[0].mxu0 %v5175
      %v5964 = vpop.f32.mrb[0].mxu0
      %v5965 = vadd.f32 %v5740, %v5964
      %v5966 = vpop.f32.mrb[0].mxu0
      %v5967 = vpop.f32.mrb[0].mxu0
      %v5968 = vadd.f32 %v5743, %v5967
      %v5969 = vpop.f32.mrb[0].mxu0
      %5970 = vmatprep.mubr.bf16.mxu0 %v5181
      %5971 = vmatmul.mubr.bf16.gmra.mrb[0].mxu0 %v5180
      %v5972 = vpop.f32.mrb[0].mxu0
      %v5973 = vadd.f32 %v5748, %v5972
      %v5974 = vpop.f32.mrb[0].mxu0
      %v5975 = vpop.f32.mrb[0].mxu0
      %v5976 = vadd.f32 %v5751, %v5975
      %v5977 = vpop.f32.mrb[0].mxu0
      %5978 = vmatprep.mubr.bf16.mxu0 %v5186
      %5979 = vmatmul.mubr.bf16.gmra.mrb[0].mxu0 %v5185
      %v5980 = vpop.f32.mrb[0].mxu0
      %v5981 = vadd.f32 %v5756, %v5980
      %v5982 = vpop.f32.mrb[0].mxu0
      %v5983 = vpop.f32.mrb[0].mxu0
      %v5984 = vadd.f32 %v5759, %v5983
      %v5985 = vpop.f32.mrb[0].mxu0
      %5986 = vmatprep.mubr.bf16.mxu0 %v5191
      %5987 = vmatmul.mubr.bf16.gmra.mrb[0].mxu0 %v5190
      %v5988 = vpop.f32.mrb[0].mxu0
      %v5989 = vadd.f32 %v5764, %v5988
      %v5990 = vpop.f32.mrb[0].mxu0
      %v5991 = vpop.f32.mrb[0].mxu0
      %v5992 = vadd.f32 %v5767, %v5991
      %v5993 = vpop.f32.mrb[0].mxu0
      %5994 = vmatprep.mubr.bf16.mxu0 %v5196
      %5995 = vmatmul.mubr.bf16.gmra.mrb[0].mxu0 %v5195
      %v5996 = vpop.f32.mrb[0].mxu0
      %v5997 = vadd.f32 %v5772, %v5996
      %v5998 = vpop.f32.mrb[0].mxu0
      %v5999 = vpop.f32.mrb[0].mxu0
      %v6000 = vadd.f32 %v5775, %v5999
      %v6001 = vpop.f32.mrb[0].mxu0
      %6002 = vmatprep.mubr.bf16.mxu0 %v5201
      %6003 = vmatmul.mubr.bf16.gmra.mrb[0].mxu0 %v5200
      %v6004 = vpop.f32.mrb[0].mxu0
      %v6005 = vadd.f32 %v5780, %v6004
      %v6006 = vpop.f32.mrb[0].mxu0
      %v6007 = vpop.f32.mrb[0].mxu0
      %v6008 = vadd.f32 %v5783, %v6007
      %v6009 = vpop.f32.mrb[0].mxu0
      %6010 = vmatprep.mubr.bf16.mxu0 %v5206
      %6011 = vmatmul.mubr.bf16.gmra.mrb[0].mxu0 %v5205
      %v6012 = vpop.f32.mrb[0].mxu0
      %v6013 = vadd.f32 %v5788, %v6012
      %v6014 = vpop.f32.mrb[0].mxu0
      %v6015 = vpop.f32.mrb[0].mxu0
      %v6016 = vadd.f32 %v5791, %v6015
      %v6017 = vpop.f32.mrb[0].mxu0
      %6018 = vmatprep.mubr.bf16.mxu0 %v5211
      %6019 = vmatmul.mubr.bf16.gmra.mrb[0].mxu0 %v5210
      %v6020 = vpop.f32.mrb[0].mxu0
      %v6021 = vadd.f32 %v5796, %v6020
      %v6022 = vpop.f32.mrb[0].mxu0
      %v6023 = vpop.f32.mrb[0].mxu0
      %v6024 = vadd.f32 %v5799, %v6023
      %v6025 = vpop.f32.mrb[0].mxu0
      %6026 = vmatprep.mubr.bf16.mxu0 %v5216
      %6027 = vmatmul.mubr.bf16.gmra.mrb[0].mxu0 %v5215
      %v6028 = vpop.f32.mrb[0].mxu0
      %v6029 = vadd.f32 %v5804, %v6028
      %v6030 = vpop.f32.mrb[0].mxu0
      %v6031 = vpop.f32.mrb[0].mxu0
      %v6032 = vadd.f32 %v5807, %v6031
      %v6033 = vpop.f32.mrb[0].mxu0
      %6034 = vdwg.mxu0
      %6035 = vmatprep.subr.bf16.mxu0 0
      %6036 = vmatpush1.bf16.msra.mxu0 %v5473
      %6037 = vmatprep.subr.bf16.mxu0 0
      %6038 = vmatpush1.bf16.msra.mxu0 %v5474
      %6039 = vmatprep.subr.bf16.mxu0 0
      %6040 = vmatpush1.bf16.msra.mxu0 %v5475
      %6041 = vmatprep.subr.bf16.mxu0 0
      %6042 = vmatpush1.bf16.msra.mxu0 %v5476
      %6043 = vmatprep.subr.bf16.mxu0 0
      %6044 = vmatpush1.bf16.msra.mxu0 0
      %6045 = vmatprep.subr.bf16.mxu0 0
      %6046 = vmatpush1.bf16.msra.mxu0 0
      %6047 = vmatprep.subr.bf16.mxu0 0
      %6048 = vmatpush1.bf16.msra.mxu0 0
      %6049 = vmatprep.subr.bf16.mxu0 0
      %6050 = vmatpush1.bf16.msra.mxu0 0
      %6051 = vmatprep.subr.bf16.mxu0 0
      %6052 = vmatpush1.bf16.msra.mxu0 0
      %6053 = vmatprep.subr.bf16.mxu0 0
      %6054 = vmatpush1.bf16.msra.mxu0 0
      %6055 = vmatprep.subr.bf16.mxu0 0
      %6056 = vmatpush1.bf16.msra.mxu0 0
      %6057 = vmatprep.subr.bf16.mxu0 0
      %6058 = vmatpush1.bf16.msra.mxu0 0
      %6059 = vmatprep.subr.bf16.mxu0 0
      %6060 = vmatpush1.bf16.msra.mxu0 0
      %6061 = vmatprep.subr.bf16.mxu0 0
      %6062 = vmatpush1.bf16.msra.mxu0 0
      %6063 = vmatprep.subr.bf16.mxu0 0
      %6064 = vmatpush1.bf16.msra.mxu0 0
      %6065 = vmatprep.subr.bf16.mxu0 0
      %6066 = vmatpush1.bf16.msra.mxu0 0
      %6067 = vmatprep.mubr.bf16.mxu0 0
      %6068 = vmatmul.mubr.bf16.gmra.mrb[0].mxu0 %v5514
      %v6069 = vpop.f32.mrb[0].mxu0
      %v6070 = vadd.f32 %v5845, %v6069
      %v6071 = vpop.f32.mrb[0].mxu0
      %v6072 = vpop.f32.mrb[0].mxu0
      %v6073 = vadd.f32 %v5848, %v6072
      %v6074 = vpop.f32.mrb[0].mxu0
      %6075 = vmatprep.mubr.bf16.mxu0 0
      %6076 = vmatmul.mubr.bf16.gmra.mrb[0].mxu0 %v5517
      %v6077 = vpop.f32.mrb[0].mxu0
      %v6078 = vadd.f32 %v5853, %v6077
      %v6079 = vpop.f32.mrb[0].mxu0
      %v6080 = vpop.f32.mrb[0].mxu0
      %v6081 = vadd.f32 %v5856, %v6080
      %v6082 = vpop.f32.mrb[0].mxu0
      %6083 = vmatprep.mubr.bf16.mxu0 0
      %6084 = vmatmul.mubr.bf16.gmra.mrb[0].mxu0 %v5520
      %v6085 = vpop.f32.mrb[0].mxu0
      %v6086 = vadd.f32 %v5861, %v6085
      %v6087 = vpop.f32.mrb[0].mxu0
      %v6088 = vpop.f32.mrb[0].mxu0
      %v6089 = vadd.f32 %v5864, %v6088
      %v6090 = vpop.f32.mrb[0].mxu0
      %6091 = vmatprep.mubr.bf16.mxu0 0
      %6092 = vmatmul.mubr.bf16.gmra.mrb[0].mxu0 %v5523
      %v6093 = vpop.f32.mrb[0].mxu0
      %v6094 = vadd.f32 %v5869, %v6093
      %v6095 = vpop.f32.mrb[0].mxu0
      %v6096 = vpop.f32.mrb[0].mxu0
      %v6097 = vadd.f32 %v5872, %v6096
      %v6098 = vpop.f32.mrb[0].mxu0
      %6099 = vmatprep.mubr.bf16.mxu0 0
      %6100 = vmatmul.mubr.bf16.gmra.mrb[0].mxu0 %v5526
      %v6101 = vpop.f32.mrb[0].mxu0
      %v6102 = vadd.f32 %v5877, %v6101
      %v6103 = vpop.f32.mrb[0].mxu0
      %v6104 = vpop.f32.mrb[0].mxu0
      %v6105 = vadd.f32 %v5880, %v6104
      %v6106 = vpop.f32.mrb[0].mxu0
      %6107 = vmatprep.mubr.bf16.mxu0 0
      %6108 = vmatmul.mubr.bf16.gmra.mrb[0].mxu0 %v5529
      %v6109 = vpop.f32.mrb[0].mxu0
      %v6110 = vadd.f32 %v5885, %v6109
      %v6111 = vpop.f32.mrb[0].mxu0
      %v6112 = vpop.f32.mrb[0].mxu0
      %v6113 = vadd.f32 %v5888, %v6112
      %v6114 = vpop.f32.mrb[0].mxu0
      %6115 = vmatprep.mubr.bf16.mxu0 0
      %6116 = vmatmul.mubr.bf16.gmra.mrb[0].mxu0 %v5532
      %v6117 = vpop.f32.mrb[0].mxu0
      %v6118 = vadd.f32 %v5893, %v6117
      %v6119 = vpop.f32.mrb[0].mxu0
      %v6120 = vpop.f32.mrb[0].mxu0
      %v6121 = vadd.f32 %v5896, %v6120
      %v6122 = vpop.f32.mrb[0].mxu0
      %6123 = vmatprep.mubr.bf16.mxu0 0
      %6124 = vmatmul.mubr.bf16.gmra.mrb[0].mxu0 %v5535
      %v6125 = vpop.f32.mrb[0].mxu0
      %v6126 = vadd.f32 %v5901, %v6125
      %v6127 = vpop.f32.mrb[0].mxu0
      %v6128 = vpop.f32.mrb[0].mxu0
      %v6129 = vadd.f32 %v5904, %v6128
      %v6130 = vpop.f32.mrb[0].mxu0
      %6131 = vmatprep.mubr.bf16.mxu0 0
      %6132 = vmatmul.mubr.bf16.gmra.mrb[0].mxu0 %v5538
      %v6133 = vpop.f32.mrb[0].mxu0
      %v6134 = vadd.f32 %v5909, %v6133
      %v6135 = vpop.f32.mrb[0].mxu0
      %v6136 = vpop.f32.mrb[0].mxu0
      %v6137 = vadd.f32 %v5912, %v6136
      %v6138 = vpop.f32.mrb[0].mxu0
      %6139 = vmatprep.mubr.bf16.mxu0 0
      %6140 = vmatmul.mubr.bf16.gmra.mrb[0].mxu0 %v5541
      %v6141 = vpop.f32.mrb[0].mxu0
      %v6142 = vadd.f32 %v5917, %v6141
      %v6143 = vpop.f32.mrb[0].mxu0
      %v6144 = vpop.f32.mrb[0].mxu0
      %v6145 = vadd.f32 %v5920, %v6144
      %v6146 = vpop.f32.mrb[0].mxu0
      %6147 = vmatprep.mubr.bf16.mxu0 0
      %6148 = vmatmul.mubr.bf16.gmra.mrb[0].mxu0 %v5544
      %v6149 = vpop.f32.mrb[0].mxu0
      %v6150 = vadd.f32 %v5925, %v6149
      %v6151 = vpop.f32.mrb[0].mxu0
      %v6152 = vpop.f32.mrb[0].mxu0
      %v6153 = vadd.f32 %v5928, %v6152
      %v6154 = vpop.f32.mrb[0].mxu0
      %6155 = vmatprep.mubr.bf16.mxu0 0
      %6156 = vmatmul.mubr.bf16.gmra.mrb[0].mxu0 %v5547
      %v6157 = vpop.f32.mrb[0].mxu0
      %v6158 = vadd.f32 %v5933, %v6157
      %v6159 = vpop.f32.mrb[0].mxu0
      %v6160 = vpop.f32.mrb[0].mxu0
      %v6161 = vadd.f32 %v5936, %v6160
      %v6162 = vpop.f32.mrb[0].mxu0
      %6163 = vmatprep.mubr.bf16.mxu0 0
      %6164 = vmatmul.mubr.bf16.gmra.mrb[0].mxu0 %v5550
      %v6165 = vpop.f32.mrb[0].mxu0
      %v6166 = vadd.f32 %v5941, %v6165
      %v6167 = vpop.f32.mrb[0].mxu0
      %v6168 = vpop.f32.mrb[0].mxu0
      %v6169 = vadd.f32 %v5944, %v6168
      %v6170 = vpop.f32.mrb[0].mxu0
      %6171 = vmatprep.mubr.bf16.mxu0 0
      %6172 = vmatmul.mubr.bf16.gmra.mrb[0].mxu0 %v5553
      %v6173 = vpop.f32.mrb[0].mxu0
      %v6174 = vadd.f32 %v5949, %v6173
      %v6175 = vpop.f32.mrb[0].mxu0
      %v6176 = vpop.f32.mrb[0].mxu0
      %v6177 = vadd.f32 %v5952, %v6176
      %v6178 = vpop.f32.mrb[0].mxu0
      %6179 = vmatprep.mubr.bf16.mxu0 0
      %6180 = vmatmul.mubr.bf16.gmra.mrb[0].mxu0 %v5556
      %v6181 = vpop.f32.mrb[0].mxu0
      %v6182 = vadd.f32 %v5957, %v6181
      %v6183 = vpop.f32.mrb[0].mxu0
      %v6184 = vpop.f32.mrb[0].mxu0
      %v6185 = vadd.f32 %v5960, %v6184
      %v6186 = vpop.f32.mrb[0].mxu0
      %6187 = vmatprep.mubr.bf16.mxu0 0
      %6188 = vmatmul.mubr.bf16.gmra.mrb[0].mxu0 %v5559
      %v6189 = vpop.f32.mrb[0].mxu0
      %v6190 = vadd.f32 %v5965, %v6189
      %v6191 = vpop.f32.mrb[0].mxu0
      %v6192 = vpop.f32.mrb[0].mxu0
      %v6193 = vadd.f32 %v5968, %v6192
      %v6194 = vpop.f32.mrb[0].mxu0
      %6195 = vmatprep.mubr.bf16.mxu0 0
      %6196 = vmatmul.mubr.bf16.gmra.mrb[0].mxu0 %v5562
      %v6197 = vpop.f32.mrb[0].mxu0
      %v6198 = vadd.f32 %v5973, %v6197
      %v6199 = vpop.f32.mrb[0].mxu0
      %v6200 = vpop.f32.mrb[0].mxu0
      %v6201 = vadd.f32 %v5976, %v6200
      %v6202 = vpop.f32.mrb[0].mxu0
      %6203 = vmatprep.mubr.bf16.mxu0 0
      %6204 = vmatmul.mubr.bf16.gmra.mrb[0].mxu0 %v5565
      %v6205 = vpop.f32.mrb[0].mxu0
      %v6206 = vadd.f32 %v5981, %v6205
      %v6207 = vpop.f32.mrb[0].mxu0
      %v6208 = vpop.f32.mrb[0].mxu0
      %v6209 = vadd.f32 %v5984, %v6208
      %v6210 = vpop.f32.mrb[0].mxu0
      %6211 = vmatprep.mubr.bf16.mxu0 0
      %6212 = vmatmul.mubr.bf16.gmra.mrb[0].mxu0 %v5568
      %v6213 = vpop.f32.mrb[0].mxu0
      %v6214 = vadd.f32 %v5989, %v6213
      %v6215 = vpop.f32.mrb[0].mxu0
      %v6216 = vpop.f32.mrb[0].mxu0
      %v6217 = vadd.f32 %v5992, %v6216
      %v6218 = vpop.f32.mrb[0].mxu0
      %6219 = vmatprep.mubr.bf16.mxu0 0
      %6220 = vmatmul.mubr.bf16.gmra.mrb[0].mxu0 %v5571
      %v6221 = vpop.f32.mrb[0].mxu0
      %v6222 = vadd.f32 %v5997, %v6221
      %v6223 = vpop.f32.mrb[0].mxu0
      %v6224 = vpop.f32.mrb[0].mxu0
      %v6225 = vadd.f32 %v6000, %v6224
      %v6226 = vpop.f32.mrb[0].mxu0
      %6227 = vmatprep.mubr.bf16.mxu0 0
      %6228 = vmatmul.mubr.bf16.gmra.mrb[0].mxu0 %v5574
      %v6229 = vpop.f32.mrb[0].mxu0
      %v6230 = vadd.f32 %v6005, %v6229
      %v6231 = vpop.f32.mrb[0].mxu0
      %v6232 = vpop.f32.mrb[0].mxu0
      %v6233 = vadd.f32 %v6008, %v6232
      %v6234 = vpop.f32.mrb[0].mxu0
      %6235 = vmatprep.mubr.bf16.mxu0 0
      %6236 = vmatmul.mubr.bf16.gmra.mrb[0].mxu0 %v5577
      %v6237 = vpop.f32.mrb[0].mxu0
      %v6238 = vadd.f32 %v6013, %v6237
      %v6239 = vpop.f32.mrb[0].mxu0
      %v6240 = vpop.f32.mrb[0].mxu0
      %v6241 = vadd.f32 %v6016, %v6240
      %v6242 = vpop.f32.mrb[0].mxu0
      %6243 = vmatprep.mubr.bf16.mxu0 0
      %6244 = vmatmul.mubr.bf16.gmra.mrb[0].mxu0 %v5580
      %v6245 = vpop.f32.mrb[0].mxu0
      %v6246 = vadd.f32 %v6021, %v6245
      %v6247 = vpop.f32.mrb[0].mxu0
      %v6248 = vpop.f32.mrb[0].mxu0
      %v6249 = vadd.f32 %v6024, %v6248
      %v6250 = vpop.f32.mrb[0].mxu0
      %6251 = vmatprep.mubr.bf16.mxu0 0
      %6252 = vmatmul.mubr.bf16.gmra.mrb[0].mxu0 %v5583
      %v6253 = vpop.f32.mrb[0].mxu0
      %v6254 = vadd.f32 %v6029, %v6253
      %v6255 = vpop.f32.mrb[0].mxu0
      %v6256 = vpop.f32.mrb[0].mxu0
      %v6257 = vadd.f32 %v6032, %v6256
      %v6258 = vpop.f32.mrb[0].mxu0
      %6259 = vdwg.mxu0
      %v6260 = vmax.f32 %v6070, 0.0
      %v6261 = vmax.f32 %v6073, 0.0
      %v6262 = vmax.f32 %v6078, 0.0
      %v6263 = vmax.f32 %v6081, 0.0
      %v6264 = vmax.f32 %v6086, 0.0
      %v6265 = vmax.f32 %v6089, 0.0
      %v6266 = vmax.f32 %v6094, 0.0
      %v6267 = vmax.f32 %v6097, 0.0
      %v6268 = vmax.f32 %v6102, 0.0
      %v6269 = vmax.f32 %v6105, 0.0
      %v6270 = vmax.f32 %v6110, 0.0
      %v6271 = vmax.f32 %v6113, 0.0
      %v6272 = vmax.f32 %v6118, 0.0
      %v6273 = vmax.f32 %v6121, 0.0
      %v6274 = vmax.f32 %v6126, 0.0
      %v6275 = vmax.f32 %v6129, 0.0
      %v6276 = vmax.f32 %v6134, 0.0
      %v6277 = vmax.f32 %v6137, 0.0
      %v6278 = vmax.f32 %v6142, 0.0
      %v6279 = vmax.f32 %v6145, 0.0
      %v6280 = vmax.f32 %v6150, 0.0
      %v6281 = vmax.f32 %v6153, 0.0
      %v6282 = vmax.f32 %v6158, 0.0
      %v6283 = vmax.f32 %v6161, 0.0
      %v6284 = vmax.f32 %v6166, 0.0
      %v6285 = vmax.f32 %v6169, 0.0
      %v6286 = vmax.f32 %v6174, 0.0
      %v6287 = vmax.f32 %v6177, 0.0
      %v6288 = vmax.f32 %v6182, 0.0
      %v6289 = vmax.f32 %v6185, 0.0
      %v6290 = vmax.f32 %v6190, 0.0
      %v6291 = vmax.f32 %v6193, 0.0
      %v6292 = vmax.f32 %v6198, 0.0
      %v6293 = vmax.f32 %v6201, 0.0
      %v6294 = vmax.f32 %v6206, 0.0
      %v6295 = vmax.f32 %v6209, 0.0
      %v6296 = vmax.f32 %v6214, 0.0
      %v6297 = vmax.f32 %v6217, 0.0
      %v6298 = vmax.f32 %v6222, 0.0
      %v6299 = vmax.f32 %v6225, 0.0
      %v6300 = vmax.f32 %v6230, 0.0
      %v6301 = vmax.f32 %v6233, 0.0
      %v6302 = vmax.f32 %v6238, 0.0
      %v6303 = vmax.f32 %v6241, 0.0
      %v6304 = vmax.f32 %v6246, 0.0
      %v6305 = vmax.f32 %v6249, 0.0
      %v6306 = vmax.f32 %v6254, 0.0
      %v6307 = vmax.f32 %v6257, 0.0
      %v6308 = vmul.f32 %v6260, %v962
      %v6309 = vmul.f32 %v6261, %v967
      %v6310 = vmul.f32 %v6262, %v972
      %v6311 = vmul.f32 %v6263, %v977
      %v6312 = vmul.f32 %v6264, %v982
      %v6313 = vmul.f32 %v6265, %v987
      %v6314 = vmul.f32 %v6266, %v992
      %v6315 = vmul.f32 %v6267, %v997
      %v6316 = vmul.f32 %v6268, %v1002
      %v6317 = vmul.f32 %v6269, %v1007
      %v6318 = vmul.f32 %v6270, %v1012
      %v6319 = vmul.f32 %v6271, %v1017
      %v6320 = vmul.f32 %v6272, %v1022
      %v6321 = vmul.f32 %v6273, %v1027
      %v6322 = vmul.f32 %v6274, %v1032
      %v6323 = vmul.f32 %v6275, %v1037
      %v6324 = vmul.f32 %v6276, %v1042
      %v6325 = vmul.f32 %v6277, %v1047
      %v6326 = vmul.f32 %v6278, %v1052
      %v6327 = vmul.f32 %v6279, %v1057
      %v6328 = vmul.f32 %v6280, %v1062
      %v6329 = vmul.f32 %v6281, %v1067
      %v6330 = vmul.f32 %v6282, %v1072
      %v6331 = vmul.f32 %v6283, %v1077
      %v6332 = vmul.f32 %v6284, %v1082
      %v6333 = vmul.f32 %v6285, %v1087
      %v6334 = vmul.f32 %v6286, %v1092
      %v6335 = vmul.f32 %v6287, %v1097
      %v6336 = vmul.f32 %v6288, %v1102
      %v6337 = vmul.f32 %v6289, %v1107
      %v6338 = vmul.f32 %v6290, %v1112
      %v6339 = vmul.f32 %v6291, %v1117
      %v6340 = vmul.f32 %v6292, %v1122
      %v6341 = vmul.f32 %v6293, %v1127
      %v6342 = vmul.f32 %v6294, %v1132
      %v6343 = vmul.f32 %v6295, %v1137
      %v6344 = vmul.f32 %v6296, %v1142
      %v6345 = vmul.f32 %v6297, %v1147
      %v6346 = vmul.f32 %v6298, %v1152
      %v6347 = vmul.f32 %v6299, %v1157
      %v6348 = vmul.f32 %v6300, %v1162
      %v6349 = vmul.f32 %v6301, %v1167
      %v6350 = vmul.f32 %v6302, %v1172
      %v6351 = vmul.f32 %v6303, %v1177
      %v6352 = vmul.f32 %v6304, %v1182
      %v6353 = vmul.f32 %v6305, %v1187
      %v6354 = vmul.f32 %v6306, %v1192
      %v6355 = vmul.f32 %v6307, %v1197
      %vm6356 = vcmask 261120
      %6357 = vst.msk [vmem:[#allocation2 + $0x18] sm:$0xff] %vm6356, %v6308
      %6358 = vst.msk [vmem:[#allocation2 + $0x20] sm:$0xff] %vm6356, %v6309
      %6359 = vst.msk [vmem:[#allocation2 + $0x28] sm:$0xff] %vm6356, %v6310
      %6360 = vst.msk [vmem:[#allocation2 + $0x30] sm:$0xff] %vm6356, %v6311
      %6361 = vst.msk [vmem:[#allocation2 + $0x38] sm:$0xff] %vm6356, %v6312
      %6362 = vst.msk [vmem:[#allocation2 + $0x40] sm:$0xff] %vm6356, %v6313
      %6363 = vst.msk [vmem:[#allocation2 + $0x48] sm:$0xff] %vm6356, %v6314
      %6364 = vst.msk [vmem:[#allocation2 + $0x50] sm:$0xff] %vm6356, %v6315
      %6365 = vst.msk [vmem:[#allocation2 + $0x58] sm:$0xff] %vm6356, %v6316
      %6366 = vst.msk [vmem:[#allocation2 + $0x60] sm:$0xff] %vm6356, %v6317
      %6367 = vst.msk [vmem:[#allocation2 + $0x68] sm:$0xff] %vm6356, %v6318
      %6368 = vst.msk [vmem:[#allocation2 + $0x70] sm:$0xff] %vm6356, %v6319
      %6369 = vst.msk [vmem:[#allocation2 + $0x78] sm:$0xff] %vm6356, %v6320
      %6370 = vst.msk [vmem:[#allocation2 + $0x80] sm:$0xff] %vm6356, %v6321
      %6371 = vst.msk [vmem:[#allocation2 + $0x88] sm:$0xff] %vm6356, %v6322
      %6372 = vst.msk [vmem:[#allocation2 + $0x90] sm:$0xff] %vm6356, %v6323
      %6373 = vst.msk [vmem:[#allocation2 + $0x98] sm:$0xff] %vm6356, %v6324
      %6374 = vst.msk [vmem:[#allocation2 + $0xa0] sm:$0xff] %vm6356, %v6325
      %6375 = vst.msk [vmem:[#allocation2 + $0xa8] sm:$0xff] %vm6356, %v6326
      %6376 = vst.msk [vmem:[#allocation2 + $0xb0] sm:$0xff] %vm6356, %v6327
      %6377 = vst.msk [vmem:[#allocation2 + $0xb8] sm:$0xff] %vm6356, %v6328
      %6378 = vst.msk [vmem:[#allocation2 + $0xc0] sm:$0xff] %vm6356, %v6329
      %6379 = vst.msk [vmem:[#allocation2 + $0xc8] sm:$0xff] %vm6356, %v6330
      %6380 = vst.msk [vmem:[#allocation2 + $0xd0] sm:$0xff] %vm6356, %v6331
      %6381 = vst.msk [vmem:[#allocation2 + $0xd8] sm:$0xff] %vm6356, %v6332
      %6382 = vst.msk [vmem:[#allocation2 + $0xe0] sm:$0xff] %vm6356, %v6333
      %6383 = vst.msk [vmem:[#allocation2 + $0xe8] sm:$0xff] %vm6356, %v6334
      %6384 = vst.msk [vmem:[#allocation2 + $0xf0] sm:$0xff] %vm6356, %v6335
      %6385 = vst.msk [vmem:[#allocation2 + $0xf8] sm:$0xff] %vm6356, %v6336
      %6386 = vst.msk [vmem:[#allocation2 + $0x100] sm:$0xff] %vm6356, %v6337
      %6387 = vst.msk [vmem:[#allocation2 + $0x108] sm:$0xff] %vm6356, %v6338
      %6388 = vst.msk [vmem:[#allocation2 + $0x110] sm:$0xff] %vm6356, %v6339
      %6389 = vst.msk [vmem:[#allocation2 + $0x118] sm:$0xff] %vm6356, %v6340
      %6390 = vst.msk [vmem:[#allocation2 + $0x120] sm:$0xff] %vm6356, %v6341
      %6391 = vst.msk [vmem:[#allocation2 + $0x128] sm:$0xff] %vm6356, %v6342
      %6392 = vst.msk [vmem:[#allocation2 + $0x130] sm:$0xff] %vm6356, %v6343
      %6393 = vst.msk [vmem:[#allocation2 + $0x138] sm:$0xff] %vm6356, %v6344
      %6394 = vst.msk [vmem:[#allocation2 + $0x140] sm:$0xff] %vm6356, %v6345
      %6395 = vst.msk [vmem:[#allocation2 + $0x148] sm:$0xff] %vm6356, %v6346
      %6396 = vst.msk [vmem:[#allocation2 + $0x150] sm:$0xff] %vm6356, %v6347
      %6397 = vst.msk [vmem:[#allocation2 + $0x158] sm:$0xff] %vm6356, %v6348
      %6398 = vst.msk [vmem:[#allocation2 + $0x160] sm:$0xff] %vm6356, %v6349
      %6399 = vst.msk [vmem:[#allocation2 + $0x168] sm:$0xff] %vm6356, %v6350
      %6400 = vst.msk [vmem:[#allocation2 + $0x170] sm:$0xff] %vm6356, %v6351
      %6401 = vst.msk [vmem:[#allocation2 + $0x178] sm:$0xff] %vm6356, %v6352
      %6402 = vst.msk [vmem:[#allocation2 + $0x180] sm:$0xff] %vm6356, %v6353
      %6403 = vst.msk [vmem:[#allocation2 + $0x188] sm:$0xff] %vm6356, %v6354
      %6404 = vst.msk [vmem:[#allocation2 + $0x190] sm:$0xff] %vm6356, %v6355
      %v6405 = vld [vmem:[#allocation2 + $0x5] sm:$0xff]
      %v6406 = vld [vmem:[#allocation2 + $0xd] sm:$0xff]
      %v6407 = vld [vmem:[#allocation2 + $0x15] sm:$0xff]
      %v6408 = vld [vmem:[#allocation2 + $0x1d] sm:$0xff]
      %v6409 = vld [vmem:[#allocation2 + $0x25] sm:$0xff]
      %v6410 = vld [vmem:[#allocation2 + $0x2d] sm:$0xff]
      %v6411 = vld [vmem:[#allocation2 + $0x35] sm:$0xff]
      %v6412 = vld [vmem:[#allocation2 + $0x3d] sm:$0xff]
      %v6413 = vld [vmem:[#allocation2 + $0x45] sm:$0xff]
      %v6414 = vld [vmem:[#allocation2 + $0x4d] sm:$0xff]
      %v6415 = vld [vmem:[#allocation2 + $0x55] sm:$0xff]
      %v6416 = vld [vmem:[#allocation2 + $0x5d] sm:$0xff]
      %v6417 = vld [vmem:[#allocation2 + $0x65] sm:$0xff]
      %v6418 = vld [vmem:[#allocation2 + $0x6d] sm:$0xff]
      %v6419 = vld [vmem:[#allocation2 + $0x75] sm:$0xff]
      %v6420 = vld [vmem:[#allocation2 + $0x7d] sm:$0xff]
      %v6421 = vld [vmem:[#allocation2 + $0x85] sm:$0xff]
      %v6422 = vld [vmem:[#allocation2 + $0x8d] sm:$0xff]
      %v6423 = vld [vmem:[#allocation2 + $0x95] sm:$0xff]
      %v6424 = vld [vmem:[#allocation2 + $0x9d] sm:$0xff]
      %v6425 = vld [vmem:[#allocation2 + $0xa5] sm:$0xff]
      %v6426 = vld [vmem:[#allocation2 + $0xad] sm:$0xff]
      %v6427 = vld [vmem:[#allocation2 + $0xb5] sm:$0xff]
      %v6428 = vld [vmem:[#allocation2 + $0xbd] sm:$0xff]
      %v6429 = vld [vmem:[#allocation2 + $0xc5] sm:$0xff]
      %v6430 = vld [vmem:[#allocation2 + $0xcd] sm:$0xff]
      %v6431 = vld [vmem:[#allocation2 + $0xd5] sm:$0xff]
      %v6432 = vld [vmem:[#allocation2 + $0xdd] sm:$0xff]
      %v6433 = vld [vmem:[#allocation2 + $0xe5] sm:$0xff]
      %v6434 = vld [vmem:[#allocation2 + $0xed] sm:$0xff]
      %v6435 = vld [vmem:[#allocation2 + $0xf5] sm:$0xff]
      %v6436 = vld [vmem:[#allocation2 + $0xfd] sm:$0xff]
      %v6437 = vld [vmem:[#allocation2 + $0x105] sm:$0xff]
      %v6438 = vld [vmem:[#allocation2 + $0x10d] sm:$0xff]
      %v6439 = vld [vmem:[#allocation2 + $0x115] sm:$0xff]
      %v6440 = vld [vmem:[#allocation2 + $0x11d] sm:$0xff]
      %v6441 = vld [vmem:[#allocation2 + $0x125] sm:$0xff]
      %v6442 = vld [vmem:[#allocation2 + $0x12d] sm:$0xff]
      %v6443 = vld [vmem:[#allocation2 + $0x135] sm:$0xff]
      %v6444 = vld [vmem:[#allocation2 + $0x13d] sm:$0xff]
      %v6445 = vld [vmem:[#allocation2 + $0x145] sm:$0xff]
      %v6446 = vld [vmem:[#allocation2 + $0x14d] sm:$0xff]
      %v6447 = vld [vmem:[#allocation2 + $0x155] sm:$0xff]
      %v6448 = vld [vmem:[#allocation2 + $0x15d] sm:$0xff]
      %v6449 = vld [vmem:[#allocation2 + $0x165] sm:$0xff]
      %v6450 = vld [vmem:[#allocation2 + $0x16d] sm:$0xff]
      %v6451 = vld [vmem:[#allocation2 + $0x175] sm:$0xff]
      %v6452 = vld [vmem:[#allocation2 + $0x17d] sm:$0xff]
      %v6453 = vpack.c.bf16 %v6406, %v6405
      %v6454 = vpack.c.bf16 %v6408, %v6407
      %v6455 = vpack.c.bf16 %v6410, %v6409
      %v6456 = vpack.c.bf16 %v6412, %v6411
      %v6457 = vpack.c.bf16 %v6414, %v6413
      %v6458 = vpack.c.bf16 %v6416, %v6415
      %v6459 = vpack.c.bf16 %v6418, %v6417
      %v6460 = vpack.c.bf16 %v6420, %v6419
      %v6461 = vpack.c.bf16 %v6422, %v6421
      %v6462 = vpack.c.bf16 %v6424, %v6423
      %v6463 = vpack.c.bf16 %v6426, %v6425
      %v6464 = vpack.c.bf16 %v6428, %v6427
      %v6465 = vpack.c.bf16 %v6430, %v6429
      %v6466 = vpack.c.bf16 %v6432, %v6431
      %v6467 = vpack.c.bf16 %v6434, %v6433
      %v6468 = vpack.c.bf16 %v6436, %v6435
      %v6469 = vpack.c.bf16 %v6438, %v6437
      %v6470 = vpack.c.bf16 %v6440, %v6439
      %v6471 = vpack.c.bf16 %v6442, %v6441
      %v6472 = vpack.c.bf16 %v6444, %v6443
      %v6473 = vpack.c.bf16 %v6446, %v6445
      %v6474 = vpack.c.bf16 %v6448, %v6447
      %v6475 = vpack.c.bf16 %v6450, %v6449
      %v6476 = vpack.c.bf16 %v6452, %v6451
      %6477 = vst.msk [vmem:[#allocation3] sm:$0xff] %vm6356, %v6453
      %6478 = vst.msk [vmem:[#allocation3 + $0x28] sm:$0xff] %vm6356, %v6454
      %6479 = vst.msk [vmem:[#allocation3 + $0x50] sm:$0xff] %vm6356, %v6455
      %6480 = vst.msk [vmem:[#allocation3 + $0x78] sm:$0xff] %vm6356, %v6456
      %6481 = vst.msk [vmem:[#allocation3 + $0xa0] sm:$0xff] %vm6356, %v6457
      %6482 = vst.msk [vmem:[#allocation3 + $0xc8] sm:$0xff] %vm6356, %v6458
      %6483 = vst.msk [vmem:[#allocation3 + $0xf0] sm:$0xff] %vm6356, %v6459
      %6484 = vst.msk [vmem:[#allocation3 + $0x118] sm:$0xff] %vm6356, %v6460
      %6485 = vst.msk [vmem:[#allocation3 + $0x140] sm:$0xff] %vm6356, %v6461
      %6486 = vst.msk [vmem:[#allocation3 + $0x168] sm:$0xff] %vm6356, %v6462
      %6487 = vst.msk [vmem:[#allocation3 + $0x190] sm:$0xff] %vm6356, %v6463
      %6488 = vst.msk [vmem:[#allocation3 + $0x1b8] sm:$0xff] %vm6356, %v6464
      %6489 = vst.msk [vmem:[#allocation3 + $0x1e0] sm:$0xff] %vm6356, %v6465
      %6490 = vst.msk [vmem:[#allocation3 + $0x208] sm:$0xff] %vm6356, %v6466
      %6491 = vst.msk [vmem:[#allocation3 + $0x230] sm:$0xff] %vm6356, %v6467
      %6492 = vst.msk [vmem:[#allocation3 + $0x258] sm:$0xff] %vm6356, %v6468
      %6493 = vst.msk [vmem:[#allocation3 + $0x280] sm:$0xff] %vm6356, %v6469
      %6494 = vst.msk [vmem:[#allocation3 + $0x2a8] sm:$0xff] %vm6356, %v6470
      %6495 = vst.msk [vmem:[#allocation3 + $0x2d0] sm:$0xff] %vm6356, %v6471
      %6496 = vst.msk [vmem:[#allocation3 + $0x2f8] sm:$0xff] %vm6356, %v6472
      %6497 = vst.msk [vmem:[#allocation3 + $0x320] sm:$0xff] %vm6356, %v6473
      %6498 = vst.msk [vmem:[#allocation3 + $0x348] sm:$0xff] %vm6356, %v6474
      %6499 = vst.msk [vmem:[#allocation3 + $0x370] sm:$0xff] %vm6356, %v6475
      %6500 = vst.msk [vmem:[#allocation3 + $0x398] sm:$0xff] %vm6356, %v6476
      %v6501 = vld [vmem:[#allocation2 + $0x6] sm:$0xff]
      %v6502 = vld [vmem:[#allocation2 + $0xe] sm:$0xff]
      %v6503 = vld [vmem:[#allocation2 + $0x16] sm:$0xff]
      %v6504 = vld [vmem:[#allocation2 + $0x1e] sm:$0xff]
      %v6505 = vld [vmem:[#allocation2 + $0x26] sm:$0xff]
      %v6506 = vld [vmem:[#allocation2 + $0x2e] sm:$0xff]
      %v6507 = vld [vmem:[#allocation2 + $0x36] sm:$0xff]
      %v6508 = vld [vmem:[#allocation2 + $0x3e] sm:$0xff]
      %v6509 = vld [vmem:[#allocation2 + $0x46] sm:$0xff]
      %v6510 = vld [vmem:[#allocation2 + $0x4e] sm:$0xff]
      %v6511 = vld [vmem:[#allocation2 + $0x56] sm:$0xff]
      %v6512 = vld [vmem:[#allocation2 + $0x5e] sm:$0xff]
      %v6513 = vld [vmem:[#allocation2 + $0x66] sm:$0xff]
      %v6514 = vld [vmem:[#allocation2 + $0x6e] sm:$0xff]
      %v6515 = vld [vmem:[#allocation2 + $0x76] sm:$0xff]
      %v6516 = vld [vmem:[#allocation2 + $0x7e] sm:$0xff]
      %v6517 = vld [vmem:[#allocation2 + $0x86] sm:$0xff]
      %v6518 = vld [vmem:[#allocation2 + $0x8e] sm:$0xff]
      %v6519 = vld [vmem:[#allocation2 + $0x96] sm:$0xff]
      %v6520 = vld [vmem:[#allocation2 + $0x9e] sm:$0xff]
      %v6521 = vld [vmem:[#allocation2 + $0xa6] sm:$0xff]
      %v6522 = vld [vmem:[#allocation2 + $0xae] sm:$0xff]
      %v6523 = vld [vmem:[#allocation2 + $0xb6] sm:$0xff]
      %v6524 = vld [vmem:[#allocation2 + $0xbe] sm:$0xff]
      %v6525 = vld [vmem:[#allocation2 + $0xc6] sm:$0xff]
      %v6526 = vld [vmem:[#allocation2 + $0xce] sm:$0xff]
      %v6527 = vld [vmem:[#allocation2 + $0xd6] sm:$0xff]
      %v6528 = vld [vmem:[#allocation2 + $0xde] sm:$0xff]
      %v6529 = vld [vmem:[#allocation2 + $0xe6] sm:$0xff]
      %v6530 = vld [vmem:[#allocation2 + $0xee] sm:$0xff]
      %v6531 = vld [vmem:[#allocation2 + $0xf6] sm:$0xff]
      %v6532 = vld [vmem:[#allocation2 + $0xfe] sm:$0xff]
      %v6533 = vld [vmem:[#allocation2 + $0x106] sm:$0xff]
      %v6534 = vld [vmem:[#allocation2 + $0x10e] sm:$0xff]
      %v6535 = vld [vmem:[#allocation2 + $0x116] sm:$0xff]
      %v6536 = vld [vmem:[#allocation2 + $0x11e] sm:$0xff]
      %v6537 = vld [vmem:[#allocation2 + $0x126] sm:$0xff]
      %v6538 = vld [vmem:[#allocation2 + $0x12e] sm:$0xff]
      %v6539 = vld [vmem:[#allocation2 + $0x136] sm:$0xff]
      %v6540 = vld [vmem:[#allocation2 + $0x13e] sm:$0xff]
      %v6541 = vld [vmem:[#allocation2 + $0x146] sm:$0xff]
      %v6542 = vld [vmem:[#allocation2 + $0x14e] sm:$0xff]
      %v6543 = vld [vmem:[#allocation2 + $0x156] sm:$0xff]
      %v6544 = vld [vmem:[#allocation2 + $0x15e] sm:$0xff]
      %v6545 = vld [vmem:[#allocation2 + $0x166] sm:$0xff]
      %v6546 = vld [vmem:[#allocation2 + $0x16e] sm:$0xff]
      %v6547 = vld [vmem:[#allocation2 + $0x176] sm:$0xff]
      %v6548 = vld [vmem:[#allocation2 + $0x17e] sm:$0xff]
      %v6549 = vpack.c.bf16 %v6502, %v6501
      %v6550 = vpack.c.bf16 %v6504, %v6503
      %v6551 = vpack.c.bf16 %v6506, %v6505
      %v6552 = vpack.c.bf16 %v6508, %v6507
      %v6553 = vpack.c.bf16 %v6510, %v6509
      %v6554 = vpack.c.bf16 %v6512, %v6511
      %v6555 = vpack.c.bf16 %v6514, %v6513
      %v6556 = vpack.c.bf16 %v6516, %v6515
      %v6557 = vpack.c.bf16 %v6518, %v6517
      %v6558 = vpack.c.bf16 %v6520, %v6519
      %v6559 = vpack.c.bf16 %v6522, %v6521
      %v6560 = vpack.c.bf16 %v6524, %v6523
      %v6561 = vpack.c.bf16 %v6526, %v6525
      %v6562 = vpack.c.bf16 %v6528, %v6527
      %v6563 = vpack.c.bf16 %v6530, %v6529
      %v6564 = vpack.c.bf16 %v6532, %v6531
      %v6565 = vpack.c.bf16 %v6534, %v6533
      %v6566 = vpack.c.bf16 %v6536, %v6535
      %v6567 = vpack.c.bf16 %v6538, %v6537
      %v6568 = vpack.c.bf16 %v6540, %v6539
      %v6569 = vpack.c.bf16 %v6542, %v6541
      %v6570 = vpack.c.bf16 %v6544, %v6543
      %v6571 = vpack.c.bf16 %v6546, %v6545
      %v6572 = vpack.c.bf16 %v6548, %v6547
      %6597 = vrot.lane.b32.xlu0 %v6549, 32
      %v6598 = vpop.permute.xlu0 %6597
      %6599 = vrot.lane.b32.xlu0 %v6550, 32
      %v6600 = vpop.permute.xlu0 %6599
      %6601 = vrot.lane.b32.xlu0 %v6551, 32
      %v6602 = vpop.permute.xlu0 %6601
      %6603 = vrot.lane.b32.xlu0 %v6552, 32
      %v6604 = vpop.permute.xlu0 %6603
      %6605 = vrot.lane.b32.xlu0 %v6553, 32
      %v6606 = vpop.permute.xlu0 %6605
      %6607 = vrot.lane.b32.xlu0 %v6554, 32
      %v6608 = vpop.permute.xlu0 %6607
      %6609 = vrot.lane.b32.xlu0 %v6555, 32
      %v6610 = vpop.permute.xlu0 %6609
      %6611 = vrot.lane.b32.xlu0 %v6556, 32
      %v6612 = vpop.permute.xlu0 %6611
      %6613 = vrot.lane.b32.xlu0 %v6557, 32
      %v6614 = vpop.permute.xlu0 %6613
      %6615 = vrot.lane.b32.xlu0 %v6558, 32
      %v6616 = vpop.permute.xlu0 %6615
      %6617 = vrot.lane.b32.xlu0 %v6559, 32
      %v6618 = vpop.permute.xlu0 %6617
      %6619 = vrot.lane.b32.xlu0 %v6560, 32
      %v6620 = vpop.permute.xlu0 %6619
      %6621 = vrot.lane.b32.xlu0 %v6561, 32
      %v6622 = vpop.permute.xlu0 %6621
      %6623 = vrot.lane.b32.xlu0 %v6562, 32
      %v6624 = vpop.permute.xlu0 %6623
      %6625 = vrot.lane.b32.xlu0 %v6563, 32
      %v6626 = vpop.permute.xlu0 %6625
      %6627 = vrot.lane.b32.xlu0 %v6564, 32
      %v6628 = vpop.permute.xlu0 %6627
      %6629 = vrot.lane.b32.xlu0 %v6565, 32
      %v6630 = vpop.permute.xlu0 %6629
      %6631 = vrot.lane.b32.xlu0 %v6566, 32
      %v6632 = vpop.permute.xlu0 %6631
      %6633 = vrot.lane.b32.xlu0 %v6567, 32
      %v6634 = vpop.permute.xlu0 %6633
      %6635 = vrot.lane.b32.xlu0 %v6568, 32
      %v6636 = vpop.permute.xlu0 %6635
      %6637 = vrot.lane.b32.xlu0 %v6569, 32
      %v6638 = vpop.permute.xlu0 %6637
      %6639 = vrot.lane.b32.xlu0 %v6570, 32
      %v6640 = vpop.permute.xlu0 %6639
      %6641 = vrot.lane.b32.xlu0 %v6571, 32
      %v6642 = vpop.permute.xlu0 %6641
      %6643 = vrot.lane.b32.xlu0 %v6572, 32
      %v6644 = vpop.permute.xlu0 %6643
      %vm6669 = vcmask 523520
      %6670 = vst.msk [vmem:[#allocation3] sm:$0xff] %vm6669, %v6598
      %6671 = vst.msk [vmem:[#allocation3 + $0x28] sm:$0xff] %vm6669, %v6600
      %6672 = vst.msk [vmem:[#allocation3 + $0x50] sm:$0xff] %vm6669, %v6602
      %6673 = vst.msk [vmem:[#allocation3 + $0x78] sm:$0xff] %vm6669, %v6604
      %6674 = vst.msk [vmem:[#allocation3 + $0xa0] sm:$0xff] %vm6669, %v6606
      %6675 = vst.msk [vmem:[#allocation3 + $0xc8] sm:$0xff] %vm6669, %v6608
      %6676 = vst.msk [vmem:[#allocation3 + $0xf0] sm:$0xff] %vm6669, %v6610
      %6677 = vst.msk [vmem:[#allocation3 + $0x118] sm:$0xff] %vm6669, %v6612
      %6678 = vst.msk [vmem:[#allocation3 + $0x140] sm:$0xff] %vm6669, %v6614
      %6679 = vst.msk [vmem:[#allocation3 + $0x168] sm:$0xff] %vm6669, %v6616
      %6680 = vst.msk [vmem:[#allocation3 + $0x190] sm:$0xff] %vm6669, %v6618
      %6681 = vst.msk [vmem:[#allocation3 + $0x1b8] sm:$0xff] %vm6669, %v6620
      %6682 = vst.msk [vmem:[#allocation3 + $0x1e0] sm:$0xff] %vm6669, %v6622
      %6683 = vst.msk [vmem:[#allocation3 + $0x208] sm:$0xff] %vm6669, %v6624
      %6684 = vst.msk [vmem:[#allocation3 + $0x230] sm:$0xff] %vm6669, %v6626
      %6685 = vst.msk [vmem:[#allocation3 + $0x258] sm:$0xff] %vm6669, %v6628
      %6686 = vst.msk [vmem:[#allocation3 + $0x280] sm:$0xff] %vm6669, %v6630
      %6687 = vst.msk [vmem:[#allocation3 + $0x2a8] sm:$0xff] %vm6669, %v6632
      %6688 = vst.msk [vmem:[#allocation3 + $0x2d0] sm:$0xff] %vm6669, %v6634
      %6689 = vst.msk [vmem:[#allocation3 + $0x2f8] sm:$0xff] %vm6669, %v6636
      %6690 = vst.msk [vmem:[#allocation3 + $0x320] sm:$0xff] %vm6669, %v6638
      %6691 = vst.msk [vmem:[#allocation3 + $0x348] sm:$0xff] %vm6669, %v6640
      %6692 = vst.msk [vmem:[#allocation3 + $0x370] sm:$0xff] %vm6669, %v6642
      %6693 = vst.msk [vmem:[#allocation3 + $0x398] sm:$0xff] %vm6669, %v6644
      %v6694 = vld [vmem:[#allocation2 + $0x7] sm:$0xff]
      %v6695 = vld [vmem:[#allocation2 + $0xf] sm:$0xff]
      %v6696 = vld [vmem:[#allocation2 + $0x17] sm:$0xff]
      %v6697 = vld [vmem:[#allocation2 + $0x1f] sm:$0xff]
      %v6698 = vld [vmem:[#allocation2 + $0x27] sm:$0xff]
      %v6699 = vld [vmem:[#allocation2 + $0x2f] sm:$0xff]
      %v6700 = vld [vmem:[#allocation2 + $0x37] sm:$0xff]
      %v6701 = vld [vmem:[#allocation2 + $0x3f] sm:$0xff]
      %v6702 = vld [vmem:[#allocation2 + $0x47] sm:$0xff]
      %v6703 = vld [vmem:[#allocation2 + $0x4f] sm:$0xff]
      %v6704 = vld [vmem:[#allocation2 + $0x57] sm:$0xff]
      %v6705 = vld [vmem:[#allocation2 + $0x5f] sm:$0xff]
      %v6706 = vld [vmem:[#allocation2 + $0x67] sm:$0xff]
      %v6707 = vld [vmem:[#allocation2 + $0x6f] sm:$0xff]
      %v6708 = vld [vmem:[#allocation2 + $0x77] sm:$0xff]
      %v6709 = vld [vmem:[#allocation2 + $0x7f] sm:$0xff]
      %v6710 = vld [vmem:[#allocation2 + $0x87] sm:$0xff]
      %v6711 = vld [vmem:[#allocation2 + $0x8f] sm:$0xff]
      %v6712 = vld [vmem:[#allocation2 + $0x97] sm:$0xff]
      %v6713 = vld [vmem:[#allocation2 + $0x9f] sm:$0xff]
      %v6714 = vld [vmem:[#allocation2 + $0xa7] sm:$0xff]
      %v6715 = vld [vmem:[#allocation2 + $0xaf] sm:$0xff]
      %v6716 = vld [vmem:[#allocation2 + $0xb7] sm:$0xff]
      %v6717 = vld [vmem:[#allocation2 + $0xbf] sm:$0xff]
      %v6718 = vld [vmem:[#allocation2 + $0xc7] sm:$0xff]
      %v6719 = vld [vmem:[#allocation2 + $0xcf] sm:$0xff]
      %v6720 = vld [vmem:[#allocation2 + $0xd7] sm:$0xff]
      %v6721 = vld [vmem:[#allocation2 + $0xdf] sm:$0xff]
      %v6722 = vld [vmem:[#allocation2 + $0xe7] sm:$0xff]
      %v6723 = vld [vmem:[#allocation2 + $0xef] sm:$0xff]
      %v6724 = vld [vmem:[#allocation2 + $0xf7] sm:$0xff]
      %v6725 = vld [vmem:[#allocation2 + $0xff] sm:$0xff]
      %v6726 = vld [vmem:[#allocation2 + $0x107] sm:$0xff]
      %v6727 = vld [vmem:[#allocation2 + $0x10f] sm:$0xff]
      %v6728 = vld [vmem:[#allocation2 + $0x117] sm:$0xff]
      %v6729 = vld [vmem:[#allocation2 + $0x11f] sm:$0xff]
      %v6730 = vld [vmem:[#allocation2 + $0x127] sm:$0xff]
      %v6731 = vld [vmem:[#allocation2 + $0x12f] sm:$0xff]
      %v6732 = vld [vmem:[#allocation2 + $0x137] sm:$0xff]
      %v6733 = vld [vmem:[#allocation2 + $0x13f] sm:$0xff]
      %v6734 = vld [vmem:[#allocation2 + $0x147] sm:$0xff]
      %v6735 = vld [vmem:[#allocation2 + $0x14f] sm:$0xff]
      %v6736 = vld [vmem:[#allocation2 + $0x157] sm:$0xff]
      %v6737 = vld [vmem:[#allocation2 + $0x15f] sm:$0xff]
      %v6738 = vld [vmem:[#allocation2 + $0x167] sm:$0xff]
      %v6739 = vld [vmem:[#allocation2 + $0x16f] sm:$0xff]
      %v6740 = vld [vmem:[#allocation2 + $0x177] sm:$0xff]
      %v6741 = vld [vmem:[#allocation2 + $0x17f] sm:$0xff]
      %v6742 = vpack.c.bf16 %v6695, %v6694
      %v6743 = vpack.c.bf16 %v6697, %v6696
      %v6744 = vpack.c.bf16 %v6699, %v6698
      %v6745 = vpack.c.bf16 %v6701, %v6700
      %v6746 = vpack.c.bf16 %v6703, %v6702
      %v6747 = vpack.c.bf16 %v6705, %v6704
      %v6748 = vpack.c.bf16 %v6707, %v6706
      %v6749 = vpack.c.bf16 %v6709, %v6708
      %v6750 = vpack.c.bf16 %v6711, %v6710
      %v6751 = vpack.c.bf16 %v6713, %v6712
      %v6752 = vpack.c.bf16 %v6715, %v6714
      %v6753 = vpack.c.bf16 %v6717, %v6716
      %v6754 = vpack.c.bf16 %v6719, %v6718
      %v6755 = vpack.c.bf16 %v6721, %v6720
      %v6756 = vpack.c.bf16 %v6723, %v6722
      %v6757 = vpack.c.bf16 %v6725, %v6724
      %v6758 = vpack.c.bf16 %v6727, %v6726
      %v6759 = vpack.c.bf16 %v6729, %v6728
      %v6760 = vpack.c.bf16 %v6731, %v6730
      %v6761 = vpack.c.bf16 %v6733, %v6732
      %v6762 = vpack.c.bf16 %v6735, %v6734
      %v6763 = vpack.c.bf16 %v6737, %v6736
      %v6764 = vpack.c.bf16 %v6739, %v6738
      %v6765 = vpack.c.bf16 %v6741, %v6740
      %6790 = vrot.lane.b32.xlu0 %v6742, 64
      %v6791 = vpop.permute.xlu0 %6790
      %6792 = vrot.lane.b32.xlu0 %v6743, 64
      %v6793 = vpop.permute.xlu0 %6792
      %6794 = vrot.lane.b32.xlu0 %v6744, 64
      %v6795 = vpop.permute.xlu0 %6794
      %6796 = vrot.lane.b32.xlu0 %v6745, 64
      %v6797 = vpop.permute.xlu0 %6796
      %6798 = vrot.lane.b32.xlu0 %v6746, 64
      %v6799 = vpop.permute.xlu0 %6798
      %6800 = vrot.lane.b32.xlu0 %v6747, 64
      %v6801 = vpop.permute.xlu0 %6800
      %6802 = vrot.lane.b32.xlu0 %v6748, 64
      %v6803 = vpop.permute.xlu0 %6802
      %6804 = vrot.lane.b32.xlu0 %v6749, 64
      %v6805 = vpop.permute.xlu0 %6804
      %6806 = vrot.lane.b32.xlu0 %v6750, 64
      %v6807 = vpop.permute.xlu0 %6806
      %6808 = vrot.lane.b32.xlu0 %v6751, 64
      %v6809 = vpop.permute.xlu0 %6808
      %6810 = vrot.lane.b32.xlu0 %v6752, 64
      %v6811 = vpop.permute.xlu0 %6810
      %6812 = vrot.lane.b32.xlu0 %v6753, 64
      %v6813 = vpop.permute.xlu0 %6812
      %6814 = vrot.lane.b32.xlu0 %v6754, 64
      %v6815 = vpop.permute.xlu0 %6814
      %6816 = vrot.lane.b32.xlu0 %v6755, 64
      %v6817 = vpop.permute.xlu0 %6816
      %6818 = vrot.lane.b32.xlu0 %v6756, 64
      %v6819 = vpop.permute.xlu0 %6818
      %6820 = vrot.lane.b32.xlu0 %v6757, 64
      %v6821 = vpop.permute.xlu0 %6820
      %6822 = vrot.lane.b32.xlu0 %v6758, 64
      %v6823 = vpop.permute.xlu0 %6822
      %6824 = vrot.lane.b32.xlu0 %v6759, 64
      %v6825 = vpop.permute.xlu0 %6824
      %6826 = vrot.lane.b32.xlu0 %v6760, 64
      %v6827 = vpop.permute.xlu0 %6826
      %6828 = vrot.lane.b32.xlu0 %v6761, 64
      %v6829 = vpop.permute.xlu0 %6828
      %6830 = vrot.lane.b32.xlu0 %v6762, 64
      %v6831 = vpop.permute.xlu0 %6830
      %6832 = vrot.lane.b32.xlu0 %v6763, 64
      %v6833 = vpop.permute.xlu0 %6832
      %6834 = vrot.lane.b32.xlu0 %v6764, 64
      %v6835 = vpop.permute.xlu0 %6834
      %6836 = vrot.lane.b32.xlu0 %v6765, 64
      %v6837 = vpop.permute.xlu0 %6836
      %vm6862 = vcmask 785920
      %6863 = vst.msk [vmem:[#allocation3] sm:$0xff] %vm6862, %v6791
      %6864 = vst.msk [vmem:[#allocation3 + $0x28] sm:$0xff] %vm6862, %v6793
      %6865 = vst.msk [vmem:[#allocation3 + $0x50] sm:$0xff] %vm6862, %v6795
      %6866 = vst.msk [vmem:[#allocation3 + $0x78] sm:$0xff] %vm6862, %v6797
      %6867 = vst.msk [vmem:[#allocation3 + $0xa0] sm:$0xff] %vm6862, %v6799
      %6868 = vst.msk [vmem:[#allocation3 + $0xc8] sm:$0xff] %vm6862, %v6801
      %6869 = vst.msk [vmem:[#allocation3 + $0xf0] sm:$0xff] %vm6862, %v6803
      %6870 = vst.msk [vmem:[#allocation3 + $0x118] sm:$0xff] %vm6862, %v6805
      %6871 = vst.msk [vmem:[#allocation3 + $0x140] sm:$0xff] %vm6862, %v6807
      %6872 = vst.msk [vmem:[#allocation3 + $0x168] sm:$0xff] %vm6862, %v6809
      %6873 = vst.msk [vmem:[#allocation3 + $0x190] sm:$0xff] %vm6862, %v6811
      %6874 = vst.msk [vmem:[#allocation3 + $0x1b8] sm:$0xff] %vm6862, %v6813
      %6875 = vst.msk [vmem:[#allocation3 + $0x1e0] sm:$0xff] %vm6862, %v6815
      %6876 = vst.msk [vmem:[#allocation3 + $0x208] sm:$0xff] %vm6862, %v6817
      %6877 = vst.msk [vmem:[#allocation3 + $0x230] sm:$0xff] %vm6862, %v6819
      %6878 = vst.msk [vmem:[#allocation3 + $0x258] sm:$0xff] %vm6862, %v6821
      %6879 = vst.msk [vmem:[#allocation3 + $0x280] sm:$0xff] %vm6862, %v6823
      %6880 = vst.msk [vmem:[#allocation3 + $0x2a8] sm:$0xff] %vm6862, %v6825
      %6881 = vst.msk [vmem:[#allocation3 + $0x2d0] sm:$0xff] %vm6862, %v6827
      %6882 = vst.msk [vmem:[#allocation3 + $0x2f8] sm:$0xff] %vm6862, %v6829
      %6883 = vst.msk [vmem:[#allocation3 + $0x320] sm:$0xff] %vm6862, %v6831
      %6884 = vst.msk [vmem:[#allocation3 + $0x348] sm:$0xff] %vm6862, %v6833
      %6885 = vst.msk [vmem:[#allocation3 + $0x370] sm:$0xff] %vm6862, %v6835
      %6886 = vst.msk [vmem:[#allocation3 + $0x398] sm:$0xff] %vm6862, %v6837
      %v6887 = vld [vmem:[#allocation2 + $0x17] sm:$0xff]
      %v6888 = vld [vmem:[#allocation2 + $0x1f] sm:$0xff]
      %v6889 = vld [vmem:[#allocation2 + $0x27] sm:$0xff]
      %v6890 = vld [vmem:[#allocation2 + $0x2f] sm:$0xff]
      %v6891 = vld [vmem:[#allocation2 + $0x37] sm:$0xff]
      %v6892 = vld [vmem:[#allocation2 + $0x3f] sm:$0xff]
      %v6893 = vld [vmem:[#allocation2 + $0x47] sm:$0xff]
      %v6894 = vld [vmem:[#allocation2 + $0x4f] sm:$0xff]
      %v6895 = vld [vmem:[#allocation2 + $0x57] sm:$0xff]
      %v6896 = vld [vmem:[#allocation2 + $0x5f] sm:$0xff]
      %v6897 = vld [vmem:[#allocation2 + $0x67] sm:$0xff]
      %v6898 = vld [vmem:[#allocation2 + $0x6f] sm:$0xff]
      %v6899 = vld [vmem:[#allocation2 + $0x77] sm:$0xff]
      %v6900 = vld [vmem:[#allocation2 + $0x7f] sm:$0xff]
      %v6901 = vld [vmem:[#allocation2 + $0x87] sm:$0xff]
      %v6902 = vld [vmem:[#allocation2 + $0x8f] sm:$0xff]
      %v6903 = vld [vmem:[#allocation2 + $0x97] sm:$0xff]
      %v6904 = vld [vmem:[#allocation2 + $0x9f] sm:$0xff]
      %v6905 = vld [vmem:[#allocation2 + $0xa7] sm:$0xff]
      %v6906 = vld [vmem:[#allocation2 + $0xaf] sm:$0xff]
      %v6907 = vld [vmem:[#allocation2 + $0xb7] sm:$0xff]
      %v6908 = vld [vmem:[#allocation2 + $0xbf] sm:$0xff]
      %v6909 = vld [vmem:[#allocation2 + $0xc7] sm:$0xff]
      %v6910 = vld [vmem:[#allocation2 + $0xcf] sm:$0xff]
      %v6911 = vld [vmem:[#allocation2 + $0xd7] sm:$0xff]
      %v6912 = vld [vmem:[#allocation2 + $0xdf] sm:$0xff]
      %v6913 = vld [vmem:[#allocation2 + $0xe7] sm:$0xff]
      %v6914 = vld [vmem:[#allocation2 + $0xef] sm:$0xff]
      %v6915 = vld [vmem:[#allocation2 + $0xf7] sm:$0xff]
      %v6916 = vld [vmem:[#allocation2 + $0xff] sm:$0xff]
      %v6917 = vld [vmem:[#allocation2 + $0x107] sm:$0xff]
      %v6918 = vld [vmem:[#allocation2 + $0x10f] sm:$0xff]
      %v6919 = vld [vmem:[#allocation2 + $0x117] sm:$0xff]
      %v6920 = vld [vmem:[#allocation2 + $0x11f] sm:$0xff]
      %v6921 = vld [vmem:[#allocation2 + $0x127] sm:$0xff]
      %v6922 = vld [vmem:[#allocation2 + $0x12f] sm:$0xff]
      %v6923 = vld [vmem:[#allocation2 + $0x137] sm:$0xff]
      %v6924 = vld [vmem:[#allocation2 + $0x13f] sm:$0xff]
      %v6925 = vld [vmem:[#allocation2 + $0x147] sm:$0xff]
      %v6926 = vld [vmem:[#allocation2 + $0x14f] sm:$0xff]
      %v6927 = vld [vmem:[#allocation2 + $0x157] sm:$0xff]
      %v6928 = vld [vmem:[#allocation2 + $0x15f] sm:$0xff]
      %v6929 = vld [vmem:[#allocation2 + $0x167] sm:$0xff]
      %v6930 = vld [vmem:[#allocation2 + $0x16f] sm:$0xff]
      %v6931 = vld [vmem:[#allocation2 + $0x177] sm:$0xff]
      %v6932 = vld [vmem:[#allocation2 + $0x17f] sm:$0xff]
      %v6933 = vld [vmem:[#allocation2 + $0x187] sm:$0xff]
      %v6934 = vld [vmem:[#allocation2 + $0x18f] sm:$0xff]
      %v6935 = vpack.c.bf16 %v6888, %v6887
      %v6936 = vpack.c.bf16 %v6890, %v6889
      %v6937 = vpack.c.bf16 %v6892, %v6891
      %v6938 = vpack.c.bf16 %v6894, %v6893
      %v6939 = vpack.c.bf16 %v6896, %v6895
      %v6940 = vpack.c.bf16 %v6898, %v6897
      %v6941 = vpack.c.bf16 %v6900, %v6899
      %v6942 = vpack.c.bf16 %v6902, %v6901
      %v6943 = vpack.c.bf16 %v6904, %v6903
      %v6944 = vpack.c.bf16 %v6906, %v6905
      %v6945 = vpack.c.bf16 %v6908, %v6907
      %v6946 = vpack.c.bf16 %v6910, %v6909
      %v6947 = vpack.c.bf16 %v6912, %v6911
      %v6948 = vpack.c.bf16 %v6914, %v6913
      %v6949 = vpack.c.bf16 %v6916, %v6915
      %v6950 = vpack.c.bf16 %v6918, %v6917
      %v6951 = vpack.c.bf16 %v6920, %v6919
      %v6952 = vpack.c.bf16 %v6922, %v6921
      %v6953 = vpack.c.bf16 %v6924, %v6923
      %v6954 = vpack.c.bf16 %v6926, %v6925
      %v6955 = vpack.c.bf16 %v6928, %v6927
      %v6956 = vpack.c.bf16 %v6930, %v6929
      %v6957 = vpack.c.bf16 %v6932, %v6931
      %v6958 = vpack.c.bf16 %v6934, %v6933
      %6983 = vrot.lane.b32.xlu0 %v6935, 96
      %v6984 = vpop.permute.xlu0 %6983
      %6985 = vrot.lane.b32.xlu0 %v6936, 96
      %v6986 = vpop.permute.xlu0 %6985
      %6987 = vrot.lane.b32.xlu0 %v6937, 96
      %v6988 = vpop.permute.xlu0 %6987
      %6989 = vrot.lane.b32.xlu0 %v6938, 96
      %v6990 = vpop.permute.xlu0 %6989
      %6991 = vrot.lane.b32.xlu0 %v6939, 96
      %v6992 = vpop.permute.xlu0 %6991
      %6993 = vrot.lane.b32.xlu0 %v6940, 96
      %v6994 = vpop.permute.xlu0 %6993
      %6995 = vrot.lane.b32.xlu0 %v6941, 96
      %v6996 = vpop.permute.xlu0 %6995
      %6997 = vrot.lane.b32.xlu0 %v6942, 96
      %v6998 = vpop.permute.xlu0 %6997
      %6999 = vrot.lane.b32.xlu0 %v6943, 96
      %v7000 = vpop.permute.xlu0 %6999
      %7001 = vrot.lane.b32.xlu0 %v6944, 96
      %v7002 = vpop.permute.xlu0 %7001
      %7003 = vrot.lane.b32.xlu0 %v6945, 96
      %v7004 = vpop.permute.xlu0 %7003
      %7005 = vrot.lane.b32.xlu0 %v6946, 96
      %v7006 = vpop.permute.xlu0 %7005
      %7007 = vrot.lane.b32.xlu0 %v6947, 96
      %v7008 = vpop.permute.xlu0 %7007
      %7009 = vrot.lane.b32.xlu0 %v6948, 96
      %v7010 = vpop.permute.xlu0 %7009
      %7011 = vrot.lane.b32.xlu0 %v6949, 96
      %v7012 = vpop.permute.xlu0 %7011
      %7013 = vrot.lane.b32.xlu0 %v6950, 96
      %v7014 = vpop.permute.xlu0 %7013
      %7015 = vrot.lane.b32.xlu0 %v6951, 96
      %v7016 = vpop.permute.xlu0 %7015
      %7017 = vrot.lane.b32.xlu0 %v6952, 96
      %v7018 = vpop.permute.xlu0 %7017
      %7019 = vrot.lane.b32.xlu0 %v6953, 96
      %v7020 = vpop.permute.xlu0 %7019
      %7021 = vrot.lane.b32.xlu0 %v6954, 96
      %v7022 = vpop.permute.xlu0 %7021
      %7023 = vrot.lane.b32.xlu0 %v6955, 96
      %v7024 = vpop.permute.xlu0 %7023
      %7025 = vrot.lane.b32.xlu0 %v6956, 96
      %v7026 = vpop.permute.xlu0 %7025
      %7027 = vrot.lane.b32.xlu0 %v6957, 96
      %v7028 = vpop.permute.xlu0 %7027
      %7029 = vrot.lane.b32.xlu0 %v6958, 96
      %v7030 = vpop.permute.xlu0 %7029
      %vm7055 = vcmask 1048320
      %7056 = vst.msk [vmem:[#allocation3] sm:$0xff] %vm7055, %v6984
      %7057 = vst.msk [vmem:[#allocation3 + $0x28] sm:$0xff] %vm7055, %v6986
      %7058 = vst.msk [vmem:[#allocation3 + $0x50] sm:$0xff] %vm7055, %v6988
      %7059 = vst.msk [vmem:[#allocation3 + $0x78] sm:$0xff] %vm7055, %v6990
      %7060 = vst.msk [vmem:[#allocation3 + $0xa0] sm:$0xff] %vm7055, %v6992
      %7061 = vst.msk [vmem:[#allocation3 + $0xc8] sm:$0xff] %vm7055, %v6994
      %7062 = vst.msk [vmem:[#allocation3 + $0xf0] sm:$0xff] %vm7055, %v6996
      %7063 = vst.msk [vmem:[#allocation3 + $0x118] sm:$0xff] %vm7055, %v6998
      %7064 = vst.msk [vmem:[#allocation3 + $0x140] sm:$0xff] %vm7055, %v7000
      %7065 = vst.msk [vmem:[#allocation3 + $0x168] sm:$0xff] %vm7055, %v7002
      %7066 = vst.msk [vmem:[#allocation3 + $0x190] sm:$0xff] %vm7055, %v7004
      %7067 = vst.msk [vmem:[#allocation3 + $0x1b8] sm:$0xff] %vm7055, %v7006
      %7068 = vst.msk [vmem:[#allocation3 + $0x1e0] sm:$0xff] %vm7055, %v7008
      %7069 = vst.msk [vmem:[#allocation3 + $0x208] sm:$0xff] %vm7055, %v7010
      %7070 = vst.msk [vmem:[#allocation3 + $0x230] sm:$0xff] %vm7055, %v7012
      %7071 = vst.msk [vmem:[#allocation3 + $0x258] sm:$0xff] %vm7055, %v7014
      %7072 = vst.msk [vmem:[#allocation3 + $0x280] sm:$0xff] %vm7055, %v7016
      %7073 = vst.msk [vmem:[#allocation3 + $0x2a8] sm:$0xff] %vm7055, %v7018
      %7074 = vst.msk [vmem:[#allocation3 + $0x2d0] sm:$0xff] %vm7055, %v7020
      %7075 = vst.msk [vmem:[#allocation3 + $0x2f8] sm:$0xff] %vm7055, %v7022
      %7076 = vst.msk [vmem:[#allocation3 + $0x320] sm:$0xff] %vm7055, %v7024
      %7077 = vst.msk [vmem:[#allocation3 + $0x348] sm:$0xff] %vm7055, %v7026
      %7078 = vst.msk [vmem:[#allocation3 + $0x370] sm:$0xff] %vm7055, %v7028
      %7079 = vst.msk [vmem:[#allocation3 + $0x398] sm:$0xff] %vm7055, %v7030
      %v7080 = vld [vmem:[#allocation2 + $0x18] sm:$0xff]
      %v7081 = vld [vmem:[#allocation2 + $0x20] sm:$0xff]
      %v7082 = vld [vmem:[#allocation2 + $0x28] sm:$0xff]
      %v7083 = vld [vmem:[#allocation2 + $0x30] sm:$0xff]
      %v7084 = vld [vmem:[#allocation2 + $0x38] sm:$0xff]
      %v7085 = vld [vmem:[#allocation2 + $0x40] sm:$0xff]
      %v7086 = vld [vmem:[#allocation2 + $0x48] sm:$0xff]
      %v7087 = vld [vmem:[#allocation2 + $0x50] sm:$0xff]
      %v7088 = vld [vmem:[#allocation2 + $0x58] sm:$0xff]
      %v7089 = vld [vmem:[#allocation2 + $0x60] sm:$0xff]
      %v7090 = vld [vmem:[#allocation2 + $0x68] sm:$0xff]
      %v7091 = vld [vmem:[#allocation2 + $0x70] sm:$0xff]
      %v7092 = vld [vmem:[#allocation2 + $0x78] sm:$0xff]
      %v7093 = vld [vmem:[#allocation2 + $0x80] sm:$0xff]
      %v7094 = vld [vmem:[#allocation2 + $0x88] sm:$0xff]
      %v7095 = vld [vmem:[#allocation2 + $0x90] sm:$0xff]
      %v7096 = vld [vmem:[#allocation2 + $0x98] sm:$0xff]
      %v7097 = vld [vmem:[#allocation2 + $0xa0] sm:$0xff]
      %v7098 = vld [vmem:[#allocation2 + $0xa8] sm:$0xff]
      %v7099 = vld [vmem:[#allocation2 + $0xb0] sm:$0xff]
      %v7100 = vld [vmem:[#allocation2 + $0xb8] sm:$0xff]
      %v7101 = vld [vmem:[#allocation2 + $0xc0] sm:$0xff]
      %v7102 = vld [vmem:[#allocation2 + $0xc8] sm:$0xff]
      %v7103 = vld [vmem:[#allocation2 + $0xd0] sm:$0xff]
      %v7104 = vld [vmem:[#allocation2 + $0xd8] sm:$0xff]
      %v7105 = vld [vmem:[#allocation2 + $0xe0] sm:$0xff]
      %v7106 = vld [vmem:[#allocation2 + $0xe8] sm:$0xff]
      %v7107 = vld [vmem:[#allocation2 + $0xf0] sm:$0xff]
      %v7108 = vld [vmem:[#allocation2 + $0xf8] sm:$0xff]
      %v7109 = vld [vmem:[#allocation2 + $0x100] sm:$0xff]
      %v7110 = vld [vmem:[#allocation2 + $0x108] sm:$0xff]
      %v7111 = vld [vmem:[#allocation2 + $0x110] sm:$0xff]
      %v7112 = vld [vmem:[#allocation2 + $0x118] sm:$0xff]
      %v7113 = vld [vmem:[#allocation2 + $0x120] sm:$0xff]
      %v7114 = vld [vmem:[#allocation2 + $0x128] sm:$0xff]
      %v7115 = vld [vmem:[#allocation2 + $0x130] sm:$0xff]
      %v7116 = vld [vmem:[#allocation2 + $0x138] sm:$0xff]
      %v7117 = vld [vmem:[#allocation2 + $0x140] sm:$0xff]
      %v7118 = vld [vmem:[#allocation2 + $0x148] sm:$0xff]
      %v7119 = vld [vmem:[#allocation2 + $0x150] sm:$0xff]
      %v7120 = vld [vmem:[#allocation2 + $0x158] sm:$0xff]
      %v7121 = vld [vmem:[#allocation2 + $0x160] sm:$0xff]
      %v7122 = vld [vmem:[#allocation2 + $0x168] sm:$0xff]
      %v7123 = vld [vmem:[#allocation2 + $0x170] sm:$0xff]
      %v7124 = vld [vmem:[#allocation2 + $0x178] sm:$0xff]
      %v7125 = vld [vmem:[#allocation2 + $0x180] sm:$0xff]
      %v7126 = vld [vmem:[#allocation2 + $0x188] sm:$0xff]
      %v7127 = vld [vmem:[#allocation2 + $0x190] sm:$0xff]
      %v7128 = vpack.c.bf16 %v7081, %v7080
      %v7129 = vpack.c.bf16 %v7083, %v7082
      %v7130 = vpack.c.bf16 %v7085, %v7084
      %v7131 = vpack.c.bf16 %v7087, %v7086
      %v7132 = vpack.c.bf16 %v7089, %v7088
      %v7133 = vpack.c.bf16 %v7091, %v7090
      %v7134 = vpack.c.bf16 %v7093, %v7092
      %v7135 = vpack.c.bf16 %v7095, %v7094
      %v7136 = vpack.c.bf16 %v7097, %v7096
      %v7137 = vpack.c.bf16 %v7099, %v7098
      %v7138 = vpack.c.bf16 %v7101, %v7100
      %v7139 = vpack.c.bf16 %v7103, %v7102
      %v7140 = vpack.c.bf16 %v7105, %v7104
      %v7141 = vpack.c.bf16 %v7107, %v7106
      %v7142 = vpack.c.bf16 %v7109, %v7108
      %v7143 = vpack.c.bf16 %v7111, %v7110
      %v7144 = vpack.c.bf16 %v7113, %v7112
      %v7145 = vpack.c.bf16 %v7115, %v7114
      %v7146 = vpack.c.bf16 %v7117, %v7116
      %v7147 = vpack.c.bf16 %v7119, %v7118
      %v7148 = vpack.c.bf16 %v7121, %v7120
      %v7149 = vpack.c.bf16 %v7123, %v7122
      %v7150 = vpack.c.bf16 %v7125, %v7124
      %v7151 = vpack.c.bf16 %v7127, %v7126
      %7152 = vst.msk [vmem:[#allocation3 + $0x8] sm:$0xff] %vm6356, %v7128
      %7153 = vst.msk [vmem:[#allocation3 + $0x30] sm:$0xff] %vm6356, %v7129
      %7154 = vst.msk [vmem:[#allocation3 + $0x58] sm:$0xff] %vm6356, %v7130
      %7155 = vst.msk [vmem:[#allocation3 + $0x80] sm:$0xff] %vm6356, %v7131
      %7156 = vst.msk [vmem:[#allocation3 + $0xa8] sm:$0xff] %vm6356, %v7132
      %7157 = vst.msk [vmem:[#allocation3 + $0xd0] sm:$0xff] %vm6356, %v7133
      %7158 = vst.msk [vmem:[#allocation3 + $0xf8] sm:$0xff] %vm6356, %v7134
      %7159 = vst.msk [vmem:[#allocation3 + $0x120] sm:$0xff] %vm6356, %v7135
      %7160 = vst.msk [vmem:[#allocation3 + $0x148] sm:$0xff] %vm6356, %v7136
      %7161 = vst.msk [vmem:[#allocation3 + $0x170] sm:$0xff] %vm6356, %v7137
      %7162 = vst.msk [vmem:[#allocation3 + $0x198] sm:$0xff] %vm6356, %v7138
      %7163 = vst.msk [vmem:[#allocation3 + $0x1c0] sm:$0xff] %vm6356, %v7139
      %7164 = vst.msk [vmem:[#allocation3 + $0x1e8] sm:$0xff] %vm6356, %v7140
      %7165 = vst.msk [vmem:[#allocation3 + $0x210] sm:$0xff] %vm6356, %v7141
      %7166 = vst.msk [vmem:[#allocation3 + $0x238] sm:$0xff] %vm6356, %v7142
      %7167 = vst.msk [vmem:[#allocation3 + $0x260] sm:$0xff] %vm6356, %v7143
      %7168 = vst.msk [vmem:[#allocation3 + $0x288] sm:$0xff] %vm6356, %v7144
      %7169 = vst.msk [vmem:[#allocation3 + $0x2b0] sm:$0xff] %vm6356, %v7145
      %7170 = vst.msk [vmem:[#allocation3 + $0x2d8] sm:$0xff] %vm6356, %v7146
      %7171 = vst.msk [vmem:[#allocation3 + $0x300] sm:$0xff] %vm6356, %v7147
      %7172 = vst.msk [vmem:[#allocation3 + $0x328] sm:$0xff] %vm6356, %v7148
      %7173 = vst.msk [vmem:[#allocation3 + $0x350] sm:$0xff] %vm6356, %v7149
      %7174 = vst.msk [vmem:[#allocation3 + $0x378] sm:$0xff] %vm6356, %v7150
      %7175 = vst.msk [vmem:[#allocation3 + $0x3a0] sm:$0xff] %vm6356, %v7151
      %v7176 = vld [vmem:[#allocation2 + $0x19] sm:$0xff]
      %v7177 = vld [vmem:[#allocation2 + $0x21] sm:$0xff]
      %v7178 = vld [vmem:[#allocation2 + $0x29] sm:$0xff]
      %v7179 = vld [vmem:[#allocation2 + $0x31] sm:$0xff]
      %v7180 = vld [vmem:[#allocation2 + $0x39] sm:$0xff]
      %v7181 = vld [vmem:[#allocation2 + $0x41] sm:$0xff]
      %v7182 = vld [vmem:[#allocation2 + $0x49] sm:$0xff]
      %v7183 = vld [vmem:[#allocation2 + $0x51] sm:$0xff]
      %v7184 = vld [vmem:[#allocation2 + $0x59] sm:$0xff]
      %v7185 = vld [vmem:[#allocation2 + $0x61] sm:$0xff]
      %v7186 = vld [vmem:[#allocation2 + $0x69] sm:$0xff]
      %v7187 = vld [vmem:[#allocation2 + $0x71] sm:$0xff]
      %v7188 = vld [vmem:[#allocation2 + $0x79] sm:$0xff]
      %v7189 = vld [vmem:[#allocation2 + $0x81] sm:$0xff]
      %v7190 = vld [vmem:[#allocation2 + $0x89] sm:$0xff]
      %v7191 = vld [vmem:[#allocation2 + $0x91] sm:$0xff]
      %v7192 = vld [vmem:[#allocation2 + $0x99] sm:$0xff]
      %v7193 = vld [vmem:[#allocation2 + $0xa1] sm:$0xff]
      %v7194 = vld [vmem:[#allocation2 + $0xa9] sm:$0xff]
      %v7195 = vld [vmem:[#allocation2 + $0xb1] sm:$0xff]
      %v7196 = vld [vmem:[#allocation2 + $0xb9] sm:$0xff]
      %v7197 = vld [vmem:[#allocation2 + $0xc1] sm:$0xff]
      %v7198 = vld [vmem:[#allocation2 + $0xc9] sm:$0xff]
      %v7199 = vld [vmem:[#allocation2 + $0xd1] sm:$0xff]
      %v7200 = vld [vmem:[#allocation2 + $0xd9] sm:$0xff]
      %v7201 = vld [vmem:[#allocation2 + $0xe1] sm:$0xff]
      %v7202 = vld [vmem:[#allocation2 + $0xe9] sm:$0xff]
      %v7203 = vld [vmem:[#allocation2 + $0xf1] sm:$0xff]
      %v7204 = vld [vmem:[#allocation2 + $0xf9] sm:$0xff]
      %v7205 = vld [vmem:[#allocation2 + $0x101] sm:$0xff]
      %v7206 = vld [vmem:[#allocation2 + $0x109] sm:$0xff]
      %v7207 = vld [vmem:[#allocation2 + $0x111] sm:$0xff]
      %v7208 = vld [vmem:[#allocation2 + $0x119] sm:$0xff]
      %v7209 = vld [vmem:[#allocation2 + $0x121] sm:$0xff]
      %v7210 = vld [vmem:[#allocation2 + $0x129] sm:$0xff]
      %v7211 = vld [vmem:[#allocation2 + $0x131] sm:$0xff]
      %v7212 = vld [vmem:[#allocation2 + $0x139] sm:$0xff]
      %v7213 = vld [vmem:[#allocation2 + $0x141] sm:$0xff]
      %v7214 = vld [vmem:[#allocation2 + $0x149] sm:$0xff]
      %v7215 = vld [vmem:[#allocation2 + $0x151] sm:$0xff]
      %v7216 = vld [vmem:[#allocation2 + $0x159] sm:$0xff]
      %v7217 = vld [vmem:[#allocation2 + $0x161] sm:$0xff]
      %v7218 = vld [vmem:[#allocation2 + $0x169] sm:$0xff]
      %v7219 = vld [vmem:[#allocation2 + $0x171] sm:$0xff]
      %v7220 = vld [vmem:[#allocation2 + $0x179] sm:$0xff]
      %v7221 = vld [vmem:[#allocation2 + $0x181] sm:$0xff]
      %v7222 = vld [vmem:[#allocation2 + $0x189] sm:$0xff]
      %v7223 = vld [vmem:[#allocation2 + $0x191] sm:$0xff]
      %v7224 = vpack.c.bf16 %v7177, %v7176
      %v7225 = vpack.c.bf16 %v7179, %v7178
      %v7226 = vpack.c.bf16 %v7181, %v7180
      %v7227 = vpack.c.bf16 %v7183, %v7182
      %v7228 = vpack.c.bf16 %v7185, %v7184
      %v7229 = vpack.c.bf16 %v7187, %v7186
      %v7230 = vpack.c.bf16 %v7189, %v7188
      %v7231 = vpack.c.bf16 %v7191, %v7190
      %v7232 = vpack.c.bf16 %v7193, %v7192
      %v7233 = vpack.c.bf16 %v7195, %v7194
      %v7234 = vpack.c.bf16 %v7197, %v7196
      %v7235 = vpack.c.bf16 %v7199, %v7198
      %v7236 = vpack.c.bf16 %v7201, %v7200
      %v7237 = vpack.c.bf16 %v7203, %v7202
      %v7238 = vpack.c.bf16 %v7205, %v7204
      %v7239 = vpack.c.bf16 %v7207, %v7206
      %v7240 = vpack.c.bf16 %v7209, %v7208
      %v7241 = vpack.c.bf16 %v7211, %v7210
      %v7242 = vpack.c.bf16 %v7213, %v7212
      %v7243 = vpack.c.bf16 %v7215, %v7214
      %v7244 = vpack.c.bf16 %v7217, %v7216
      %v7245 = vpack.c.bf16 %v7219, %v7218
      %v7246 = vpack.c.bf16 %v7221, %v7220
      %v7247 = vpack.c.bf16 %v7223, %v7222
      %7272 = vrot.lane.b32.xlu0 %v7224, 32
      %v7273 = vpop.permute.xlu0 %7272
      %7274 = vrot.lane.b32.xlu0 %v7225, 32
      %v7275 = vpop.permute.xlu0 %7274
      %7276 = vrot.lane.b32.xlu0 %v7226, 32
      %v7277 = vpop.permute.xlu0 %7276
      %7278 = vrot.lane.b32.xlu0 %v7227, 32
      %v7279 = vpop.permute.xlu0 %7278
      %7280 = vrot.lane.b32.xlu0 %v7228, 32
      %v7281 = vpop.permute.xlu0 %7280
      %7282 = vrot.lane.b32.xlu0 %v7229, 32
      %v7283 = vpop.permute.xlu0 %7282
      %7284 = vrot.lane.b32.xlu0 %v7230, 32
      %v7285 = vpop.permute.xlu0 %7284
      %7286 = vrot.lane.b32.xlu0 %v7231, 32
      %v7287 = vpop.permute.xlu0 %7286
      %7288 = vrot.lane.b32.xlu0 %v7232, 32
      %v7289 = vpop.permute.xlu0 %7288
      %7290 = vrot.lane.b32.xlu0 %v7233, 32
      %v7291 = vpop.permute.xlu0 %7290
      %7292 = vrot.lane.b32.xlu0 %v7234, 32
      %v7293 = vpop.permute.xlu0 %7292
      %7294 = vrot.lane.b32.xlu0 %v7235, 32
      %v7295 = vpop.permute.xlu0 %7294
      %7296 = vrot.lane.b32.xlu0 %v7236, 32
      %v7297 = vpop.permute.xlu0 %7296
      %7298 = vrot.lane.b32.xlu0 %v7237, 32
      %v7299 = vpop.permute.xlu0 %7298
      %7300 = vrot.lane.b32.xlu0 %v7238, 32
      %v7301 = vpop.permute.xlu0 %7300
      %7302 = vrot.lane.b32.xlu0 %v7239, 32
      %v7303 = vpop.permute.xlu0 %7302
      %7304 = vrot.lane.b32.xlu0 %v7240, 32
      %v7305 = vpop.permute.xlu0 %7304
      %7306 = vrot.lane.b32.xlu0 %v7241, 32
      %v7307 = vpop.permute.xlu0 %7306
      %7308 = vrot.lane.b32.xlu0 %v7242, 32
      %v7309 = vpop.permute.xlu0 %7308
      %7310 = vrot.lane.b32.xlu0 %v7243, 32
      %v7311 = vpop.permute.xlu0 %7310
      %7312 = vrot.lane.b32.xlu0 %v7244, 32
      %v7313 = vpop.permute.xlu0 %7312
      %7314 = vrot.lane.b32.xlu0 %v7245, 32
      %v7315 = vpop.permute.xlu0 %7314
      %7316 = vrot.lane.b32.xlu0 %v7246, 32
      %v7317 = vpop.permute.xlu0 %7316
      %7318 = vrot.lane.b32.xlu0 %v7247, 32
      %v7319 = vpop.permute.xlu0 %7318
      %7344 = vst.msk [vmem:[#allocation3 + $0x8] sm:$0xff] %vm6669, %v7273
      %7345 = vst.msk [vmem:[#allocation3 + $0x30] sm:$0xff] %vm6669, %v7275
      %7346 = vst.msk [vmem:[#allocation3 + $0x58] sm:$0xff] %vm6669, %v7277
      %7347 = vst.msk [vmem:[#allocation3 + $0x80] sm:$0xff] %vm6669, %v7279
      %7348 = vst.msk [vmem:[#allocation3 + $0xa8] sm:$0xff] %vm6669, %v7281
      %7349 = vst.msk [vmem:[#allocation3 + $0xd0] sm:$0xff] %vm6669, %v7283
      %7350 = vst.msk [vmem:[#allocation3 + $0xf8] sm:$0xff] %vm6669, %v7285
      %7351 = vst.msk [vmem:[#allocation3 + $0x120] sm:$0xff] %vm6669, %v7287
      %7352 = vst.msk [vmem:[#allocation3 + $0x148] sm:$0xff] %vm6669, %v7289
      %7353 = vst.msk [vmem:[#allocation3 + $0x170] sm:$0xff] %vm6669, %v7291
      %7354 = vst.msk [vmem:[#allocation3 + $0x198] sm:$0xff] %vm6669, %v7293
      %7355 = vst.msk [vmem:[#allocation3 + $0x1c0] sm:$0xff] %vm6669, %v7295
      %7356 = vst.msk [vmem:[#allocation3 + $0x1e8] sm:$0xff] %vm6669, %v7297
      %7357 = vst.msk [vmem:[#allocation3 + $0x210] sm:$0xff] %vm6669, %v7299
      %7358 = vst.msk [vmem:[#allocation3 + $0x238] sm:$0xff] %vm6669, %v7301
      %7359 = vst.msk [vmem:[#allocation3 + $0x260] sm:$0xff] %vm6669, %v7303
      %7360 = vst.msk [vmem:[#allocation3 + $0x288] sm:$0xff] %vm6669, %v7305
      %7361 = vst.msk [vmem:[#allocation3 + $0x2b0] sm:$0xff] %vm6669, %v7307
      %7362 = vst.msk [vmem:[#allocation3 + $0x2d8] sm:$0xff] %vm6669, %v7309
      %7363 = vst.msk [vmem:[#allocation3 + $0x300] sm:$0xff] %vm6669, %v7311
      %7364 = vst.msk [vmem:[#allocation3 + $0x328] sm:$0xff] %vm6669, %v7313
      %7365 = vst.msk [vmem:[#allocation3 + $0x350] sm:$0xff] %vm6669, %v7315
      %7366 = vst.msk [vmem:[#allocation3 + $0x378] sm:$0xff] %vm6669, %v7317
      %7367 = vst.msk [vmem:[#allocation3 + $0x3a0] sm:$0xff] %vm6669, %v7319
      %v7368 = vld [vmem:[#allocation2 + $0x29] sm:$0xff]
      %v7369 = vld [vmem:[#allocation2 + $0x31] sm:$0xff]
      %v7370 = vld [vmem:[#allocation2 + $0x39] sm:$0xff]
      %v7371 = vld [vmem:[#allocation2 + $0x41] sm:$0xff]
      %v7372 = vld [vmem:[#allocation2 + $0x49] sm:$0xff]
      %v7373 = vld [vmem:[#allocation2 + $0x51] sm:$0xff]
      %v7374 = vld [vmem:[#allocation2 + $0x59] sm:$0xff]
      %v7375 = vld [vmem:[#allocation2 + $0x61] sm:$0xff]
      %v7376 = vld [vmem:[#allocation2 + $0x69] sm:$0xff]
      %v7377 = vld [vmem:[#allocation2 + $0x71] sm:$0xff]
      %v7378 = vld [vmem:[#allocation2 + $0x79] sm:$0xff]
      %v7379 = vld [vmem:[#allocation2 + $0x81] sm:$0xff]
      %v7380 = vld [vmem:[#allocation2 + $0x89] sm:$0xff]
      %v7381 = vld [vmem:[#allocation2 + $0x91] sm:$0xff]
      %v7382 = vld [vmem:[#allocation2 + $0x99] sm:$0xff]
      %v7383 = vld [vmem:[#allocation2 + $0xa1] sm:$0xff]
      %v7384 = vld [vmem:[#allocation2 + $0xa9] sm:$0xff]
      %v7385 = vld [vmem:[#allocation2 + $0xb1] sm:$0xff]
      %v7386 = vld [vmem:[#allocation2 + $0xb9] sm:$0xff]
      %v7387 = vld [vmem:[#allocation2 + $0xc1] sm:$0xff]
      %v7388 = vld [vmem:[#allocation2 + $0xc9] sm:$0xff]
      %v7389 = vld [vmem:[#allocation2 + $0xd1] sm:$0xff]
      %v7390 = vld [vmem:[#allocation2 + $0xd9] sm:$0xff]
      %v7391 = vld [vmem:[#allocation2 + $0xe1] sm:$0xff]
      %v7392 = vld [vmem:[#allocation2 + $0xe9] sm:$0xff]
      %v7393 = vld [vmem:[#allocation2 + $0xf1] sm:$0xff]
      %v7394 = vld [vmem:[#allocation2 + $0xf9] sm:$0xff]
      %v7395 = vld [vmem:[#allocation2 + $0x101] sm:$0xff]
      %v7396 = vld [vmem:[#allocation2 + $0x109] sm:$0xff]
      %v7397 = vld [vmem:[#allocation2 + $0x111] sm:$0xff]
      %v7398 = vld [vmem:[#allocation2 + $0x119] sm:$0xff]
      %v7399 = vld [vmem:[#allocation2 + $0x121] sm:$0xff]
      %v7400 = vld [vmem:[#allocation2 + $0x129] sm:$0xff]
      %v7401 = vld [vmem:[#allocation2 + $0x131] sm:$0xff]
      %v7402 = vld [vmem:[#allocation2 + $0x139] sm:$0xff]
      %v7403 = vld [vmem:[#allocation2 + $0x141] sm:$0xff]
      %v7404 = vld [vmem:[#allocation2 + $0x149] sm:$0xff]
      %v7405 = vld [vmem:[#allocation2 + $0x151] sm:$0xff]
      %v7406 = vld [vmem:[#allocation2 + $0x159] sm:$0xff]
      %v7407 = vld [vmem:[#allocation2 + $0x161] sm:$0xff]
      %v7408 = vld [vmem:[#allocation2 + $0x169] sm:$0xff]
      %v7409 = vld [vmem:[#allocation2 + $0x171] sm:$0xff]
      %v7410 = vld [vmem:[#allocation2 + $0x179] sm:$0xff]
      %v7411 = vld [vmem:[#allocation2 + $0x181] sm:$0xff]
      %v7412 = vld [vmem:[#allocation2 + $0x189] sm:$0xff]
      %v7413 = vld [vmem:[#allocation2 + $0x191] sm:$0xff]
      %v7414 = vld [vmem:[#allocation2 + $0x199] sm:$0xff]
      %v7415 = vld [vmem:[#allocation2 + $0x1a1] sm:$0xff]
      %v7416 = vpack.c.bf16 %v7369, %v7368
      %v7417 = vpack.c.bf16 %v7371, %v7370
      %v7418 = vpack.c.bf16 %v7373, %v7372
      %v7419 = vpack.c.bf16 %v7375, %v7374
      %v7420 = vpack.c.bf16 %v7377, %v7376
      %v7421 = vpack.c.bf16 %v7379, %v7378
      %v7422 = vpack.c.bf16 %v7381, %v7380
      %v7423 = vpack.c.bf16 %v7383, %v7382
      %v7424 = vpack.c.bf16 %v7385, %v7384
      %v7425 = vpack.c.bf16 %v7387, %v7386
      %v7426 = vpack.c.bf16 %v7389, %v7388
      %v7427 = vpack.c.bf16 %v7391, %v7390
      %v7428 = vpack.c.bf16 %v7393, %v7392
      %v7429 = vpack.c.bf16 %v7395, %v7394
      %v7430 = vpack.c.bf16 %v7397, %v7396
      %v7431 = vpack.c.bf16 %v7399, %v7398
      %v7432 = vpack.c.bf16 %v7401, %v7400
      %v7433 = vpack.c.bf16 %v7403, %v7402
      %v7434 = vpack.c.bf16 %v7405, %v7404
      %v7435 = vpack.c.bf16 %v7407, %v7406
      %v7436 = vpack.c.bf16 %v7409, %v7408
      %v7437 = vpack.c.bf16 %v7411, %v7410
      %v7438 = vpack.c.bf16 %v7413, %v7412
      %v7439 = vpack.c.bf16 %v7415, %v7414
      %7464 = vrot.lane.b32.xlu0 %v7416, 64
      %v7465 = vpop.permute.xlu0 %7464
      %7466 = vrot.lane.b32.xlu0 %v7417, 64
      %v7467 = vpop.permute.xlu0 %7466
      %7468 = vrot.lane.b32.xlu0 %v7418, 64
      %v7469 = vpop.permute.xlu0 %7468
      %7470 = vrot.lane.b32.xlu0 %v7419, 64
      %v7471 = vpop.permute.xlu0 %7470
      %7472 = vrot.lane.b32.xlu0 %v7420, 64
      %v7473 = vpop.permute.xlu0 %7472
      %7474 = vrot.lane.b32.xlu0 %v7421, 64
      %v7475 = vpop.permute.xlu0 %7474
      %7476 = vrot.lane.b32.xlu0 %v7422, 64
      %v7477 = vpop.permute.xlu0 %7476
      %7478 = vrot.lane.b32.xlu0 %v7423, 64
      %v7479 = vpop.permute.xlu0 %7478
      %7480 = vrot.lane.b32.xlu0 %v7424, 64
      %v7481 = vpop.permute.xlu0 %7480
      %7482 = vrot.lane.b32.xlu0 %v7425, 64
      %v7483 = vpop.permute.xlu0 %7482
      %7484 = vrot.lane.b32.xlu0 %v7426, 64
      %v7485 = vpop.permute.xlu0 %7484
      %7486 = vrot.lane.b32.xlu0 %v7427, 64
      %v7487 = vpop.permute.xlu0 %7486
      %7488 = vrot.lane.b32.xlu0 %v7428, 64
      %v7489 = vpop.permute.xlu0 %7488
      %7490 = vrot.lane.b32.xlu0 %v7429, 64
      %v7491 = vpop.permute.xlu0 %7490
      %7492 = vrot.lane.b32.xlu0 %v7430, 64
      %v7493 = vpop.permute.xlu0 %7492
      %7494 = vrot.lane.b32.xlu0 %v7431, 64
      %v7495 = vpop.permute.xlu0 %7494
      %7496 = vrot.lane.b32.xlu0 %v7432, 64
      %v7497 = vpop.permute.xlu0 %7496
      %7498 = vrot.lane.b32.xlu0 %v7433, 64
      %v7499 = vpop.permute.xlu0 %7498
      %7500 = vrot.lane.b32.xlu0 %v7434, 64
      %v7501 = vpop.permute.xlu0 %7500
      %7502 = vrot.lane.b32.xlu0 %v7435, 64
      %v7503 = vpop.permute.xlu0 %7502
      %7504 = vrot.lane.b32.xlu0 %v7436, 64
      %v7505 = vpop.permute.xlu0 %7504
      %7506 = vrot.lane.b32.xlu0 %v7437, 64
      %v7507 = vpop.permute.xlu0 %7506
      %7508 = vrot.lane.b32.xlu0 %v7438, 64
      %v7509 = vpop.permute.xlu0 %7508
      %7510 = vrot.lane.b32.xlu0 %v7439, 64
      %v7511 = vpop.permute.xlu0 %7510
      %7536 = vst.msk [vmem:[#allocation3 + $0x8] sm:$0xff] %vm6862, %v7465
      %7537 = vst.msk [vmem:[#allocation3 + $0x30] sm:$0xff] %vm6862, %v7467
      %7538 = vst.msk [vmem:[#allocation3 + $0x58] sm:$0xff] %vm6862, %v7469
      %7539 = vst.msk [vmem:[#allocation3 + $0x80] sm:$0xff] %vm6862, %v7471
      %7540 = vst.msk [vmem:[#allocation3 + $0xa8] sm:$0xff] %vm6862, %v7473
      %7541 = vst.msk [vmem:[#allocation3 + $0xd0] sm:$0xff] %vm6862, %v7475
      %7542 = vst.msk [vmem:[#allocation3 + $0xf8] sm:$0xff] %vm6862, %v7477
      %7543 = vst.msk [vmem:[#allocation3 + $0x120] sm:$0xff] %vm6862, %v7479
      %7544 = vst.msk [vmem:[#allocation3 + $0x148] sm:$0xff] %vm6862, %v7481
      %7545 = vst.msk [vmem:[#allocation3 + $0x170] sm:$0xff] %vm6862, %v7483
      %7546 = vst.msk [vmem:[#allocation3 + $0x198] sm:$0xff] %vm6862, %v7485
      %7547 = vst.msk [vmem:[#allocation3 + $0x1c0] sm:$0xff] %vm6862, %v7487
      %7548 = vst.msk [vmem:[#allocation3 + $0x1e8] sm:$0xff] %vm6862, %v7489
      %7549 = vst.msk [vmem:[#allocation3 + $0x210] sm:$0xff] %vm6862, %v7491
      %7550 = vst.msk [vmem:[#allocation3 + $0x238] sm:$0xff] %vm6862, %v7493
      %7551 = vst.msk [vmem:[#allocation3 + $0x260] sm:$0xff] %vm6862, %v7495
      %7552 = vst.msk [vmem:[#allocation3 + $0x288] sm:$0xff] %vm6862, %v7497
      %7553 = vst.msk [vmem:[#allocation3 + $0x2b0] sm:$0xff] %vm6862, %v7499
      %7554 = vst.msk [vmem:[#allocation3 + $0x2d8] sm:$0xff] %vm6862, %v7501
      %7555 = vst.msk [vmem:[#allocation3 + $0x300] sm:$0xff] %vm6862, %v7503
      %7556 = vst.msk [vmem:[#allocation3 + $0x328] sm:$0xff] %vm6862, %v7505
      %7557 = vst.msk [vmem:[#allocation3 + $0x350] sm:$0xff] %vm6862, %v7507
      %7558 = vst.msk [vmem:[#allocation3 + $0x378] sm:$0xff] %vm6862, %v7509
      %7559 = vst.msk [vmem:[#allocation3 + $0x3a0] sm:$0xff] %vm6862, %v7511
      %v7560 = vld [vmem:[#allocation2 + $0x2a] sm:$0xff]
      %v7561 = vld [vmem:[#allocation2 + $0x32] sm:$0xff]
      %v7562 = vld [vmem:[#allocation2 + $0x3a] sm:$0xff]
      %v7563 = vld [vmem:[#allocation2 + $0x42] sm:$0xff]
      %v7564 = vld [vmem:[#allocation2 + $0x4a] sm:$0xff]
      %v7565 = vld [vmem:[#allocation2 + $0x52] sm:$0xff]
      %v7566 = vld [vmem:[#allocation2 + $0x5a] sm:$0xff]
      %v7567 = vld [vmem:[#allocation2 + $0x62] sm:$0xff]
      %v7568 = vld [vmem:[#allocation2 + $0x6a] sm:$0xff]
      %v7569 = vld [vmem:[#allocation2 + $0x72] sm:$0xff]
      %v7570 = vld [vmem:[#allocation2 + $0x7a] sm:$0xff]
      %v7571 = vld [vmem:[#allocation2 + $0x82] sm:$0xff]
      %v7572 = vld [vmem:[#allocation2 + $0x8a] sm:$0xff]
      %v7573 = vld [vmem:[#allocation2 + $0x92] sm:$0xff]
      %v7574 = vld [vmem:[#allocation2 + $0x9a] sm:$0xff]
      %v7575 = vld [vmem:[#allocation2 + $0xa2] sm:$0xff]
      %v7576 = vld [vmem:[#allocation2 + $0xaa] sm:$0xff]
      %v7577 = vld [vmem:[#allocation2 + $0xb2] sm:$0xff]
      %v7578 = vld [vmem:[#allocation2 + $0xba] sm:$0xff]
      %v7579 = vld [vmem:[#allocation2 + $0xc2] sm:$0xff]
      %v7580 = vld [vmem:[#allocation2 + $0xca] sm:$0xff]
      %v7581 = vld [vmem:[#allocation2 + $0xd2] sm:$0xff]
      %v7582 = vld [vmem:[#allocation2 + $0xda] sm:$0xff]
      %v7583 = vld [vmem:[#allocation2 + $0xe2] sm:$0xff]
      %v7584 = vld [vmem:[#allocation2 + $0xea] sm:$0xff]
      %v7585 = vld [vmem:[#allocation2 + $0xf2] sm:$0xff]
      %v7586 = vld [vmem:[#allocation2 + $0xfa] sm:$0xff]
      %v7587 = vld [vmem:[#allocation2 + $0x102] sm:$0xff]
      %v7588 = vld [vmem:[#allocation2 + $0x10a] sm:$0xff]
      %v7589 = vld [vmem:[#allocation2 + $0x112] sm:$0xff]
      %v7590 = vld [vmem:[#allocation2 + $0x11a] sm:$0xff]
      %v7591 = vld [vmem:[#allocation2 + $0x122] sm:$0xff]
      %v7592 = vld [vmem:[#allocation2 + $0x12a] sm:$0xff]
      %v7593 = vld [vmem:[#allocation2 + $0x132] sm:$0xff]
      %v7594 = vld [vmem:[#allocation2 + $0x13a] sm:$0xff]
      %v7595 = vld [vmem:[#allocation2 + $0x142] sm:$0xff]
      %v7596 = vld [vmem:[#allocation2 + $0x14a] sm:$0xff]
      %v7597 = vld [vmem:[#allocation2 + $0x152] sm:$0xff]
      %v7598 = vld [vmem:[#allocation2 + $0x15a] sm:$0xff]
      %v7599 = vld [vmem:[#allocation2 + $0x162] sm:$0xff]
      %v7600 = vld [vmem:[#allocation2 + $0x16a] sm:$0xff]
      %v7601 = vld [vmem:[#allocation2 + $0x172] sm:$0xff]
      %v7602 = vld [vmem:[#allocation2 + $0x17a] sm:$0xff]
      %v7603 = vld [vmem:[#allocation2 + $0x182] sm:$0xff]
      %v7604 = vld [vmem:[#allocation2 + $0x18a] sm:$0xff]
      %v7605 = vld [vmem:[#allocation2 + $0x192] sm:$0xff]
      %v7606 = vld [vmem:[#allocation2 + $0x19a] sm:$0xff]
      %v7607 = vld [vmem:[#allocation2 + $0x1a2] sm:$0xff]
      %v7608 = vpack.c.bf16 %v7561, %v7560
      %v7609 = vpack.c.bf16 %v7563, %v7562
      %v7610 = vpack.c.bf16 %v7565, %v7564
      %v7611 = vpack.c.bf16 %v7567, %v7566
      %v7612 = vpack.c.bf16 %v7569, %v7568
      %v7613 = vpack.c.bf16 %v7571, %v7570
      %v7614 = vpack.c.bf16 %v7573, %v7572
      %v7615 = vpack.c.bf16 %v7575, %v7574
      %v7616 = vpack.c.bf16 %v7577, %v7576
      %v7617 = vpack.c.bf16 %v7579, %v7578
      %v7618 = vpack.c.bf16 %v7581, %v7580
      %v7619 = vpack.c.bf16 %v7583, %v7582
      %v7620 = vpack.c.bf16 %v7585, %v7584
      %v7621 = vpack.c.bf16 %v7587, %v7586
      %v7622 = vpack.c.bf16 %v7589, %v7588
      %v7623 = vpack.c.bf16 %v7591, %v7590
      %v7624 = vpack.c.bf16 %v7593, %v7592
      %v7625 = vpack.c.bf16 %v7595, %v7594
      %v7626 = vpack.c.bf16 %v7597, %v7596
      %v7627 = vpack.c.bf16 %v7599, %v7598
      %v7628 = vpack.c.bf16 %v7601, %v7600
      %v7629 = vpack.c.bf16 %v7603, %v7602
      %v7630 = vpack.c.bf16 %v7605, %v7604
      %v7631 = vpack.c.bf16 %v7607, %v7606
      %7656 = vrot.lane.b32.xlu0 %v7608, 96
      %v7657 = vpop.permute.xlu0 %7656
      %7658 = vrot.lane.b32.xlu0 %v7609, 96
      %v7659 = vpop.permute.xlu0 %7658
      %7660 = vrot.lane.b32.xlu0 %v7610, 96
      %v7661 = vpop.permute.xlu0 %7660
      %7662 = vrot.lane.b32.xlu0 %v7611, 96
      %v7663 = vpop.permute.xlu0 %7662
      %7664 = vrot.lane.b32.xlu0 %v7612, 96
      %v7665 = vpop.permute.xlu0 %7664
      %7666 = vrot.lane.b32.xlu0 %v7613, 96
      %v7667 = vpop.permute.xlu0 %7666
      %7668 = vrot.lane.b32.xlu0 %v7614, 96
      %v7669 = vpop.permute.xlu0 %7668
      %7670 = vrot.lane.b32.xlu0 %v7615, 96
      %v7671 = vpop.permute.xlu0 %7670
      %7672 = vrot.lane.b32.xlu0 %v7616, 96
      %v7673 = vpop.permute.xlu0 %7672
      %7674 = vrot.lane.b32.xlu0 %v7617, 96
      %v7675 = vpop.permute.xlu0 %7674
      %7676 = vrot.lane.b32.xlu0 %v7618, 96
      %v7677 = vpop.permute.xlu0 %7676
      %7678 = vrot.lane.b32.xlu0 %v7619, 96
      %v7679 = vpop.permute.xlu0 %7678
      %7680 = vrot.lane.b32.xlu0 %v7620, 96
      %v7681 = vpop.permute.xlu0 %7680
      %7682 = vrot.lane.b32.xlu0 %v7621, 96
      %v7683 = vpop.permute.xlu0 %7682
      %7684 = vrot.lane.b32.xlu0 %v7622, 96
      %v7685 = vpop.permute.xlu0 %7684
      %7686 = vrot.lane.b32.xlu0 %v7623, 96
      %v7687 = vpop.permute.xlu0 %7686
      %7688 = vrot.lane.b32.xlu0 %v7624, 96
      %v7689 = vpop.permute.xlu0 %7688
      %7690 = vrot.lane.b32.xlu0 %v7625, 96
      %v7691 = vpop.permute.xlu0 %7690
      %7692 = vrot.lane.b32.xlu0 %v7626, 96
      %v7693 = vpop.permute.xlu0 %7692
      %7694 = vrot.lane.b32.xlu0 %v7627, 96
      %v7695 = vpop.permute.xlu0 %7694
      %7696 = vrot.lane.b32.xlu0 %v7628, 96
      %v7697 = vpop.permute.xlu0 %7696
      %7698 = vrot.lane.b32.xlu0 %v7629, 96
      %v7699 = vpop.permute.xlu0 %7698
      %7700 = vrot.lane.b32.xlu0 %v7630, 96
      %v7701 = vpop.permute.xlu0 %7700
      %7702 = vrot.lane.b32.xlu0 %v7631, 96
      %v7703 = vpop.permute.xlu0 %7702
      %7728 = vst.msk [vmem:[#allocation3 + $0x8] sm:$0xff] %vm7055, %v7657
      %7729 = vst.msk [vmem:[#allocation3 + $0x30] sm:$0xff] %vm7055, %v7659
      %7730 = vst.msk [vmem:[#allocation3 + $0x58] sm:$0xff] %vm7055, %v7661
      %7731 = vst.msk [vmem:[#allocation3 + $0x80] sm:$0xff] %vm7055, %v7663
      %7732 = vst.msk [vmem:[#allocation3 + $0xa8] sm:$0xff] %vm7055, %v7665
      %7733 = vst.msk [vmem:[#allocation3 + $0xd0] sm:$0xff] %vm7055, %v7667
      %7734 = vst.msk [vmem:[#allocation3 + $0xf8] sm:$0xff] %vm7055, %v7669
      %7735 = vst.msk [vmem:[#allocation3 + $0x120] sm:$0xff] %vm7055, %v7671
      %7736 = vst.msk [vmem:[#allocation3 + $0x148] sm:$0xff] %vm7055, %v7673
      %7737 = vst.msk [vmem:[#allocation3 + $0x170] sm:$0xff] %vm7055, %v7675
      %7738 = vst.msk [vmem:[#allocation3 + $0x198] sm:$0xff] %vm7055, %v7677
      %7739 = vst.msk [vmem:[#allocation3 + $0x1c0] sm:$0xff] %vm7055, %v7679
      %7740 = vst.msk [vmem:[#allocation3 + $0x1e8] sm:$0xff] %vm7055, %v7681
      %7741 = vst.msk [vmem:[#allocation3 + $0x210] sm:$0xff] %vm7055, %v7683
      %7742 = vst.msk [vmem:[#allocation3 + $0x238] sm:$0xff] %vm7055, %v7685
      %7743 = vst.msk [vmem:[#allocation3 + $0x260] sm:$0xff] %vm7055, %v7687
      %7744 = vst.msk [vmem:[#allocation3 + $0x288] sm:$0xff] %vm7055, %v7689
      %7745 = vst.msk [vmem:[#allocation3 + $0x2b0] sm:$0xff] %vm7055, %v7691
      %7746 = vst.msk [vmem:[#allocation3 + $0x2d8] sm:$0xff] %vm7055, %v7693
      %7747 = vst.msk [vmem:[#allocation3 + $0x300] sm:$0xff] %vm7055, %v7695
      %7748 = vst.msk [vmem:[#allocation3 + $0x328] sm:$0xff] %vm7055, %v7697
      %7749 = vst.msk [vmem:[#allocation3 + $0x350] sm:$0xff] %vm7055, %v7699
      %7750 = vst.msk [vmem:[#allocation3 + $0x378] sm:$0xff] %vm7055, %v7701
      %7751 = vst.msk [vmem:[#allocation3 + $0x3a0] sm:$0xff] %vm7055, %v7703
      %v7752 = vld [vmem:[#allocation2 + $0x2b] sm:$0xff]
      %v7753 = vld [vmem:[#allocation2 + $0x33] sm:$0xff]
      %v7754 = vld [vmem:[#allocation2 + $0x3b] sm:$0xff]
      %v7755 = vld [vmem:[#allocation2 + $0x43] sm:$0xff]
      %v7756 = vld [vmem:[#allocation2 + $0x4b] sm:$0xff]
      %v7757 = vld [vmem:[#allocation2 + $0x53] sm:$0xff]
      %v7758 = vld [vmem:[#allocation2 + $0x5b] sm:$0xff]
      %v7759 = vld [vmem:[#allocation2 + $0x63] sm:$0xff]
      %v7760 = vld [vmem:[#allocation2 + $0x6b] sm:$0xff]
      %v7761 = vld [vmem:[#allocation2 + $0x73] sm:$0xff]
      %v7762 = vld [vmem:[#allocation2 + $0x7b] sm:$0xff]
      %v7763 = vld [vmem:[#allocation2 + $0x83] sm:$0xff]
      %v7764 = vld [vmem:[#allocation2 + $0x8b] sm:$0xff]
      %v7765 = vld [vmem:[#allocation2 + $0x93] sm:$0xff]
      %v7766 = vld [vmem:[#allocation2 + $0x9b] sm:$0xff]
      %v7767 = vld [vmem:[#allocation2 + $0xa3] sm:$0xff]
      %v7768 = vld [vmem:[#allocation2 + $0xab] sm:$0xff]
      %v7769 = vld [vmem:[#allocation2 + $0xb3] sm:$0xff]
      %v7770 = vld [vmem:[#allocation2 + $0xbb] sm:$0xff]
      %v7771 = vld [vmem:[#allocation2 + $0xc3] sm:$0xff]
      %v7772 = vld [vmem:[#allocation2 + $0xcb] sm:$0xff]
      %v7773 = vld [vmem:[#allocation2 + $0xd3] sm:$0xff]
      %v7774 = vld [vmem:[#allocation2 + $0xdb] sm:$0xff]
      %v7775 = vld [vmem:[#allocation2 + $0xe3] sm:$0xff]
      %v7776 = vld [vmem:[#allocation2 + $0xeb] sm:$0xff]
      %v7777 = vld [vmem:[#allocation2 + $0xf3] sm:$0xff]
      %v7778 = vld [vmem:[#allocation2 + $0xfb] sm:$0xff]
      %v7779 = vld [vmem:[#allocation2 + $0x103] sm:$0xff]
      %v7780 = vld [vmem:[#allocation2 + $0x10b] sm:$0xff]
      %v7781 = vld [vmem:[#allocation2 + $0x113] sm:$0xff]
      %v7782 = vld [vmem:[#allocation2 + $0x11b] sm:$0xff]
      %v7783 = vld [vmem:[#allocation2 + $0x123] sm:$0xff]
      %v7784 = vld [vmem:[#allocation2 + $0x12b] sm:$0xff]
      %v7785 = vld [vmem:[#allocation2 + $0x133] sm:$0xff]
      %v7786 = vld [vmem:[#allocation2 + $0x13b] sm:$0xff]
      %v7787 = vld [vmem:[#allocation2 + $0x143] sm:$0xff]
      %v7788 = vld [vmem:[#allocation2 + $0x14b] sm:$0xff]
      %v7789 = vld [vmem:[#allocation2 + $0x153] sm:$0xff]
      %v7790 = vld [vmem:[#allocation2 + $0x15b] sm:$0xff]
      %v7791 = vld [vmem:[#allocation2 + $0x163] sm:$0xff]
      %v7792 = vld [vmem:[#allocation2 + $0x16b] sm:$0xff]
      %v7793 = vld [vmem:[#allocation2 + $0x173] sm:$0xff]
      %v7794 = vld [vmem:[#allocation2 + $0x17b] sm:$0xff]
      %v7795 = vld [vmem:[#allocation2 + $0x183] sm:$0xff]
      %v7796 = vld [vmem:[#allocation2 + $0x18b] sm:$0xff]
      %v7797 = vld [vmem:[#allocation2 + $0x193] sm:$0xff]
      %v7798 = vld [vmem:[#allocation2 + $0x19b] sm:$0xff]
      %v7799 = vld [vmem:[#allocation2 + $0x1a3] sm:$0xff]
      %v7800 = vpack.c.bf16 %v7753, %v7752
      %v7801 = vpack.c.bf16 %v7755, %v7754
      %v7802 = vpack.c.bf16 %v7757, %v7756
      %v7803 = vpack.c.bf16 %v7759, %v7758
      %v7804 = vpack.c.bf16 %v7761, %v7760
      %v7805 = vpack.c.bf16 %v7763, %v7762
      %v7806 = vpack.c.bf16 %v7765, %v7764
      %v7807 = vpack.c.bf16 %v7767, %v7766
      %v7808 = vpack.c.bf16 %v7769, %v7768
      %v7809 = vpack.c.bf16 %v7771, %v7770
      %v7810 = vpack.c.bf16 %v7773, %v7772
      %v7811 = vpack.c.bf16 %v7775, %v7774
      %v7812 = vpack.c.bf16 %v7777, %v7776
      %v7813 = vpack.c.bf16 %v7779, %v7778
      %v7814 = vpack.c.bf16 %v7781, %v7780
      %v7815 = vpack.c.bf16 %v7783, %v7782
      %v7816 = vpack.c.bf16 %v7785, %v7784
      %v7817 = vpack.c.bf16 %v7787, %v7786
      %v7818 = vpack.c.bf16 %v7789, %v7788
      %v7819 = vpack.c.bf16 %v7791, %v7790
      %v7820 = vpack.c.bf16 %v7793, %v7792
      %v7821 = vpack.c.bf16 %v7795, %v7794
      %v7822 = vpack.c.bf16 %v7797, %v7796
      %v7823 = vpack.c.bf16 %v7799, %v7798
      %7824 = vst.msk [vmem:[#allocation3 + $0x10] sm:$0xff] %vm6356, %v7800
      %7825 = vst.msk [vmem:[#allocation3 + $0x38] sm:$0xff] %vm6356, %v7801
      %7826 = vst.msk [vmem:[#allocation3 + $0x60] sm:$0xff] %vm6356, %v7802
      %7827 = vst.msk [vmem:[#allocation3 + $0x88] sm:$0xff] %vm6356, %v7803
      %7828 = vst.msk [vmem:[#allocation3 + $0xb0] sm:$0xff] %vm6356, %v7804
      %7829 = vst.msk [vmem:[#allocation3 + $0xd8] sm:$0xff] %vm6356, %v7805
      %7830 = vst.msk [vmem:[#allocation3 + $0x100] sm:$0xff] %vm6356, %v7806
      %7831 = vst.msk [vmem:[#allocation3 + $0x128] sm:$0xff] %vm6356, %v7807
      %7832 = vst.msk [vmem:[#allocation3 + $0x150] sm:$0xff] %vm6356, %v7808
      %7833 = vst.msk [vmem:[#allocation3 + $0x178] sm:$0xff] %vm6356, %v7809
      %7834 = vst.msk [vmem:[#allocation3 + $0x1a0] sm:$0xff] %vm6356, %v7810
      %7835 = vst.msk [vmem:[#allocation3 + $0x1c8] sm:$0xff] %vm6356, %v7811
      %7836 = vst.msk [vmem:[#allocation3 + $0x1f0] sm:$0xff] %vm6356, %v7812
      %7837 = vst.msk [vmem:[#allocation3 + $0x218] sm:$0xff] %vm6356, %v7813
      %7838 = vst.msk [vmem:[#allocation3 + $0x240] sm:$0xff] %vm6356, %v7814
      %7839 = vst.msk [vmem:[#allocation3 + $0x268] sm:$0xff] %vm6356, %v7815
      %7840 = vst.msk [vmem:[#allocation3 + $0x290] sm:$0xff] %vm6356, %v7816
      %7841 = vst.msk [vmem:[#allocation3 + $0x2b8] sm:$0xff] %vm6356, %v7817
      %7842 = vst.msk [vmem:[#allocation3 + $0x2e0] sm:$0xff] %vm6356, %v7818
      %7843 = vst.msk [vmem:[#allocation3 + $0x308] sm:$0xff] %vm6356, %v7819
      %7844 = vst.msk [vmem:[#allocation3 + $0x330] sm:$0xff] %vm6356, %v7820
      %7845 = vst.msk [vmem:[#allocation3 + $0x358] sm:$0xff] %vm6356, %v7821
      %7846 = vst.msk [vmem:[#allocation3 + $0x380] sm:$0xff] %vm6356, %v7822
      %7847 = vst.msk [vmem:[#allocation3 + $0x3a8] sm:$0xff] %vm6356, %v7823
      %v7848 = vld [vmem:[#allocation3] sm:$0xff]
      %v7849 = vld [vmem:[#allocation3 + $0x8] sm:$0xff]
      %v7850 = vld [vmem:[#allocation3 + $0x10] sm:$0xff]
      %v7851 = vld [vmem:[#allocation3 + $0x28] sm:$0xff]
      %v7852 = vld [vmem:[#allocation3 + $0x30] sm:$0xff]
      %v7853 = vld [vmem:[#allocation3 + $0x38] sm:$0xff]
      %v7854 = vld [vmem:[#allocation3 + $0x50] sm:$0xff]
      %v7855 = vld [vmem:[#allocation3 + $0x58] sm:$0xff]
      %v7856 = vld [vmem:[#allocation3 + $0x60] sm:$0xff]
      %v7857 = vld [vmem:[#allocation3 + $0x78] sm:$0xff]
      %v7858 = vld [vmem:[#allocation3 + $0x80] sm:$0xff]
      %v7859 = vld [vmem:[#allocation3 + $0x88] sm:$0xff]
      %v7860 = vld [vmem:[#allocation3 + $0xa0] sm:$0xff]
      %v7861 = vld [vmem:[#allocation3 + $0xa8] sm:$0xff]
      %v7862 = vld [vmem:[#allocation3 + $0xb0] sm:$0xff]
      %v7863 = vld [vmem:[#allocation3 + $0xc8] sm:$0xff]
      %v7864 = vld [vmem:[#allocation3 + $0xd0] sm:$0xff]
      %v7865 = vld [vmem:[#allocation3 + $0xd8] sm:$0xff]
      %v7866 = vld [vmem:[#allocation3 + $0xf0] sm:$0xff]
      %v7867 = vld [vmem:[#allocation3 + $0xf8] sm:$0xff]
      %v7868 = vld [vmem:[#allocation3 + $0x100] sm:$0xff]
      %v7869 = vld [vmem:[#allocation3 + $0x118] sm:$0xff]
      %v7870 = vld [vmem:[#allocation3 + $0x120] sm:$0xff]
      %v7871 = vld [vmem:[#allocation3 + $0x128] sm:$0xff]
      %v7872 = vld [vmem:[#allocation3 + $0x140] sm:$0xff]
      %v7873 = vld [vmem:[#allocation3 + $0x148] sm:$0xff]
      %v7874 = vld [vmem:[#allocation3 + $0x150] sm:$0xff]
      %v7875 = vld [vmem:[#allocation3 + $0x168] sm:$0xff]
      %v7876 = vld [vmem:[#allocation3 + $0x170] sm:$0xff]
      %v7877 = vld [vmem:[#allocation3 + $0x178] sm:$0xff]
      %v7878 = vld [vmem:[#allocation3 + $0x190] sm:$0xff]
      %v7879 = vld [vmem:[#allocation3 + $0x198] sm:$0xff]
      %v7880 = vld [vmem:[#allocation3 + $0x1a0] sm:$0xff]
      %v7881 = vld [vmem:[#allocation3 + $0x1b8] sm:$0xff]
      %v7882 = vld [vmem:[#allocation3 + $0x1c0] sm:$0xff]
      %v7883 = vld [vmem:[#allocation3 + $0x1c8] sm:$0xff]
      %v7884 = vld [vmem:[#allocation3 + $0x1e0] sm:$0xff]
      %v7885 = vld [vmem:[#allocation3 + $0x1e8] sm:$0xff]
      %v7886 = vld [vmem:[#allocation3 + $0x1f0] sm:$0xff]
      %v7887 = vld [vmem:[#allocation3 + $0x208] sm:$0xff]
      %v7888 = vld [vmem:[#allocation3 + $0x210] sm:$0xff]
      %v7889 = vld [vmem:[#allocation3 + $0x218] sm:$0xff]
      %v7890 = vld [vmem:[#allocation3 + $0x230] sm:$0xff]
      %v7891 = vld [vmem:[#allocation3 + $0x238] sm:$0xff]
      %v7892 = vld [vmem:[#allocation3 + $0x240] sm:$0xff]
      %v7893 = vld [vmem:[#allocation3 + $0x258] sm:$0xff]
      %v7894 = vld [vmem:[#allocation3 + $0x260] sm:$0xff]
      %v7895 = vld [vmem:[#allocation3 + $0x268] sm:$0xff]
      %v7896 = vld [vmem:[#allocation3 + $0x280] sm:$0xff]
      %v7897 = vld [vmem:[#allocation3 + $0x288] sm:$0xff]
      %v7898 = vld [vmem:[#allocation3 + $0x290] sm:$0xff]
      %v7899 = vld [vmem:[#allocation3 + $0x2a8] sm:$0xff]
      %v7900 = vld [vmem:[#allocation3 + $0x2b0] sm:$0xff]
      %v7901 = vld [vmem:[#allocation3 + $0x2b8] sm:$0xff]
      %v7902 = vld [vmem:[#allocation3 + $0x2d0] sm:$0xff]
      %v7903 = vld [vmem:[#allocation3 + $0x2d8] sm:$0xff]
      %v7904 = vld [vmem:[#allocation3 + $0x2e0] sm:$0xff]
      %v7905 = vld [vmem:[#allocation3 + $0x2f8] sm:$0xff]
      %v7906 = vld [vmem:[#allocation3 + $0x300] sm:$0xff]
      %v7907 = vld [vmem:[#allocation3 + $0x308] sm:$0xff]
      %v7908 = vld [vmem:[#allocation3 + $0x320] sm:$0xff]
      %v7909 = vld [vmem:[#allocation3 + $0x328] sm:$0xff]
      %v7910 = vld [vmem:[#allocation3 + $0x330] sm:$0xff]
      %v7911 = vld [vmem:[#allocation3 + $0x348] sm:$0xff]
      %v7912 = vld [vmem:[#allocation3 + $0x350] sm:$0xff]
      %v7913 = vld [vmem:[#allocation3 + $0x358] sm:$0xff]
      %v7914 = vld [vmem:[#allocation3 + $0x370] sm:$0xff]
      %v7915 = vld [vmem:[#allocation3 + $0x378] sm:$0xff]
      %v7916 = vld [vmem:[#allocation3 + $0x380] sm:$0xff]
      %v7917 = vld [vmem:[#allocation3 + $0x398] sm:$0xff]
      %v7918 = vld [vmem:[#allocation3 + $0x3a0] sm:$0xff]
      %v7919 = vld [vmem:[#allocation3 + $0x3a8] sm:$0xff]
      %v7920 = vld [vmem:[%s8] sm:$0xf]
      %v7921 = vld [vmem:[%s8 + $0x4] sm:$0xf]
      %v7922 = vld [vmem:[%s8 + $0x8] sm:$0xf]
      %v7923 = vld [vmem:[%s8 + $0xc] sm:$0xf]
      %v7924 = vld [vmem:[%s8 + $0x10] sm:$0xf]
      %v7925 = vld [vmem:[%s8 + $0x14] sm:$0xf]
      %v7926 = vld [vmem:[%s8 + $0x18] sm:$0xf]
      %v7927 = vld [vmem:[%s8 + $0x1c] sm:$0xf]
      %v7928 = vld [vmem:[%s8 + $0x20] sm:$0xf]
      %v7929 = vld [vmem:[%s8 + $0x24] sm:$0xf]
      %v7930 = vld [vmem:[%s8 + $0x28] sm:$0xf]
      %v7931 = vld [vmem:[%s8 + $0x2c] sm:$0xf]
      %v7932 = vld [vmem:[%s8 + $0x30] sm:$0xf]
      %v7933 = vld [vmem:[%s8 + $0x34] sm:$0xf]
      %v7934 = vld [vmem:[%s8 + $0x38] sm:$0xf]
      %v7935 = vld [vmem:[%s8 + $0x3c] sm:$0xf]
      %v7936 = vld [vmem:[%s8 + $0x40] sm:$0xf]
      %v7937 = vld [vmem:[%s8 + $0x44] sm:$0xf]
      %v7938 = vld [vmem:[%s8 + $0x48] sm:$0xf]
      %v7939 = vld [vmem:[%s8 + $0x4c] sm:$0xf]
      %v7940 = vld [vmem:[%s8 + $0x50] sm:$0xf]
      %v7941 = vld [vmem:[%s8 + $0x54] sm:$0xf]
      %v7942 = vld [vmem:[%s8 + $0x58] sm:$0xf]
      %v7943 = vld [vmem:[%s8 + $0x5c] sm:$0xf]
      %v7944 = vld [vmem:[%s8 + $0x60] sm:$0xf]
      %v7945 = vld [vmem:[%s8 + $0x64] sm:$0xf]
      %v7946 = vld [vmem:[%s8 + $0x68] sm:$0xf]
      %v7947 = vld [vmem:[%s8 + $0x6c] sm:$0xf]
      %v7948 = vld [vmem:[%s8 + $0x70] sm:$0xf]
      %v7949 = vld [vmem:[%s8 + $0x74] sm:$0xf]
      %v7950 = vld [vmem:[%s8 + $0x78] sm:$0xf]
      %v7951 = vld [vmem:[%s8 + $0x7c] sm:$0xf]
      %v7952 = vld [vmem:[%s8 + $0x80] sm:$0xf]
      %v7953 = vld [vmem:[%s8 + $0x84] sm:$0xf]
      %v7954 = vld [vmem:[%s8 + $0x88] sm:$0xf]
      %v7955 = vld [vmem:[%s8 + $0x8c] sm:$0xf]
      %v7956 = vld [vmem:[%s9] sm:$0x1]
      %v7958 = vlaneseq
      %v7959 = vshrl.u32 %v7958, 7
      %v7960 = vsub.s32 0, %v7959
      %v7961 = vrot.slane %v7956, %v7960
      %v7999 = vunpack.c.l.b16 %v7920
      %v8000 = vunpack.c.l.b16 %v7921
      %v8001 = vunpack.c.l.b16 %v7922
      %v8002 = vunpack.c.l.b16 %v7923
      %v8003 = vunpack.c.l.b16 %v7924
      %v8004 = vunpack.c.l.b16 %v7925
      %v8005 = vunpack.c.l.b16 %v7926
      %v8006 = vunpack.c.l.b16 %v7927
      %v8007 = vunpack.c.l.b16 %v7928
      %v8008 = vunpack.c.l.b16 %v7929
      %v8009 = vunpack.c.l.b16 %v7930
      %v8010 = vunpack.c.l.b16 %v7931
      %v8011 = vunpack.c.l.b16 %v7932
      %v8012 = vunpack.c.l.b16 %v7933
      %v8013 = vunpack.c.l.b16 %v7934
      %v8014 = vunpack.c.l.b16 %v7935
      %v8015 = vunpack.c.l.b16 %v7936
      %v8016 = vunpack.c.l.b16 %v7937
      %v8017 = vunpack.c.l.b16 %v7938
      %v8018 = vunpack.c.l.b16 %v7939
      %v8019 = vunpack.c.l.b16 %v7940
      %v8020 = vunpack.c.l.b16 %v7941
      %v8021 = vunpack.c.l.b16 %v7942
      %v8022 = vunpack.c.l.b16 %v7943
      %v8023 = vunpack.c.l.b16 %v7944
      %v8024 = vunpack.c.l.b16 %v7945
      %v8025 = vunpack.c.l.b16 %v7946
      %v8026 = vunpack.c.l.b16 %v7947
      %v8027 = vunpack.c.l.b16 %v7948
      %v8028 = vunpack.c.l.b16 %v7949
      %v8029 = vunpack.c.l.b16 %v7950
      %v8030 = vunpack.c.l.b16 %v7951
      %v8031 = vunpack.c.l.b16 %v7952
      %v8032 = vunpack.c.l.b16 %v7953
      %v8033 = vunpack.c.l.b16 %v7954
      %v8034 = vunpack.c.l.b16 %v7955
      %v8035 = vpack.c.b16 %v8000, %v7999
      %v8036 = vpack.c.b16 %v8002, %v8001
      %v8037 = vpack.c.b16 %v8004, %v8003
      %v8038 = vpack.c.b16 %v8006, %v8005
      %v8039 = vpack.c.b16 %v8008, %v8007
      %v8040 = vpack.c.b16 %v8010, %v8009
      %v8041 = vpack.c.b16 %v8012, %v8011
      %v8042 = vpack.c.b16 %v8014, %v8013
      %v8043 = vpack.c.b16 %v8016, %v8015
      %v8044 = vpack.c.b16 %v8018, %v8017
      %v8045 = vpack.c.b16 %v8020, %v8019
      %v8046 = vpack.c.b16 %v8022, %v8021
      %v8047 = vpack.c.b16 %v8024, %v8023
      %v8048 = vpack.c.b16 %v8026, %v8025
      %v8049 = vpack.c.b16 %v8028, %v8027
      %v8050 = vpack.c.b16 %v8030, %v8029
      %v8051 = vpack.c.b16 %v8032, %v8031
      %v8052 = vpack.c.b16 %v8034, %v8033
      %v8072 = vsel %vm6356, %v7850, 0
      %v8075 = vsel %vm6356, %v7853, 0
      %v8078 = vsel %vm6356, %v7856, 0
      %v8081 = vsel %vm6356, %v7859, 0
      %v8084 = vsel %vm6356, %v7862, 0
      %v8087 = vsel %vm6356, %v7865, 0
      %v8090 = vsel %vm6356, %v7868, 0
      %v8093 = vsel %vm6356, %v7871, 0
      %v8096 = vsel %vm6356, %v7874, 0
      %v8099 = vsel %vm6356, %v7877, 0
      %v8102 = vsel %vm6356, %v7880, 0
      %v8105 = vsel %vm6356, %v7883, 0
      %v8108 = vsel %vm6356, %v7886, 0
      %v8111 = vsel %vm6356, %v7889, 0
      %v8114 = vsel %vm6356, %v7892, 0
      %v8117 = vsel %vm6356, %v7895, 0
      %v8120 = vsel %vm6356, %v7898, 0
      %v8123 = vsel %vm6356, %v7901, 0
      %v8126 = vsel %vm6356, %v7904, 0
      %v8129 = vsel %vm6356, %v7907, 0
      %v8132 = vsel %vm6356, %v7910, 0
      %v8135 = vsel %vm6356, %v7913, 0
      %v8138 = vsel %vm6356, %v7916, 0
      %v8141 = vsel %vm6356, %v7919, 0
      %8143 = vmatprep.subr.bf16.mxu0 0
      %8144 = vmatpush1.bf16.msra.mxu0 %v8035
      %8145 = vmatprep.subr.bf16.mxu0 0
      %8146 = vmatpush1.bf16.msra.mxu0 %v8036
      %8147 = vmatprep.subr.bf16.mxu0 0
      %8148 = vmatpush1.bf16.msra.mxu0 %v8037
      %8149 = vmatprep.subr.bf16.mxu0 0
      %8150 = vmatpush1.bf16.msra.mxu0 %v8038
      %8151 = vmatprep.subr.bf16.mxu0 0
      %8152 = vmatpush1.bf16.msra.mxu0 %v8039
      %8153 = vmatprep.subr.bf16.mxu0 0
      %8154 = vmatpush1.bf16.msra.mxu0 %v8040
      %8155 = vmatprep.subr.bf16.mxu0 0
      %8156 = vmatpush1.bf16.msra.mxu0 %v8041
      %8157 = vmatprep.subr.bf16.mxu0 0
      %8158 = vmatpush1.bf16.msra.mxu0 %v8042
      %8159 = vmatprep.subr.bf16.mxu0 0
      %8160 = vmatpush1.bf16.msra.mxu0 %v8043
      %8161 = vmatprep.subr.bf16.mxu0 0
      %8162 = vmatpush1.bf16.msra.mxu0 %v8044
      %8163 = vmatprep.subr.bf16.mxu0 0
      %8164 = vmatpush1.bf16.msra.mxu0 %v8045
      %8165 = vmatprep.subr.bf16.mxu0 0
      %8166 = vmatpush1.bf16.msra.mxu0 %v8046
      %8167 = vmatprep.subr.bf16.mxu0 0
      %8168 = vmatpush1.bf16.msra.mxu0 %v8047
      %8169 = vmatprep.subr.bf16.mxu0 0
      %8170 = vmatpush1.bf16.msra.mxu0 %v8048
      %8171 = vmatprep.subr.bf16.mxu0 0
      %8172 = vmatpush1.bf16.msra.mxu0 %v8049
      %8173 = vmatprep.subr.bf16.mxu0 0
      %8174 = vmatpush1.bf16.msra.mxu0 %v8050
      %8175 = vmatprep.mubr.bf16.mxu0 %v7849
      %8176 = vmatmul.mubr.bf16.gmra.mrb[0].mxu0 %v7848
      %v8177 = vpop.f32.mrb[0].mxu0
      %v8178 = vadd.f32 %v7961, %v8177
      %v8179 = vpop.f32.mrb[0].mxu0
      %v8180 = vpop.f32.mrb[0].mxu0
      %v8181 = vadd.f32 %v7961, %v8180
      %v8182 = vpop.f32.mrb[0].mxu0
      %8183 = vmatprep.mubr.bf16.mxu0 %v7852
      %8184 = vmatmul.mubr.bf16.gmra.mrb[0].mxu0 %v7851
      %v8185 = vpop.f32.mrb[0].mxu0
      %v8186 = vadd.f32 %v7961, %v8185
      %v8187 = vpop.f32.mrb[0].mxu0
      %v8188 = vpop.f32.mrb[0].mxu0
      %v8189 = vadd.f32 %v7961, %v8188
      %v8190 = vpop.f32.mrb[0].mxu0
      %8191 = vmatprep.mubr.bf16.mxu0 %v7855
      %8192 = vmatmul.mubr.bf16.gmra.mrb[0].mxu0 %v7854
      %v8193 = vpop.f32.mrb[0].mxu0
      %v8194 = vadd.f32 %v7961, %v8193
      %v8195 = vpop.f32.mrb[0].mxu0
      %v8196 = vpop.f32.mrb[0].mxu0
      %v8197 = vadd.f32 %v7961, %v8196
      %v8198 = vpop.f32.mrb[0].mxu0
      %8199 = vmatprep.mubr.bf16.mxu0 %v7858
      %8200 = vmatmul.mubr.bf16.gmra.mrb[0].mxu0 %v7857
      %v8201 = vpop.f32.mrb[0].mxu0
      %v8202 = vadd.f32 %v7961, %v8201
      %v8203 = vpop.f32.mrb[0].mxu0
      %v8204 = vpop.f32.mrb[0].mxu0
      %v8205 = vadd.f32 %v7961, %v8204
      %v8206 = vpop.f32.mrb[0].mxu0
      %8207 = vmatprep.mubr.bf16.mxu0 %v7861
      %8208 = vmatmul.mubr.bf16.gmra.mrb[0].mxu0 %v7860
      %v8209 = vpop.f32.mrb[0].mxu0
      %v8210 = vadd.f32 %v7961, %v8209
      %v8211 = vpop.f32.mrb[0].mxu0
      %v8212 = vpop.f32.mrb[0].mxu0
      %v8213 = vadd.f32 %v7961, %v8212
      %v8214 = vpop.f32.mrb[0].mxu0
      %8215 = vmatprep.mubr.bf16.mxu0 %v7864
      %8216 = vmatmul.mubr.bf16.gmra.mrb[0].mxu0 %v7863
      %v8217 = vpop.f32.mrb[0].mxu0
      %v8218 = vadd.f32 %v7961, %v8217
      %v8219 = vpop.f32.mrb[0].mxu0
      %v8220 = vpop.f32.mrb[0].mxu0
      %v8221 = vadd.f32 %v7961, %v8220
      %v8222 = vpop.f32.mrb[0].mxu0
      %8223 = vmatprep.mubr.bf16.mxu0 %v7867
      %8224 = vmatmul.mubr.bf16.gmra.mrb[0].mxu0 %v7866
      %v8225 = vpop.f32.mrb[0].mxu0
      %v8226 = vadd.f32 %v7961, %v8225
      %v8227 = vpop.f32.mrb[0].mxu0
      %v8228 = vpop.f32.mrb[0].mxu0
      %v8229 = vadd.f32 %v7961, %v8228
      %v8230 = vpop.f32.mrb[0].mxu0
      %8231 = vmatprep.mubr.bf16.mxu0 %v7870
      %8232 = vmatmul.mubr.bf16.gmra.mrb[0].mxu0 %v7869
      %v8233 = vpop.f32.mrb[0].mxu0
      %v8234 = vadd.f32 %v7961, %v8233
      %v8235 = vpop.f32.mrb[0].mxu0
      %v8236 = vpop.f32.mrb[0].mxu0
      %v8237 = vadd.f32 %v7961, %v8236
      %v8238 = vpop.f32.mrb[0].mxu0
      %8239 = vmatprep.mubr.bf16.mxu0 %v7873
      %8240 = vmatmul.mubr.bf16.gmra.mrb[0].mxu0 %v7872
      %v8241 = vpop.f32.mrb[0].mxu0
      %v8242 = vadd.f32 %v7961, %v8241
      %v8243 = vpop.f32.mrb[0].mxu0
      %v8244 = vpop.f32.mrb[0].mxu0
      %v8245 = vadd.f32 %v7961, %v8244
      %v8246 = vpop.f32.mrb[0].mxu0
      %8247 = vmatprep.mubr.bf16.mxu0 %v7876
      %8248 = vmatmul.mubr.bf16.gmra.mrb[0].mxu0 %v7875
      %v8249 = vpop.f32.mrb[0].mxu0
      %v8250 = vadd.f32 %v7961, %v8249
      %v8251 = vpop.f32.mrb[0].mxu0
      %v8252 = vpop.f32.mrb[0].mxu0
      %v8253 = vadd.f32 %v7961, %v8252
      %v8254 = vpop.f32.mrb[0].mxu0
      %8255 = vmatprep.mubr.bf16.mxu0 %v7879
      %8256 = vmatmul.mubr.bf16.gmra.mrb[0].mxu0 %v7878
      %v8257 = vpop.f32.mrb[0].mxu0
      %v8258 = vadd.f32 %v7961, %v8257
      %v8259 = vpop.f32.mrb[0].mxu0
      %v8260 = vpop.f32.mrb[0].mxu0
      %v8261 = vadd.f32 %v7961, %v8260
      %v8262 = vpop.f32.mrb[0].mxu0
      %8263 = vmatprep.mubr.bf16.mxu0 %v7882
      %8264 = vmatmul.mubr.bf16.gmra.mrb[0].mxu0 %v7881
      %v8265 = vpop.f32.mrb[0].mxu0
      %v8266 = vadd.f32 %v7961, %v8265
      %v8267 = vpop.f32.mrb[0].mxu0
      %v8268 = vpop.f32.mrb[0].mxu0
      %v8269 = vadd.f32 %v7961, %v8268
      %v8270 = vpop.f32.mrb[0].mxu0
      %8271 = vmatprep.mubr.bf16.mxu0 %v7885
      %8272 = vmatmul.mubr.bf16.gmra.mrb[0].mxu0 %v7884
      %v8273 = vpop.f32.mrb[0].mxu0
      %v8274 = vadd.f32 %v7961, %v8273
      %v8275 = vpop.f32.mrb[0].mxu0
      %v8276 = vpop.f32.mrb[0].mxu0
      %v8277 = vadd.f32 %v7961, %v8276
      %v8278 = vpop.f32.mrb[0].mxu0
      %8279 = vmatprep.mubr.bf16.mxu0 %v7888
      %8280 = vmatmul.mubr.bf16.gmra.mrb[0].mxu0 %v7887
      %v8281 = vpop.f32.mrb[0].mxu0
      %v8282 = vadd.f32 %v7961, %v8281
      %v8283 = vpop.f32.mrb[0].mxu0
      %v8284 = vpop.f32.mrb[0].mxu0
      %v8285 = vadd.f32 %v7961, %v8284
      %v8286 = vpop.f32.mrb[0].mxu0
      %8287 = vmatprep.mubr.bf16.mxu0 %v7891
      %8288 = vmatmul.mubr.bf16.gmra.mrb[0].mxu0 %v7890
      %v8289 = vpop.f32.mrb[0].mxu0
      %v8290 = vadd.f32 %v7961, %v8289
      %v8291 = vpop.f32.mrb[0].mxu0
      %v8292 = vpop.f32.mrb[0].mxu0
      %v8293 = vadd.f32 %v7961, %v8292
      %v8294 = vpop.f32.mrb[0].mxu0
      %8295 = vmatprep.mubr.bf16.mxu0 %v7894
      %8296 = vmatmul.mubr.bf16.gmra.mrb[0].mxu0 %v7893
      %v8297 = vpop.f32.mrb[0].mxu0
      %v8298 = vadd.f32 %v7961, %v8297
      %v8299 = vpop.f32.mrb[0].mxu0
      %v8300 = vpop.f32.mrb[0].mxu0
      %v8301 = vadd.f32 %v7961, %v8300
      %v8302 = vpop.f32.mrb[0].mxu0
      %8303 = vmatprep.mubr.bf16.mxu0 %v7897
      %8304 = vmatmul.mubr.bf16.gmra.mrb[0].mxu0 %v7896
      %v8305 = vpop.f32.mrb[0].mxu0
      %v8306 = vadd.f32 %v7961, %v8305
      %v8307 = vpop.f32.mrb[0].mxu0
      %v8308 = vpop.f32.mrb[0].mxu0
      %v8309 = vadd.f32 %v7961, %v8308
      %v8310 = vpop.f32.mrb[0].mxu0
      %8311 = vmatprep.mubr.bf16.mxu0 %v7900
      %8312 = vmatmul.mubr.bf16.gmra.mrb[0].mxu0 %v7899
      %v8313 = vpop.f32.mrb[0].mxu0
      %v8314 = vadd.f32 %v7961, %v8313
      %v8315 = vpop.f32.mrb[0].mxu0
      %v8316 = vpop.f32.mrb[0].mxu0
      %v8317 = vadd.f32 %v7961, %v8316
      %v8318 = vpop.f32.mrb[0].mxu0
      %8319 = vmatprep.mubr.bf16.mxu0 %v7903
      %8320 = vmatmul.mubr.bf16.gmra.mrb[0].mxu0 %v7902
      %v8321 = vpop.f32.mrb[0].mxu0
      %v8322 = vadd.f32 %v7961, %v8321
      %v8323 = vpop.f32.mrb[0].mxu0
      %v8324 = vpop.f32.mrb[0].mxu0
      %v8325 = vadd.f32 %v7961, %v8324
      %v8326 = vpop.f32.mrb[0].mxu0
      %8327 = vmatprep.mubr.bf16.mxu0 %v7906
      %8328 = vmatmul.mubr.bf16.gmra.mrb[0].mxu0 %v7905
      %v8329 = vpop.f32.mrb[0].mxu0
      %v8330 = vadd.f32 %v7961, %v8329
      %v8331 = vpop.f32.mrb[0].mxu0
      %v8332 = vpop.f32.mrb[0].mxu0
      %v8333 = vadd.f32 %v7961, %v8332
      %v8334 = vpop.f32.mrb[0].mxu0
      %8335 = vmatprep.mubr.bf16.mxu0 %v7909
      %8336 = vmatmul.mubr.bf16.gmra.mrb[0].mxu0 %v7908
      %v8337 = vpop.f32.mrb[0].mxu0
      %v8338 = vadd.f32 %v7961, %v8337
      %v8339 = vpop.f32.mrb[0].mxu0
      %v8340 = vpop.f32.mrb[0].mxu0
      %v8341 = vadd.f32 %v7961, %v8340
      %v8342 = vpop.f32.mrb[0].mxu0
      %8343 = vmatprep.mubr.bf16.mxu0 %v7912
      %8344 = vmatmul.mubr.bf16.gmra.mrb[0].mxu0 %v7911
      %v8345 = vpop.f32.mrb[0].mxu0
      %v8346 = vadd.f32 %v7961, %v8345
      %v8347 = vpop.f32.mrb[0].mxu0
      %v8348 = vpop.f32.mrb[0].mxu0
      %v8349 = vadd.f32 %v7961, %v8348
      %v8350 = vpop.f32.mrb[0].mxu0
      %8351 = vmatprep.mubr.bf16.mxu0 %v7915
      %8352 = vmatmul.mubr.bf16.gmra.mrb[0].mxu0 %v7914
      %v8353 = vpop.f32.mrb[0].mxu0
      %v8354 = vadd.f32 %v7961, %v8353
      %v8355 = vpop.f32.mrb[0].mxu0
      %v8356 = vpop.f32.mrb[0].mxu0
      %v8357 = vadd.f32 %v7961, %v8356
      %v8358 = vpop.f32.mrb[0].mxu0
      %8359 = vmatprep.mubr.bf16.mxu0 %v7918
      %8360 = vmatmul.mubr.bf16.gmra.mrb[0].mxu0 %v7917
      %v8361 = vpop.f32.mrb[0].mxu0
      %v8362 = vadd.f32 %v7961, %v8361
      %v8363 = vpop.f32.mrb[0].mxu0
      %v8364 = vpop.f32.mrb[0].mxu0
      %v8365 = vadd.f32 %v7961, %v8364
      %v8366 = vpop.f32.mrb[0].mxu0
      %8367 = vdwg.mxu0
      %8368 = vmatprep.subr.bf16.mxu0 0
      %8369 = vmatpush1.bf16.msra.mxu0 %v8051
      %8370 = vmatprep.subr.bf16.mxu0 0
      %8371 = vmatpush1.bf16.msra.mxu0 %v8052
      %8372 = vmatprep.subr.bf16.mxu0 0
      %8373 = vmatpush1.bf16.msra.mxu0 0
      %8374 = vmatprep.subr.bf16.mxu0 0
      %8375 = vmatpush1.bf16.msra.mxu0 0
      %8376 = vmatprep.subr.bf16.mxu0 0
      %8377 = vmatpush1.bf16.msra.mxu0 0
      %8378 = vmatprep.subr.bf16.mxu0 0
      %8379 = vmatpush1.bf16.msra.mxu0 0
      %8380 = vmatprep.subr.bf16.mxu0 0
      %8381 = vmatpush1.bf16.msra.mxu0 0
      %8382 = vmatprep.subr.bf16.mxu0 0
      %8383 = vmatpush1.bf16.msra.mxu0 0
      %8384 = vmatprep.subr.bf16.mxu0 0
      %8385 = vmatpush1.bf16.msra.mxu0 0
      %8386 = vmatprep.subr.bf16.mxu0 0
      %8387 = vmatpush1.bf16.msra.mxu0 0
      %8388 = vmatprep.subr.bf16.mxu0 0
      %8389 = vmatpush1.bf16.msra.mxu0 0
      %8390 = vmatprep.subr.bf16.mxu0 0
      %8391 = vmatpush1.bf16.msra.mxu0 0
      %8392 = vmatprep.subr.bf16.mxu0 0
      %8393 = vmatpush1.bf16.msra.mxu0 0
      %8394 = vmatprep.subr.bf16.mxu0 0
      %8395 = vmatpush1.bf16.msra.mxu0 0
      %8396 = vmatprep.subr.bf16.mxu0 0
      %8397 = vmatpush1.bf16.msra.mxu0 0
      %8398 = vmatprep.subr.bf16.mxu0 0
      %8399 = vmatpush1.bf16.msra.mxu0 0
      %8400 = vmatprep.mubr.bf16.mxu0 0
      %8401 = vmatmul.mubr.bf16.gmra.mrb[0].mxu0 %v8072
      %v8402 = vpop.f32.mrb[0].mxu0
      %v8403 = vadd.f32 %v8178, %v8402
      %v8404 = vpop.f32.mrb[0].mxu0
      %v8405 = vpop.f32.mrb[0].mxu0
      %v8406 = vadd.f32 %v8181, %v8405
      %v8407 = vpop.f32.mrb[0].mxu0
      %8408 = vmatprep.mubr.bf16.mxu0 0
      %8409 = vmatmul.mubr.bf16.gmra.mrb[0].mxu0 %v8075
      %v8410 = vpop.f32.mrb[0].mxu0
      %v8411 = vadd.f32 %v8186, %v8410
      %v8412 = vpop.f32.mrb[0].mxu0
      %v8413 = vpop.f32.mrb[0].mxu0
      %v8414 = vadd.f32 %v8189, %v8413
      %v8415 = vpop.f32.mrb[0].mxu0
      %8416 = vmatprep.mubr.bf16.mxu0 0
      %8417 = vmatmul.mubr.bf16.gmra.mrb[0].mxu0 %v8078
      %v8418 = vpop.f32.mrb[0].mxu0
      %v8419 = vadd.f32 %v8194, %v8418
      %v8420 = vpop.f32.mrb[0].mxu0
      %v8421 = vpop.f32.mrb[0].mxu0
      %v8422 = vadd.f32 %v8197, %v8421
      %v8423 = vpop.f32.mrb[0].mxu0
      %8424 = vmatprep.mubr.bf16.mxu0 0
      %8425 = vmatmul.mubr.bf16.gmra.mrb[0].mxu0 %v8081
      %v8426 = vpop.f32.mrb[0].mxu0
      %v8427 = vadd.f32 %v8202, %v8426
      %v8428 = vpop.f32.mrb[0].mxu0
      %v8429 = vpop.f32.mrb[0].mxu0
      %v8430 = vadd.f32 %v8205, %v8429
      %v8431 = vpop.f32.mrb[0].mxu0
      %8432 = vmatprep.mubr.bf16.mxu0 0
      %8433 = vmatmul.mubr.bf16.gmra.mrb[0].mxu0 %v8084
      %v8434 = vpop.f32.mrb[0].mxu0
      %v8435 = vadd.f32 %v8210, %v8434
      %v8436 = vpop.f32.mrb[0].mxu0
      %v8437 = vpop.f32.mrb[0].mxu0
      %v8438 = vadd.f32 %v8213, %v8437
      %v8439 = vpop.f32.mrb[0].mxu0
      %8440 = vmatprep.mubr.bf16.mxu0 0
      %8441 = vmatmul.mubr.bf16.gmra.mrb[0].mxu0 %v8087
      %v8442 = vpop.f32.mrb[0].mxu0
      %v8443 = vadd.f32 %v8218, %v8442
      %v8444 = vpop.f32.mrb[0].mxu0
      %v8445 = vpop.f32.mrb[0].mxu0
      %v8446 = vadd.f32 %v8221, %v8445
      %v8447 = vpop.f32.mrb[0].mxu0
      %8448 = vmatprep.mubr.bf16.mxu0 0
      %8449 = vmatmul.mubr.bf16.gmra.mrb[0].mxu0 %v8090
      %v8450 = vpop.f32.mrb[0].mxu0
      %v8451 = vadd.f32 %v8226, %v8450
      %v8452 = vpop.f32.mrb[0].mxu0
      %v8453 = vpop.f32.mrb[0].mxu0
      %v8454 = vadd.f32 %v8229, %v8453
      %v8455 = vpop.f32.mrb[0].mxu0
      %8456 = vmatprep.mubr.bf16.mxu0 0
      %8457 = vmatmul.mubr.bf16.gmra.mrb[0].mxu0 %v8093
      %v8458 = vpop.f32.mrb[0].mxu0
      %v8459 = vadd.f32 %v8234, %v8458
      %v8460 = vpop.f32.mrb[0].mxu0
      %v8461 = vpop.f32.mrb[0].mxu0
      %v8462 = vadd.f32 %v8237, %v8461
      %v8463 = vpop.f32.mrb[0].mxu0
      %8464 = vmatprep.mubr.bf16.mxu0 0
      %8465 = vmatmul.mubr.bf16.gmra.mrb[0].mxu0 %v8096
      %v8466 = vpop.f32.mrb[0].mxu0
      %v8467 = vadd.f32 %v8242, %v8466
      %v8468 = vpop.f32.mrb[0].mxu0
      %v8469 = vpop.f32.mrb[0].mxu0
      %v8470 = vadd.f32 %v8245, %v8469
      %v8471 = vpop.f32.mrb[0].mxu0
      %8472 = vmatprep.mubr.bf16.mxu0 0
      %8473 = vmatmul.mubr.bf16.gmra.mrb[0].mxu0 %v8099
      %v8474 = vpop.f32.mrb[0].mxu0
      %v8475 = vadd.f32 %v8250, %v8474
      %v8476 = vpop.f32.mrb[0].mxu0
      %v8477 = vpop.f32.mrb[0].mxu0
      %v8478 = vadd.f32 %v8253, %v8477
      %v8479 = vpop.f32.mrb[0].mxu0
      %8480 = vmatprep.mubr.bf16.mxu0 0
      %8481 = vmatmul.mubr.bf16.gmra.mrb[0].mxu0 %v8102
      %v8482 = vpop.f32.mrb[0].mxu0
      %v8483 = vadd.f32 %v8258, %v8482
      %v8484 = vpop.f32.mrb[0].mxu0
      %v8485 = vpop.f32.mrb[0].mxu0
      %v8486 = vadd.f32 %v8261, %v8485
      %v8487 = vpop.f32.mrb[0].mxu0
      %8488 = vmatprep.mubr.bf16.mxu0 0
      %8489 = vmatmul.mubr.bf16.gmra.mrb[0].mxu0 %v8105
      %v8490 = vpop.f32.mrb[0].mxu0
      %v8491 = vadd.f32 %v8266, %v8490
      %v8492 = vpop.f32.mrb[0].mxu0
      %v8493 = vpop.f32.mrb[0].mxu0
      %v8494 = vadd.f32 %v8269, %v8493
      %v8495 = vpop.f32.mrb[0].mxu0
      %8496 = vmatprep.mubr.bf16.mxu0 0
      %8497 = vmatmul.mubr.bf16.gmra.mrb[0].mxu0 %v8108
      %v8498 = vpop.f32.mrb[0].mxu0
      %v8499 = vadd.f32 %v8274, %v8498
      %v8500 = vpop.f32.mrb[0].mxu0
      %v8501 = vpop.f32.mrb[0].mxu0
      %v8502 = vadd.f32 %v8277, %v8501
      %v8503 = vpop.f32.mrb[0].mxu0
      %8504 = vmatprep.mubr.bf16.mxu0 0
      %8505 = vmatmul.mubr.bf16.gmra.mrb[0].mxu0 %v8111
      %v8506 = vpop.f32.mrb[0].mxu0
      %v8507 = vadd.f32 %v8282, %v8506
      %v8508 = vpop.f32.mrb[0].mxu0
      %v8509 = vpop.f32.mrb[0].mxu0
      %v8510 = vadd.f32 %v8285, %v8509
      %v8511 = vpop.f32.mrb[0].mxu0
      %8512 = vmatprep.mubr.bf16.mxu0 0
      %8513 = vmatmul.mubr.bf16.gmra.mrb[0].mxu0 %v8114
      %v8514 = vpop.f32.mrb[0].mxu0
      %v8515 = vadd.f32 %v8290, %v8514
      %v8516 = vpop.f32.mrb[0].mxu0
      %v8517 = vpop.f32.mrb[0].mxu0
      %v8518 = vadd.f32 %v8293, %v8517
      %v8519 = vpop.f32.mrb[0].mxu0
      %8520 = vmatprep.mubr.bf16.mxu0 0
      %8521 = vmatmul.mubr.bf16.gmra.mrb[0].mxu0 %v8117
      %v8522 = vpop.f32.mrb[0].mxu0
      %v8523 = vadd.f32 %v8298, %v8522
      %v8524 = vpop.f32.mrb[0].mxu0
      %v8525 = vpop.f32.mrb[0].mxu0
      %v8526 = vadd.f32 %v8301, %v8525
      %v8527 = vpop.f32.mrb[0].mxu0
      %8528 = vmatprep.mubr.bf16.mxu0 0
      %8529 = vmatmul.mubr.bf16.gmra.mrb[0].mxu0 %v8120
      %v8530 = vpop.f32.mrb[0].mxu0
      %v8531 = vadd.f32 %v8306, %v8530
      %v8532 = vpop.f32.mrb[0].mxu0
      %v8533 = vpop.f32.mrb[0].mxu0
      %v8534 = vadd.f32 %v8309, %v8533
      %v8535 = vpop.f32.mrb[0].mxu0
      %8536 = vmatprep.mubr.bf16.mxu0 0
      %8537 = vmatmul.mubr.bf16.gmra.mrb[0].mxu0 %v8123
      %v8538 = vpop.f32.mrb[0].mxu0
      %v8539 = vadd.f32 %v8314, %v8538
      %v8540 = vpop.f32.mrb[0].mxu0
      %v8541 = vpop.f32.mrb[0].mxu0
      %v8542 = vadd.f32 %v8317, %v8541
      %v8543 = vpop.f32.mrb[0].mxu0
      %8544 = vmatprep.mubr.bf16.mxu0 0
      %8545 = vmatmul.mubr.bf16.gmra.mrb[0].mxu0 %v8126
      %v8546 = vpop.f32.mrb[0].mxu0
      %v8547 = vadd.f32 %v8322, %v8546
      %v8548 = vpop.f32.mrb[0].mxu0
      %v8549 = vpop.f32.mrb[0].mxu0
      %v8550 = vadd.f32 %v8325, %v8549
      %v8551 = vpop.f32.mrb[0].mxu0
      %8552 = vmatprep.mubr.bf16.mxu0 0
      %8553 = vmatmul.mubr.bf16.gmra.mrb[0].mxu0 %v8129
      %v8554 = vpop.f32.mrb[0].mxu0
      %v8555 = vadd.f32 %v8330, %v8554
      %v8556 = vpop.f32.mrb[0].mxu0
      %v8557 = vpop.f32.mrb[0].mxu0
      %v8558 = vadd.f32 %v8333, %v8557
      %v8559 = vpop.f32.mrb[0].mxu0
      %8560 = vmatprep.mubr.bf16.mxu0 0
      %8561 = vmatmul.mubr.bf16.gmra.mrb[0].mxu0 %v8132
      %v8562 = vpop.f32.mrb[0].mxu0
      %v8563 = vadd.f32 %v8338, %v8562
      %v8564 = vpop.f32.mrb[0].mxu0
      %v8565 = vpop.f32.mrb[0].mxu0
      %v8566 = vadd.f32 %v8341, %v8565
      %v8567 = vpop.f32.mrb[0].mxu0
      %8568 = vmatprep.mubr.bf16.mxu0 0
      %8569 = vmatmul.mubr.bf16.gmra.mrb[0].mxu0 %v8135
      %v8570 = vpop.f32.mrb[0].mxu0
      %v8571 = vadd.f32 %v8346, %v8570
      %v8572 = vpop.f32.mrb[0].mxu0
      %v8573 = vpop.f32.mrb[0].mxu0
      %v8574 = vadd.f32 %v8349, %v8573
      %v8575 = vpop.f32.mrb[0].mxu0
      %8576 = vmatprep.mubr.bf16.mxu0 0
      %8577 = vmatmul.mubr.bf16.gmra.mrb[0].mxu0 %v8138
      %v8578 = vpop.f32.mrb[0].mxu0
      %v8579 = vadd.f32 %v8354, %v8578
      %v8580 = vpop.f32.mrb[0].mxu0
      %v8581 = vpop.f32.mrb[0].mxu0
      %v8582 = vadd.f32 %v8357, %v8581
      %v8583 = vpop.f32.mrb[0].mxu0
      %8584 = vmatprep.mubr.bf16.mxu0 0
      %8585 = vmatmul.mubr.bf16.gmra.mrb[0].mxu0 %v8141
      %v8586 = vpop.f32.mrb[0].mxu0
      %v8587 = vadd.f32 %v8362, %v8586
      %v8588 = vpop.f32.mrb[0].mxu0
      %v8589 = vpop.f32.mrb[0].mxu0
      %v8590 = vadd.f32 %v8365, %v8589
      %v8591 = vpop.f32.mrb[0].mxu0
      %8592 = vdwg.mxu0
      %8593 = vxpose.xlu0.b32.start [1/16] %v8403, 128
      %8594 = vxpose.xlu0.b32.cont [2/16] %v8406, 128
      %8595 = vxpose.xlu0.b32.cont [3/16] %v8411, 128
      %8596 = vxpose.xlu0.b32.cont [4/16] %v8414, 128
      %8597 = vxpose.xlu0.b32.cont [5/16] %v8419, 128
      %8598 = vxpose.xlu0.b32.cont [6/16] %v8422, 128
      %8599 = vxpose.xlu0.b32.cont [7/16] %v8427, 128
      %8600 = vxpose.xlu0.b32.cont [8/16] %v8430, 128
      %8601 = vxpose.xlu0.b32.cont [9/16] %v8435, 128
      %8602 = vxpose.xlu0.b32.cont [10/16] %v8438, 128
      %8603 = vxpose.xlu0.b32.cont [11/16] %v8443, 128
      %8604 = vxpose.xlu0.b32.cont [12/16] %v8446, 128
      %8605 = vxpose.xlu0.b32.cont [13/16] %v8451, 128
      %8606 = vxpose.xlu0.b32.cont [14/16] %v8454, 128
      %8607 = vxpose.xlu0.b32.cont [15/16] %v8459, 128
      %8608 = vxpose.xlu0.b32.end [16/16] %v8462, 128
      %v8609 = vpop.trf.xlu0
      %v8610 = vpop.trf.xlu0
      %v8611 = vpop.trf.xlu0
      %v8612 = vpop.trf.xlu0
      %v8613 = vpop.trf.xlu0
      %v8614 = vpop.trf.xlu0
      %v8615 = vpop.trf.xlu0
      %v8616 = vpop.trf.xlu0
      %v8617 = vpop.trf.xlu0
      %v8618 = vpop.trf.xlu0
      %v8619 = vpop.trf.xlu0
      %v8620 = vpop.trf.xlu0
      %v8621 = vpop.trf.xlu0
      %v8622 = vpop.trf.xlu0
      %v8623 = vpop.trf.xlu0
      %v8624 = vpop.trf.xlu0
      %8625 = vxpose.xlu0.b32.start [1/16] %v8467, 128
      %8626 = vxpose.xlu0.b32.cont [2/16] %v8470, 128
      %8627 = vxpose.xlu0.b32.cont [3/16] %v8475, 128
      %8628 = vxpose.xlu0.b32.cont [4/16] %v8478, 128
      %8629 = vxpose.xlu0.b32.cont [5/16] %v8483, 128
      %8630 = vxpose.xlu0.b32.cont [6/16] %v8486, 128
      %8631 = vxpose.xlu0.b32.cont [7/16] %v8491, 128
      %8632 = vxpose.xlu0.b32.cont [8/16] %v8494, 128
      %8633 = vxpose.xlu0.b32.cont [9/16] %v8499, 128
      %8634 = vxpose.xlu0.b32.cont [10/16] %v8502, 128
      %8635 = vxpose.xlu0.b32.cont [11/16] %v8507, 128
      %8636 = vxpose.xlu0.b32.cont [12/16] %v8510, 128
      %8637 = vxpose.xlu0.b32.cont [13/16] %v8515, 128
      %8638 = vxpose.xlu0.b32.cont [14/16] %v8518, 128
      %8639 = vxpose.xlu0.b32.cont [15/16] %v8523, 128
      %8640 = vxpose.xlu0.b32.end [16/16] %v8526, 128
      %v8641 = vpop.trf.xlu0
      %v8642 = vpop.trf.xlu0
      %v8643 = vpop.trf.xlu0
      %v8644 = vpop.trf.xlu0
      %v8645 = vpop.trf.xlu0
      %v8646 = vpop.trf.xlu0
      %v8647 = vpop.trf.xlu0
      %v8648 = vpop.trf.xlu0
      %v8649 = vpop.trf.xlu0
      %v8650 = vpop.trf.xlu0
      %v8651 = vpop.trf.xlu0
      %v8652 = vpop.trf.xlu0
      %v8653 = vpop.trf.xlu0
      %v8654 = vpop.trf.xlu0
      %v8655 = vpop.trf.xlu0
      %v8656 = vpop.trf.xlu0
      %8657 = vxpose.xlu0.b32.start [1/16] %v8531, 128
      %8658 = vxpose.xlu0.b32.cont [2/16] %v8534, 128
      %8659 = vxpose.xlu0.b32.cont [3/16] %v8539, 128
      %8660 = vxpose.xlu0.b32.cont [4/16] %v8542, 128
      %8661 = vxpose.xlu0.b32.cont [5/16] %v8547, 128
      %8662 = vxpose.xlu0.b32.cont [6/16] %v8550, 128
      %8663 = vxpose.xlu0.b32.cont [7/16] %v8555, 128
      %8664 = vxpose.xlu0.b32.cont [8/16] %v8558, 128
      %8665 = vxpose.xlu0.b32.cont [9/16] %v8563, 128
      %8666 = vxpose.xlu0.b32.cont [10/16] %v8566, 128
      %8667 = vxpose.xlu0.b32.cont [11/16] %v8571, 128
      %8668 = vxpose.xlu0.b32.cont [12/16] %v8574, 128
      %8669 = vxpose.xlu0.b32.cont [13/16] %v8579, 128
      %8670 = vxpose.xlu0.b32.cont [14/16] %v8582, 128
      %8671 = vxpose.xlu0.b32.cont [15/16] %v8587, 128
      %8672 = vxpose.xlu0.b32.end [16/16] %v8590, 128
      %v8673 = vpop.trf.xlu0
      %v8674 = vpop.trf.xlu0
      %v8675 = vpop.trf.xlu0
      %v8676 = vpop.trf.xlu0
      %v8677 = vpop.trf.xlu0
      %v8678 = vpop.trf.xlu0
      %v8679 = vpop.trf.xlu0
      %v8680 = vpop.trf.xlu0
      %v8681 = vpop.trf.xlu0
      %v8682 = vpop.trf.xlu0
      %v8683 = vpop.trf.xlu0
      %v8684 = vpop.trf.xlu0
      %v8685 = vpop.trf.xlu0
      %v8686 = vpop.trf.xlu0
      %v8687 = vpop.trf.xlu0
      %v8688 = vpop.trf.xlu0
      %v8691 = vcombine.low %v8609, %v8641
      %8693 = vst [vmem:[%s359] sm:$0xff] %v8691
      %8694 = vst [vmem:[%s359 + $0x8] sm:$0xf] %v8673
      %p8695 = scmp.lt.s32.totalorder %s21, 1
      %s8696 = scalar_select %p8695, %s21, 1
      %s8697 = smul.addr %s8696, 3
      %s8698 = smul.addr %s8697, 4
      %s8699 = scalar_lea.vmem %s10, %s8698
      // Predicated region
      $region61: #{srcnn_forward.1} parent=59 // pred_check
        %p8700 = pneg %p254
      $region62: #{srcnn_forward.1} parent=59 // pred_check_branch
        %8702 = sbr.rel (%p8700) target = $region64
      $region63: #{srcnn_forward.1} parent=59 // pred_region
        _
      $region64: #{srcnn_forward.1} parent=59 // pred_fallthru
        _
    $region60: #{srcnn_forward.1} parent=5 // pred_fallthru
      _
    %p8703 = scmp.le.s32.totalorder 2, %s16
    // Predicated region
    $region65: #{srcnn_forward.1} parent=5 // pred_check
      %p8704 = pneg %p8703
    $region66: #{srcnn_forward.1} parent=5 // pred_check_branch
      %8706 = sbr.rel (%p8704) target = $region68
    $region67: #{srcnn_forward.1} parent=5 // pred_region
      %s8707 = ssub.s32 %s16, 2
      // Predicated region
      $region69: #{srcnn_forward.1} parent=67 // pred_check
        %p8708 = pneg %p260
      $region70: #{srcnn_forward.1} parent=67 // pred_check_branch
        %8710 = sbr.rel (%p8708) target = $region72
      $region71: #{srcnn_forward.1} parent=67 // pred_region
        %p8711 = scmp.lt.s32.totalorder %s22, 1
        %s8712 = scalar_select %p8711, %s22, 1
        %s8713 = smul.addr %s8712, 3
        %s8714 = smul.addr %s8713, 4
        %s8715 = scalar_lea.vmem %s10, %s8714
      $region72: #{srcnn_forward.1} parent=67 // pred_fallthru
        _
    $region68: #{srcnn_forward.1} parent=5 // pred_fallthru
      _
  $region6: #{srcnn_forward.1} parent=0 // loop_footer
    %s20 = sadd.s32 1, %s16
  $region7: #{srcnn_forward.1} parent=0 // loop_footer_branch
    %15 = sbr.rel target = $region3
  $region8: #{srcnn_forward.1} parent=0 // loop_exit
    _

</llo_original>
